<compile_context>
chip_gen: v7x
topology: tpu7x:2x2x1
jax: 0.10.0
libtpu: 0.0.40
codegen_flags: <defaults>
</compile_context>

<pallas_src>
import numpy as np

import jax
import jax.numpy as jnp
from jax import lax
from jax.experimental import pallas as pl
from jax.experimental.pallas import tpu as pltpu

# ----------------------------- flat-canvas geometry -----------------------------
# conv1: 28x28 image zero-padded onto a 32x32 canvas (flat rows = 1024).
#        Output pixel (h, w) lives at flat row q = 32*h + w of an 896-row window
#        that starts at canvas offset 33.  A 3x3 tap (dh, dw) is the constant
#        row shift (dh-1)*32 + (dw-1).
C1_W = 32                 # padded canvas width
C1_ROWS = 32 * 32         # 1024 flat canvas rows per image
C1_WIN = 28 * 32          # 896 rows of conv1 output window
C1_BASE = 33              # canvas row of output pixel (0, 0)
C1_POOL = 859             # pooled-corner window (max selected q = 64*13+26 = 858)

# conv2: 14x14 pooled map zero-padded onto a 17x16 canvas (flat rows = 272).
C2_W = 16
C2_ROWS = 17 * 16         # 272
C2_WIN = 14 * 16          # 224, output row q = 16*h + w
C2_BASE = 17
C2_POOL = 205             # max selected q = 32*6+12 = 204


def _build_s1():
    # Pooled conv1 cell (i, j) sits at row 64*i + 2*j of the pooled window and is
    # scattered to row (i+1)*16 + (j+1) of conv2's zero-padded 17x16 canvas
    # (all other canvas rows stay exactly zero = conv2's padding).
    s = np.zeros((C2_ROWS, C1_POOL), np.float32)
    for i in range(14):
        for j in range(14):
            s[(i + 1) * 16 + (j + 1), 64 * i + 2 * j] = 1.0
    return jnp.asarray(s)


def _build_s2():
    # Pooled conv2 cell (i, j) sits at row 32*i + 2*j and maps to flat spatial
    # index i*7 + j of the (49, 64) kernel output.
    s = np.zeros((49, C2_POOL), np.float32)
    for i in range(7):
        for j in range(7):
            s[i * 7 + j, 32 * i + 2 * j] = 1.0
    return jnp.asarray(s)


# --------------------------------- kernels ---------------------------------

def _conv1_pool1_kernel(x_ref, w_ref, b_ref, s_ref, o_ref):
    # x_ref: (1024, 1) f32  -- one zero-padded 32x32 image, row-major flat.
    # w_ref: (9, 32)  f32   -- 3x3 taps (k = dh*3+dw) x out-channels.
    # b_ref: (1, 32)  f32
    # s_ref: (272, 859) f32 -- pool-gather + re-pad selection matrix.
    # o_ref: (272, 32) f32  -- conv2's zero-padded flat canvas for this image.
    x = x_ref[...]
    w = w_ref[...]
    acc = jnp.zeros((C1_WIN, 32), jnp.float32)
    # cin == 1: the 3x3 conv is 9 shifted VPU multiply-adds (no MXU, no im2col).
    for k in range(9):
        dh, dw = divmod(k, 3)
        shift = (dh - 1) * C1_W + (dw - 1)
        slab = x[C1_BASE + shift: C1_BASE + shift + C1_WIN, :]     # (896, 1)
        acc = acc + slab * w[k:k + 1, :]                            # -> (896, 32)
    y = jnp.maximum(acc + b_ref[...], 0.0)                          # bias + ReLU
    # Fused 2x2 max-pool: max over the 4 corners (row offsets 0, 1, W, W+1).
    p = jnp.maximum(
        jnp.maximum(y[0:C1_POOL, :], y[1:C1_POOL + 1, :]),
        jnp.maximum(y[C1_W:C1_W + C1_POOL, :], y[C1_W + 1:C1_W + 1 + C1_POOL, :]))
    # Gather the 14x14 pooled cells and scatter them (with zero padding) onto
    # conv2's canvas with a single constant 0/1 selection matmul.
    o_ref[...] = jnp.dot(s_ref[...], p, preferred_element_type=jnp.float32)


def _conv2_pool2_kernel(x_ref, w_ref, b_ref, s_ref, o_ref):
    # x_ref: (272, 32) f32   -- zero-padded 17x16 canvas x 32 input channels.
    # w_ref: (9, 32, 64) bf16 -- per-tap weight matrices.
    # b_ref: (1, 64) f32
    # s_ref: (49, 205) f32
    # o_ref: (49, 64) f32    -- pooled output; rows = spatial i*7+j, cols = cout.
    xb = x_ref[...].astype(jnp.bfloat16)                 # bf16 MXU operands
    acc = jnp.zeros((C2_WIN, 64), jnp.float32)           # f32 accumulation
    for k in range(9):
        dh, dw = divmod(k, 3)
        shift = (dh - 1) * C2_W + (dw - 1)
        slab = xb[C2_BASE + shift: C2_BASE + shift + C2_WIN, :]    # (224, 32)
        acc = acc + jnp.dot(slab, w_ref[k], preferred_element_type=jnp.float32)
    y = jnp.maximum(acc + b_ref[...], 0.0)
    p = jnp.maximum(
        jnp.maximum(y[0:C2_POOL, :], y[1:C2_POOL + 1, :]),
        jnp.maximum(y[C2_W:C2_W + C2_POOL, :], y[C2_W + 1:C2_W + 1 + C2_POOL, :]))
    o_ref[...] = jnp.dot(s_ref[...], p, preferred_element_type=jnp.float32)


def _fc_kernel(x_ref, w1_ref, b1_ref, w2_ref, b2_ref, o_ref):
    # Fused Linear(3136,128) + ReLU + Linear(128,10); bf16 MXU, f32 accumulate.
    xb = x_ref[...].astype(jnp.bfloat16)                               # (TM, 3136)
    h = jnp.dot(xb, w1_ref[...], preferred_element_type=jnp.float32)   # (TM, 128)
    h = jnp.maximum(h + b1_ref[...], 0.0).astype(jnp.bfloat16)
    y = jnp.dot(h, w2_ref[...], preferred_element_type=jnp.float32)    # (TM, 10)
    o_ref[...] = y + b2_ref[...]


# --------------------------------- wrappers ---------------------------------

def _round_up(x, m):
    return (x + m - 1) // m * m


def digit_recognizer_forward(x_nchw, kp):
    n = x_nchw.shape[0]
    parallel = pltpu.CompilerParams(dimension_semantics=("parallel",))

    # Stage 0: place each 28x28 image on a zero 32x32 canvas, flatten rows.
    x = x_nchw.reshape(n, 28, 28)
    x = jnp.pad(x, ((0, 0), (1, 3), (1, 3)))                  # (n, 32, 32)
    x = x.reshape(n, C1_ROWS, 1)

    # Stage 1: conv1 + ReLU + maxpool (one image per grid step, megacore-parallel).
    c1 = pl.pallas_call(
        _conv1_pool1_kernel,
        out_shape=jax.ShapeDtypeStruct((n, C2_ROWS, 32), jnp.float32),
        grid=(n,),
        in_specs=[
            pl.BlockSpec((None, C1_ROWS, 1), lambda i: (i, 0, 0)),
            pl.BlockSpec((9, 32), lambda i: (0, 0)),
            pl.BlockSpec((1, 32), lambda i: (0, 0)),
            pl.BlockSpec((C2_ROWS, C1_POOL), lambda i: (0, 0)),
        ],
        out_specs=pl.BlockSpec((None, C2_ROWS, 32), lambda i: (i, 0, 0)),
        compiler_params=parallel,
    )(x, kp["w1_taps"], kp["b1"], kp["s1"])

    # Stage 2: conv2 + ReLU + maxpool (c1 IS conv2's padded canvas: no glue ops).
    c2 = pl.pallas_call(
        _conv2_pool2_kernel,
        out_shape=jax.ShapeDtypeStruct((n, 49, 64), jnp.float32),
        grid=(n,),
        in_specs=[
            pl.BlockSpec((None, C2_ROWS, 32), lambda i: (i, 0, 0)),
            pl.BlockSpec((9, 32, 64), lambda i: (0, 0, 0)),
            pl.BlockSpec((1, 64), lambda i: (0, 0)),
            pl.BlockSpec((49, C2_POOL), lambda i: (0, 0)),
        ],
        out_specs=pl.BlockSpec((None, 49, 64), lambda i: (i, 0, 0)),
        compiler_params=parallel,
    )(c1, kp["w2_taps"], kp["b2"], kp["s2"])

    # Stage 3: fused FC1 + ReLU + FC2, tiled over (padded) batch rows.
    feats = c2.reshape(n, 49 * 64)       # contiguous; FC1 weight rows were
                                         # pre-permuted to this ordering.
    tm = 128 if n >= 128 else _round_up(n, 8)
    npad = _round_up(n, tm)
    if npad != n:
        feats = jnp.pad(feats, ((0, npad - n), (0, 0)))
    logits = pl.pallas_call(
        _fc_kernel,
        out_shape=jax.ShapeDtypeStruct((npad, 10), jnp.float32),
        grid=(npad // tm,),
        in_specs=[
            pl.BlockSpec((tm, 49 * 64), lambda i: (i, 0)),
            pl.BlockSpec((49 * 64, 128), lambda i: (0, 0)),
            pl.BlockSpec((1, 128), lambda i: (0, 0)),
            pl.BlockSpec((128, 10), lambda i: (0, 0)),
            pl.BlockSpec((1, 10), lambda i: (0, 0)),
        ],
        out_specs=pl.BlockSpec((tm, 10), lambda i: (i, 0)),
        compiler_params=parallel,
    )(feats, kp["w_fc1"], kp["b_fc1"], kp["w_fc2"], kp["b_fc2"])
    return logits[:n]


def prepare_params(params):
    """One-time conversion of PyTorch-layout f32 params to kernel operands."""
    # conv1 weight (32,1,3,3) -> (9 taps, 32 cout); stays f32 (VPU path).
    w1_taps = jnp.transpose(params["w1"].reshape(32, 9), (1, 0)).astype(jnp.float32)
    # conv2 weight (64,32,3,3) -> (9 taps, 32 cin, 64 cout), bf16 for the MXU.
    w2_taps = jnp.transpose(params["w2"], (2, 3, 1, 0)).reshape(9, 32, 64)
    w2_taps = w2_taps.astype(jnp.bfloat16)
    # FC1: transpose once and permute rows from PyTorch's (c, h, w) flatten order
    # to this kernel's (h*7+w, c) order -> no runtime transpose between conv2 and FC.
    w_fc1 = jnp.transpose(params["w_fc1"].reshape(128, 64, 49), (2, 1, 0))
    w_fc1 = w_fc1.reshape(49 * 64, 128).astype(jnp.bfloat16)
    w_fc2 = jnp.transpose(params["w_fc2"], (1, 0)).astype(jnp.bfloat16)   # (128, 10)
    return {
        "w1_taps": w1_taps,
        "b1": params["b1"].reshape(1, 32).astype(jnp.float32),
        "w2_taps": w2_taps,
        "b2": params["b2"].reshape(1, 64).astype(jnp.float32),
        "w_fc1": w_fc1,
        "b_fc1": params["b_fc1"].reshape(1, 128).astype(jnp.float32),
        "w_fc2": w_fc2,
        "b_fc2": params["b_fc2"].reshape(1, 10).astype(jnp.float32),
        "s1": _build_s1(),
        "s2": _build_s2(),
    }


# ------------------------- reference & initialization -------------------------

def init_params(key):
    """Deterministic init mimicking PyTorch default uniform(-1/sqrt(fan_in), ...)."""
    ks = jax.random.split(key, 8)

    def u(k, shape, fan_in):
        bound = 1.0 / jnp.sqrt(jnp.float32(fan_in))
        return jax.random.uniform(k, shape, jnp.float32, -bound, bound)

    return {
        "w1": u(ks[0], (32, 1, 3, 3), 1 * 3 * 3),
        "b1": u(ks[1], (32,), 1 * 3 * 3),
        "w2": u(ks[2], (64, 32, 3, 3), 32 * 3 * 3),
        "b2": u(ks[3], (64,), 32 * 3 * 3),
        "w_fc1": u(ks[4], (128, 64 * 7 * 7), 64 * 7 * 7),
        "b_fc1": u(ks[5], (128,), 64 * 7 * 7),
        "w_fc2": u(ks[6], (10, 128), 128),
        "b_fc2": u(ks[7], (10,), 128),
    }


def reference_forward(x_nchw, params):
    """Pure-JAX f32 reference matching the PyTorch module exactly."""
    dn = ("NCHW", "OIHW", "NCHW")
    n = x_nchw.shape[0]
    y = lax.conv_general_dilated(x_nchw, params["w1"], (1, 1), ((1, 1), (1, 1)),
                                 dimension_numbers=dn)
    y = jnp.maximum(y + params["b1"][None, :, None, None], 0.0)
    y = y.reshape(n, 32, 14, 2, 14, 2).max(axis=(3, 5))
    y = lax.conv_general_dilated(y, params["w2"], (1, 1), ((1, 1), (1, 1)),
                                 dimension_numbers=dn)
    y = jnp.maximum(y + params["b2"][None, :, None, None], 0.0)
    y = y.reshape(n, 64, 7, 2, 7, 2).max(axis=(3, 5))
    y = y.reshape(n, 64 * 7 * 7)
    y = jnp.maximum(y @ params["w_fc1"].T + params["b_fc1"], 0.0)
    return y @ params["w_fc2"].T + params["b_fc2"]


if __name__ == "__main__":
    key = jax.random.PRNGKey(0)
    k_x, k_p = jax.random.split(key)
    # 28x28 single-channel input is implied by Linear(64 * 7 * 7, 128).
    x = jax.random.normal(k_x, (2, 1, 28, 28), dtype=jnp.float32)
    params = init_params(k_p)
    kparams = prepare_params(params)

    fwd = jax.jit(digit_recognizer_forward)
    logits = fwd(x, kparams)
    jax.block_until_ready(logits)
    assert logits.shape == (2, 10) and logits.dtype == jnp.float32

    # Self-check against the f32 reference (bf16 MXU operands -> small tolerance).
    ref = reference_forward(x, params)
    np.testing.assert_allclose(np.asarray(logits), np.asarray(ref),
                               rtol=2e-2, atol=2e-2)
    print("KERNEL_OK")
</pallas_src>

<mosaic_0001>
module attributes {stable_mosaic.version = 11 : i64} {
  func.func @_conv1_pool1_kernel(%arg0: i32, %arg1: memref<1x1024x1xf32, #tpu.memory_space<vmem>>, %arg2: memref<9x32xf32, #tpu.memory_space<vmem>>, %arg3: memref<1x32xf32, #tpu.memory_space<vmem>>, %arg4: memref<272x859xf32, #tpu.memory_space<vmem>>, %arg5: memref<1x272x32xf32, #tpu.memory_space<vmem>>) attributes {dimension_semantics = [#tpu.dimension_semantics<parallel>], iteration_bounds = array<i64: 2>, scalar_prefetch = 0 : i64, scratch_operands = 0 : i64, tpu.core_type = #tpu.core_type<tc>, window_params = [{transform_indices = @transform_0, window_bounds = array<i64: 1, 1024, 1>}, {pipeline_mode = #tpu.pipeline_mode<synchronous>, transform_indices = @transform_1, window_bounds = array<i64: 9, 32>}, {pipeline_mode = #tpu.pipeline_mode<synchronous>, transform_indices = @transform_2, window_bounds = array<i64: 1, 32>}, {pipeline_mode = #tpu.pipeline_mode<synchronous>, transform_indices = @transform_3, window_bounds = array<i64: 272, 859>}, {transform_indices = @transform_4, window_bounds = array<i64: 1, 272, 32>}]} {
    %c0 = arith.constant 0 : index
    %c0_0 = arith.constant 0 : index
    %c0_1 = arith.constant 0 : index
    %0 = vector.load %arg1[%c0, %c0_0, %c0_1] : memref<1x1024x1xf32, #tpu.memory_space<vmem>>, vector<1x1024x1xf32>
    %1 = vector.shape_cast %0 : vector<1x1024x1xf32> to vector<1024x1xf32>
    %c0_2 = arith.constant 0 : index
    %c0_3 = arith.constant 0 : index
    %2 = vector.load %arg2[%c0_2, %c0_3] : memref<9x32xf32, #tpu.memory_space<vmem>>, vector<9x32xf32>
    %cst = arith.constant 0.000000e+00 : f32
    %3 = vector.broadcast %cst : f32 to vector<896x32xf32>
    %4 = vector.extract_strided_slice %1 {offsets = [0, 0], sizes = [896, 1], strides = [1, 1]} : vector<1024x1xf32> to vector<896x1xf32>
    %5 = vector.extract_strided_slice %2 {offsets = [0, 0], sizes = [1, 32], strides = [1, 1]} : vector<9x32xf32> to vector<1x32xf32>
    %6 = vector.broadcast %4 : vector<896x1xf32> to vector<896x32xf32>
    %7 = vector.broadcast %5 : vector<1x32xf32> to vector<896x32xf32>
    %8 = arith.mulf %6, %7 : vector<896x32xf32>
    %9 = arith.addf %3, %8 : vector<896x32xf32>
    %10 = vector.extract_strided_slice %1 {offsets = [1, 0], sizes = [896, 1], strides = [1, 1]} : vector<1024x1xf32> to vector<896x1xf32>
    %11 = vector.extract_strided_slice %2 {offsets = [1, 0], sizes = [1, 32], strides = [1, 1]} : vector<9x32xf32> to vector<1x32xf32>
    %12 = vector.broadcast %10 : vector<896x1xf32> to vector<896x32xf32>
    %13 = vector.broadcast %11 : vector<1x32xf32> to vector<896x32xf32>
    %14 = arith.mulf %12, %13 : vector<896x32xf32>
    %15 = arith.addf %9, %14 : vector<896x32xf32>
    %16 = vector.extract_strided_slice %1 {offsets = [2, 0], sizes = [896, 1], strides = [1, 1]} : vector<1024x1xf32> to vector<896x1xf32>
    %17 = vector.extract_strided_slice %2 {offsets = [2, 0], sizes = [1, 32], strides = [1, 1]} : vector<9x32xf32> to vector<1x32xf32>
    %18 = vector.broadcast %16 : vector<896x1xf32> to vector<896x32xf32>
    %19 = vector.broadcast %17 : vector<1x32xf32> to vector<896x32xf32>
    %20 = arith.mulf %18, %19 : vector<896x32xf32>
    %21 = arith.addf %15, %20 : vector<896x32xf32>
    %22 = vector.extract_strided_slice %1 {offsets = [32, 0], sizes = [896, 1], strides = [1, 1]} : vector<1024x1xf32> to vector<896x1xf32>
    %23 = vector.extract_strided_slice %2 {offsets = [3, 0], sizes = [1, 32], strides = [1, 1]} : vector<9x32xf32> to vector<1x32xf32>
    %24 = vector.broadcast %22 : vector<896x1xf32> to vector<896x32xf32>
    %25 = vector.broadcast %23 : vector<1x32xf32> to vector<896x32xf32>
    %26 = arith.mulf %24, %25 : vector<896x32xf32>
    %27 = arith.addf %21, %26 : vector<896x32xf32>
    %28 = vector.extract_strided_slice %1 {offsets = [33, 0], sizes = [896, 1], strides = [1, 1]} : vector<1024x1xf32> to vector<896x1xf32>
    %29 = vector.extract_strided_slice %2 {offsets = [4, 0], sizes = [1, 32], strides = [1, 1]} : vector<9x32xf32> to vector<1x32xf32>
    %30 = vector.broadcast %28 : vector<896x1xf32> to vector<896x32xf32>
    %31 = vector.broadcast %29 : vector<1x32xf32> to vector<896x32xf32>
    %32 = arith.mulf %30, %31 : vector<896x32xf32>
    %33 = arith.addf %27, %32 : vector<896x32xf32>
    %34 = vector.extract_strided_slice %1 {offsets = [34, 0], sizes = [896, 1], strides = [1, 1]} : vector<1024x1xf32> to vector<896x1xf32>
    %35 = vector.extract_strided_slice %2 {offsets = [5, 0], sizes = [1, 32], strides = [1, 1]} : vector<9x32xf32> to vector<1x32xf32>
    %36 = vector.broadcast %34 : vector<896x1xf32> to vector<896x32xf32>
    %37 = vector.broadcast %35 : vector<1x32xf32> to vector<896x32xf32>
    %38 = arith.mulf %36, %37 : vector<896x32xf32>
    %39 = arith.addf %33, %38 : vector<896x32xf32>
    %40 = vector.extract_strided_slice %1 {offsets = [64, 0], sizes = [896, 1], strides = [1, 1]} : vector<1024x1xf32> to vector<896x1xf32>
    %41 = vector.extract_strided_slice %2 {offsets = [6, 0], sizes = [1, 32], strides = [1, 1]} : vector<9x32xf32> to vector<1x32xf32>
    %42 = vector.broadcast %40 : vector<896x1xf32> to vector<896x32xf32>
    %43 = vector.broadcast %41 : vector<1x32xf32> to vector<896x32xf32>
    %44 = arith.mulf %42, %43 : vector<896x32xf32>
    %45 = arith.addf %39, %44 : vector<896x32xf32>
    %46 = vector.extract_strided_slice %1 {offsets = [65, 0], sizes = [896, 1], strides = [1, 1]} : vector<1024x1xf32> to vector<896x1xf32>
    %47 = vector.extract_strided_slice %2 {offsets = [7, 0], sizes = [1, 32], strides = [1, 1]} : vector<9x32xf32> to vector<1x32xf32>
    %48 = vector.broadcast %46 : vector<896x1xf32> to vector<896x32xf32>
    %49 = vector.broadcast %47 : vector<1x32xf32> to vector<896x32xf32>
    %50 = arith.mulf %48, %49 : vector<896x32xf32>
    %51 = arith.addf %45, %50 : vector<896x32xf32>
    %52 = vector.extract_strided_slice %1 {offsets = [66, 0], sizes = [896, 1], strides = [1, 1]} : vector<1024x1xf32> to vector<896x1xf32>
    %53 = vector.extract_strided_slice %2 {offsets = [8, 0], sizes = [1, 32], strides = [1, 1]} : vector<9x32xf32> to vector<1x32xf32>
    %54 = vector.broadcast %52 : vector<896x1xf32> to vector<896x32xf32>
    %55 = vector.broadcast %53 : vector<1x32xf32> to vector<896x32xf32>
    %56 = arith.mulf %54, %55 : vector<896x32xf32>
    %57 = arith.addf %51, %56 : vector<896x32xf32>
    %c0_4 = arith.constant 0 : index
    %c0_5 = arith.constant 0 : index
    %58 = vector.load %arg3[%c0_4, %c0_5] : memref<1x32xf32, #tpu.memory_space<vmem>>, vector<1x32xf32>
    %59 = vector.broadcast %58 : vector<1x32xf32> to vector<896x32xf32>
    %60 = arith.addf %57, %59 : vector<896x32xf32>
    %cst_6 = arith.constant 0.000000e+00 : f32
    %61 = vector.broadcast %cst_6 : f32 to vector<896x32xf32>
    %62 = arith.maximumf %60, %61 : vector<896x32xf32>
    %63 = vector.extract_strided_slice %62 {offsets = [0, 0], sizes = [859, 32], strides = [1, 1]} : vector<896x32xf32> to vector<859x32xf32>
    %64 = vector.extract_strided_slice %62 {offsets = [1, 0], sizes = [859, 32], strides = [1, 1]} : vector<896x32xf32> to vector<859x32xf32>
    %65 = arith.maximumf %63, %64 : vector<859x32xf32>
    %66 = vector.extract_strided_slice %62 {offsets = [32, 0], sizes = [859, 32], strides = [1, 1]} : vector<896x32xf32> to vector<859x32xf32>
    %67 = vector.extract_strided_slice %62 {offsets = [33, 0], sizes = [859, 32], strides = [1, 1]} : vector<896x32xf32> to vector<859x32xf32>
    %68 = arith.maximumf %66, %67 : vector<859x32xf32>
    %69 = arith.maximumf %65, %68 : vector<859x32xf32>
    %c0_7 = arith.constant 0 : index
    %c0_8 = arith.constant 0 : index
    %70 = vector.load %arg4[%c0_7, %c0_8] : memref<272x859xf32, #tpu.memory_space<vmem>>, vector<272x859xf32>
    %cst_9 = arith.constant dense<0.000000e+00> : vector<272x32xf32>
    %71 = tpu.matmul %70, %69, %cst_9 {dimension_numbers = #tpu.dot_dimension_numbers<[1], [0], [0], [1], [0, 0, 1, 1], [], []>} : vector<272x859xf32>, vector<859x32xf32>, vector<272x32xf32> -> vector<272x32xf32>
    %c0_10 = arith.constant 0 : index
    %c0_11 = arith.constant 0 : index
    %c0_12 = arith.constant 0 : index
    %72 = vector.load %arg5[%c0_10, %c0_11, %c0_12] : memref<1x272x32xf32, #tpu.memory_space<vmem>>, vector<1x272x32xf32>
    %73 = vector.shape_cast %72 : vector<1x272x32xf32> to vector<272x32xf32>
    %74 = vector.shape_cast %71 : vector<272x32xf32> to vector<1x272x32xf32>
    tpu.vector_store %arg5[%c0_10, %c0_11, %c0_12], %74 {strides = array<i32>} : memref<1x272x32xf32, #tpu.memory_space<vmem>>, vector<1x272x32xf32>,
    return
  }
  func.func @transform_0(%arg0: i32) -> (i32, i32, i32) {
    %c0_i32 = arith.constant 0 : i32
    %c0_i32_0 = arith.constant 0 : i32
    %c0_i32_1 = arith.constant 0 : i32
    return %arg0, %c0_i32, %c0_i32_0 : i32, i32, i32
  }
  func.func @transform_1(%arg0: i32) -> (i32, i32) {
    %c0_i32 = arith.constant 0 : i32
    %c0_i32_0 = arith.constant 0 : i32
    %c0_i32_1 = arith.constant 0 : i32
    return %c0_i32, %c0_i32_0 : i32, i32
  }
  func.func @transform_2(%arg0: i32) -> (i32, i32) {
    %c0_i32 = arith.constant 0 : i32
    %c0_i32_0 = arith.constant 0 : i32
    %c0_i32_1 = arith.constant 0 : i32
    return %c0_i32, %c0_i32_0 : i32, i32
  }
  func.func @transform_3(%arg0: i32) -> (i32, i32) {
    %c0_i32 = arith.constant 0 : i32
    %c0_i32_0 = arith.constant 0 : i32
    %c0_i32_1 = arith.constant 0 : i32
    return %c0_i32, %c0_i32_0 : i32, i32
  }
  func.func @transform_4(%arg0: i32) -> (i32, i32, i32) {
    %c0_i32 = arith.constant 0 : i32
    %c0_i32_0 = arith.constant 0 : i32
    %c0_i32_1 = arith.constant 0 : i32
    return %arg0, %c0_i32, %c0_i32_0 : i32, i32, i32
  }
}

module attributes {stable_mosaic.version = 11 : i64} {
  func.func @_conv2_pool2_kernel(%arg0: i32, %arg1: memref<1x272x32xf32, #tpu.memory_space<vmem>>, %arg2: memref<9x32x64xbf16, #tpu.memory_space<vmem>>, %arg3: memref<1x64xf32, #tpu.memory_space<vmem>>, %arg4: memref<49x205xf32, #tpu.memory_space<vmem>>, %arg5: memref<1x49x64xf32, #tpu.memory_space<vmem>>) attributes {dimension_semantics = [#tpu.dimension_semantics<parallel>], iteration_bounds = array<i64: 2>, scalar_prefetch = 0 : i64, scratch_operands = 0 : i64, tpu.core_type = #tpu.core_type<tc>, window_params = [{transform_indices = @transform_0, window_bounds = array<i64: 1, 272, 32>}, {pipeline_mode = #tpu.pipeline_mode<synchronous>, transform_indices = @transform_1, window_bounds = array<i64: 9, 32, 64>}, {pipeline_mode = #tpu.pipeline_mode<synchronous>, transform_indices = @transform_2, window_bounds = array<i64: 1, 64>}, {pipeline_mode = #tpu.pipeline_mode<synchronous>, transform_indices = @transform_3, window_bounds = array<i64: 49, 205>}, {transform_indices = @transform_4, window_bounds = array<i64: 1, 49, 64>}]} {
    %c0 = arith.constant 0 : index
    %c0_0 = arith.constant 0 : index
    %c0_1 = arith.constant 0 : index
    %0 = vector.load %arg1[%c0, %c0_0, %c0_1] : memref<1x272x32xf32, #tpu.memory_space<vmem>>, vector<1x272x32xf32>
    %1 = vector.shape_cast %0 : vector<1x272x32xf32> to vector<272x32xf32>
    %2 = arith.truncf %1 : vector<272x32xf32> to vector<272x32xbf16>
    %cst = arith.constant 0.000000e+00 : f32
    %3 = vector.broadcast %cst : f32 to vector<224x64xf32>
    %4 = vector.extract_strided_slice %2 {offsets = [0, 0], sizes = [224, 32], strides = [1, 1]} : vector<272x32xbf16> to vector<224x32xbf16>
    %c0_2 = arith.constant 0 : index
    %c0_3 = arith.constant 0 : index
    %c0_4 = arith.constant 0 : index
    %5 = vector.load %arg2[%c0_2, %c0_3, %c0_4] : memref<9x32x64xbf16, #tpu.memory_space<vmem>>, vector<1x32x64xbf16>
    %6 = vector.shape_cast %5 : vector<1x32x64xbf16> to vector<32x64xbf16>
    %cst_5 = arith.constant dense<0.000000e+00> : vector<224x64xf32>
    %7 = tpu.matmul %4, %6, %cst_5 {dimension_numbers = #tpu.dot_dimension_numbers<[1], [0], [0], [1], [0, 0, 1, 1], [], []>} : vector<224x32xbf16>, vector<32x64xbf16>, vector<224x64xf32> -> vector<224x64xf32>
    %8 = arith.addf %3, %7 : vector<224x64xf32>
    %9 = vector.extract_strided_slice %2 {offsets = [1, 0], sizes = [224, 32], strides = [1, 1]} : vector<272x32xbf16> to vector<224x32xbf16>
    %c1 = arith.constant 1 : index
    %c0_6 = arith.constant 0 : index
    %c0_7 = arith.constant 0 : index
    %10 = vector.load %arg2[%c1, %c0_6, %c0_7] : memref<9x32x64xbf16, #tpu.memory_space<vmem>>, vector<1x32x64xbf16>
    %11 = vector.shape_cast %10 : vector<1x32x64xbf16> to vector<32x64xbf16>
    %cst_8 = arith.constant dense<0.000000e+00> : vector<224x64xf32>
    %12 = tpu.matmul %9, %11, %cst_8 {dimension_numbers = #tpu.dot_dimension_numbers<[1], [0], [0], [1], [0, 0, 1, 1], [], []>} : vector<224x32xbf16>, vector<32x64xbf16>, vector<224x64xf32> -> vector<224x64xf32>
    %13 = arith.addf %8, %12 : vector<224x64xf32>
    %14 = vector.extract_strided_slice %2 {offsets = [2, 0], sizes = [224, 32], strides = [1, 1]} : vector<272x32xbf16> to vector<224x32xbf16>
    %c2 = arith.constant 2 : index
    %c0_9 = arith.constant 0 : index
    %c0_10 = arith.constant 0 : index
    %15 = vector.load %arg2[%c2, %c0_9, %c0_10] : memref<9x32x64xbf16, #tpu.memory_space<vmem>>, vector<1x32x64xbf16>
    %16 = vector.shape_cast %15 : vector<1x32x64xbf16> to vector<32x64xbf16>
    %cst_11 = arith.constant dense<0.000000e+00> : vector<224x64xf32>
    %17 = tpu.matmul %14, %16, %cst_11 {dimension_numbers = #tpu.dot_dimension_numbers<[1], [0], [0], [1], [0, 0, 1, 1], [], []>} : vector<224x32xbf16>, vector<32x64xbf16>, vector<224x64xf32> -> vector<224x64xf32>
    %18 = arith.addf %13, %17 : vector<224x64xf32>
    %19 = vector.extract_strided_slice %2 {offsets = [16, 0], sizes = [224, 32], strides = [1, 1]} : vector<272x32xbf16> to vector<224x32xbf16>
    %c3 = arith.constant 3 : index
    %c0_12 = arith.constant 0 : index
    %c0_13 = arith.constant 0 : index
    %20 = vector.load %arg2[%c3, %c0_12, %c0_13] : memref<9x32x64xbf16, #tpu.memory_space<vmem>>, vector<1x32x64xbf16>
    %21 = vector.shape_cast %20 : vector<1x32x64xbf16> to vector<32x64xbf16>
    %cst_14 = arith.constant dense<0.000000e+00> : vector<224x64xf32>
    %22 = tpu.matmul %19, %21, %cst_14 {dimension_numbers = #tpu.dot_dimension_numbers<[1], [0], [0], [1], [0, 0, 1, 1], [], []>} : vector<224x32xbf16>, vector<32x64xbf16>, vector<224x64xf32> -> vector<224x64xf32>
    %23 = arith.addf %18, %22 : vector<224x64xf32>
    %24 = vector.extract_strided_slice %2 {offsets = [17, 0], sizes = [224, 32], strides = [1, 1]} : vector<272x32xbf16> to vector<224x32xbf16>
    %c4 = arith.constant 4 : index
    %c0_15 = arith.constant 0 : index
    %c0_16 = arith.constant 0 : index
    %25 = vector.load %arg2[%c4, %c0_15, %c0_16] : memref<9x32x64xbf16, #tpu.memory_space<vmem>>, vector<1x32x64xbf16>
    %26 = vector.shape_cast %25 : vector<1x32x64xbf16> to vector<32x64xbf16>
    %cst_17 = arith.constant dense<0.000000e+00> : vector<224x64xf32>
    %27 = tpu.matmul %24, %26, %cst_17 {dimension_numbers = #tpu.dot_dimension_numbers<[1], [0], [0], [1], [0, 0, 1, 1], [], []>} : vector<224x32xbf16>, vector<32x64xbf16>, vector<224x64xf32> -> vector<224x64xf32>
    %28 = arith.addf %23, %27 : vector<224x64xf32>
    %29 = vector.extract_strided_slice %2 {offsets = [18, 0], sizes = [224, 32], strides = [1, 1]} : vector<272x32xbf16> to vector<224x32xbf16>
    %c5 = arith.constant 5 : index
    %c0_18 = arith.constant 0 : index
    %c0_19 = arith.constant 0 : index
    %30 = vector.load %arg2[%c5, %c0_18, %c0_19] : memref<9x32x64xbf16, #tpu.memory_space<vmem>>, vector<1x32x64xbf16>
    %31 = vector.shape_cast %30 : vector<1x32x64xbf16> to vector<32x64xbf16>
    %cst_20 = arith.constant dense<0.000000e+00> : vector<224x64xf32>
    %32 = tpu.matmul %29, %31, %cst_20 {dimension_numbers = #tpu.dot_dimension_numbers<[1], [0], [0], [1], [0, 0, 1, 1], [], []>} : vector<224x32xbf16>, vector<32x64xbf16>, vector<224x64xf32> -> vector<224x64xf32>
    %33 = arith.addf %28, %32 : vector<224x64xf32>
    %34 = vector.extract_strided_slice %2 {offsets = [32, 0], sizes = [224, 32], strides = [1, 1]} : vector<272x32xbf16> to vector<224x32xbf16>
    %c6 = arith.constant 6 : index
    %c0_21 = arith.constant 0 : index
    %c0_22 = arith.constant 0 : index
    %35 = vector.load %arg2[%c6, %c0_21, %c0_22] : memref<9x32x64xbf16, #tpu.memory_space<vmem>>, vector<1x32x64xbf16>
    %36 = vector.shape_cast %35 : vector<1x32x64xbf16> to vector<32x64xbf16>
    %cst_23 = arith.constant dense<0.000000e+00> : vector<224x64xf32>
    %37 = tpu.matmul %34, %36, %cst_23 {dimension_numbers = #tpu.dot_dimension_numbers<[1], [0], [0], [1], [0, 0, 1, 1], [], []>} : vector<224x32xbf16>, vector<32x64xbf16>, vector<224x64xf32> -> vector<224x64xf32>
    %38 = arith.addf %33, %37 : vector<224x64xf32>
    %39 = vector.extract_strided_slice %2 {offsets = [33, 0], sizes = [224, 32], strides = [1, 1]} : vector<272x32xbf16> to vector<224x32xbf16>
    %c7 = arith.constant 7 : index
    %c0_24 = arith.constant 0 : index
    %c0_25 = arith.constant 0 : index
    %40 = vector.load %arg2[%c7, %c0_24, %c0_25] : memref<9x32x64xbf16, #tpu.memory_space<vmem>>, vector<1x32x64xbf16>
    %41 = vector.shape_cast %40 : vector<1x32x64xbf16> to vector<32x64xbf16>
    %cst_26 = arith.constant dense<0.000000e+00> : vector<224x64xf32>
    %42 = tpu.matmul %39, %41, %cst_26 {dimension_numbers = #tpu.dot_dimension_numbers<[1], [0], [0], [1], [0, 0, 1, 1], [], []>} : vector<224x32xbf16>, vector<32x64xbf16>, vector<224x64xf32> -> vector<224x64xf32>
    %43 = arith.addf %38, %42 : vector<224x64xf32>
    %44 = vector.extract_strided_slice %2 {offsets = [34, 0], sizes = [224, 32], strides = [1, 1]} : vector<272x32xbf16> to vector<224x32xbf16>
    %c8 = arith.constant 8 : index
    %c0_27 = arith.constant 0 : index
    %c0_28 = arith.constant 0 : index
    %45 = vector.load %arg2[%c8, %c0_27, %c0_28] : memref<9x32x64xbf16, #tpu.memory_space<vmem>>, vector<1x32x64xbf16>
    %46 = vector.shape_cast %45 : vector<1x32x64xbf16> to vector<32x64xbf16>
    %cst_29 = arith.constant dense<0.000000e+00> : vector<224x64xf32>
    %47 = tpu.matmul %44, %46, %cst_29 {dimension_numbers = #tpu.dot_dimension_numbers<[1], [0], [0], [1], [0, 0, 1, 1], [], []>} : vector<224x32xbf16>, vector<32x64xbf16>, vector<224x64xf32> -> vector<224x64xf32>
    %48 = arith.addf %43, %47 : vector<224x64xf32>
    %c0_30 = arith.constant 0 : index
    %c0_31 = arith.constant 0 : index
    %49 = vector.load %arg3[%c0_30, %c0_31] : memref<1x64xf32, #tpu.memory_space<vmem>>, vector<1x64xf32>
    %50 = vector.broadcast %49 : vector<1x64xf32> to vector<224x64xf32>
    %51 = arith.addf %48, %50 : vector<224x64xf32>
    %cst_32 = arith.constant 0.000000e+00 : f32
    %52 = vector.broadcast %cst_32 : f32 to vector<224x64xf32>
    %53 = arith.maximumf %51, %52 : vector<224x64xf32>
    %54 = vector.extract_strided_slice %53 {offsets = [0, 0], sizes = [205, 64], strides = [1, 1]} : vector<224x64xf32> to vector<205x64xf32>
    %55 = vector.extract_strided_slice %53 {offsets = [1, 0], sizes = [205, 64], strides = [1, 1]} : vector<224x64xf32> to vector<205x64xf32>
    %56 = arith.maximumf %54, %55 : vector<205x64xf32>
    %57 = vector.extract_strided_slice %53 {offsets = [16, 0], sizes = [205, 64], strides = [1, 1]} : vector<224x64xf32> to vector<205x64xf32>
    %58 = vector.extract_strided_slice %53 {offsets = [17, 0], sizes = [205, 64], strides = [1, 1]} : vector<224x64xf32> to vector<205x64xf32>
    %59 = arith.maximumf %57, %58 : vector<205x64xf32>
    %60 = arith.maximumf %56, %59 : vector<205x64xf32>
    %c0_33 = arith.constant 0 : index
    %c0_34 = arith.constant 0 : index
    %61 = vector.load %arg4[%c0_33, %c0_34] : memref<49x205xf32, #tpu.memory_space<vmem>>, vector<49x205xf32>
    %cst_35 = arith.constant dense<0.000000e+00> : vector<49x64xf32>
    %62 = tpu.matmul %61, %60, %cst_35 {dimension_numbers = #tpu.dot_dimension_numbers<[1], [0], [0], [1], [0, 0, 1, 1], [], []>} : vector<49x205xf32>, vector<205x64xf32>, vector<49x64xf32> -> vector<49x64xf32>
    %c0_36 = arith.constant 0 : index
    %c0_37 = arith.constant 0 : index
    %c0_38 = arith.constant 0 : index
    %63 = vector.load %arg5[%c0_36, %c0_37, %c0_38] : memref<1x49x64xf32, #tpu.memory_space<vmem>>, vector<1x49x64xf32>
    %64 = vector.shape_cast %63 : vector<1x49x64xf32> to vector<49x64xf32>
    %65 = vector.shape_cast %62 : vector<49x64xf32> to vector<1x49x64xf32>
    tpu.vector_store %arg5[%c0_36, %c0_37, %c0_38], %65 {strides = array<i32>} : memref<1x49x64xf32, #tpu.memory_space<vmem>>, vector<1x49x64xf32>,
    return
  }
  func.func @transform_0(%arg0: i32) -> (i32, i32, i32) {
    %c0_i32 = arith.constant 0 : i32
    %c0_i32_0 = arith.constant 0 : i32
    %c0_i32_1 = arith.constant 0 : i32
    return %arg0, %c0_i32, %c0_i32_0 : i32, i32, i32
  }
  func.func @transform_1(%arg0: i32) -> (i32, i32, i32) {
    %c0_i32 = arith.constant 0 : i32
    %c0_i32_0 = arith.constant 0 : i32
    %c0_i32_1 = arith.constant 0 : i32
    %c0_i32_2 = arith.constant 0 : i32
    return %c0_i32, %c0_i32_0, %c0_i32_1 : i32, i32, i32
  }
  func.func @transform_2(%arg0: i32) -> (i32, i32) {
    %c0_i32 = arith.constant 0 : i32
    %c0_i32_0 = arith.constant 0 : i32
    %c0_i32_1 = arith.constant 0 : i32
    return %c0_i32, %c0_i32_0 : i32, i32
  }
  func.func @transform_3(%arg0: i32) -> (i32, i32) {
    %c0_i32 = arith.constant 0 : i32
    %c0_i32_0 = arith.constant 0 : i32
    %c0_i32_1 = arith.constant 0 : i32
    return %c0_i32, %c0_i32_0 : i32, i32
  }
  func.func @transform_4(%arg0: i32) -> (i32, i32, i32) {
    %c0_i32 = arith.constant 0 : i32
    %c0_i32_0 = arith.constant 0 : i32
    %c0_i32_1 = arith.constant 0 : i32
    return %arg0, %c0_i32, %c0_i32_0 : i32, i32, i32
  }
}

module attributes {stable_mosaic.version = 11 : i64} {
  func.func @_fc_kernel(%arg0: i32, %arg1: memref<8x3136xf32, #tpu.memory_space<vmem>>, %arg2: memref<3136x128xbf16, #tpu.memory_space<vmem>>, %arg3: memref<1x128xf32, #tpu.memory_space<vmem>>, %arg4: memref<128x10xbf16, #tpu.memory_space<vmem>>, %arg5: memref<1x10xf32, #tpu.memory_space<vmem>>, %arg6: memref<8x10xf32, #tpu.memory_space<vmem>>) attributes {dimension_semantics = [#tpu.dimension_semantics<parallel>], iteration_bounds = array<i64: 1>, scalar_prefetch = 0 : i64, scratch_operands = 0 : i64, tpu.core_type = #tpu.core_type<tc>, window_params = [{transform_indices = @transform_0, window_bounds = array<i64: 8, 3136>}, {pipeline_mode = #tpu.pipeline_mode<synchronous>, transform_indices = @transform_1, window_bounds = array<i64: 3136, 128>}, {pipeline_mode = #tpu.pipeline_mode<synchronous>, transform_indices = @transform_2, window_bounds = array<i64: 1, 128>}, {pipeline_mode = #tpu.pipeline_mode<synchronous>, transform_indices = @transform_3, window_bounds = array<i64: 128, 10>}, {pipeline_mode = #tpu.pipeline_mode<synchronous>, transform_indices = @transform_4, window_bounds = array<i64: 1, 10>}, {transform_indices = @transform_5, window_bounds = array<i64: 8, 10>}]} {
    %c0 = arith.constant 0 : index
    %c0_0 = arith.constant 0 : index
    %0 = vector.load %arg1[%c0, %c0_0] : memref<8x3136xf32, #tpu.memory_space<vmem>>, vector<8x3136xf32>
    %1 = arith.truncf %0 : vector<8x3136xf32> to vector<8x3136xbf16>
    %c0_1 = arith.constant 0 : index
    %c0_2 = arith.constant 0 : index
    %2 = vector.load %arg2[%c0_1, %c0_2] : memref<3136x128xbf16, #tpu.memory_space<vmem>>, vector<3136x128xbf16>
    %cst = arith.constant dense<0.000000e+00> : vector<8x128xf32>
    %3 = tpu.matmul %1, %2, %cst {dimension_numbers = #tpu.dot_dimension_numbers<[1], [0], [0], [1], [0, 0, 1, 1], [], []>} : vector<8x3136xbf16>, vector<3136x128xbf16>, vector<8x128xf32> -> vector<8x128xf32>
    %c0_3 = arith.constant 0 : index
    %c0_4 = arith.constant 0 : index
    %4 = vector.load %arg3[%c0_3, %c0_4] : memref<1x128xf32, #tpu.memory_space<vmem>>, vector<1x128xf32>
    %5 = vector.broadcast %4 : vector<1x128xf32> to vector<8x128xf32>
    %6 = arith.addf %3, %5 : vector<8x128xf32>
    %cst_5 = arith.constant 0.000000e+00 : f32
    %7 = vector.broadcast %cst_5 : f32 to vector<8x128xf32>
    %8 = arith.maximumf %6, %7 : vector<8x128xf32>
    %9 = arith.truncf %8 : vector<8x128xf32> to vector<8x128xbf16>
    %c0_6 = arith.constant 0 : index
    %c0_7 = arith.constant 0 : index
    %10 = vector.load %arg4[%c0_6, %c0_7] : memref<128x10xbf16, #tpu.memory_space<vmem>>, vector<128x10xbf16>
    %cst_8 = arith.constant dense<0.000000e+00> : vector<8x10xf32>
    %11 = tpu.matmul %9, %10, %cst_8 {dimension_numbers = #tpu.dot_dimension_numbers<[1], [0], [0], [1], [0, 0, 1, 1], [], []>} : vector<8x128xbf16>, vector<128x10xbf16>, vector<8x10xf32> -> vector<8x10xf32>
    %c0_9 = arith.constant 0 : index
    %c0_10 = arith.constant 0 : index
    %12 = vector.load %arg5[%c0_9, %c0_10] : memref<1x10xf32, #tpu.memory_space<vmem>>, vector<1x10xf32>
    %13 = vector.broadcast %12 : vector<1x10xf32> to vector<8x10xf32>
    %14 = arith.addf %11, %13 : vector<8x10xf32>
    %c0_11 = arith.constant 0 : index
    %c0_12 = arith.constant 0 : index
    %15 = vector.load %arg6[%c0_11, %c0_12] : memref<8x10xf32, #tpu.memory_space<vmem>>, vector<8x10xf32>
    tpu.vector_store %arg6[%c0_11, %c0_12], %14 {strides = array<i32>} : memref<8x10xf32, #tpu.memory_space<vmem>>, vector<8x10xf32>,
    return
  }
  func.func @transform_0(%arg0: i32) -> (i32, i32) {
    %c0_i32 = arith.constant 0 : i32
    %c0_i32_0 = arith.constant 0 : i32
    return %arg0, %c0_i32 : i32, i32
  }
  func.func @transform_1(%arg0: i32) -> (i32, i32) {
    %c0_i32 = arith.constant 0 : i32
    %c0_i32_0 = arith.constant 0 : i32
    %c0_i32_1 = arith.constant 0 : i32
    return %c0_i32, %c0_i32_0 : i32, i32
  }
  func.func @transform_2(%arg0: i32) -> (i32, i32) {
    %c0_i32 = arith.constant 0 : i32
    %c0_i32_0 = arith.constant 0 : i32
    %c0_i32_1 = arith.constant 0 : i32
    return %c0_i32, %c0_i32_0 : i32, i32
  }
  func.func @transform_3(%arg0: i32) -> (i32, i32) {
    %c0_i32 = arith.constant 0 : i32
    %c0_i32_0 = arith.constant 0 : i32
    %c0_i32_1 = arith.constant 0 : i32
    return %c0_i32, %c0_i32_0 : i32, i32
  }
  func.func @transform_4(%arg0: i32) -> (i32, i32) {
    %c0_i32 = arith.constant 0 : i32
    %c0_i32_0 = arith.constant 0 : i32
    %c0_i32_1 = arith.constant 0 : i32
    return %c0_i32, %c0_i32_0 : i32, i32
  }
  func.func @transform_5(%arg0: i32) -> (i32, i32) {
    %c0_i32 = arith.constant 0 : i32
    %c0_i32_0 = arith.constant 0 : i32
    return %arg0, %c0_i32 : i32, i32
  }
}

</mosaic_0001>

<llo_original>
// kernel: digit_recognizer_forward.4
$region0: #{digit_recognizer_forward.4}
  #allocation0 [shape = 'u32[]', space=smem, size = 0x4, offset = 0x4, fixed_abs, tag = 'smem constant byte address 0x4 - core index']
  #allocation1 [shape = 'u32[144,128]{1,0:T(1,128)}', space=vmem, size = 0x12000, scoped, tag = 'internal scratch']
  %s0 = inlined_call_operand.vmem [shape: f32[2,272,32], index: 0, kind: input, shape index: {}]
  %s1 = inlined_call_operand.vmem [shape: bf16[9,32,64], index: 1, kind: input, shape index: {}]
  %s2 = inlined_call_operand.vmem [shape: f32[1,64], index: 2, kind: input, shape index: {}]
  %s3 = inlined_call_operand.vmem [shape: f32[49,205], index: 3, kind: input, shape index: {}]
  %s4 = inlined_call_operand.vmem [shape: f32[2,49,64], index: 4, kind: output, shape index: {}]
  %s5 = sld [smem:[#allocation0]]
  $region49: #{digit_recognizer_forward.4} parent=0
    _
  %s7 = ssub.s32 1, %s5
  %s8 = scalar_select 0, %s7, %s5
  loop: start=0, step=1, limit=4
  $region2: #{digit_recognizer_forward.4} parent=0 // loop_pre_header
    _
  $region3: #{digit_recognizer_forward.4} parent=0 // loop_header
    %s10 = sphi 0, %s14
    %p11 = scmp.ge.s32.totalorder %s10, 4
    %s20 = sphi 0, %s22
    %s23 = sphi 0, %s20
    %s24 = sphi 0, %s23
    %s40 = sphi 0, %s24
    %s44 = sphi 0, %s44
    %s46 = sphi 0, %s44
    %s47 = sphi 0, %s46
    %s61 = sphi 0, %s47
    %s65 = sphi 0, %s65
    %s67 = sphi 0, %s65
    %s68 = sphi 0, %s67
    %s82 = sphi 0, %s68
    %s86 = sphi 0, %s86
    %s88 = sphi 0, %s86
    %s89 = sphi 0, %s88
    %s103 = sphi 0, %s89
    %s109 = sphi 0, %s111
    %s112 = sphi 0, %s109
    %s113 = sphi 0, %s112
    %s129 = sphi 0, %s113
  $region4: #{digit_recognizer_forward.4} parent=0 // loop_header_branch
    %13 = sbr.rel (%p11) target = $region8
  $region5: #{digit_recognizer_forward.4} parent=0 // loop_body
    %s15 = ssub.s32 %s10, 1
    %s16 = ssub.s32 %s10, 2
    %s17 = sadd.s32 %s10, 1
    %s18 = ssub.s32 %s10, %s17
    %p19 = scmp.eq.s32.totalorder %s18, 0
    %s21 = sadd.s32 %s20, 1
    %s22 = scalar_select %p19, %s20, %s21
    %p25 = pneg %p19
    %p26 = scmp.eq.s32.totalorder %s10, 1
    %p27 = por %p25, %p26
    %p28 = scmp.ne.s32.totalorder %s20, %s23
    %p29 = scmp.eq.s32.totalorder %s10, 0
    %p30 = por %p28, %p29
    %p31 = scmp.ne.s32.totalorder %s20, %s23
    %p32 = scmp.eq.s32.totalorder %s15, 1
    %p33 = por %p31, %p32
    %p34 = scmp.ne.s32.totalorder %s23, %s24
    %p35 = scmp.eq.s32.totalorder %s15, 0
    %p36 = por %p34, %p35
    %p37 = scmp.ne.s32.totalorder %s23, %s24
    %p38 = scmp.eq.s32.totalorder %s16, 1
    %p39 = por %p37, %p38
    %p41 = scmp.ne.s32.totalorder %s24, %s40
    %p42 = scmp.eq.s32.totalorder %s16, 0
    %p43 = por %p41, %p42
    %s45 = sadd.s32 %s44, 1
    %p48 = scmp.eq.s32.totalorder %s10, 1
    %p49 = scmp.ne.s32.totalorder %s44, %s46
    %p50 = scmp.eq.s32.totalorder %s10, 0
    %p51 = por %p49, %p50
    %p52 = scmp.ne.s32.totalorder %s44, %s46
    %p53 = scmp.eq.s32.totalorder %s15, 1
    %p54 = por %p52, %p53
    %p55 = scmp.ne.s32.totalorder %s46, %s47
    %p56 = scmp.eq.s32.totalorder %s15, 0
    %p57 = por %p55, %p56
    %p58 = scmp.ne.s32.totalorder %s46, %s47
    %p59 = scmp.eq.s32.totalorder %s16, 1
    %p60 = por %p58, %p59
    %p62 = scmp.ne.s32.totalorder %s47, %s61
    %p63 = scmp.eq.s32.totalorder %s16, 0
    %p64 = por %p62, %p63
    %s66 = sadd.s32 %s65, 1
    %p69 = scmp.eq.s32.totalorder %s10, 1
    %p70 = scmp.ne.s32.totalorder %s65, %s67
    %p71 = scmp.eq.s32.totalorder %s10, 0
    %p72 = por %p70, %p71
    %p73 = scmp.ne.s32.totalorder %s65, %s67
    %p74 = scmp.eq.s32.totalorder %s15, 1
    %p75 = por %p73, %p74
    %p76 = scmp.ne.s32.totalorder %s67, %s68
    %p77 = scmp.eq.s32.totalorder %s15, 0
    %p78 = por %p76, %p77
    %p79 = scmp.ne.s32.totalorder %s67, %s68
    %p80 = scmp.eq.s32.totalorder %s16, 1
    %p81 = por %p79, %p80
    %p83 = scmp.ne.s32.totalorder %s68, %s82
    %p84 = scmp.eq.s32.totalorder %s16, 0
    %p85 = por %p83, %p84
    %s87 = sadd.s32 %s86, 1
    %p90 = scmp.eq.s32.totalorder %s10, 1
    %p91 = scmp.ne.s32.totalorder %s86, %s88
    %p92 = scmp.eq.s32.totalorder %s10, 0
    %p93 = por %p91, %p92
    %p94 = scmp.ne.s32.totalorder %s86, %s88
    %p95 = scmp.eq.s32.totalorder %s15, 1
    %p96 = por %p94, %p95
    %p97 = scmp.ne.s32.totalorder %s88, %s89
    %p98 = scmp.eq.s32.totalorder %s15, 0
    %p99 = por %p97, %p98
    %p100 = scmp.ne.s32.totalorder %s88, %s89
    %p101 = scmp.eq.s32.totalorder %s16, 1
    %p102 = por %p100, %p101
    %p104 = scmp.ne.s32.totalorder %s89, %s103
    %p105 = scmp.eq.s32.totalorder %s16, 0
    %p106 = por %p104, %p105
    %s107 = ssub.s32 %s10, %s17
    %p108 = scmp.eq.s32.totalorder %s107, 0
    %s110 = sadd.s32 %s109, 1
    %s111 = scalar_select %p108, %s109, %s110
    %p114 = pneg %p108
    %p115 = scmp.eq.s32.totalorder %s10, 1
    %p116 = por %p114, %p115
    %p117 = scmp.ne.s32.totalorder %s109, %s112
    %p118 = scmp.eq.s32.totalorder %s10, 0
    %p119 = por %p117, %p118
    %p120 = scmp.ne.s32.totalorder %s109, %s112
    %p121 = scmp.eq.s32.totalorder %s15, 1
    %p122 = por %p120, %p121
    %p123 = scmp.ne.s32.totalorder %s112, %s113
    %p124 = scmp.eq.s32.totalorder %s15, 0
    %p125 = por %p123, %p124
    %p126 = scmp.ne.s32.totalorder %s112, %s113
    %p127 = scmp.eq.s32.totalorder %s16, 1
    %p128 = por %p126, %p127
    %p130 = scmp.ne.s32.totalorder %s113, %s129
    %p131 = scmp.eq.s32.totalorder %s16, 0
    %p132 = por %p130, %p131
    %p133 = scmp.le.s32.totalorder 1, %s10
    %p134 = scmp.lt.s32.totalorder %s10, 3
    %p135 = pnand %p133, %p134
    %p136 = pneg %p135
    // Predicated region
    $region9: #{digit_recognizer_forward.4} parent=5 // pred_check
      _
    $region10: #{digit_recognizer_forward.4} parent=5 // pred_check_branch
      %138 = sbr.rel (%p135) target = $region12
    $region11: #{digit_recognizer_forward.4} parent=5 // pred_region
      %s139 = ssub.s32 %s10, 1
      // Predicated region
      $region13: #{digit_recognizer_forward.4} parent=11 // pred_check
        %p140 = pneg %p57
      $region14: #{digit_recognizer_forward.4} parent=11 // pred_check_branch
        %142 = sbr.rel (%p140) target = $region16
      $region15: #{digit_recognizer_forward.4} parent=11 // pred_region
        _
      $region16: #{digit_recognizer_forward.4} parent=11 // pred_fallthru
        _
      // Predicated region
      $region17: #{digit_recognizer_forward.4} parent=11 // pred_check
        %p143 = pneg %p78
      $region18: #{digit_recognizer_forward.4} parent=11 // pred_check_branch
        %145 = sbr.rel (%p143) target = $region20
      $region19: #{digit_recognizer_forward.4} parent=11 // pred_region
        _
      $region20: #{digit_recognizer_forward.4} parent=11 // pred_fallthru
        _
      // Predicated region
      $region21: #{digit_recognizer_forward.4} parent=11 // pred_check
        %p146 = pneg %p99
      $region22: #{digit_recognizer_forward.4} parent=11 // pred_check_branch
        %148 = sbr.rel (%p146) target = $region24
      $region23: #{digit_recognizer_forward.4} parent=11 // pred_region
        _
      $region24: #{digit_recognizer_forward.4} parent=11 // pred_fallthru
        _
    $region12: #{digit_recognizer_forward.4} parent=5 // pred_fallthru
      _
    %p149 = scmp.lt.s32.totalorder %s10, 2
    // Predicated region
    $region25: #{digit_recognizer_forward.4} parent=5 // pred_check
      %p150 = pneg %p149
    $region26: #{digit_recognizer_forward.4} parent=5 // pred_check_branch
      %152 = sbr.rel (%p150) target = $region28
    $region27: #{digit_recognizer_forward.4} parent=5 // pred_region
      // Predicated region
      $region29: #{digit_recognizer_forward.4} parent=27 // pred_check
        %p153 = pneg %p30
      $region30: #{digit_recognizer_forward.4} parent=27 // pred_check_branch
        %155 = sbr.rel (%p153) target = $region32
      $region31: #{digit_recognizer_forward.4} parent=27 // pred_region
        %p156 = scmp.lt.s32.totalorder %s10, 1
        %s157 = scalar_select %p156, %s10, 1
        %s158 = smul.addr %s157, 34
        %s159 = smul.addr %s158, 8
        %s160 = scalar_lea.vmem %s0, %s159
      $region32: #{digit_recognizer_forward.4} parent=27 // pred_fallthru
        _
    $region28: #{digit_recognizer_forward.4} parent=5 // pred_fallthru
      _
    %p161 = scmp.le.s32.totalorder 1, %s10
    %p162 = scmp.lt.s32.totalorder %s10, 3
    %p163 = pnand %p161, %p162
    %p164 = pneg %p163
    // Predicated region
    $region33: #{digit_recognizer_forward.4} parent=5 // pred_check
      _
    $region34: #{digit_recognizer_forward.4} parent=5 // pred_check_branch
      %166 = sbr.rel (%p163) target = $region36
    $region35: #{digit_recognizer_forward.4} parent=5 // pred_region
      %s167 = ssub.s32 %s10, 1
      %p168 = scmp.lt.s32.totalorder %s15, 1
      %s169 = scalar_select %p168, %s15, 1
      %s170 = smul.addr %s169, 34
      %s171 = smul.addr %s170, 8
      %s172 = scalar_lea.vmem %s0, %s171
      %p173 = pneg %p36
      %p174 = pneg %p33
      %p175 = pneg %p57
      %p176 = pneg %p54
      %p177 = pneg %p78
      %p178 = pneg %p75
      %p179 = pneg %p99
      %p180 = pneg %p96
      %p181 = pneg %p125
      %p182 = pneg %p122
      %p183 = scmp.lt.s32.totalorder %s15, 1
      %s184 = scalar_select %p183, %s15, 1
      %s185 = smul.addr %s184, 7
      %s186 = smul.addr %s185, 8
      %s187 = scalar_lea.vmem %s4, %s186
      %p188 = scmp.lt.s32.totalorder %s15, 1
      %s189 = scalar_select %p188, %s15, 1
      %s190 = smul.addr %s189, 34
      %s191 = smul.addr %s190, 8
      %s192 = scalar_lea.vmem %s0, %s191
      %p193 = scmp.lt.s32.totalorder %s15, 1
      %s194 = scalar_select %p193, %s15, 1
      %s195 = smul.addr %s194, 7
      %s196 = smul.addr %s195, 8
      %s197 = scalar_lea.vmem %s4, %s196
      %v199 = vld [vmem:[%s192] sm:$0xff]
      %v200 = vld [vmem:[%s192 + $0x8] sm:$0xff]
      %v201 = vld [vmem:[%s192 + $0x10] sm:$0xff]
      %v202 = vld [vmem:[%s192 + $0x18] sm:$0xff]
      %v203 = vld [vmem:[%s192 + $0x20] sm:$0xff]
      %v204 = vld [vmem:[%s192 + $0x28] sm:$0xff]
      %v205 = vld [vmem:[%s192 + $0x30] sm:$0xff]
      %v206 = vld [vmem:[%s192 + $0x38] sm:$0xff]
      %v207 = vld [vmem:[%s192 + $0x40] sm:$0xff]
      %v208 = vld [vmem:[%s192 + $0x48] sm:$0xff]
      %v209 = vld [vmem:[%s192 + $0x50] sm:$0xff]
      %v210 = vld [vmem:[%s192 + $0x58] sm:$0xff]
      %v211 = vld [vmem:[%s192 + $0x60] sm:$0xff]
      %v212 = vld [vmem:[%s192 + $0x68] sm:$0xff]
      %v213 = vld [vmem:[%s192 + $0x70] sm:$0xff]
      %v214 = vld [vmem:[%s192 + $0x78] sm:$0xff]
      %v215 = vld [vmem:[%s192 + $0x80] sm:$0xff]
      %v216 = vld [vmem:[%s192 + $0x88] sm:$0xff]
      %v217 = vld [vmem:[%s192 + $0x90] sm:$0xff]
      %v218 = vld [vmem:[%s192 + $0x98] sm:$0xff]
      %v219 = vld [vmem:[%s192 + $0xa0] sm:$0xff]
      %v220 = vld [vmem:[%s192 + $0xa8] sm:$0xff]
      %v221 = vld [vmem:[%s192 + $0xb0] sm:$0xff]
      %v222 = vld [vmem:[%s192 + $0xb8] sm:$0xff]
      %v223 = vld [vmem:[%s192 + $0xc0] sm:$0xff]
      %v224 = vld [vmem:[%s192 + $0xc8] sm:$0xff]
      %v225 = vld [vmem:[%s192 + $0xd0] sm:$0xff]
      %v226 = vld [vmem:[%s192 + $0xd8] sm:$0xff]
      %v227 = vld [vmem:[%s192 + $0xe0] sm:$0xff]
      %v228 = vld [vmem:[%s192 + $0xe8] sm:$0xff]
      %v229 = vld [vmem:[%s192 + $0xf0] sm:$0xff]
      %v230 = vld [vmem:[%s192 + $0xf8] sm:$0xff]
      %v231 = vld [vmem:[%s192 + $0x100] sm:$0xff]
      %v232 = vld [vmem:[%s192 + $0x108] sm:$0xff]
      %v233 = vpack.c.bf16 %v200, %v199
      %v234 = vpack.c.bf16 %v202, %v201
      %v235 = vpack.c.bf16 %v204, %v203
      %v236 = vpack.c.bf16 %v206, %v205
      %v237 = vpack.c.bf16 %v208, %v207
      %v238 = vpack.c.bf16 %v210, %v209
      %v239 = vpack.c.bf16 %v212, %v211
      %v240 = vpack.c.bf16 %v214, %v213
      %v241 = vpack.c.bf16 %v216, %v215
      %v242 = vpack.c.bf16 %v218, %v217
      %v243 = vpack.c.bf16 %v220, %v219
      %v244 = vpack.c.bf16 %v222, %v221
      %v245 = vpack.c.bf16 %v224, %v223
      %v246 = vpack.c.bf16 %v226, %v225
      %v247 = vpack.c.bf16 %v228, %v227
      %v248 = vpack.c.bf16 %v230, %v229
      %v249 = vpack.c.bf16 %v232, %v231
      %v250 = vld [vmem:[%s1] sm:$0xf]
      %v251 = vld [vmem:[%s1 + $0x4] sm:$0xf]
      %v252 = vld [vmem:[%s1 + $0x8] sm:$0xf]
      %v253 = vld [vmem:[%s1 + $0xc] sm:$0xf]
      %s254 = scalar_lea.vmem %s1, 16
      %v255 = vld [vmem:[%s254] sm:$0xf]
      %v256 = vld [vmem:[%s254 + $0x4] sm:$0xf]
      %v257 = vld [vmem:[%s254 + $0x8] sm:$0xf]
      %v258 = vld [vmem:[%s254 + $0xc] sm:$0xf]
      %vm259 = vsmask.f32 7424
      %v261 = vshrl.u32 %v233, 16
      %v263 = vshll.u32 %v233, 16
      %v265 = vrot.slane %v263, 1
      %v266 = vor.u32 %v261, %v265
      %v268 = vshll.u32 %v234, 16
      %v270 = vrot.slane %v268, 1
      %v271 = vsel %vm259, %v266, %v270
      %v272 = vshrl.u32 %v234, 16
      %v274 = vor.u32 %v272, %v270
      %v276 = vshll.u32 %v235, 16
      %v278 = vrot.slane %v276, 1
      %v279 = vsel %vm259, %v274, %v278
      %v280 = vshrl.u32 %v235, 16
      %v282 = vor.u32 %v280, %v278
      %v284 = vshll.u32 %v236, 16
      %v286 = vrot.slane %v284, 1
      %v287 = vsel %vm259, %v282, %v286
      %v288 = vshrl.u32 %v236, 16
      %v290 = vor.u32 %v288, %v286
      %v292 = vshll.u32 %v237, 16
      %v294 = vrot.slane %v292, 1
      %v295 = vsel %vm259, %v290, %v294
      %v296 = vshrl.u32 %v237, 16
      %v298 = vor.u32 %v296, %v294
      %v300 = vshll.u32 %v238, 16
      %v302 = vrot.slane %v300, 1
      %v303 = vsel %vm259, %v298, %v302
      %v304 = vshrl.u32 %v238, 16
      %v306 = vor.u32 %v304, %v302
      %v308 = vshll.u32 %v239, 16
      %v310 = vrot.slane %v308, 1
      %v311 = vsel %vm259, %v306, %v310
      %v312 = vshrl.u32 %v239, 16
      %v314 = vor.u32 %v312, %v310
      %v316 = vshll.u32 %v240, 16
      %v318 = vrot.slane %v316, 1
      %v319 = vsel %vm259, %v314, %v318
      %v320 = vshrl.u32 %v240, 16
      %v322 = vor.u32 %v320, %v318
      %v324 = vshll.u32 %v241, 16
      %v326 = vrot.slane %v324, 1
      %v327 = vsel %vm259, %v322, %v326
      %v328 = vshrl.u32 %v241, 16
      %v330 = vor.u32 %v328, %v326
      %v332 = vshll.u32 %v242, 16
      %v334 = vrot.slane %v332, 1
      %v335 = vsel %vm259, %v330, %v334
      %v336 = vshrl.u32 %v242, 16
      %v338 = vor.u32 %v336, %v334
      %v340 = vshll.u32 %v243, 16
      %v342 = vrot.slane %v340, 1
      %v343 = vsel %vm259, %v338, %v342
      %v344 = vshrl.u32 %v243, 16
      %v346 = vor.u32 %v344, %v342
      %v348 = vshll.u32 %v244, 16
      %v350 = vrot.slane %v348, 1
      %v351 = vsel %vm259, %v346, %v350
      %v352 = vshrl.u32 %v244, 16
      %v354 = vor.u32 %v352, %v350
      %v356 = vshll.u32 %v245, 16
      %v358 = vrot.slane %v356, 1
      %v359 = vsel %vm259, %v354, %v358
      %v360 = vshrl.u32 %v245, 16
      %v362 = vor.u32 %v360, %v358
      %v364 = vshll.u32 %v246, 16
      %v366 = vrot.slane %v364, 1
      %v367 = vsel %vm259, %v362, %v366
      %v368 = vshrl.u32 %v246, 16
      %v370 = vor.u32 %v368, %v366
      %v372 = vshll.u32 %v247, 16
      %v374 = vrot.slane %v372, 1
      %v375 = vsel %vm259, %v370, %v374
      %v380 = vunpack.c.l.b16 %v255
      %v381 = vunpack.c.l.b16 %v256
      %v382 = vunpack.c.l.b16 %v257
      %v383 = vunpack.c.l.b16 %v258
      %v384 = vpack.c.b16 %v381, %v380
      %v385 = vpack.c.b16 %v383, %v382
      %vm388 = vcmask 261120
      %v390 = vsel %vm388, %v271, 0
      %v393 = vsel %vm388, %v279, 0
      %v396 = vsel %vm388, %v287, 0
      %v399 = vsel %vm388, %v295, 0
      %v402 = vsel %vm388, %v303, 0
      %v405 = vsel %vm388, %v311, 0
      %v408 = vsel %vm388, %v319, 0
      %v411 = vsel %vm388, %v327, 0
      %v414 = vsel %vm388, %v335, 0
      %v417 = vsel %vm388, %v343, 0
      %v420 = vsel %vm388, %v351, 0
      %v423 = vsel %vm388, %v359, 0
      %v426 = vsel %vm388, %v367, 0
      %v429 = vsel %vm388, %v375, 0
      %431 = vmatprep.subr.bf16.mxu0 0
      %432 = vmatpush1.bf16.msra.mxu0 %v384
      %433 = vmatprep.subr.bf16.mxu0 0
      %434 = vmatpush1.bf16.msra.mxu0 %v385
      %435 = vmatprep.subr.bf16.mxu0 0
      %436 = vmatpush1.bf16.msra.mxu0 0
      %437 = vmatprep.subr.bf16.mxu0 0
      %438 = vmatpush1.bf16.msra.mxu0 0
      %439 = vmatprep.subr.bf16.mxu0 0
      %440 = vmatpush1.bf16.msra.mxu0 0
      %441 = vmatprep.subr.bf16.mxu0 0
      %442 = vmatpush1.bf16.msra.mxu0 0
      %443 = vmatprep.subr.bf16.mxu0 0
      %444 = vmatpush1.bf16.msra.mxu0 0
      %445 = vmatprep.subr.bf16.mxu0 0
      %446 = vmatpush1.bf16.msra.mxu0 0
      %447 = vmatprep.subr.bf16.mxu0 0
      %448 = vmatpush1.bf16.msra.mxu0 0
      %449 = vmatprep.subr.bf16.mxu0 0
      %450 = vmatpush1.bf16.msra.mxu0 0
      %451 = vmatprep.subr.bf16.mxu0 0
      %452 = vmatpush1.bf16.msra.mxu0 0
      %453 = vmatprep.subr.bf16.mxu0 0
      %454 = vmatpush1.bf16.msra.mxu0 0
      %455 = vmatprep.subr.bf16.mxu0 0
      %456 = vmatpush1.bf16.msra.mxu0 0
      %457 = vmatprep.subr.bf16.mxu0 0
      %458 = vmatpush1.bf16.msra.mxu0 0
      %459 = vmatprep.subr.bf16.mxu0 0
      %460 = vmatpush1.bf16.msra.mxu0 0
      %461 = vmatprep.subr.bf16.mxu0 0
      %462 = vmatpush1.bf16.msra.mxu0 0
      %463 = vmatprep.mubr.bf16.mxu0 0
      %464 = vmatmul.mubr.bf16.gmra.mrb[0].mxu0 %v390
      %v465 = vpop.f32.mrb[0].mxu0
      %v466 = vadd.f32 0.0, %v465
      %v467 = vpop.f32.mrb[0].mxu0
      %v468 = vpop.f32.mrb[0].mxu0
      %v469 = vadd.f32 0.0, %v468
      %v470 = vpop.f32.mrb[0].mxu0
      %471 = vmatprep.mubr.bf16.mxu0 0
      %472 = vmatmul.mubr.bf16.gmra.mrb[0].mxu0 %v393
      %v473 = vpop.f32.mrb[0].mxu0
      %v474 = vadd.f32 0.0, %v473
      %v475 = vpop.f32.mrb[0].mxu0
      %v476 = vpop.f32.mrb[0].mxu0
      %v477 = vadd.f32 0.0, %v476
      %v478 = vpop.f32.mrb[0].mxu0
      %479 = vmatprep.mubr.bf16.mxu0 0
      %480 = vmatmul.mubr.bf16.gmra.mrb[0].mxu0 %v396
      %v481 = vpop.f32.mrb[0].mxu0
      %v482 = vadd.f32 0.0, %v481
      %v483 = vpop.f32.mrb[0].mxu0
      %v484 = vpop.f32.mrb[0].mxu0
      %v485 = vadd.f32 0.0, %v484
      %v486 = vpop.f32.mrb[0].mxu0
      %487 = vmatprep.mubr.bf16.mxu0 0
      %488 = vmatmul.mubr.bf16.gmra.mrb[0].mxu0 %v399
      %v489 = vpop.f32.mrb[0].mxu0
      %v490 = vadd.f32 0.0, %v489
      %v491 = vpop.f32.mrb[0].mxu0
      %v492 = vpop.f32.mrb[0].mxu0
      %v493 = vadd.f32 0.0, %v492
      %v494 = vpop.f32.mrb[0].mxu0
      %495 = vmatprep.mubr.bf16.mxu0 0
      %496 = vmatmul.mubr.bf16.gmra.mrb[0].mxu0 %v402
      %v497 = vpop.f32.mrb[0].mxu0
      %v498 = vadd.f32 0.0, %v497
      %v499 = vpop.f32.mrb[0].mxu0
      %v500 = vpop.f32.mrb[0].mxu0
      %v501 = vadd.f32 0.0, %v500
      %v502 = vpop.f32.mrb[0].mxu0
      %503 = vmatprep.mubr.bf16.mxu0 0
      %504 = vmatmul.mubr.bf16.gmra.mrb[0].mxu0 %v405
      %v505 = vpop.f32.mrb[0].mxu0
      %v506 = vadd.f32 0.0, %v505
      %v507 = vpop.f32.mrb[0].mxu0
      %v508 = vpop.f32.mrb[0].mxu0
      %v509 = vadd.f32 0.0, %v508
      %v510 = vpop.f32.mrb[0].mxu0
      %511 = vmatprep.mubr.bf16.mxu0 0
      %512 = vmatmul.mubr.bf16.gmra.mrb[0].mxu0 %v408
      %v513 = vpop.f32.mrb[0].mxu0
      %v514 = vadd.f32 0.0, %v513
      %v515 = vpop.f32.mrb[0].mxu0
      %v516 = vpop.f32.mrb[0].mxu0
      %v517 = vadd.f32 0.0, %v516
      %v518 = vpop.f32.mrb[0].mxu0
      %519 = vmatprep.mubr.bf16.mxu0 0
      %520 = vmatmul.mubr.bf16.gmra.mrb[0].mxu0 %v411
      %v521 = vpop.f32.mrb[0].mxu0
      %v522 = vadd.f32 0.0, %v521
      %v523 = vpop.f32.mrb[0].mxu0
      %v524 = vpop.f32.mrb[0].mxu0
      %v525 = vadd.f32 0.0, %v524
      %v526 = vpop.f32.mrb[0].mxu0
      %527 = vmatprep.mubr.bf16.mxu0 0
      %528 = vmatmul.mubr.bf16.gmra.mrb[0].mxu0 %v414
      %v529 = vpop.f32.mrb[0].mxu0
      %v530 = vadd.f32 0.0, %v529
      %v531 = vpop.f32.mrb[0].mxu0
      %v532 = vpop.f32.mrb[0].mxu0
      %v533 = vadd.f32 0.0, %v532
      %v534 = vpop.f32.mrb[0].mxu0
      %535 = vmatprep.mubr.bf16.mxu0 0
      %536 = vmatmul.mubr.bf16.gmra.mrb[0].mxu0 %v417
      %v537 = vpop.f32.mrb[0].mxu0
      %v538 = vadd.f32 0.0, %v537
      %v539 = vpop.f32.mrb[0].mxu0
      %v540 = vpop.f32.mrb[0].mxu0
      %v541 = vadd.f32 0.0, %v540
      %v542 = vpop.f32.mrb[0].mxu0
      %543 = vmatprep.mubr.bf16.mxu0 0
      %544 = vmatmul.mubr.bf16.gmra.mrb[0].mxu0 %v420
      %v545 = vpop.f32.mrb[0].mxu0
      %v546 = vadd.f32 0.0, %v545
      %v547 = vpop.f32.mrb[0].mxu0
      %v548 = vpop.f32.mrb[0].mxu0
      %v549 = vadd.f32 0.0, %v548
      %v550 = vpop.f32.mrb[0].mxu0
      %551 = vmatprep.mubr.bf16.mxu0 0
      %552 = vmatmul.mubr.bf16.gmra.mrb[0].mxu0 %v423
      %v553 = vpop.f32.mrb[0].mxu0
      %v554 = vadd.f32 0.0, %v553
      %v555 = vpop.f32.mrb[0].mxu0
      %v556 = vpop.f32.mrb[0].mxu0
      %v557 = vadd.f32 0.0, %v556
      %v558 = vpop.f32.mrb[0].mxu0
      %559 = vmatprep.mubr.bf16.mxu0 0
      %560 = vmatmul.mubr.bf16.gmra.mrb[0].mxu0 %v426
      %v561 = vpop.f32.mrb[0].mxu0
      %v562 = vadd.f32 0.0, %v561
      %v563 = vpop.f32.mrb[0].mxu0
      %v564 = vpop.f32.mrb[0].mxu0
      %v565 = vadd.f32 0.0, %v564
      %v566 = vpop.f32.mrb[0].mxu0
      %567 = vmatprep.mubr.bf16.mxu0 0
      %568 = vmatmul.mubr.bf16.gmra.mrb[0].mxu0 %v429
      %v569 = vpop.f32.mrb[0].mxu0
      %v570 = vadd.f32 0.0, %v569
      %v571 = vpop.f32.mrb[0].mxu0
      %v572 = vpop.f32.mrb[0].mxu0
      %v573 = vadd.f32 0.0, %v572
      %v574 = vpop.f32.mrb[0].mxu0
      %575 = vdwg.mxu0
      %v580 = vunpack.c.l.b16 %v250
      %v581 = vunpack.c.l.b16 %v251
      %v582 = vunpack.c.l.b16 %v252
      %v583 = vunpack.c.l.b16 %v253
      %v584 = vpack.c.b16 %v581, %v580
      %v585 = vpack.c.b16 %v583, %v582
      %v588 = vsel %vm388, %v233, 0
      %v590 = vsel %vm388, %v234, 0
      %v592 = vsel %vm388, %v235, 0
      %v594 = vsel %vm388, %v236, 0
      %v596 = vsel %vm388, %v237, 0
      %v598 = vsel %vm388, %v238, 0
      %v600 = vsel %vm388, %v239, 0
      %v602 = vsel %vm388, %v240, 0
      %v604 = vsel %vm388, %v241, 0
      %v606 = vsel %vm388, %v242, 0
      %v608 = vsel %vm388, %v243, 0
      %v610 = vsel %vm388, %v244, 0
      %v612 = vsel %vm388, %v245, 0
      %v614 = vsel %vm388, %v246, 0
      %616 = vmatprep.subr.bf16.mxu0 0
      %617 = vmatpush1.bf16.msra.mxu0 %v584
      %618 = vmatprep.subr.bf16.mxu0 0
      %619 = vmatpush1.bf16.msra.mxu0 %v585
      %620 = vmatprep.subr.bf16.mxu0 0
      %621 = vmatpush1.bf16.msra.mxu0 0
      %622 = vmatprep.subr.bf16.mxu0 0
      %623 = vmatpush1.bf16.msra.mxu0 0
      %624 = vmatprep.subr.bf16.mxu0 0
      %625 = vmatpush1.bf16.msra.mxu0 0
      %626 = vmatprep.subr.bf16.mxu0 0
      %627 = vmatpush1.bf16.msra.mxu0 0
      %628 = vmatprep.subr.bf16.mxu0 0
      %629 = vmatpush1.bf16.msra.mxu0 0
      %630 = vmatprep.subr.bf16.mxu0 0
      %631 = vmatpush1.bf16.msra.mxu0 0
      %632 = vmatprep.subr.bf16.mxu0 0
      %633 = vmatpush1.bf16.msra.mxu0 0
      %634 = vmatprep.subr.bf16.mxu0 0
      %635 = vmatpush1.bf16.msra.mxu0 0
      %636 = vmatprep.subr.bf16.mxu0 0
      %637 = vmatpush1.bf16.msra.mxu0 0
      %638 = vmatprep.subr.bf16.mxu0 0
      %639 = vmatpush1.bf16.msra.mxu0 0
      %640 = vmatprep.subr.bf16.mxu0 0
      %641 = vmatpush1.bf16.msra.mxu0 0
      %642 = vmatprep.subr.bf16.mxu0 0
      %643 = vmatpush1.bf16.msra.mxu0 0
      %644 = vmatprep.subr.bf16.mxu0 0
      %645 = vmatpush1.bf16.msra.mxu0 0
      %646 = vmatprep.subr.bf16.mxu0 0
      %647 = vmatpush1.bf16.msra.mxu0 0
      %648 = vmatprep.mubr.bf16.mxu0 0
      %649 = vmatmul.mubr.bf16.gmra.mrb[0].mxu0 %v588
      %v650 = vpop.f32.mrb[0].mxu0
      %v651 = vadd.f32 %v466, %v650
      %v652 = vpop.f32.mrb[0].mxu0
      %v653 = vpop.f32.mrb[0].mxu0
      %v654 = vadd.f32 %v469, %v653
      %v655 = vpop.f32.mrb[0].mxu0
      %656 = vmatprep.mubr.bf16.mxu0 0
      %657 = vmatmul.mubr.bf16.gmra.mrb[0].mxu0 %v590
      %v658 = vpop.f32.mrb[0].mxu0
      %v659 = vadd.f32 %v474, %v658
      %v660 = vpop.f32.mrb[0].mxu0
      %v661 = vpop.f32.mrb[0].mxu0
      %v662 = vadd.f32 %v477, %v661
      %v663 = vpop.f32.mrb[0].mxu0
      %664 = vmatprep.mubr.bf16.mxu0 0
      %665 = vmatmul.mubr.bf16.gmra.mrb[0].mxu0 %v592
      %v666 = vpop.f32.mrb[0].mxu0
      %v667 = vadd.f32 %v482, %v666
      %v668 = vpop.f32.mrb[0].mxu0
      %v669 = vpop.f32.mrb[0].mxu0
      %v670 = vadd.f32 %v485, %v669
      %v671 = vpop.f32.mrb[0].mxu0
      %672 = vmatprep.mubr.bf16.mxu0 0
      %673 = vmatmul.mubr.bf16.gmra.mrb[0].mxu0 %v594
      %v674 = vpop.f32.mrb[0].mxu0
      %v675 = vadd.f32 %v490, %v674
      %v676 = vpop.f32.mrb[0].mxu0
      %v677 = vpop.f32.mrb[0].mxu0
      %v678 = vadd.f32 %v493, %v677
      %v679 = vpop.f32.mrb[0].mxu0
      %680 = vmatprep.mubr.bf16.mxu0 0
      %681 = vmatmul.mubr.bf16.gmra.mrb[0].mxu0 %v596
      %v682 = vpop.f32.mrb[0].mxu0
      %v683 = vadd.f32 %v498, %v682
      %v684 = vpop.f32.mrb[0].mxu0
      %v685 = vpop.f32.mrb[0].mxu0
      %v686 = vadd.f32 %v501, %v685
      %v687 = vpop.f32.mrb[0].mxu0
      %688 = vmatprep.mubr.bf16.mxu0 0
      %689 = vmatmul.mubr.bf16.gmra.mrb[0].mxu0 %v598
      %v690 = vpop.f32.mrb[0].mxu0
      %v691 = vadd.f32 %v506, %v690
      %v692 = vpop.f32.mrb[0].mxu0
      %v693 = vpop.f32.mrb[0].mxu0
      %v694 = vadd.f32 %v509, %v693
      %v695 = vpop.f32.mrb[0].mxu0
      %696 = vmatprep.mubr.bf16.mxu0 0
      %697 = vmatmul.mubr.bf16.gmra.mrb[0].mxu0 %v600
      %v698 = vpop.f32.mrb[0].mxu0
      %v699 = vadd.f32 %v514, %v698
      %v700 = vpop.f32.mrb[0].mxu0
      %v701 = vpop.f32.mrb[0].mxu0
      %v702 = vadd.f32 %v517, %v701
      %v703 = vpop.f32.mrb[0].mxu0
      %704 = vmatprep.mubr.bf16.mxu0 0
      %705 = vmatmul.mubr.bf16.gmra.mrb[0].mxu0 %v602
      %v706 = vpop.f32.mrb[0].mxu0
      %v707 = vadd.f32 %v522, %v706
      %v708 = vpop.f32.mrb[0].mxu0
      %v709 = vpop.f32.mrb[0].mxu0
      %v710 = vadd.f32 %v525, %v709
      %v711 = vpop.f32.mrb[0].mxu0
      %712 = vmatprep.mubr.bf16.mxu0 0
      %713 = vmatmul.mubr.bf16.gmra.mrb[0].mxu0 %v604
      %v714 = vpop.f32.mrb[0].mxu0
      %v715 = vadd.f32 %v530, %v714
      %v716 = vpop.f32.mrb[0].mxu0
      %v717 = vpop.f32.mrb[0].mxu0
      %v718 = vadd.f32 %v533, %v717
      %v719 = vpop.f32.mrb[0].mxu0
      %720 = vmatprep.mubr.bf16.mxu0 0
      %721 = vmatmul.mubr.bf16.gmra.mrb[0].mxu0 %v606
      %v722 = vpop.f32.mrb[0].mxu0
      %v723 = vadd.f32 %v538, %v722
      %v724 = vpop.f32.mrb[0].mxu0
      %v725 = vpop.f32.mrb[0].mxu0
      %v726 = vadd.f32 %v541, %v725
      %v727 = vpop.f32.mrb[0].mxu0
      %728 = vmatprep.mubr.bf16.mxu0 0
      %729 = vmatmul.mubr.bf16.gmra.mrb[0].mxu0 %v608
      %v730 = vpop.f32.mrb[0].mxu0
      %v731 = vadd.f32 %v546, %v730
      %v732 = vpop.f32.mrb[0].mxu0
      %v733 = vpop.f32.mrb[0].mxu0
      %v734 = vadd.f32 %v549, %v733
      %v735 = vpop.f32.mrb[0].mxu0
      %736 = vmatprep.mubr.bf16.mxu0 0
      %737 = vmatmul.mubr.bf16.gmra.mrb[0].mxu0 %v610
      %v738 = vpop.f32.mrb[0].mxu0
      %v739 = vadd.f32 %v554, %v738
      %v740 = vpop.f32.mrb[0].mxu0
      %v741 = vpop.f32.mrb[0].mxu0
      %v742 = vadd.f32 %v557, %v741
      %v743 = vpop.f32.mrb[0].mxu0
      %744 = vmatprep.mubr.bf16.mxu0 0
      %745 = vmatmul.mubr.bf16.gmra.mrb[0].mxu0 %v612
      %v746 = vpop.f32.mrb[0].mxu0
      %v747 = vadd.f32 %v562, %v746
      %v748 = vpop.f32.mrb[0].mxu0
      %v749 = vpop.f32.mrb[0].mxu0
      %v750 = vadd.f32 %v565, %v749
      %v751 = vpop.f32.mrb[0].mxu0
      %752 = vmatprep.mubr.bf16.mxu0 0
      %753 = vmatmul.mubr.bf16.gmra.mrb[0].mxu0 %v614
      %v754 = vpop.f32.mrb[0].mxu0
      %v755 = vadd.f32 %v570, %v754
      %v756 = vpop.f32.mrb[0].mxu0
      %v757 = vpop.f32.mrb[0].mxu0
      %v758 = vadd.f32 %v573, %v757
      %v759 = vpop.f32.mrb[0].mxu0
      %760 = vdwg.mxu0
      %s761 = scalar_lea.vmem %s1, 32
      %v762 = vld [vmem:[%s761] sm:$0xf]
      %v763 = vld [vmem:[%s761 + $0x4] sm:$0xf]
      %v764 = vld [vmem:[%s761 + $0x8] sm:$0xf]
      %v765 = vld [vmem:[%s761 + $0xc] sm:$0xf]
      %vm781 = vcmask 1046528
      %v782 = vrot.slane %v233, 1
      %v783 = vrot.slane %v234, 1
      %v784 = vsel %vm781, %v782, %v783
      %v785 = vrot.slane %v235, 1
      %v786 = vsel %vm781, %v783, %v785
      %v787 = vrot.slane %v236, 1
      %v788 = vsel %vm781, %v785, %v787
      %v789 = vrot.slane %v237, 1
      %v790 = vsel %vm781, %v787, %v789
      %v791 = vrot.slane %v238, 1
      %v792 = vsel %vm781, %v789, %v791
      %v793 = vrot.slane %v239, 1
      %v794 = vsel %vm781, %v791, %v793
      %v795 = vrot.slane %v240, 1
      %v796 = vsel %vm781, %v793, %v795
      %v797 = vrot.slane %v241, 1
      %v798 = vsel %vm781, %v795, %v797
      %v799 = vrot.slane %v242, 1
      %v800 = vsel %vm781, %v797, %v799
      %v801 = vrot.slane %v243, 1
      %v802 = vsel %vm781, %v799, %v801
      %v803 = vrot.slane %v244, 1
      %v804 = vsel %vm781, %v801, %v803
      %v805 = vrot.slane %v245, 1
      %v806 = vsel %vm781, %v803, %v805
      %v807 = vrot.slane %v246, 1
      %v808 = vsel %vm781, %v805, %v807
      %v809 = vrot.slane %v247, 1
      %v810 = vsel %vm781, %v807, %v809
      %v815 = vunpack.c.l.b16 %v762
      %v816 = vunpack.c.l.b16 %v763
      %v817 = vunpack.c.l.b16 %v764
      %v818 = vunpack.c.l.b16 %v765
      %v819 = vpack.c.b16 %v816, %v815
      %v820 = vpack.c.b16 %v818, %v817
      %v824 = vsel %vm388, %v784, 0
      %v827 = vsel %vm388, %v786, 0
      %v830 = vsel %vm388, %v788, 0
      %v833 = vsel %vm388, %v790, 0
      %v836 = vsel %vm388, %v792, 0
      %v839 = vsel %vm388, %v794, 0
      %v842 = vsel %vm388, %v796, 0
      %v845 = vsel %vm388, %v798, 0
      %v848 = vsel %vm388, %v800, 0
      %v851 = vsel %vm388, %v802, 0
      %v854 = vsel %vm388, %v804, 0
      %v857 = vsel %vm388, %v806, 0
      %v860 = vsel %vm388, %v808, 0
      %v863 = vsel %vm388, %v810, 0
      %865 = vmatprep.subr.bf16.mxu0 0
      %866 = vmatpush1.bf16.msra.mxu0 %v819
      %867 = vmatprep.subr.bf16.mxu0 0
      %868 = vmatpush1.bf16.msra.mxu0 %v820
      %869 = vmatprep.subr.bf16.mxu0 0
      %870 = vmatpush1.bf16.msra.mxu0 0
      %871 = vmatprep.subr.bf16.mxu0 0
      %872 = vmatpush1.bf16.msra.mxu0 0
      %873 = vmatprep.subr.bf16.mxu0 0
      %874 = vmatpush1.bf16.msra.mxu0 0
      %875 = vmatprep.subr.bf16.mxu0 0
      %876 = vmatpush1.bf16.msra.mxu0 0
      %877 = vmatprep.subr.bf16.mxu0 0
      %878 = vmatpush1.bf16.msra.mxu0 0
      %879 = vmatprep.subr.bf16.mxu0 0
      %880 = vmatpush1.bf16.msra.mxu0 0
      %881 = vmatprep.subr.bf16.mxu0 0
      %882 = vmatpush1.bf16.msra.mxu0 0
      %883 = vmatprep.subr.bf16.mxu0 0
      %884 = vmatpush1.bf16.msra.mxu0 0
      %885 = vmatprep.subr.bf16.mxu0 0
      %886 = vmatpush1.bf16.msra.mxu0 0
      %887 = vmatprep.subr.bf16.mxu0 0
      %888 = vmatpush1.bf16.msra.mxu0 0
      %889 = vmatprep.subr.bf16.mxu0 0
      %890 = vmatpush1.bf16.msra.mxu0 0
      %891 = vmatprep.subr.bf16.mxu0 0
      %892 = vmatpush1.bf16.msra.mxu0 0
      %893 = vmatprep.subr.bf16.mxu0 0
      %894 = vmatpush1.bf16.msra.mxu0 0
      %895 = vmatprep.subr.bf16.mxu0 0
      %896 = vmatpush1.bf16.msra.mxu0 0
      %897 = vmatprep.mubr.bf16.mxu0 0
      %898 = vmatmul.mubr.bf16.gmra.mrb[0].mxu0 %v824
      %v899 = vpop.f32.mrb[0].mxu0
      %v900 = vadd.f32 0.0, %v899
      %v901 = vpop.f32.mrb[0].mxu0
      %v902 = vpop.f32.mrb[0].mxu0
      %v903 = vadd.f32 0.0, %v902
      %v904 = vpop.f32.mrb[0].mxu0
      %905 = vmatprep.mubr.bf16.mxu0 0
      %906 = vmatmul.mubr.bf16.gmra.mrb[0].mxu0 %v827
      %v907 = vpop.f32.mrb[0].mxu0
      %v908 = vadd.f32 0.0, %v907
      %v909 = vpop.f32.mrb[0].mxu0
      %v910 = vpop.f32.mrb[0].mxu0
      %v911 = vadd.f32 0.0, %v910
      %v912 = vpop.f32.mrb[0].mxu0
      %913 = vmatprep.mubr.bf16.mxu0 0
      %914 = vmatmul.mubr.bf16.gmra.mrb[0].mxu0 %v830
      %v915 = vpop.f32.mrb[0].mxu0
      %v916 = vadd.f32 0.0, %v915
      %v917 = vpop.f32.mrb[0].mxu0
      %v918 = vpop.f32.mrb[0].mxu0
      %v919 = vadd.f32 0.0, %v918
      %v920 = vpop.f32.mrb[0].mxu0
      %921 = vmatprep.mubr.bf16.mxu0 0
      %922 = vmatmul.mubr.bf16.gmra.mrb[0].mxu0 %v833
      %v923 = vpop.f32.mrb[0].mxu0
      %v924 = vadd.f32 0.0, %v923
      %v925 = vpop.f32.mrb[0].mxu0
      %v926 = vpop.f32.mrb[0].mxu0
      %v927 = vadd.f32 0.0, %v926
      %v928 = vpop.f32.mrb[0].mxu0
      %929 = vmatprep.mubr.bf16.mxu0 0
      %930 = vmatmul.mubr.bf16.gmra.mrb[0].mxu0 %v836
      %v931 = vpop.f32.mrb[0].mxu0
      %v932 = vadd.f32 0.0, %v931
      %v933 = vpop.f32.mrb[0].mxu0
      %v934 = vpop.f32.mrb[0].mxu0
      %v935 = vadd.f32 0.0, %v934
      %v936 = vpop.f32.mrb[0].mxu0
      %937 = vmatprep.mubr.bf16.mxu0 0
      %938 = vmatmul.mubr.bf16.gmra.mrb[0].mxu0 %v839
      %v939 = vpop.f32.mrb[0].mxu0
      %v940 = vadd.f32 0.0, %v939
      %v941 = vpop.f32.mrb[0].mxu0
      %v942 = vpop.f32.mrb[0].mxu0
      %v943 = vadd.f32 0.0, %v942
      %v944 = vpop.f32.mrb[0].mxu0
      %945 = vmatprep.mubr.bf16.mxu0 0
      %946 = vmatmul.mubr.bf16.gmra.mrb[0].mxu0 %v842
      %v947 = vpop.f32.mrb[0].mxu0
      %v948 = vadd.f32 0.0, %v947
      %v949 = vpop.f32.mrb[0].mxu0
      %v950 = vpop.f32.mrb[0].mxu0
      %v951 = vadd.f32 0.0, %v950
      %v952 = vpop.f32.mrb[0].mxu0
      %953 = vmatprep.mubr.bf16.mxu0 0
      %954 = vmatmul.mubr.bf16.gmra.mrb[0].mxu0 %v845
      %v955 = vpop.f32.mrb[0].mxu0
      %v956 = vadd.f32 0.0, %v955
      %v957 = vpop.f32.mrb[0].mxu0
      %v958 = vpop.f32.mrb[0].mxu0
      %v959 = vadd.f32 0.0, %v958
      %v960 = vpop.f32.mrb[0].mxu0
      %961 = vmatprep.mubr.bf16.mxu0 0
      %962 = vmatmul.mubr.bf16.gmra.mrb[0].mxu0 %v848
      %v963 = vpop.f32.mrb[0].mxu0
      %v964 = vadd.f32 0.0, %v963
      %v965 = vpop.f32.mrb[0].mxu0
      %v966 = vpop.f32.mrb[0].mxu0
      %v967 = vadd.f32 0.0, %v966
      %v968 = vpop.f32.mrb[0].mxu0
      %969 = vmatprep.mubr.bf16.mxu0 0
      %970 = vmatmul.mubr.bf16.gmra.mrb[0].mxu0 %v851
      %v971 = vpop.f32.mrb[0].mxu0
      %v972 = vadd.f32 0.0, %v971
      %v973 = vpop.f32.mrb[0].mxu0
      %v974 = vpop.f32.mrb[0].mxu0
      %v975 = vadd.f32 0.0, %v974
      %v976 = vpop.f32.mrb[0].mxu0
      %977 = vmatprep.mubr.bf16.mxu0 0
      %978 = vmatmul.mubr.bf16.gmra.mrb[0].mxu0 %v854
      %v979 = vpop.f32.mrb[0].mxu0
      %v980 = vadd.f32 0.0, %v979
      %v981 = vpop.f32.mrb[0].mxu0
      %v982 = vpop.f32.mrb[0].mxu0
      %v983 = vadd.f32 0.0, %v982
      %v984 = vpop.f32.mrb[0].mxu0
      %985 = vmatprep.mubr.bf16.mxu0 0
      %986 = vmatmul.mubr.bf16.gmra.mrb[0].mxu0 %v857
      %v987 = vpop.f32.mrb[0].mxu0
      %v988 = vadd.f32 0.0, %v987
      %v989 = vpop.f32.mrb[0].mxu0
      %v990 = vpop.f32.mrb[0].mxu0
      %v991 = vadd.f32 0.0, %v990
      %v992 = vpop.f32.mrb[0].mxu0
      %993 = vmatprep.mubr.bf16.mxu0 0
      %994 = vmatmul.mubr.bf16.gmra.mrb[0].mxu0 %v860
      %v995 = vpop.f32.mrb[0].mxu0
      %v996 = vadd.f32 0.0, %v995
      %v997 = vpop.f32.mrb[0].mxu0
      %v998 = vpop.f32.mrb[0].mxu0
      %v999 = vadd.f32 0.0, %v998
      %v1000 = vpop.f32.mrb[0].mxu0
      %1001 = vmatprep.mubr.bf16.mxu0 0
      %1002 = vmatmul.mubr.bf16.gmra.mrb[0].mxu0 %v863
      %v1003 = vpop.f32.mrb[0].mxu0
      %v1004 = vadd.f32 0.0, %v1003
      %v1005 = vpop.f32.mrb[0].mxu0
      %v1006 = vpop.f32.mrb[0].mxu0
      %v1007 = vadd.f32 0.0, %v1006
      %v1008 = vpop.f32.mrb[0].mxu0
      %1009 = vdwg.mxu0
      %v1010 = vadd.f32 %v651, %v900
      %v1011 = vadd.f32 %v654, %v903
      %v1012 = vadd.f32 %v659, %v908
      %v1013 = vadd.f32 %v662, %v911
      %v1014 = vadd.f32 %v667, %v916
      %v1015 = vadd.f32 %v670, %v919
      %v1016 = vadd.f32 %v675, %v924
      %v1017 = vadd.f32 %v678, %v927
      %v1018 = vadd.f32 %v683, %v932
      %v1019 = vadd.f32 %v686, %v935
      %v1020 = vadd.f32 %v691, %v940
      %v1021 = vadd.f32 %v694, %v943
      %v1022 = vadd.f32 %v699, %v948
      %v1023 = vadd.f32 %v702, %v951
      %v1024 = vadd.f32 %v707, %v956
      %v1025 = vadd.f32 %v710, %v959
      %v1026 = vadd.f32 %v715, %v964
      %v1027 = vadd.f32 %v718, %v967
      %v1028 = vadd.f32 %v723, %v972
      %v1029 = vadd.f32 %v726, %v975
      %v1030 = vadd.f32 %v731, %v980
      %v1031 = vadd.f32 %v734, %v983
      %v1032 = vadd.f32 %v739, %v988
      %v1033 = vadd.f32 %v742, %v991
      %v1034 = vadd.f32 %v747, %v996
      %v1035 = vadd.f32 %v750, %v999
      %v1036 = vadd.f32 %v755, %v1004
      %v1037 = vadd.f32 %v758, %v1007
      %s1038 = scalar_lea.vmem %s1, 48
      %v1039 = vld [vmem:[%s1038] sm:$0xf]
      %v1040 = vld [vmem:[%s1038 + $0x4] sm:$0xf]
      %v1041 = vld [vmem:[%s1038 + $0x8] sm:$0xf]
      %v1042 = vld [vmem:[%s1038 + $0xc] sm:$0xf]
      %v1047 = vunpack.c.l.b16 %v1039
      %v1048 = vunpack.c.l.b16 %v1040
      %v1049 = vunpack.c.l.b16 %v1041
      %v1050 = vunpack.c.l.b16 %v1042
      %v1051 = vpack.c.b16 %v1048, %v1047
      %v1052 = vpack.c.b16 %v1050, %v1049
      %v1055 = vsel %vm388, %v247, 0
      %1057 = vmatprep.subr.bf16.mxu0 0
      %1058 = vmatpush1.bf16.msra.mxu0 %v1051
      %1059 = vmatprep.subr.bf16.mxu0 0
      %1060 = vmatpush1.bf16.msra.mxu0 %v1052
      %1061 = vmatprep.subr.bf16.mxu0 0
      %1062 = vmatpush1.bf16.msra.mxu0 0
      %1063 = vmatprep.subr.bf16.mxu0 0
      %1064 = vmatpush1.bf16.msra.mxu0 0
      %1065 = vmatprep.subr.bf16.mxu0 0
      %1066 = vmatpush1.bf16.msra.mxu0 0
      %1067 = vmatprep.subr.bf16.mxu0 0
      %1068 = vmatpush1.bf16.msra.mxu0 0
      %1069 = vmatprep.subr.bf16.mxu0 0
      %1070 = vmatpush1.bf16.msra.mxu0 0
      %1071 = vmatprep.subr.bf16.mxu0 0
      %1072 = vmatpush1.bf16.msra.mxu0 0
      %1073 = vmatprep.subr.bf16.mxu0 0
      %1074 = vmatpush1.bf16.msra.mxu0 0
      %1075 = vmatprep.subr.bf16.mxu0 0
      %1076 = vmatpush1.bf16.msra.mxu0 0
      %1077 = vmatprep.subr.bf16.mxu0 0
      %1078 = vmatpush1.bf16.msra.mxu0 0
      %1079 = vmatprep.subr.bf16.mxu0 0
      %1080 = vmatpush1.bf16.msra.mxu0 0
      %1081 = vmatprep.subr.bf16.mxu0 0
      %1082 = vmatpush1.bf16.msra.mxu0 0
      %1083 = vmatprep.subr.bf16.mxu0 0
      %1084 = vmatpush1.bf16.msra.mxu0 0
      %1085 = vmatprep.subr.bf16.mxu0 0
      %1086 = vmatpush1.bf16.msra.mxu0 0
      %1087 = vmatprep.subr.bf16.mxu0 0
      %1088 = vmatpush1.bf16.msra.mxu0 0
      %1089 = vmatprep.mubr.bf16.mxu0 0
      %1090 = vmatmul.mubr.bf16.gmra.mrb[0].mxu0 %v590
      %v1091 = vpop.f32.mrb[0].mxu0
      %v1092 = vadd.f32 0.0, %v1091
      %v1093 = vpop.f32.mrb[0].mxu0
      %v1094 = vpop.f32.mrb[0].mxu0
      %v1095 = vadd.f32 0.0, %v1094
      %v1096 = vpop.f32.mrb[0].mxu0
      %1097 = vmatprep.mubr.bf16.mxu0 0
      %1098 = vmatmul.mubr.bf16.gmra.mrb[0].mxu0 %v592
      %v1099 = vpop.f32.mrb[0].mxu0
      %v1100 = vadd.f32 0.0, %v1099
      %v1101 = vpop.f32.mrb[0].mxu0
      %v1102 = vpop.f32.mrb[0].mxu0
      %v1103 = vadd.f32 0.0, %v1102
      %v1104 = vpop.f32.mrb[0].mxu0
      %1105 = vmatprep.mubr.bf16.mxu0 0
      %1106 = vmatmul.mubr.bf16.gmra.mrb[0].mxu0 %v594
      %v1107 = vpop.f32.mrb[0].mxu0
      %v1108 = vadd.f32 0.0, %v1107
      %v1109 = vpop.f32.mrb[0].mxu0
      %v1110 = vpop.f32.mrb[0].mxu0
      %v1111 = vadd.f32 0.0, %v1110
      %v1112 = vpop.f32.mrb[0].mxu0
      %1113 = vmatprep.mubr.bf16.mxu0 0
      %1114 = vmatmul.mubr.bf16.gmra.mrb[0].mxu0 %v596
      %v1115 = vpop.f32.mrb[0].mxu0
      %v1116 = vadd.f32 0.0, %v1115
      %v1117 = vpop.f32.mrb[0].mxu0
      %v1118 = vpop.f32.mrb[0].mxu0
      %v1119 = vadd.f32 0.0, %v1118
      %v1120 = vpop.f32.mrb[0].mxu0
      %1121 = vmatprep.mubr.bf16.mxu0 0
      %1122 = vmatmul.mubr.bf16.gmra.mrb[0].mxu0 %v598
      %v1123 = vpop.f32.mrb[0].mxu0
      %v1124 = vadd.f32 0.0, %v1123
      %v1125 = vpop.f32.mrb[0].mxu0
      %v1126 = vpop.f32.mrb[0].mxu0
      %v1127 = vadd.f32 0.0, %v1126
      %v1128 = vpop.f32.mrb[0].mxu0
      %1129 = vmatprep.mubr.bf16.mxu0 0
      %1130 = vmatmul.mubr.bf16.gmra.mrb[0].mxu0 %v600
      %v1131 = vpop.f32.mrb[0].mxu0
      %v1132 = vadd.f32 0.0, %v1131
      %v1133 = vpop.f32.mrb[0].mxu0
      %v1134 = vpop.f32.mrb[0].mxu0
      %v1135 = vadd.f32 0.0, %v1134
      %v1136 = vpop.f32.mrb[0].mxu0
      %1137 = vmatprep.mubr.bf16.mxu0 0
      %1138 = vmatmul.mubr.bf16.gmra.mrb[0].mxu0 %v602
      %v1139 = vpop.f32.mrb[0].mxu0
      %v1140 = vadd.f32 0.0, %v1139
      %v1141 = vpop.f32.mrb[0].mxu0
      %v1142 = vpop.f32.mrb[0].mxu0
      %v1143 = vadd.f32 0.0, %v1142
      %v1144 = vpop.f32.mrb[0].mxu0
      %1145 = vmatprep.mubr.bf16.mxu0 0
      %1146 = vmatmul.mubr.bf16.gmra.mrb[0].mxu0 %v604
      %v1147 = vpop.f32.mrb[0].mxu0
      %v1148 = vadd.f32 0.0, %v1147
      %v1149 = vpop.f32.mrb[0].mxu0
      %v1150 = vpop.f32.mrb[0].mxu0
      %v1151 = vadd.f32 0.0, %v1150
      %v1152 = vpop.f32.mrb[0].mxu0
      %1153 = vmatprep.mubr.bf16.mxu0 0
      %1154 = vmatmul.mubr.bf16.gmra.mrb[0].mxu0 %v606
      %v1155 = vpop.f32.mrb[0].mxu0
      %v1156 = vadd.f32 0.0, %v1155
      %v1157 = vpop.f32.mrb[0].mxu0
      %v1158 = vpop.f32.mrb[0].mxu0
      %v1159 = vadd.f32 0.0, %v1158
      %v1160 = vpop.f32.mrb[0].mxu0
      %1161 = vmatprep.mubr.bf16.mxu0 0
      %1162 = vmatmul.mubr.bf16.gmra.mrb[0].mxu0 %v608
      %v1163 = vpop.f32.mrb[0].mxu0
      %v1164 = vadd.f32 0.0, %v1163
      %v1165 = vpop.f32.mrb[0].mxu0
      %v1166 = vpop.f32.mrb[0].mxu0
      %v1167 = vadd.f32 0.0, %v1166
      %v1168 = vpop.f32.mrb[0].mxu0
      %1169 = vmatprep.mubr.bf16.mxu0 0
      %1170 = vmatmul.mubr.bf16.gmra.mrb[0].mxu0 %v610
      %v1171 = vpop.f32.mrb[0].mxu0
      %v1172 = vadd.f32 0.0, %v1171
      %v1173 = vpop.f32.mrb[0].mxu0
      %v1174 = vpop.f32.mrb[0].mxu0
      %v1175 = vadd.f32 0.0, %v1174
      %v1176 = vpop.f32.mrb[0].mxu0
      %1177 = vmatprep.mubr.bf16.mxu0 0
      %1178 = vmatmul.mubr.bf16.gmra.mrb[0].mxu0 %v612
      %v1179 = vpop.f32.mrb[0].mxu0
      %v1180 = vadd.f32 0.0, %v1179
      %v1181 = vpop.f32.mrb[0].mxu0
      %v1182 = vpop.f32.mrb[0].mxu0
      %v1183 = vadd.f32 0.0, %v1182
      %v1184 = vpop.f32.mrb[0].mxu0
      %1185 = vmatprep.mubr.bf16.mxu0 0
      %1186 = vmatmul.mubr.bf16.gmra.mrb[0].mxu0 %v614
      %v1187 = vpop.f32.mrb[0].mxu0
      %v1188 = vadd.f32 0.0, %v1187
      %v1189 = vpop.f32.mrb[0].mxu0
      %v1190 = vpop.f32.mrb[0].mxu0
      %v1191 = vadd.f32 0.0, %v1190
      %v1192 = vpop.f32.mrb[0].mxu0
      %1193 = vmatprep.mubr.bf16.mxu0 0
      %1194 = vmatmul.mubr.bf16.gmra.mrb[0].mxu0 %v1055
      %v1195 = vpop.f32.mrb[0].mxu0
      %v1196 = vadd.f32 0.0, %v1195
      %v1197 = vpop.f32.mrb[0].mxu0
      %v1198 = vpop.f32.mrb[0].mxu0
      %v1199 = vadd.f32 0.0, %v1198
      %v1200 = vpop.f32.mrb[0].mxu0
      %1201 = vdwg.mxu0
      %v1202 = vadd.f32 %v1010, %v1092
      %v1203 = vadd.f32 %v1011, %v1095
      %v1204 = vadd.f32 %v1012, %v1100
      %v1205 = vadd.f32 %v1013, %v1103
      %v1206 = vadd.f32 %v1014, %v1108
      %v1207 = vadd.f32 %v1015, %v1111
      %v1208 = vadd.f32 %v1016, %v1116
      %v1209 = vadd.f32 %v1017, %v1119
      %v1210 = vadd.f32 %v1018, %v1124
      %v1211 = vadd.f32 %v1019, %v1127
      %v1212 = vadd.f32 %v1020, %v1132
      %v1213 = vadd.f32 %v1021, %v1135
      %v1214 = vadd.f32 %v1022, %v1140
      %v1215 = vadd.f32 %v1023, %v1143
      %v1216 = vadd.f32 %v1024, %v1148
      %v1217 = vadd.f32 %v1025, %v1151
      %v1218 = vadd.f32 %v1026, %v1156
      %v1219 = vadd.f32 %v1027, %v1159
      %v1220 = vadd.f32 %v1028, %v1164
      %v1221 = vadd.f32 %v1029, %v1167
      %v1222 = vadd.f32 %v1030, %v1172
      %v1223 = vadd.f32 %v1031, %v1175
      %v1224 = vadd.f32 %v1032, %v1180
      %v1225 = vadd.f32 %v1033, %v1183
      %v1226 = vadd.f32 %v1034, %v1188
      %v1227 = vadd.f32 %v1035, %v1191
      %v1228 = vadd.f32 %v1036, %v1196
      %v1229 = vadd.f32 %v1037, %v1199
      %s1230 = scalar_lea.vmem %s1, 64
      %v1231 = vld [vmem:[%s1230] sm:$0xf]
      %v1232 = vld [vmem:[%s1230 + $0x4] sm:$0xf]
      %v1233 = vld [vmem:[%s1230 + $0x8] sm:$0xf]
      %v1234 = vld [vmem:[%s1230 + $0xc] sm:$0xf]
      %v1235 = vshrl.u32 %v247, 16
      %v1237 = vor.u32 %v1235, %v374
      %v1239 = vshll.u32 %v248, 16
      %v1241 = vrot.slane %v1239, 1
      %v1242 = vsel %vm259, %v1237, %v1241
      %v1247 = vunpack.c.l.b16 %v1231
      %v1248 = vunpack.c.l.b16 %v1232
      %v1249 = vunpack.c.l.b16 %v1233
      %v1250 = vunpack.c.l.b16 %v1234
      %v1251 = vpack.c.b16 %v1248, %v1247
      %v1252 = vpack.c.b16 %v1250, %v1249
      %v1256 = vsel %vm388, %v1242, 0
      %1258 = vmatprep.subr.bf16.mxu0 0
      %1259 = vmatpush1.bf16.msra.mxu0 %v1251
      %1260 = vmatprep.subr.bf16.mxu0 0
      %1261 = vmatpush1.bf16.msra.mxu0 %v1252
      %1262 = vmatprep.subr.bf16.mxu0 0
      %1263 = vmatpush1.bf16.msra.mxu0 0
      %1264 = vmatprep.subr.bf16.mxu0 0
      %1265 = vmatpush1.bf16.msra.mxu0 0
      %1266 = vmatprep.subr.bf16.mxu0 0
      %1267 = vmatpush1.bf16.msra.mxu0 0
      %1268 = vmatprep.subr.bf16.mxu0 0
      %1269 = vmatpush1.bf16.msra.mxu0 0
      %1270 = vmatprep.subr.bf16.mxu0 0
      %1271 = vmatpush1.bf16.msra.mxu0 0
      %1272 = vmatprep.subr.bf16.mxu0 0
      %1273 = vmatpush1.bf16.msra.mxu0 0
      %1274 = vmatprep.subr.bf16.mxu0 0
      %1275 = vmatpush1.bf16.msra.mxu0 0
      %1276 = vmatprep.subr.bf16.mxu0 0
      %1277 = vmatpush1.bf16.msra.mxu0 0
      %1278 = vmatprep.subr.bf16.mxu0 0
      %1279 = vmatpush1.bf16.msra.mxu0 0
      %1280 = vmatprep.subr.bf16.mxu0 0
      %1281 = vmatpush1.bf16.msra.mxu0 0
      %1282 = vmatprep.subr.bf16.mxu0 0
      %1283 = vmatpush1.bf16.msra.mxu0 0
      %1284 = vmatprep.subr.bf16.mxu0 0
      %1285 = vmatpush1.bf16.msra.mxu0 0
      %1286 = vmatprep.subr.bf16.mxu0 0
      %1287 = vmatpush1.bf16.msra.mxu0 0
      %1288 = vmatprep.subr.bf16.mxu0 0
      %1289 = vmatpush1.bf16.msra.mxu0 0
      %1290 = vmatprep.mubr.bf16.mxu0 0
      %1291 = vmatmul.mubr.bf16.gmra.mrb[0].mxu0 %v393
      %v1292 = vpop.f32.mrb[0].mxu0
      %v1293 = vadd.f32 0.0, %v1292
      %v1294 = vpop.f32.mrb[0].mxu0
      %v1295 = vpop.f32.mrb[0].mxu0
      %v1296 = vadd.f32 0.0, %v1295
      %v1297 = vpop.f32.mrb[0].mxu0
      %1298 = vmatprep.mubr.bf16.mxu0 0
      %1299 = vmatmul.mubr.bf16.gmra.mrb[0].mxu0 %v396
      %v1300 = vpop.f32.mrb[0].mxu0
      %v1301 = vadd.f32 0.0, %v1300
      %v1302 = vpop.f32.mrb[0].mxu0
      %v1303 = vpop.f32.mrb[0].mxu0
      %v1304 = vadd.f32 0.0, %v1303
      %v1305 = vpop.f32.mrb[0].mxu0
      %1306 = vmatprep.mubr.bf16.mxu0 0
      %1307 = vmatmul.mubr.bf16.gmra.mrb[0].mxu0 %v399
      %v1308 = vpop.f32.mrb[0].mxu0
      %v1309 = vadd.f32 0.0, %v1308
      %v1310 = vpop.f32.mrb[0].mxu0
      %v1311 = vpop.f32.mrb[0].mxu0
      %v1312 = vadd.f32 0.0, %v1311
      %v1313 = vpop.f32.mrb[0].mxu0
      %1314 = vmatprep.mubr.bf16.mxu0 0
      %1315 = vmatmul.mubr.bf16.gmra.mrb[0].mxu0 %v402
      %v1316 = vpop.f32.mrb[0].mxu0
      %v1317 = vadd.f32 0.0, %v1316
      %v1318 = vpop.f32.mrb[0].mxu0
      %v1319 = vpop.f32.mrb[0].mxu0
      %v1320 = vadd.f32 0.0, %v1319
      %v1321 = vpop.f32.mrb[0].mxu0
      %1322 = vmatprep.mubr.bf16.mxu0 0
      %1323 = vmatmul.mubr.bf16.gmra.mrb[0].mxu0 %v405
      %v1324 = vpop.f32.mrb[0].mxu0
      %v1325 = vadd.f32 0.0, %v1324
      %v1326 = vpop.f32.mrb[0].mxu0
      %v1327 = vpop.f32.mrb[0].mxu0
      %v1328 = vadd.f32 0.0, %v1327
      %v1329 = vpop.f32.mrb[0].mxu0
      %1330 = vmatprep.mubr.bf16.mxu0 0
      %1331 = vmatmul.mubr.bf16.gmra.mrb[0].mxu0 %v408
      %v1332 = vpop.f32.mrb[0].mxu0
      %v1333 = vadd.f32 0.0, %v1332
      %v1334 = vpop.f32.mrb[0].mxu0
      %v1335 = vpop.f32.mrb[0].mxu0
      %v1336 = vadd.f32 0.0, %v1335
      %v1337 = vpop.f32.mrb[0].mxu0
      %1338 = vmatprep.mubr.bf16.mxu0 0
      %1339 = vmatmul.mubr.bf16.gmra.mrb[0].mxu0 %v411
      %v1340 = vpop.f32.mrb[0].mxu0
      %v1341 = vadd.f32 0.0, %v1340
      %v1342 = vpop.f32.mrb[0].mxu0
      %v1343 = vpop.f32.mrb[0].mxu0
      %v1344 = vadd.f32 0.0, %v1343
      %v1345 = vpop.f32.mrb[0].mxu0
      %1346 = vmatprep.mubr.bf16.mxu0 0
      %1347 = vmatmul.mubr.bf16.gmra.mrb[0].mxu0 %v414
      %v1348 = vpop.f32.mrb[0].mxu0
      %v1349 = vadd.f32 0.0, %v1348
      %v1350 = vpop.f32.mrb[0].mxu0
      %v1351 = vpop.f32.mrb[0].mxu0
      %v1352 = vadd.f32 0.0, %v1351
      %v1353 = vpop.f32.mrb[0].mxu0
      %1354 = vmatprep.mubr.bf16.mxu0 0
      %1355 = vmatmul.mubr.bf16.gmra.mrb[0].mxu0 %v417
      %v1356 = vpop.f32.mrb[0].mxu0
      %v1357 = vadd.f32 0.0, %v1356
      %v1358 = vpop.f32.mrb[0].mxu0
      %v1359 = vpop.f32.mrb[0].mxu0
      %v1360 = vadd.f32 0.0, %v1359
      %v1361 = vpop.f32.mrb[0].mxu0
      %1362 = vmatprep.mubr.bf16.mxu0 0
      %1363 = vmatmul.mubr.bf16.gmra.mrb[0].mxu0 %v420
      %v1364 = vpop.f32.mrb[0].mxu0
      %v1365 = vadd.f32 0.0, %v1364
      %v1366 = vpop.f32.mrb[0].mxu0
      %v1367 = vpop.f32.mrb[0].mxu0
      %v1368 = vadd.f32 0.0, %v1367
      %v1369 = vpop.f32.mrb[0].mxu0
      %1370 = vmatprep.mubr.bf16.mxu0 0
      %1371 = vmatmul.mubr.bf16.gmra.mrb[0].mxu0 %v423
      %v1372 = vpop.f32.mrb[0].mxu0
      %v1373 = vadd.f32 0.0, %v1372
      %v1374 = vpop.f32.mrb[0].mxu0
      %v1375 = vpop.f32.mrb[0].mxu0
      %v1376 = vadd.f32 0.0, %v1375
      %v1377 = vpop.f32.mrb[0].mxu0
      %1378 = vmatprep.mubr.bf16.mxu0 0
      %1379 = vmatmul.mubr.bf16.gmra.mrb[0].mxu0 %v426
      %v1380 = vpop.f32.mrb[0].mxu0
      %v1381 = vadd.f32 0.0, %v1380
      %v1382 = vpop.f32.mrb[0].mxu0
      %v1383 = vpop.f32.mrb[0].mxu0
      %v1384 = vadd.f32 0.0, %v1383
      %v1385 = vpop.f32.mrb[0].mxu0
      %1386 = vmatprep.mubr.bf16.mxu0 0
      %1387 = vmatmul.mubr.bf16.gmra.mrb[0].mxu0 %v429
      %v1388 = vpop.f32.mrb[0].mxu0
      %v1389 = vadd.f32 0.0, %v1388
      %v1390 = vpop.f32.mrb[0].mxu0
      %v1391 = vpop.f32.mrb[0].mxu0
      %v1392 = vadd.f32 0.0, %v1391
      %v1393 = vpop.f32.mrb[0].mxu0
      %1394 = vmatprep.mubr.bf16.mxu0 0
      %1395 = vmatmul.mubr.bf16.gmra.mrb[0].mxu0 %v1256
      %v1396 = vpop.f32.mrb[0].mxu0
      %v1397 = vadd.f32 0.0, %v1396
      %v1398 = vpop.f32.mrb[0].mxu0
      %v1399 = vpop.f32.mrb[0].mxu0
      %v1400 = vadd.f32 0.0, %v1399
      %v1401 = vpop.f32.mrb[0].mxu0
      %1402 = vdwg.mxu0
      %v1403 = vadd.f32 %v1202, %v1293
      %v1404 = vadd.f32 %v1203, %v1296
      %v1405 = vadd.f32 %v1204, %v1301
      %v1406 = vadd.f32 %v1205, %v1304
      %v1407 = vadd.f32 %v1206, %v1309
      %v1408 = vadd.f32 %v1207, %v1312
      %v1409 = vadd.f32 %v1208, %v1317
      %v1410 = vadd.f32 %v1209, %v1320
      %v1411 = vadd.f32 %v1210, %v1325
      %v1412 = vadd.f32 %v1211, %v1328
      %v1413 = vadd.f32 %v1212, %v1333
      %v1414 = vadd.f32 %v1213, %v1336
      %v1415 = vadd.f32 %v1214, %v1341
      %v1416 = vadd.f32 %v1215, %v1344
      %v1417 = vadd.f32 %v1216, %v1349
      %v1418 = vadd.f32 %v1217, %v1352
      %v1419 = vadd.f32 %v1218, %v1357
      %v1420 = vadd.f32 %v1219, %v1360
      %v1421 = vadd.f32 %v1220, %v1365
      %v1422 = vadd.f32 %v1221, %v1368
      %v1423 = vadd.f32 %v1222, %v1373
      %v1424 = vadd.f32 %v1223, %v1376
      %v1425 = vadd.f32 %v1224, %v1381
      %v1426 = vadd.f32 %v1225, %v1384
      %v1427 = vadd.f32 %v1226, %v1389
      %v1428 = vadd.f32 %v1227, %v1392
      %v1429 = vadd.f32 %v1228, %v1397
      %v1430 = vadd.f32 %v1229, %v1400
      %s1431 = scalar_lea.vmem %s1, 80
      %v1432 = vld [vmem:[%s1431] sm:$0xf]
      %v1433 = vld [vmem:[%s1431 + $0x4] sm:$0xf]
      %v1434 = vld [vmem:[%s1431 + $0x8] sm:$0xf]
      %v1435 = vld [vmem:[%s1431 + $0xc] sm:$0xf]
      %v1437 = vrot.slane %v248, 1
      %v1438 = vsel %vm781, %v809, %v1437
      %v1443 = vunpack.c.l.b16 %v1432
      %v1444 = vunpack.c.l.b16 %v1433
      %v1445 = vunpack.c.l.b16 %v1434
      %v1446 = vunpack.c.l.b16 %v1435
      %v1447 = vpack.c.b16 %v1444, %v1443
      %v1448 = vpack.c.b16 %v1446, %v1445
      %v1452 = vsel %vm388, %v1438, 0
      %1454 = vmatprep.subr.bf16.mxu0 0
      %1455 = vmatpush1.bf16.msra.mxu0 %v1447
      %1456 = vmatprep.subr.bf16.mxu0 0
      %1457 = vmatpush1.bf16.msra.mxu0 %v1448
      %1458 = vmatprep.subr.bf16.mxu0 0
      %1459 = vmatpush1.bf16.msra.mxu0 0
      %1460 = vmatprep.subr.bf16.mxu0 0
      %1461 = vmatpush1.bf16.msra.mxu0 0
      %1462 = vmatprep.subr.bf16.mxu0 0
      %1463 = vmatpush1.bf16.msra.mxu0 0
      %1464 = vmatprep.subr.bf16.mxu0 0
      %1465 = vmatpush1.bf16.msra.mxu0 0
      %1466 = vmatprep.subr.bf16.mxu0 0
      %1467 = vmatpush1.bf16.msra.mxu0 0
      %1468 = vmatprep.subr.bf16.mxu0 0
      %1469 = vmatpush1.bf16.msra.mxu0 0
      %1470 = vmatprep.subr.bf16.mxu0 0
      %1471 = vmatpush1.bf16.msra.mxu0 0
      %1472 = vmatprep.subr.bf16.mxu0 0
      %1473 = vmatpush1.bf16.msra.mxu0 0
      %1474 = vmatprep.subr.bf16.mxu0 0
      %1475 = vmatpush1.bf16.msra.mxu0 0
      %1476 = vmatprep.subr.bf16.mxu0 0
      %1477 = vmatpush1.bf16.msra.mxu0 0
      %1478 = vmatprep.subr.bf16.mxu0 0
      %1479 = vmatpush1.bf16.msra.mxu0 0
      %1480 = vmatprep.subr.bf16.mxu0 0
      %1481 = vmatpush1.bf16.msra.mxu0 0
      %1482 = vmatprep.subr.bf16.mxu0 0
      %1483 = vmatpush1.bf16.msra.mxu0 0
      %1484 = vmatprep.subr.bf16.mxu0 0
      %1485 = vmatpush1.bf16.msra.mxu0 0
      %1486 = vmatprep.mubr.bf16.mxu0 0
      %1487 = vmatmul.mubr.bf16.gmra.mrb[0].mxu0 %v827
      %v1488 = vpop.f32.mrb[0].mxu0
      %v1489 = vadd.f32 0.0, %v1488
      %v1490 = vpop.f32.mrb[0].mxu0
      %v1491 = vpop.f32.mrb[0].mxu0
      %v1492 = vadd.f32 0.0, %v1491
      %v1493 = vpop.f32.mrb[0].mxu0
      %1494 = vmatprep.mubr.bf16.mxu0 0
      %1495 = vmatmul.mubr.bf16.gmra.mrb[0].mxu0 %v830
      %v1496 = vpop.f32.mrb[0].mxu0
      %v1497 = vadd.f32 0.0, %v1496
      %v1498 = vpop.f32.mrb[0].mxu0
      %v1499 = vpop.f32.mrb[0].mxu0
      %v1500 = vadd.f32 0.0, %v1499
      %v1501 = vpop.f32.mrb[0].mxu0
      %1502 = vmatprep.mubr.bf16.mxu0 0
      %1503 = vmatmul.mubr.bf16.gmra.mrb[0].mxu0 %v833
      %v1504 = vpop.f32.mrb[0].mxu0
      %v1505 = vadd.f32 0.0, %v1504
      %v1506 = vpop.f32.mrb[0].mxu0
      %v1507 = vpop.f32.mrb[0].mxu0
      %v1508 = vadd.f32 0.0, %v1507
      %v1509 = vpop.f32.mrb[0].mxu0
      %1510 = vmatprep.mubr.bf16.mxu0 0
      %1511 = vmatmul.mubr.bf16.gmra.mrb[0].mxu0 %v836
      %v1512 = vpop.f32.mrb[0].mxu0
      %v1513 = vadd.f32 0.0, %v1512
      %v1514 = vpop.f32.mrb[0].mxu0
      %v1515 = vpop.f32.mrb[0].mxu0
      %v1516 = vadd.f32 0.0, %v1515
      %v1517 = vpop.f32.mrb[0].mxu0
      %1518 = vmatprep.mubr.bf16.mxu0 0
      %1519 = vmatmul.mubr.bf16.gmra.mrb[0].mxu0 %v839
      %v1520 = vpop.f32.mrb[0].mxu0
      %v1521 = vadd.f32 0.0, %v1520
      %v1522 = vpop.f32.mrb[0].mxu0
      %v1523 = vpop.f32.mrb[0].mxu0
      %v1524 = vadd.f32 0.0, %v1523
      %v1525 = vpop.f32.mrb[0].mxu0
      %1526 = vmatprep.mubr.bf16.mxu0 0
      %1527 = vmatmul.mubr.bf16.gmra.mrb[0].mxu0 %v842
      %v1528 = vpop.f32.mrb[0].mxu0
      %v1529 = vadd.f32 0.0, %v1528
      %v1530 = vpop.f32.mrb[0].mxu0
      %v1531 = vpop.f32.mrb[0].mxu0
      %v1532 = vadd.f32 0.0, %v1531
      %v1533 = vpop.f32.mrb[0].mxu0
      %1534 = vmatprep.mubr.bf16.mxu0 0
      %1535 = vmatmul.mubr.bf16.gmra.mrb[0].mxu0 %v845
      %v1536 = vpop.f32.mrb[0].mxu0
      %v1537 = vadd.f32 0.0, %v1536
      %v1538 = vpop.f32.mrb[0].mxu0
      %v1539 = vpop.f32.mrb[0].mxu0
      %v1540 = vadd.f32 0.0, %v1539
      %v1541 = vpop.f32.mrb[0].mxu0
      %1542 = vmatprep.mubr.bf16.mxu0 0
      %1543 = vmatmul.mubr.bf16.gmra.mrb[0].mxu0 %v848
      %v1544 = vpop.f32.mrb[0].mxu0
      %v1545 = vadd.f32 0.0, %v1544
      %v1546 = vpop.f32.mrb[0].mxu0
      %v1547 = vpop.f32.mrb[0].mxu0
      %v1548 = vadd.f32 0.0, %v1547
      %v1549 = vpop.f32.mrb[0].mxu0
      %1550 = vmatprep.mubr.bf16.mxu0 0
      %1551 = vmatmul.mubr.bf16.gmra.mrb[0].mxu0 %v851
      %v1552 = vpop.f32.mrb[0].mxu0
      %v1553 = vadd.f32 0.0, %v1552
      %v1554 = vpop.f32.mrb[0].mxu0
      %v1555 = vpop.f32.mrb[0].mxu0
      %v1556 = vadd.f32 0.0, %v1555
      %v1557 = vpop.f32.mrb[0].mxu0
      %1558 = vmatprep.mubr.bf16.mxu0 0
      %1559 = vmatmul.mubr.bf16.gmra.mrb[0].mxu0 %v854
      %v1560 = vpop.f32.mrb[0].mxu0
      %v1561 = vadd.f32 0.0, %v1560
      %v1562 = vpop.f32.mrb[0].mxu0
      %v1563 = vpop.f32.mrb[0].mxu0
      %v1564 = vadd.f32 0.0, %v1563
      %v1565 = vpop.f32.mrb[0].mxu0
      %1566 = vmatprep.mubr.bf16.mxu0 0
      %1567 = vmatmul.mubr.bf16.gmra.mrb[0].mxu0 %v857
      %v1568 = vpop.f32.mrb[0].mxu0
      %v1569 = vadd.f32 0.0, %v1568
      %v1570 = vpop.f32.mrb[0].mxu0
      %v1571 = vpop.f32.mrb[0].mxu0
      %v1572 = vadd.f32 0.0, %v1571
      %v1573 = vpop.f32.mrb[0].mxu0
      %1574 = vmatprep.mubr.bf16.mxu0 0
      %1575 = vmatmul.mubr.bf16.gmra.mrb[0].mxu0 %v860
      %v1576 = vpop.f32.mrb[0].mxu0
      %v1577 = vadd.f32 0.0, %v1576
      %v1578 = vpop.f32.mrb[0].mxu0
      %v1579 = vpop.f32.mrb[0].mxu0
      %v1580 = vadd.f32 0.0, %v1579
      %v1581 = vpop.f32.mrb[0].mxu0
      %1582 = vmatprep.mubr.bf16.mxu0 0
      %1583 = vmatmul.mubr.bf16.gmra.mrb[0].mxu0 %v863
      %v1584 = vpop.f32.mrb[0].mxu0
      %v1585 = vadd.f32 0.0, %v1584
      %v1586 = vpop.f32.mrb[0].mxu0
      %v1587 = vpop.f32.mrb[0].mxu0
      %v1588 = vadd.f32 0.0, %v1587
      %v1589 = vpop.f32.mrb[0].mxu0
      %1590 = vmatprep.mubr.bf16.mxu0 0
      %1591 = vmatmul.mubr.bf16.gmra.mrb[0].mxu0 %v1452
      %v1592 = vpop.f32.mrb[0].mxu0
      %v1593 = vadd.f32 0.0, %v1592
      %v1594 = vpop.f32.mrb[0].mxu0
      %v1595 = vpop.f32.mrb[0].mxu0
      %v1596 = vadd.f32 0.0, %v1595
      %v1597 = vpop.f32.mrb[0].mxu0
      %1598 = vdwg.mxu0
      %v1599 = vadd.f32 %v1403, %v1489
      %v1600 = vadd.f32 %v1404, %v1492
      %v1601 = vadd.f32 %v1405, %v1497
      %v1602 = vadd.f32 %v1406, %v1500
      %v1603 = vadd.f32 %v1407, %v1505
      %v1604 = vadd.f32 %v1408, %v1508
      %v1605 = vadd.f32 %v1409, %v1513
      %v1606 = vadd.f32 %v1410, %v1516
      %v1607 = vadd.f32 %v1411, %v1521
      %v1608 = vadd.f32 %v1412, %v1524
      %v1609 = vadd.f32 %v1413, %v1529
      %v1610 = vadd.f32 %v1414, %v1532
      %v1611 = vadd.f32 %v1415, %v1537
      %v1612 = vadd.f32 %v1416, %v1540
      %v1613 = vadd.f32 %v1417, %v1545
      %v1614 = vadd.f32 %v1418, %v1548
      %v1615 = vadd.f32 %v1419, %v1553
      %v1616 = vadd.f32 %v1420, %v1556
      %v1617 = vadd.f32 %v1421, %v1561
      %v1618 = vadd.f32 %v1422, %v1564
      %v1619 = vadd.f32 %v1423, %v1569
      %v1620 = vadd.f32 %v1424, %v1572
      %v1621 = vadd.f32 %v1425, %v1577
      %v1622 = vadd.f32 %v1426, %v1580
      %v1623 = vadd.f32 %v1427, %v1585
      %v1624 = vadd.f32 %v1428, %v1588
      %v1625 = vadd.f32 %v1429, %v1593
      %v1626 = vadd.f32 %v1430, %v1596
      %s1627 = scalar_lea.vmem %s1, 96
      %v1628 = vld [vmem:[%s1627] sm:$0xf]
      %v1629 = vld [vmem:[%s1627 + $0x4] sm:$0xf]
      %v1630 = vld [vmem:[%s1627 + $0x8] sm:$0xf]
      %v1631 = vld [vmem:[%s1627 + $0xc] sm:$0xf]
      %v1636 = vunpack.c.l.b16 %v1628
      %v1637 = vunpack.c.l.b16 %v1629
      %v1638 = vunpack.c.l.b16 %v1630
      %v1639 = vunpack.c.l.b16 %v1631
      %v1640 = vpack.c.b16 %v1637, %v1636
      %v1641 = vpack.c.b16 %v1639, %v1638
      %v1644 = vsel %vm388, %v248, 0
      %1646 = vmatprep.subr.bf16.mxu0 0
      %1647 = vmatpush1.bf16.msra.mxu0 %v1640
      %1648 = vmatprep.subr.bf16.mxu0 0
      %1649 = vmatpush1.bf16.msra.mxu0 %v1641
      %1650 = vmatprep.subr.bf16.mxu0 0
      %1651 = vmatpush1.bf16.msra.mxu0 0
      %1652 = vmatprep.subr.bf16.mxu0 0
      %1653 = vmatpush1.bf16.msra.mxu0 0
      %1654 = vmatprep.subr.bf16.mxu0 0
      %1655 = vmatpush1.bf16.msra.mxu0 0
      %1656 = vmatprep.subr.bf16.mxu0 0
      %1657 = vmatpush1.bf16.msra.mxu0 0
      %1658 = vmatprep.subr.bf16.mxu0 0
      %1659 = vmatpush1.bf16.msra.mxu0 0
      %1660 = vmatprep.subr.bf16.mxu0 0
      %1661 = vmatpush1.bf16.msra.mxu0 0
      %1662 = vmatprep.subr.bf16.mxu0 0
      %1663 = vmatpush1.bf16.msra.mxu0 0
      %1664 = vmatprep.subr.bf16.mxu0 0
      %1665 = vmatpush1.bf16.msra.mxu0 0
      %1666 = vmatprep.subr.bf16.mxu0 0
      %1667 = vmatpush1.bf16.msra.mxu0 0
      %1668 = vmatprep.subr.bf16.mxu0 0
      %1669 = vmatpush1.bf16.msra.mxu0 0
      %1670 = vmatprep.subr.bf16.mxu0 0
      %1671 = vmatpush1.bf16.msra.mxu0 0
      %1672 = vmatprep.subr.bf16.mxu0 0
      %1673 = vmatpush1.bf16.msra.mxu0 0
      %1674 = vmatprep.subr.bf16.mxu0 0
      %1675 = vmatpush1.bf16.msra.mxu0 0
      %1676 = vmatprep.subr.bf16.mxu0 0
      %1677 = vmatpush1.bf16.msra.mxu0 0
      %1678 = vmatprep.mubr.bf16.mxu0 0
      %1679 = vmatmul.mubr.bf16.gmra.mrb[0].mxu0 %v592
      %v1680 = vpop.f32.mrb[0].mxu0
      %v1681 = vadd.f32 0.0, %v1680
      %v1682 = vpop.f32.mrb[0].mxu0
      %v1683 = vpop.f32.mrb[0].mxu0
      %v1684 = vadd.f32 0.0, %v1683
      %v1685 = vpop.f32.mrb[0].mxu0
      %1686 = vmatprep.mubr.bf16.mxu0 0
      %1687 = vmatmul.mubr.bf16.gmra.mrb[0].mxu0 %v594
      %v1688 = vpop.f32.mrb[0].mxu0
      %v1689 = vadd.f32 0.0, %v1688
      %v1690 = vpop.f32.mrb[0].mxu0
      %v1691 = vpop.f32.mrb[0].mxu0
      %v1692 = vadd.f32 0.0, %v1691
      %v1693 = vpop.f32.mrb[0].mxu0
      %1694 = vmatprep.mubr.bf16.mxu0 0
      %1695 = vmatmul.mubr.bf16.gmra.mrb[0].mxu0 %v596
      %v1696 = vpop.f32.mrb[0].mxu0
      %v1697 = vadd.f32 0.0, %v1696
      %v1698 = vpop.f32.mrb[0].mxu0
      %v1699 = vpop.f32.mrb[0].mxu0
      %v1700 = vadd.f32 0.0, %v1699
      %v1701 = vpop.f32.mrb[0].mxu0
      %1702 = vmatprep.mubr.bf16.mxu0 0
      %1703 = vmatmul.mubr.bf16.gmra.mrb[0].mxu0 %v598
      %v1704 = vpop.f32.mrb[0].mxu0
      %v1705 = vadd.f32 0.0, %v1704
      %v1706 = vpop.f32.mrb[0].mxu0
      %v1707 = vpop.f32.mrb[0].mxu0
      %v1708 = vadd.f32 0.0, %v1707
      %v1709 = vpop.f32.mrb[0].mxu0
      %1710 = vmatprep.mubr.bf16.mxu0 0
      %1711 = vmatmul.mubr.bf16.gmra.mrb[0].mxu0 %v600
      %v1712 = vpop.f32.mrb[0].mxu0
      %v1713 = vadd.f32 0.0, %v1712
      %v1714 = vpop.f32.mrb[0].mxu0
      %v1715 = vpop.f32.mrb[0].mxu0
      %v1716 = vadd.f32 0.0, %v1715
      %v1717 = vpop.f32.mrb[0].mxu0
      %1718 = vmatprep.mubr.bf16.mxu0 0
      %1719 = vmatmul.mubr.bf16.gmra.mrb[0].mxu0 %v602
      %v1720 = vpop.f32.mrb[0].mxu0
      %v1721 = vadd.f32 0.0, %v1720
      %v1722 = vpop.f32.mrb[0].mxu0
      %v1723 = vpop.f32.mrb[0].mxu0
      %v1724 = vadd.f32 0.0, %v1723
      %v1725 = vpop.f32.mrb[0].mxu0
      %1726 = vmatprep.mubr.bf16.mxu0 0
      %1727 = vmatmul.mubr.bf16.gmra.mrb[0].mxu0 %v604
      %v1728 = vpop.f32.mrb[0].mxu0
      %v1729 = vadd.f32 0.0, %v1728
      %v1730 = vpop.f32.mrb[0].mxu0
      %v1731 = vpop.f32.mrb[0].mxu0
      %v1732 = vadd.f32 0.0, %v1731
      %v1733 = vpop.f32.mrb[0].mxu0
      %1734 = vmatprep.mubr.bf16.mxu0 0
      %1735 = vmatmul.mubr.bf16.gmra.mrb[0].mxu0 %v606
      %v1736 = vpop.f32.mrb[0].mxu0
      %v1737 = vadd.f32 0.0, %v1736
      %v1738 = vpop.f32.mrb[0].mxu0
      %v1739 = vpop.f32.mrb[0].mxu0
      %v1740 = vadd.f32 0.0, %v1739
      %v1741 = vpop.f32.mrb[0].mxu0
      %1742 = vmatprep.mubr.bf16.mxu0 0
      %1743 = vmatmul.mubr.bf16.gmra.mrb[0].mxu0 %v608
      %v1744 = vpop.f32.mrb[0].mxu0
      %v1745 = vadd.f32 0.0, %v1744
      %v1746 = vpop.f32.mrb[0].mxu0
      %v1747 = vpop.f32.mrb[0].mxu0
      %v1748 = vadd.f32 0.0, %v1747
      %v1749 = vpop.f32.mrb[0].mxu0
      %1750 = vmatprep.mubr.bf16.mxu0 0
      %1751 = vmatmul.mubr.bf16.gmra.mrb[0].mxu0 %v610
      %v1752 = vpop.f32.mrb[0].mxu0
      %v1753 = vadd.f32 0.0, %v1752
      %v1754 = vpop.f32.mrb[0].mxu0
      %v1755 = vpop.f32.mrb[0].mxu0
      %v1756 = vadd.f32 0.0, %v1755
      %v1757 = vpop.f32.mrb[0].mxu0
      %1758 = vmatprep.mubr.bf16.mxu0 0
      %1759 = vmatmul.mubr.bf16.gmra.mrb[0].mxu0 %v612
      %v1760 = vpop.f32.mrb[0].mxu0
      %v1761 = vadd.f32 0.0, %v1760
      %v1762 = vpop.f32.mrb[0].mxu0
      %v1763 = vpop.f32.mrb[0].mxu0
      %v1764 = vadd.f32 0.0, %v1763
      %v1765 = vpop.f32.mrb[0].mxu0
      %1766 = vmatprep.mubr.bf16.mxu0 0
      %1767 = vmatmul.mubr.bf16.gmra.mrb[0].mxu0 %v614
      %v1768 = vpop.f32.mrb[0].mxu0
      %v1769 = vadd.f32 0.0, %v1768
      %v1770 = vpop.f32.mrb[0].mxu0
      %v1771 = vpop.f32.mrb[0].mxu0
      %v1772 = vadd.f32 0.0, %v1771
      %v1773 = vpop.f32.mrb[0].mxu0
      %1774 = vmatprep.mubr.bf16.mxu0 0
      %1775 = vmatmul.mubr.bf16.gmra.mrb[0].mxu0 %v1055
      %v1776 = vpop.f32.mrb[0].mxu0
      %v1777 = vadd.f32 0.0, %v1776
      %v1778 = vpop.f32.mrb[0].mxu0
      %v1779 = vpop.f32.mrb[0].mxu0
      %v1780 = vadd.f32 0.0, %v1779
      %v1781 = vpop.f32.mrb[0].mxu0
      %1782 = vmatprep.mubr.bf16.mxu0 0
      %1783 = vmatmul.mubr.bf16.gmra.mrb[0].mxu0 %v1644
      %v1784 = vpop.f32.mrb[0].mxu0
      %v1785 = vadd.f32 0.0, %v1784
      %v1786 = vpop.f32.mrb[0].mxu0
      %v1787 = vpop.f32.mrb[0].mxu0
      %v1788 = vadd.f32 0.0, %v1787
      %v1789 = vpop.f32.mrb[0].mxu0
      %1790 = vdwg.mxu0
      %v1791 = vadd.f32 %v1599, %v1681
      %v1792 = vadd.f32 %v1600, %v1684
      %v1793 = vadd.f32 %v1601, %v1689
      %v1794 = vadd.f32 %v1602, %v1692
      %v1795 = vadd.f32 %v1603, %v1697
      %v1796 = vadd.f32 %v1604, %v1700
      %v1797 = vadd.f32 %v1605, %v1705
      %v1798 = vadd.f32 %v1606, %v1708
      %v1799 = vadd.f32 %v1607, %v1713
      %v1800 = vadd.f32 %v1608, %v1716
      %v1801 = vadd.f32 %v1609, %v1721
      %v1802 = vadd.f32 %v1610, %v1724
      %v1803 = vadd.f32 %v1611, %v1729
      %v1804 = vadd.f32 %v1612, %v1732
      %v1805 = vadd.f32 %v1613, %v1737
      %v1806 = vadd.f32 %v1614, %v1740
      %v1807 = vadd.f32 %v1615, %v1745
      %v1808 = vadd.f32 %v1616, %v1748
      %v1809 = vadd.f32 %v1617, %v1753
      %v1810 = vadd.f32 %v1618, %v1756
      %v1811 = vadd.f32 %v1619, %v1761
      %v1812 = vadd.f32 %v1620, %v1764
      %v1813 = vadd.f32 %v1621, %v1769
      %v1814 = vadd.f32 %v1622, %v1772
      %v1815 = vadd.f32 %v1623, %v1777
      %v1816 = vadd.f32 %v1624, %v1780
      %v1817 = vadd.f32 %v1625, %v1785
      %v1818 = vadd.f32 %v1626, %v1788
      %s1819 = scalar_lea.vmem %s1, 112
      %v1820 = vld [vmem:[%s1819] sm:$0xf]
      %v1821 = vld [vmem:[%s1819 + $0x4] sm:$0xf]
      %v1822 = vld [vmem:[%s1819 + $0x8] sm:$0xf]
      %v1823 = vld [vmem:[%s1819 + $0xc] sm:$0xf]
      %v1824 = vshrl.u32 %v248, 16
      %v1826 = vor.u32 %v1824, %v1241
      %v1828 = vshll.u32 %v249, 16
      %v1830 = vrot.slane %v1828, 1
      %v1831 = vsel %vm259, %v1826, %v1830
      %v1836 = vunpack.c.l.b16 %v1820
      %v1837 = vunpack.c.l.b16 %v1821
      %v1838 = vunpack.c.l.b16 %v1822
      %v1839 = vunpack.c.l.b16 %v1823
      %v1840 = vpack.c.b16 %v1837, %v1836
      %v1841 = vpack.c.b16 %v1839, %v1838
      %v1845 = vsel %vm388, %v1831, 0
      %1847 = vmatprep.subr.bf16.mxu0 0
      %1848 = vmatpush1.bf16.msra.mxu0 %v1840
      %1849 = vmatprep.subr.bf16.mxu0 0
      %1850 = vmatpush1.bf16.msra.mxu0 %v1841
      %1851 = vmatprep.subr.bf16.mxu0 0
      %1852 = vmatpush1.bf16.msra.mxu0 0
      %1853 = vmatprep.subr.bf16.mxu0 0
      %1854 = vmatpush1.bf16.msra.mxu0 0
      %1855 = vmatprep.subr.bf16.mxu0 0
      %1856 = vmatpush1.bf16.msra.mxu0 0
      %1857 = vmatprep.subr.bf16.mxu0 0
      %1858 = vmatpush1.bf16.msra.mxu0 0
      %1859 = vmatprep.subr.bf16.mxu0 0
      %1860 = vmatpush1.bf16.msra.mxu0 0
      %1861 = vmatprep.subr.bf16.mxu0 0
      %1862 = vmatpush1.bf16.msra.mxu0 0
      %1863 = vmatprep.subr.bf16.mxu0 0
      %1864 = vmatpush1.bf16.msra.mxu0 0
      %1865 = vmatprep.subr.bf16.mxu0 0
      %1866 = vmatpush1.bf16.msra.mxu0 0
      %1867 = vmatprep.subr.bf16.mxu0 0
      %1868 = vmatpush1.bf16.msra.mxu0 0
      %1869 = vmatprep.subr.bf16.mxu0 0
      %1870 = vmatpush1.bf16.msra.mxu0 0
      %1871 = vmatprep.subr.bf16.mxu0 0
      %1872 = vmatpush1.bf16.msra.mxu0 0
      %1873 = vmatprep.subr.bf16.mxu0 0
      %1874 = vmatpush1.bf16.msra.mxu0 0
      %1875 = vmatprep.subr.bf16.mxu0 0
      %1876 = vmatpush1.bf16.msra.mxu0 0
      %1877 = vmatprep.subr.bf16.mxu0 0
      %1878 = vmatpush1.bf16.msra.mxu0 0
      %1879 = vmatprep.mubr.bf16.mxu0 0
      %1880 = vmatmul.mubr.bf16.gmra.mrb[0].mxu0 %v396
      %v1881 = vpop.f32.mrb[0].mxu0
      %v1882 = vadd.f32 0.0, %v1881
      %v1883 = vpop.f32.mrb[0].mxu0
      %v1884 = vpop.f32.mrb[0].mxu0
      %v1885 = vadd.f32 0.0, %v1884
      %v1886 = vpop.f32.mrb[0].mxu0
      %1887 = vmatprep.mubr.bf16.mxu0 0
      %1888 = vmatmul.mubr.bf16.gmra.mrb[0].mxu0 %v399
      %v1889 = vpop.f32.mrb[0].mxu0
      %v1890 = vadd.f32 0.0, %v1889
      %v1891 = vpop.f32.mrb[0].mxu0
      %v1892 = vpop.f32.mrb[0].mxu0
      %v1893 = vadd.f32 0.0, %v1892
      %v1894 = vpop.f32.mrb[0].mxu0
      %1895 = vmatprep.mubr.bf16.mxu0 0
      %1896 = vmatmul.mubr.bf16.gmra.mrb[0].mxu0 %v402
      %v1897 = vpop.f32.mrb[0].mxu0
      %v1898 = vadd.f32 0.0, %v1897
      %v1899 = vpop.f32.mrb[0].mxu0
      %v1900 = vpop.f32.mrb[0].mxu0
      %v1901 = vadd.f32 0.0, %v1900
      %v1902 = vpop.f32.mrb[0].mxu0
      %1903 = vmatprep.mubr.bf16.mxu0 0
      %1904 = vmatmul.mubr.bf16.gmra.mrb[0].mxu0 %v405
      %v1905 = vpop.f32.mrb[0].mxu0
      %v1906 = vadd.f32 0.0, %v1905
      %v1907 = vpop.f32.mrb[0].mxu0
      %v1908 = vpop.f32.mrb[0].mxu0
      %v1909 = vadd.f32 0.0, %v1908
      %v1910 = vpop.f32.mrb[0].mxu0
      %1911 = vmatprep.mubr.bf16.mxu0 0
      %1912 = vmatmul.mubr.bf16.gmra.mrb[0].mxu0 %v408
      %v1913 = vpop.f32.mrb[0].mxu0
      %v1914 = vadd.f32 0.0, %v1913
      %v1915 = vpop.f32.mrb[0].mxu0
      %v1916 = vpop.f32.mrb[0].mxu0
      %v1917 = vadd.f32 0.0, %v1916
      %v1918 = vpop.f32.mrb[0].mxu0
      %1919 = vmatprep.mubr.bf16.mxu0 0
      %1920 = vmatmul.mubr.bf16.gmra.mrb[0].mxu0 %v411
      %v1921 = vpop.f32.mrb[0].mxu0
      %v1922 = vadd.f32 0.0, %v1921
      %v1923 = vpop.f32.mrb[0].mxu0
      %v1924 = vpop.f32.mrb[0].mxu0
      %v1925 = vadd.f32 0.0, %v1924
      %v1926 = vpop.f32.mrb[0].mxu0
      %1927 = vmatprep.mubr.bf16.mxu0 0
      %1928 = vmatmul.mubr.bf16.gmra.mrb[0].mxu0 %v414
      %v1929 = vpop.f32.mrb[0].mxu0
      %v1930 = vadd.f32 0.0, %v1929
      %v1931 = vpop.f32.mrb[0].mxu0
      %v1932 = vpop.f32.mrb[0].mxu0
      %v1933 = vadd.f32 0.0, %v1932
      %v1934 = vpop.f32.mrb[0].mxu0
      %1935 = vmatprep.mubr.bf16.mxu0 0
      %1936 = vmatmul.mubr.bf16.gmra.mrb[0].mxu0 %v417
      %v1937 = vpop.f32.mrb[0].mxu0
      %v1938 = vadd.f32 0.0, %v1937
      %v1939 = vpop.f32.mrb[0].mxu0
      %v1940 = vpop.f32.mrb[0].mxu0
      %v1941 = vadd.f32 0.0, %v1940
      %v1942 = vpop.f32.mrb[0].mxu0
      %1943 = vmatprep.mubr.bf16.mxu0 0
      %1944 = vmatmul.mubr.bf16.gmra.mrb[0].mxu0 %v420
      %v1945 = vpop.f32.mrb[0].mxu0
      %v1946 = vadd.f32 0.0, %v1945
      %v1947 = vpop.f32.mrb[0].mxu0
      %v1948 = vpop.f32.mrb[0].mxu0
      %v1949 = vadd.f32 0.0, %v1948
      %v1950 = vpop.f32.mrb[0].mxu0
      %1951 = vmatprep.mubr.bf16.mxu0 0
      %1952 = vmatmul.mubr.bf16.gmra.mrb[0].mxu0 %v423
      %v1953 = vpop.f32.mrb[0].mxu0
      %v1954 = vadd.f32 0.0, %v1953
      %v1955 = vpop.f32.mrb[0].mxu0
      %v1956 = vpop.f32.mrb[0].mxu0
      %v1957 = vadd.f32 0.0, %v1956
      %v1958 = vpop.f32.mrb[0].mxu0
      %1959 = vmatprep.mubr.bf16.mxu0 0
      %1960 = vmatmul.mubr.bf16.gmra.mrb[0].mxu0 %v426
      %v1961 = vpop.f32.mrb[0].mxu0
      %v1962 = vadd.f32 0.0, %v1961
      %v1963 = vpop.f32.mrb[0].mxu0
      %v1964 = vpop.f32.mrb[0].mxu0
      %v1965 = vadd.f32 0.0, %v1964
      %v1966 = vpop.f32.mrb[0].mxu0
      %1967 = vmatprep.mubr.bf16.mxu0 0
      %1968 = vmatmul.mubr.bf16.gmra.mrb[0].mxu0 %v429
      %v1969 = vpop.f32.mrb[0].mxu0
      %v1970 = vadd.f32 0.0, %v1969
      %v1971 = vpop.f32.mrb[0].mxu0
      %v1972 = vpop.f32.mrb[0].mxu0
      %v1973 = vadd.f32 0.0, %v1972
      %v1974 = vpop.f32.mrb[0].mxu0
      %1975 = vmatprep.mubr.bf16.mxu0 0
      %1976 = vmatmul.mubr.bf16.gmra.mrb[0].mxu0 %v1256
      %v1977 = vpop.f32.mrb[0].mxu0
      %v1978 = vadd.f32 0.0, %v1977
      %v1979 = vpop.f32.mrb[0].mxu0
      %v1980 = vpop.f32.mrb[0].mxu0
      %v1981 = vadd.f32 0.0, %v1980
      %v1982 = vpop.f32.mrb[0].mxu0
      %1983 = vmatprep.mubr.bf16.mxu0 0
      %1984 = vmatmul.mubr.bf16.gmra.mrb[0].mxu0 %v1845
      %v1985 = vpop.f32.mrb[0].mxu0
      %v1986 = vadd.f32 0.0, %v1985
      %v1987 = vpop.f32.mrb[0].mxu0
      %v1988 = vpop.f32.mrb[0].mxu0
      %v1989 = vadd.f32 0.0, %v1988
      %v1990 = vpop.f32.mrb[0].mxu0
      %1991 = vdwg.mxu0
      %v1992 = vadd.f32 %v1791, %v1882
      %v1993 = vadd.f32 %v1792, %v1885
      %v1994 = vadd.f32 %v1793, %v1890
      %v1995 = vadd.f32 %v1794, %v1893
      %v1996 = vadd.f32 %v1795, %v1898
      %v1997 = vadd.f32 %v1796, %v1901
      %v1998 = vadd.f32 %v1797, %v1906
      %v1999 = vadd.f32 %v1798, %v1909
      %v2000 = vadd.f32 %v1799, %v1914
      %v2001 = vadd.f32 %v1800, %v1917
      %v2002 = vadd.f32 %v1801, %v1922
      %v2003 = vadd.f32 %v1802, %v1925
      %v2004 = vadd.f32 %v1803, %v1930
      %v2005 = vadd.f32 %v1804, %v1933
      %v2006 = vadd.f32 %v1805, %v1938
      %v2007 = vadd.f32 %v1806, %v1941
      %v2008 = vadd.f32 %v1807, %v1946
      %v2009 = vadd.f32 %v1808, %v1949
      %v2010 = vadd.f32 %v1809, %v1954
      %v2011 = vadd.f32 %v1810, %v1957
      %v2012 = vadd.f32 %v1811, %v1962
      %v2013 = vadd.f32 %v1812, %v1965
      %v2014 = vadd.f32 %v1813, %v1970
      %v2015 = vadd.f32 %v1814, %v1973
      %v2016 = vadd.f32 %v1815, %v1978
      %v2017 = vadd.f32 %v1816, %v1981
      %v2018 = vadd.f32 %v1817, %v1986
      %v2019 = vadd.f32 %v1818, %v1989
      %s2020 = scalar_lea.vmem %s1, 128
      %v2021 = vld [vmem:[%s2020] sm:$0xf]
      %v2022 = vld [vmem:[%s2020 + $0x4] sm:$0xf]
      %v2023 = vld [vmem:[%s2020 + $0x8] sm:$0xf]
      %v2024 = vld [vmem:[%s2020 + $0xc] sm:$0xf]
      %v2026 = vrot.slane %v249, 1
      %v2027 = vsel %vm781, %v1437, %v2026
      %v2032 = vunpack.c.l.b16 %v2021
      %v2033 = vunpack.c.l.b16 %v2022
      %v2034 = vunpack.c.l.b16 %v2023
      %v2035 = vunpack.c.l.b16 %v2024
      %v2036 = vpack.c.b16 %v2033, %v2032
      %v2037 = vpack.c.b16 %v2035, %v2034
      %v2041 = vsel %vm388, %v2027, 0
      %2043 = vmatprep.subr.bf16.mxu0 0
      %2044 = vmatpush1.bf16.msra.mxu0 %v2036
      %2045 = vmatprep.subr.bf16.mxu0 0
      %2046 = vmatpush1.bf16.msra.mxu0 %v2037
      %2047 = vmatprep.subr.bf16.mxu0 0
      %2048 = vmatpush1.bf16.msra.mxu0 0
      %2049 = vmatprep.subr.bf16.mxu0 0
      %2050 = vmatpush1.bf16.msra.mxu0 0
      %2051 = vmatprep.subr.bf16.mxu0 0
      %2052 = vmatpush1.bf16.msra.mxu0 0
      %2053 = vmatprep.subr.bf16.mxu0 0
      %2054 = vmatpush1.bf16.msra.mxu0 0
      %2055 = vmatprep.subr.bf16.mxu0 0
      %2056 = vmatpush1.bf16.msra.mxu0 0
      %2057 = vmatprep.subr.bf16.mxu0 0
      %2058 = vmatpush1.bf16.msra.mxu0 0
      %2059 = vmatprep.subr.bf16.mxu0 0
      %2060 = vmatpush1.bf16.msra.mxu0 0
      %2061 = vmatprep.subr.bf16.mxu0 0
      %2062 = vmatpush1.bf16.msra.mxu0 0
      %2063 = vmatprep.subr.bf16.mxu0 0
      %2064 = vmatpush1.bf16.msra.mxu0 0
      %2065 = vmatprep.subr.bf16.mxu0 0
      %2066 = vmatpush1.bf16.msra.mxu0 0
      %2067 = vmatprep.subr.bf16.mxu0 0
      %2068 = vmatpush1.bf16.msra.mxu0 0
      %2069 = vmatprep.subr.bf16.mxu0 0
      %2070 = vmatpush1.bf16.msra.mxu0 0
      %2071 = vmatprep.subr.bf16.mxu0 0
      %2072 = vmatpush1.bf16.msra.mxu0 0
      %2073 = vmatprep.subr.bf16.mxu0 0
      %2074 = vmatpush1.bf16.msra.mxu0 0
      %2075 = vmatprep.mubr.bf16.mxu0 0
      %2076 = vmatmul.mubr.bf16.gmra.mrb[0].mxu0 %v830
      %v2077 = vpop.f32.mrb[0].mxu0
      %v2078 = vadd.f32 0.0, %v2077
      %v2079 = vpop.f32.mrb[0].mxu0
      %v2080 = vpop.f32.mrb[0].mxu0
      %v2081 = vadd.f32 0.0, %v2080
      %v2082 = vpop.f32.mrb[0].mxu0
      %2083 = vmatprep.mubr.bf16.mxu0 0
      %2084 = vmatmul.mubr.bf16.gmra.mrb[0].mxu0 %v833
      %v2085 = vpop.f32.mrb[0].mxu0
      %v2086 = vadd.f32 0.0, %v2085
      %v2087 = vpop.f32.mrb[0].mxu0
      %v2088 = vpop.f32.mrb[0].mxu0
      %v2089 = vadd.f32 0.0, %v2088
      %v2090 = vpop.f32.mrb[0].mxu0
      %2091 = vmatprep.mubr.bf16.mxu0 0
      %2092 = vmatmul.mubr.bf16.gmra.mrb[0].mxu0 %v836
      %v2093 = vpop.f32.mrb[0].mxu0
      %v2094 = vadd.f32 0.0, %v2093
      %v2095 = vpop.f32.mrb[0].mxu0
      %v2096 = vpop.f32.mrb[0].mxu0
      %v2097 = vadd.f32 0.0, %v2096
      %v2098 = vpop.f32.mrb[0].mxu0
      %2099 = vmatprep.mubr.bf16.mxu0 0
      %2100 = vmatmul.mubr.bf16.gmra.mrb[0].mxu0 %v839
      %v2101 = vpop.f32.mrb[0].mxu0
      %v2102 = vadd.f32 0.0, %v2101
      %v2103 = vpop.f32.mrb[0].mxu0
      %v2104 = vpop.f32.mrb[0].mxu0
      %v2105 = vadd.f32 0.0, %v2104
      %v2106 = vpop.f32.mrb[0].mxu0
      %2107 = vmatprep.mubr.bf16.mxu0 0
      %2108 = vmatmul.mubr.bf16.gmra.mrb[0].mxu0 %v842
      %v2109 = vpop.f32.mrb[0].mxu0
      %v2110 = vadd.f32 0.0, %v2109
      %v2111 = vpop.f32.mrb[0].mxu0
      %v2112 = vpop.f32.mrb[0].mxu0
      %v2113 = vadd.f32 0.0, %v2112
      %v2114 = vpop.f32.mrb[0].mxu0
      %2115 = vmatprep.mubr.bf16.mxu0 0
      %2116 = vmatmul.mubr.bf16.gmra.mrb[0].mxu0 %v845
      %v2117 = vpop.f32.mrb[0].mxu0
      %v2118 = vadd.f32 0.0, %v2117
      %v2119 = vpop.f32.mrb[0].mxu0
      %v2120 = vpop.f32.mrb[0].mxu0
      %v2121 = vadd.f32 0.0, %v2120
      %v2122 = vpop.f32.mrb[0].mxu0
      %2123 = vmatprep.mubr.bf16.mxu0 0
      %2124 = vmatmul.mubr.bf16.gmra.mrb[0].mxu0 %v848
      %v2125 = vpop.f32.mrb[0].mxu0
      %v2126 = vadd.f32 0.0, %v2125
      %v2127 = vpop.f32.mrb[0].mxu0
      %v2128 = vpop.f32.mrb[0].mxu0
      %v2129 = vadd.f32 0.0, %v2128
      %v2130 = vpop.f32.mrb[0].mxu0
      %2131 = vmatprep.mubr.bf16.mxu0 0
      %2132 = vmatmul.mubr.bf16.gmra.mrb[0].mxu0 %v851
      %v2133 = vpop.f32.mrb[0].mxu0
      %v2134 = vadd.f32 0.0, %v2133
      %v2135 = vpop.f32.mrb[0].mxu0
      %v2136 = vpop.f32.mrb[0].mxu0
      %v2137 = vadd.f32 0.0, %v2136
      %v2138 = vpop.f32.mrb[0].mxu0
      %2139 = vmatprep.mubr.bf16.mxu0 0
      %2140 = vmatmul.mubr.bf16.gmra.mrb[0].mxu0 %v854
      %v2141 = vpop.f32.mrb[0].mxu0
      %v2142 = vadd.f32 0.0, %v2141
      %v2143 = vpop.f32.mrb[0].mxu0
      %v2144 = vpop.f32.mrb[0].mxu0
      %v2145 = vadd.f32 0.0, %v2144
      %v2146 = vpop.f32.mrb[0].mxu0
      %2147 = vmatprep.mubr.bf16.mxu0 0
      %2148 = vmatmul.mubr.bf16.gmra.mrb[0].mxu0 %v857
      %v2149 = vpop.f32.mrb[0].mxu0
      %v2150 = vadd.f32 0.0, %v2149
      %v2151 = vpop.f32.mrb[0].mxu0
      %v2152 = vpop.f32.mrb[0].mxu0
      %v2153 = vadd.f32 0.0, %v2152
      %v2154 = vpop.f32.mrb[0].mxu0
      %2155 = vmatprep.mubr.bf16.mxu0 0
      %2156 = vmatmul.mubr.bf16.gmra.mrb[0].mxu0 %v860
      %v2157 = vpop.f32.mrb[0].mxu0
      %v2158 = vadd.f32 0.0, %v2157
      %v2159 = vpop.f32.mrb[0].mxu0
      %v2160 = vpop.f32.mrb[0].mxu0
      %v2161 = vadd.f32 0.0, %v2160
      %v2162 = vpop.f32.mrb[0].mxu0
      %2163 = vmatprep.mubr.bf16.mxu0 0
      %2164 = vmatmul.mubr.bf16.gmra.mrb[0].mxu0 %v863
      %v2165 = vpop.f32.mrb[0].mxu0
      %v2166 = vadd.f32 0.0, %v2165
      %v2167 = vpop.f32.mrb[0].mxu0
      %v2168 = vpop.f32.mrb[0].mxu0
      %v2169 = vadd.f32 0.0, %v2168
      %v2170 = vpop.f32.mrb[0].mxu0
      %2171 = vmatprep.mubr.bf16.mxu0 0
      %2172 = vmatmul.mubr.bf16.gmra.mrb[0].mxu0 %v1452
      %v2173 = vpop.f32.mrb[0].mxu0
      %v2174 = vadd.f32 0.0, %v2173
      %v2175 = vpop.f32.mrb[0].mxu0
      %v2176 = vpop.f32.mrb[0].mxu0
      %v2177 = vadd.f32 0.0, %v2176
      %v2178 = vpop.f32.mrb[0].mxu0
      %2179 = vmatprep.mubr.bf16.mxu0 0
      %2180 = vmatmul.mubr.bf16.gmra.mrb[0].mxu0 %v2041
      %v2181 = vpop.f32.mrb[0].mxu0
      %v2182 = vadd.f32 0.0, %v2181
      %v2183 = vpop.f32.mrb[0].mxu0
      %v2184 = vpop.f32.mrb[0].mxu0
      %v2185 = vadd.f32 0.0, %v2184
      %v2186 = vpop.f32.mrb[0].mxu0
      %2187 = vdwg.mxu0
      %v2188 = vadd.f32 %v1992, %v2078
      %v2189 = vadd.f32 %v1993, %v2081
      %v2190 = vadd.f32 %v1994, %v2086
      %v2191 = vadd.f32 %v1995, %v2089
      %v2192 = vadd.f32 %v1996, %v2094
      %v2193 = vadd.f32 %v1997, %v2097
      %v2194 = vadd.f32 %v1998, %v2102
      %v2195 = vadd.f32 %v1999, %v2105
      %v2196 = vadd.f32 %v2000, %v2110
      %v2197 = vadd.f32 %v2001, %v2113
      %v2198 = vadd.f32 %v2002, %v2118
      %v2199 = vadd.f32 %v2003, %v2121
      %v2200 = vadd.f32 %v2004, %v2126
      %v2201 = vadd.f32 %v2005, %v2129
      %v2202 = vadd.f32 %v2006, %v2134
      %v2203 = vadd.f32 %v2007, %v2137
      %v2204 = vadd.f32 %v2008, %v2142
      %v2205 = vadd.f32 %v2009, %v2145
      %v2206 = vadd.f32 %v2010, %v2150
      %v2207 = vadd.f32 %v2011, %v2153
      %v2208 = vadd.f32 %v2012, %v2158
      %v2209 = vadd.f32 %v2013, %v2161
      %v2210 = vadd.f32 %v2014, %v2166
      %v2211 = vadd.f32 %v2015, %v2169
      %v2212 = vadd.f32 %v2016, %v2174
      %v2213 = vadd.f32 %v2017, %v2177
      %v2214 = vadd.f32 %v2018, %v2182
      %v2215 = vadd.f32 %v2019, %v2185
      %v2216 = vld [vmem:[%s2] sm:$0x1]
      %v2218 = vlaneseq
      %v2219 = vshrl.u32 %v2218, 7
      %v2220 = vsub.s32 0, %v2219
      %v2221 = vrot.slane %v2216, %v2220
      %v2223 = vadd.f32 %v2188, %v2221
      %v2224 = vadd.f32 %v2189, %v2221
      %v2225 = vadd.f32 %v2190, %v2221
      %v2226 = vadd.f32 %v2191, %v2221
      %v2227 = vadd.f32 %v2192, %v2221
      %v2228 = vadd.f32 %v2193, %v2221
      %v2229 = vadd.f32 %v2194, %v2221
      %v2230 = vadd.f32 %v2195, %v2221
      %v2231 = vadd.f32 %v2196, %v2221
      %v2232 = vadd.f32 %v2197, %v2221
      %v2233 = vadd.f32 %v2198, %v2221
      %v2234 = vadd.f32 %v2199, %v2221
      %v2235 = vadd.f32 %v2200, %v2221
      %v2236 = vadd.f32 %v2201, %v2221
      %v2237 = vadd.f32 %v2202, %v2221
      %v2238 = vadd.f32 %v2203, %v2221
      %v2239 = vadd.f32 %v2204, %v2221
      %v2240 = vadd.f32 %v2205, %v2221
      %v2241 = vadd.f32 %v2206, %v2221
      %v2242 = vadd.f32 %v2207, %v2221
      %v2243 = vadd.f32 %v2208, %v2221
      %v2244 = vadd.f32 %v2209, %v2221
      %v2245 = vadd.f32 %v2210, %v2221
      %v2246 = vadd.f32 %v2211, %v2221
      %v2247 = vadd.f32 %v2212, %v2221
      %v2248 = vadd.f32 %v2213, %v2221
      %v2249 = vadd.f32 %v2214, %v2221
      %v2250 = vadd.f32 %v2215, %v2221
      %v2251 = vmax.f32 %v2223, 0.0
      %v2252 = vmax.f32 %v2224, 0.0
      %v2253 = vmax.f32 %v2225, 0.0
      %v2254 = vmax.f32 %v2226, 0.0
      %v2255 = vmax.f32 %v2227, 0.0
      %v2256 = vmax.f32 %v2228, 0.0
      %v2257 = vmax.f32 %v2229, 0.0
      %v2258 = vmax.f32 %v2230, 0.0
      %v2259 = vmax.f32 %v2231, 0.0
      %v2260 = vmax.f32 %v2232, 0.0
      %v2261 = vmax.f32 %v2233, 0.0
      %v2262 = vmax.f32 %v2234, 0.0
      %v2263 = vmax.f32 %v2235, 0.0
      %v2264 = vmax.f32 %v2236, 0.0
      %v2265 = vmax.f32 %v2237, 0.0
      %v2266 = vmax.f32 %v2238, 0.0
      %v2267 = vmax.f32 %v2239, 0.0
      %v2268 = vmax.f32 %v2240, 0.0
      %v2269 = vmax.f32 %v2241, 0.0
      %v2270 = vmax.f32 %v2242, 0.0
      %v2271 = vmax.f32 %v2243, 0.0
      %v2272 = vmax.f32 %v2244, 0.0
      %v2273 = vmax.f32 %v2245, 0.0
      %v2274 = vmax.f32 %v2246, 0.0
      %v2275 = vmax.f32 %v2247, 0.0
      %v2276 = vmax.f32 %v2248, 0.0
      %v2277 = vmax.f32 %v2249, 0.0
      %v2278 = vmax.f32 %v2250, 0.0
      %vm2305 = vcmask 1046528
      %v2306 = vrot.slane %v2251, 1
      %v2307 = vrot.slane %v2252, 1
      %v2308 = vsel %vm2305, %v2306, %v2307
      %v2309 = vrot.slane %v2253, 1
      %v2310 = vsel %vm2305, %v2307, %v2309
      %v2311 = vrot.slane %v2254, 1
      %v2312 = vsel %vm2305, %v2309, %v2311
      %v2313 = vrot.slane %v2255, 1
      %v2314 = vsel %vm2305, %v2311, %v2313
      %v2315 = vrot.slane %v2256, 1
      %v2316 = vsel %vm2305, %v2313, %v2315
      %v2317 = vrot.slane %v2257, 1
      %v2318 = vsel %vm2305, %v2315, %v2317
      %v2319 = vrot.slane %v2258, 1
      %v2320 = vsel %vm2305, %v2317, %v2319
      %v2321 = vrot.slane %v2259, 1
      %v2322 = vsel %vm2305, %v2319, %v2321
      %v2323 = vrot.slane %v2260, 1
      %v2324 = vsel %vm2305, %v2321, %v2323
      %v2325 = vrot.slane %v2261, 1
      %v2326 = vsel %vm2305, %v2323, %v2325
      %v2327 = vrot.slane %v2262, 1
      %v2328 = vsel %vm2305, %v2325, %v2327
      %v2329 = vrot.slane %v2263, 1
      %v2330 = vsel %vm2305, %v2327, %v2329
      %v2331 = vrot.slane %v2264, 1
      %v2332 = vsel %vm2305, %v2329, %v2331
      %v2333 = vrot.slane %v2265, 1
      %v2334 = vsel %vm2305, %v2331, %v2333
      %v2335 = vrot.slane %v2266, 1
      %v2336 = vsel %vm2305, %v2333, %v2335
      %v2337 = vrot.slane %v2267, 1
      %v2338 = vsel %vm2305, %v2335, %v2337
      %v2339 = vrot.slane %v2268, 1
      %v2340 = vsel %vm2305, %v2337, %v2339
      %v2341 = vrot.slane %v2269, 1
      %v2342 = vsel %vm2305, %v2339, %v2341
      %v2343 = vrot.slane %v2270, 1
      %v2344 = vsel %vm2305, %v2341, %v2343
      %v2345 = vrot.slane %v2271, 1
      %v2346 = vsel %vm2305, %v2343, %v2345
      %v2347 = vrot.slane %v2272, 1
      %v2348 = vsel %vm2305, %v2345, %v2347
      %v2349 = vrot.slane %v2273, 1
      %v2350 = vsel %vm2305, %v2347, %v2349
      %v2351 = vrot.slane %v2274, 1
      %v2352 = vsel %vm2305, %v2349, %v2351
      %v2353 = vrot.slane %v2275, 1
      %v2354 = vsel %vm2305, %v2351, %v2353
      %v2355 = vrot.slane %v2276, 1
      %v2356 = vsel %vm2305, %v2353, %v2355
      %v2383 = vmax.f32 %v2251, %v2308
      %v2384 = vmax.f32 %v2252, %v2310
      %v2385 = vmax.f32 %v2253, %v2312
      %v2386 = vmax.f32 %v2254, %v2314
      %v2387 = vmax.f32 %v2255, %v2316
      %v2388 = vmax.f32 %v2256, %v2318
      %v2389 = vmax.f32 %v2257, %v2320
      %v2390 = vmax.f32 %v2258, %v2322
      %v2391 = vmax.f32 %v2259, %v2324
      %v2392 = vmax.f32 %v2260, %v2326
      %v2393 = vmax.f32 %v2261, %v2328
      %v2394 = vmax.f32 %v2262, %v2330
      %v2395 = vmax.f32 %v2263, %v2332
      %v2396 = vmax.f32 %v2264, %v2334
      %v2397 = vmax.f32 %v2265, %v2336
      %v2398 = vmax.f32 %v2266, %v2338
      %v2399 = vmax.f32 %v2267, %v2340
      %v2400 = vmax.f32 %v2268, %v2342
      %v2401 = vmax.f32 %v2269, %v2344
      %v2402 = vmax.f32 %v2270, %v2346
      %v2403 = vmax.f32 %v2271, %v2348
      %v2404 = vmax.f32 %v2272, %v2350
      %v2405 = vmax.f32 %v2273, %v2352
      %v2406 = vmax.f32 %v2274, %v2354
      %v2407 = vmax.f32 %v2275, %v2356
      %v2408 = vmax.f32 %v2276, %v2355
      %v2411 = vrot.slane %v2277, 1
      %v2412 = vsel %vm2305, %v2355, %v2411
      %v2413 = vrot.slane %v2278, 1
      %v2414 = vsel %vm2305, %v2411, %v2413
      %v2418 = vmax.f32 %v2276, %v2412
      %v2419 = vmax.f32 %v2277, %v2414
      %v2420 = vmax.f32 %v2278, %v2413
      %v2421 = vmax.f32 %v2383, %v2385
      %v2422 = vmax.f32 %v2384, %v2386
      %v2423 = vmax.f32 %v2385, %v2387
      %v2424 = vmax.f32 %v2386, %v2388
      %v2425 = vmax.f32 %v2387, %v2389
      %v2426 = vmax.f32 %v2388, %v2390
      %v2427 = vmax.f32 %v2389, %v2391
      %v2428 = vmax.f32 %v2390, %v2392
      %v2429 = vmax.f32 %v2391, %v2393
      %v2430 = vmax.f32 %v2392, %v2394
      %v2431 = vmax.f32 %v2393, %v2395
      %v2432 = vmax.f32 %v2394, %v2396
      %v2433 = vmax.f32 %v2395, %v2397
      %v2434 = vmax.f32 %v2396, %v2398
      %v2435 = vmax.f32 %v2397, %v2399
      %v2436 = vmax.f32 %v2398, %v2400
      %v2437 = vmax.f32 %v2399, %v2401
      %v2438 = vmax.f32 %v2400, %v2402
      %v2439 = vmax.f32 %v2401, %v2403
      %v2440 = vmax.f32 %v2402, %v2404
      %v2441 = vmax.f32 %v2403, %v2405
      %v2442 = vmax.f32 %v2404, %v2406
      %v2443 = vmax.f32 %v2405, %v2407
      %v2444 = vmax.f32 %v2406, %v2418
      %v2445 = vmax.f32 %v2407, %v2419
      %v2446 = vmax.f32 %v2408, %v2420
      %v2447 = vld [vmem:[%s3] sm:$0xff]
      %v2448 = vld [vmem:[%s3 + $0x8] sm:$0xff]
      %v2449 = vld [vmem:[%s3 + $0x10] sm:$0xff]
      %v2450 = vld [vmem:[%s3 + $0x18] sm:$0xff]
      %v2451 = vld [vmem:[%s3 + $0x20] sm:$0xff]
      %v2452 = vld [vmem:[%s3 + $0x28] sm:$0xff]
      %v2453 = vld [vmem:[%s3 + $0x30] sm:$0xff]
      %v2454 = vld [vmem:[%s3 + $0x38] sm:$0xff]
      %v2455 = vld [vmem:[%s3 + $0x40] sm:$0xff]
      %v2456 = vld [vmem:[%s3 + $0x48] sm:$0xff]
      %v2457 = vld [vmem:[%s3 + $0x50] sm:$0xff]
      %v2458 = vld [vmem:[%s3 + $0x58] sm:$0xff]
      %v2459 = vld [vmem:[%s3 + $0x60] sm:$0x1]
      %v2460 = vld [vmem:[%s3 + $0x68] sm:$0x1]
      %vm2461 = vcmask 629760
      %v2463 = vsel %vm2461, %v2448, 0
      %v2466 = vsel %vm2461, %v2450, 0
      %v2469 = vsel %vm2461, %v2452, 0
      %v2472 = vsel %vm2461, %v2454, 0
      %v2475 = vsel %vm2461, %v2456, 0
      %v2478 = vsel %vm2461, %v2458, 0
      %v2481 = vsel %vm2461, %v2460, 0
      %vm2483 = vcmask 1044480
      %v2485 = vsel %vm2483, %v2446, 0
      %2487 = vmatprep.subr.mxu0 0.0
      %2488 = vmatpush1.msra.mxu0 %v2421
      %2489 = vmatprep.subr.mxu0 0.0
      %2490 = vmatpush1.msra.mxu0 %v2422
      %2491 = vmatprep.subr.mxu0 0.0
      %2492 = vmatpush1.msra.mxu0 %v2423
      %2493 = vmatprep.subr.mxu0 0.0
      %2494 = vmatpush1.msra.mxu0 %v2424
      %2495 = vmatprep.subr.mxu0 0.0
      %2496 = vmatpush1.msra.mxu0 %v2425
      %2497 = vmatprep.subr.mxu0 0.0
      %2498 = vmatpush1.msra.mxu0 %v2426
      %2499 = vmatprep.subr.mxu0 0.0
      %2500 = vmatpush1.msra.mxu0 %v2427
      %2501 = vmatprep.subr.mxu0 0.0
      %2502 = vmatpush1.msra.mxu0 %v2428
      %2503 = vmatprep.subr.mxu0 0.0
      %2504 = vmatpush1.msra.mxu0 %v2429
      %2505 = vmatprep.subr.mxu0 0.0
      %2506 = vmatpush1.msra.mxu0 %v2430
      %2507 = vmatprep.subr.mxu0 0.0
      %2508 = vmatpush1.msra.mxu0 %v2431
      %2509 = vmatprep.subr.mxu0 0.0
      %2510 = vmatpush1.msra.mxu0 %v2432
      %2511 = vmatprep.subr.mxu0 0.0
      %2512 = vmatpush1.msra.mxu0 %v2433
      %2513 = vmatprep.subr.mxu0 0.0
      %2514 = vmatpush1.msra.mxu0 %v2434
      %2515 = vmatprep.subr.mxu0 0.0
      %2516 = vmatpush1.msra.mxu0 %v2435
      %2517 = vmatprep.subr.mxu0 0.0
      %2518 = vmatpush1.msra.mxu0 %v2436
      %2519 = vmatprep.subr.mxu0 0.0
      %2520 = vmatpush1.msra.mxu0 %v2437
      %2521 = vmatprep.subr.mxu0 0.0
      %2522 = vmatpush1.msra.mxu0 %v2438
      %2523 = vmatprep.subr.mxu0 0.0
      %2524 = vmatpush1.msra.mxu0 %v2439
      %2525 = vmatprep.subr.mxu0 0.0
      %2526 = vmatpush1.msra.mxu0 %v2440
      %2527 = vmatprep.subr.mxu0 0.0
      %2528 = vmatpush1.msra.mxu0 %v2441
      %2529 = vmatprep.subr.mxu0 0.0
      %2530 = vmatpush1.msra.mxu0 %v2442
      %2531 = vmatprep.subr.mxu0 0.0
      %2532 = vmatpush1.msra.mxu0 %v2443
      %2533 = vmatprep.subr.mxu0 0.0
      %2534 = vmatpush1.msra.mxu0 %v2444
      %2535 = vmatprep.subr.mxu0 0.0
      %2536 = vmatpush1.msra.mxu0 %v2445
      %2537 = vmatprep.subr.mxu0 0.0
      %2538 = vmatpush1.msra.mxu0 %v2485
      %2539 = vmatprep.subr.mxu0 0.0
      %2540 = vmatpush1.msra.mxu0 0.0
      %2541 = vmatprep.subr.mxu0 0.0
      %2542 = vmatpush1.msra.mxu0 0.0
      %2543 = vmatprep.subr.mxu0 0.0
      %2544 = vmatpush1.msra.mxu0 0.0
      %2545 = vmatprep.subr.mxu0 0.0
      %2546 = vmatpush1.msra.mxu0 0.0
      %2547 = vmatprep.subr.mxu0 0.0
      %2548 = vmatpush1.msra.mxu0 0.0
      %2549 = vmatprep.subr.mxu0 0.0
      %2550 = vmatpush1.msra.mxu0 0.0
      %2551 = vmatprep.mubr.f32.mxu0 %v2463
      %2552 = vmatmul.mubr.f32.gmra.mrb[0].mxu0 %v2447
      %v2553 = vpop.f32.mrb[0].mxu0
      %v2554 = vadd.f32 0.0, %v2553
      %v2555 = vpop.f32.mrb[0].mxu0
      %2556 = vmatprep.mubr.f32.mxu0 %v2466
      %2557 = vmatmul.mubr.f32.gmra.mrb[0].mxu0 %v2449
      %v2558 = vpop.f32.mrb[0].mxu0
      %v2559 = vadd.f32 0.0, %v2558
      %v2560 = vpop.f32.mrb[0].mxu0
      %2561 = vmatprep.mubr.f32.mxu0 %v2469
      %2562 = vmatmul.mubr.f32.gmra.mrb[0].mxu0 %v2451
      %v2563 = vpop.f32.mrb[0].mxu0
      %v2564 = vadd.f32 0.0, %v2563
      %v2565 = vpop.f32.mrb[0].mxu0
      %2566 = vmatprep.mubr.f32.mxu0 %v2472
      %2567 = vmatmul.mubr.f32.gmra.mrb[0].mxu0 %v2453
      %v2568 = vpop.f32.mrb[0].mxu0
      %v2569 = vadd.f32 0.0, %v2568
      %v2570 = vpop.f32.mrb[0].mxu0
      %2571 = vmatprep.mubr.f32.mxu0 %v2475
      %2572 = vmatmul.mubr.f32.gmra.mrb[0].mxu0 %v2455
      %v2573 = vpop.f32.mrb[0].mxu0
      %v2574 = vadd.f32 0.0, %v2573
      %v2575 = vpop.f32.mrb[0].mxu0
      %2576 = vmatprep.mubr.f32.mxu0 %v2478
      %2577 = vmatmul.mubr.f32.gmra.mrb[0].mxu0 %v2457
      %v2578 = vpop.f32.mrb[0].mxu0
      %v2579 = vadd.f32 0.0, %v2578
      %v2580 = vpop.f32.mrb[0].mxu0
      %2581 = vmatprep.mubr.f32.mxu0 %v2481
      %2582 = vmatmul.mubr.f32.gmra.mrb[0].mxu0 %v2459
      %v2583 = vpop.f32.mrb[0].mxu0
      %v2584 = vadd.f32 0.0, %v2583
      %v2585 = vpop.f32.mrb[0].mxu0
      %2586 = vdwg.mxu0
      %vm2587 = vcmask 523264
      %2588 = vst.msk [vmem:[%s197] sm:$0xff] %vm2587, %v2554
      %2589 = vst.msk [vmem:[%s197 + $0x8] sm:$0xff] %vm2587, %v2559
      %2590 = vst.msk [vmem:[%s197 + $0x10] sm:$0xff] %vm2587, %v2564
      %2591 = vst.msk [vmem:[%s197 + $0x18] sm:$0xff] %vm2587, %v2569
      %2592 = vst.msk [vmem:[%s197 + $0x20] sm:$0xff] %vm2587, %v2574
      %2593 = vst.msk [vmem:[%s197 + $0x28] sm:$0xff] %vm2587, %v2579
      %vm2594 = vcmask 516096
      %2595 = vst.msk [vmem:[%s197 + $0x30] sm:$0x1] %vm2594, %v2584
      %p2596 = scmp.lt.s32.totalorder %s15, 1
      %s2597 = scalar_select %p2596, %s15, 1
      %s2598 = smul.addr %s2597, 7
      %s2599 = smul.addr %s2598, 8
      %s2600 = scalar_lea.vmem %s4, %s2599
      // Predicated region
      $region37: #{digit_recognizer_forward.4} parent=35 // pred_check
        %p2601 = pneg %p122
      $region38: #{digit_recognizer_forward.4} parent=35 // pred_check_branch
        %2603 = sbr.rel (%p2601) target = $region40
      $region39: #{digit_recognizer_forward.4} parent=35 // pred_region
        _
      $region40: #{digit_recognizer_forward.4} parent=35 // pred_fallthru
        _
    $region36: #{digit_recognizer_forward.4} parent=5 // pred_fallthru
      _
    %p2604 = scmp.le.s32.totalorder 2, %s10
    // Predicated region
    $region41: #{digit_recognizer_forward.4} parent=5 // pred_check
      %p2605 = pneg %p2604
    $region42: #{digit_recognizer_forward.4} parent=5 // pred_check_branch
      %2607 = sbr.rel (%p2605) target = $region44
    $region43: #{digit_recognizer_forward.4} parent=5 // pred_region
      %s2608 = ssub.s32 %s10, 2
      // Predicated region
      $region45: #{digit_recognizer_forward.4} parent=43 // pred_check
        %p2609 = pneg %p128
      $region46: #{digit_recognizer_forward.4} parent=43 // pred_check_branch
        %2611 = sbr.rel (%p2609) target = $region48
      $region47: #{digit_recognizer_forward.4} parent=43 // pred_region
        %p2612 = scmp.lt.s32.totalorder %s16, 1
        %s2613 = scalar_select %p2612, %s16, 1
        %s2614 = smul.addr %s2613, 7
        %s2615 = smul.addr %s2614, 8
        %s2616 = scalar_lea.vmem %s4, %s2615
      $region48: #{digit_recognizer_forward.4} parent=43 // pred_fallthru
        _
    $region44: #{digit_recognizer_forward.4} parent=5 // pred_fallthru
      _
  $region6: #{digit_recognizer_forward.4} parent=0 // loop_footer
    %s14 = sadd.s32 1, %s10
  $region7: #{digit_recognizer_forward.4} parent=0 // loop_footer_branch
    %9 = sbr.rel target = $region3
  $region8: #{digit_recognizer_forward.4} parent=0 // loop_exit
    _

// kernel: digit_recognizer_forward.5
$region0: #{digit_recognizer_forward.5}
  #allocation0 [shape = 'u32[]', space=smem, size = 0x4, offset = 0x4, fixed_abs, tag = 'smem constant byte address 0x4 - core index']
  #allocation1 [shape = 'u32[144,128]{1,0:T(1,128)}', space=vmem, size = 0x12000, scoped, tag = 'internal scratch']
  %s0 = inlined_call_operand.vmem [shape: f32[8,3136], index: 0, kind: input, shape index: {}]
  %s1 = inlined_call_operand.vmem [shape: bf16[3136,128], index: 1, kind: input, shape index: {}]
  %s2 = inlined_call_operand.vmem [shape: f32[1,128], index: 2, kind: input, shape index: {}]
  %s3 = inlined_call_operand.vmem [shape: bf16[128,10], index: 3, kind: input, shape index: {}]
  %s4 = inlined_call_operand.vmem [shape: f32[1,10], index: 4, kind: input, shape index: {}]
  %s5 = inlined_call_operand.vmem [shape: f32[8,10], index: 5, kind: output, shape index: {}]
  %s6 = sld [smem:[#allocation0]]
  $region30: #{digit_recognizer_forward.5} parent=0
    _
  %s8 = ssub.s32 1, %s6
  %s9 = scalar_select 0, %s8, %s6
  // Predicated region
  $region2: #{digit_recognizer_forward.5} parent=0 // pred_check
    _
  $region3: #{digit_recognizer_forward.5} parent=0 // pred_check_branch
    %11 = sbr.rel (0) target = $region5
  $region4: #{digit_recognizer_forward.5} parent=0 // pred_region
    _
  $region5: #{digit_recognizer_forward.5} parent=0 // pred_fallthru
    _
  // Predicated region
  $region6: #{digit_recognizer_forward.5} parent=0 // pred_check
    _
  $region7: #{digit_recognizer_forward.5} parent=0 // pred_check_branch
    %13 = sbr.rel (0) target = $region9
  $region8: #{digit_recognizer_forward.5} parent=0 // pred_region
    _
  $region9: #{digit_recognizer_forward.5} parent=0 // pred_fallthru
    _
  // Predicated region
  $region10: #{digit_recognizer_forward.5} parent=0 // pred_check
    _
  $region11: #{digit_recognizer_forward.5} parent=0 // pred_check_branch
    %15 = sbr.rel (0) target = $region13
  $region12: #{digit_recognizer_forward.5} parent=0 // pred_region
    _
  $region13: #{digit_recognizer_forward.5} parent=0 // pred_fallthru
    _
  // Predicated region
  $region14: #{digit_recognizer_forward.5} parent=0 // pred_check
    _
  $region15: #{digit_recognizer_forward.5} parent=0 // pred_check_branch
    %17 = sbr.rel (0) target = $region17
  $region16: #{digit_recognizer_forward.5} parent=0 // pred_region
    _
  $region17: #{digit_recognizer_forward.5} parent=0 // pred_fallthru
    _
  // Predicated region
  $region18: #{digit_recognizer_forward.5} parent=0 // pred_check
    _
  $region19: #{digit_recognizer_forward.5} parent=0 // pred_check_branch
    %19 = sbr.rel (0) target = $region21
  $region20: #{digit_recognizer_forward.5} parent=0 // pred_region
    _
  $region21: #{digit_recognizer_forward.5} parent=0 // pred_fallthru
    _
  %v21 = vld [vmem:[%s0] sm:$0xff]
  %v22 = vld [vmem:[%s0 + $0x8] sm:$0xff]
  %v23 = vld [vmem:[%s0 + $0x10] sm:$0xff]
  %v24 = vld [vmem:[%s0 + $0x18] sm:$0xff]
  %v25 = vld [vmem:[%s0 + $0x20] sm:$0xff]
  %v26 = vld [vmem:[%s0 + $0x28] sm:$0xff]
  %v27 = vld [vmem:[%s0 + $0x30] sm:$0xff]
  %v28 = vld [vmem:[%s0 + $0x38] sm:$0xff]
  %v29 = vld [vmem:[%s0 + $0x40] sm:$0xff]
  %v30 = vld [vmem:[%s0 + $0x48] sm:$0xff]
  %v31 = vld [vmem:[%s0 + $0x50] sm:$0xff]
  %v32 = vld [vmem:[%s0 + $0x58] sm:$0xff]
  %v33 = vld [vmem:[%s0 + $0x60] sm:$0xff]
  %v34 = vld [vmem:[%s0 + $0x68] sm:$0xff]
  %v35 = vld [vmem:[%s0 + $0x70] sm:$0xff]
  %v36 = vld [vmem:[%s0 + $0x78] sm:$0xff]
  %v37 = vld [vmem:[%s0 + $0x80] sm:$0xff]
  %v38 = vld [vmem:[%s0 + $0x88] sm:$0xff]
  %v39 = vld [vmem:[%s0 + $0x90] sm:$0xff]
  %v40 = vld [vmem:[%s0 + $0x98] sm:$0xff]
  %v41 = vld [vmem:[%s0 + $0xa0] sm:$0xff]
  %v42 = vld [vmem:[%s0 + $0xa8] sm:$0xff]
  %v43 = vld [vmem:[%s0 + $0xb0] sm:$0xff]
  %v44 = vld [vmem:[%s0 + $0xb8] sm:$0xff]
  %v45 = vld [vmem:[%s0 + $0xc0] sm:$0xff]
  %v46 = vpack.c.bf16 %v21, %v21
  %v47 = vpack.c.bf16 %v22, %v22
  %v48 = vpack.c.bf16 %v23, %v23
  %v49 = vpack.c.bf16 %v24, %v24
  %v50 = vpack.c.bf16 %v25, %v25
  %v51 = vpack.c.bf16 %v26, %v26
  %v52 = vpack.c.bf16 %v27, %v27
  %v53 = vpack.c.bf16 %v28, %v28
  %v54 = vpack.c.bf16 %v29, %v29
  %v55 = vpack.c.bf16 %v30, %v30
  %v56 = vpack.c.bf16 %v31, %v31
  %v57 = vpack.c.bf16 %v32, %v32
  %v58 = vpack.c.bf16 %v33, %v33
  %v59 = vpack.c.bf16 %v34, %v34
  %v60 = vpack.c.bf16 %v35, %v35
  %v61 = vpack.c.bf16 %v36, %v36
  %v62 = vpack.c.bf16 %v37, %v37
  %v63 = vpack.c.bf16 %v38, %v38
  %v64 = vpack.c.bf16 %v39, %v39
  %v65 = vpack.c.bf16 %v40, %v40
  %v66 = vpack.c.bf16 %v41, %v41
  %v67 = vpack.c.bf16 %v42, %v42
  %v68 = vpack.c.bf16 %v43, %v43
  %v69 = vpack.c.bf16 %v44, %v44
  %v70 = vpack.c.bf16 %v45, %v45
  %v71 = vld [vmem:[%s1] sm:$0xf]
  %v72 = vld [vmem:[%s1 + $0x4] sm:$0xf]
  %v73 = vld [vmem:[%s1 + $0x8] sm:$0xf]
  %v74 = vld [vmem:[%s1 + $0xc] sm:$0xf]
  %v75 = vld [vmem:[%s1 + $0x10] sm:$0xf]
  %v76 = vld [vmem:[%s1 + $0x14] sm:$0xf]
  %v77 = vld [vmem:[%s1 + $0x18] sm:$0xf]
  %v78 = vld [vmem:[%s1 + $0x1c] sm:$0xf]
  %v79 = vld [vmem:[%s1 + $0x20] sm:$0xf]
  %v80 = vld [vmem:[%s1 + $0x24] sm:$0xf]
  %v81 = vld [vmem:[%s1 + $0x28] sm:$0xf]
  %v82 = vld [vmem:[%s1 + $0x2c] sm:$0xf]
  %v83 = vld [vmem:[%s1 + $0x30] sm:$0xf]
  %v84 = vld [vmem:[%s1 + $0x34] sm:$0xf]
  %v85 = vld [vmem:[%s1 + $0x38] sm:$0xf]
  %v86 = vld [vmem:[%s1 + $0x3c] sm:$0xf]
  %v87 = vld [vmem:[%s1 + $0x40] sm:$0xf]
  %v88 = vld [vmem:[%s1 + $0x44] sm:$0xf]
  %v89 = vld [vmem:[%s1 + $0x48] sm:$0xf]
  %v90 = vld [vmem:[%s1 + $0x4c] sm:$0xf]
  %v91 = vld [vmem:[%s1 + $0x50] sm:$0xf]
  %v92 = vld [vmem:[%s1 + $0x54] sm:$0xf]
  %v93 = vld [vmem:[%s1 + $0x58] sm:$0xf]
  %v94 = vld [vmem:[%s1 + $0x5c] sm:$0xf]
  %v95 = vld [vmem:[%s1 + $0x60] sm:$0xf]
  %v96 = vld [vmem:[%s1 + $0x64] sm:$0xf]
  %v97 = vld [vmem:[%s1 + $0x68] sm:$0xf]
  %v98 = vld [vmem:[%s1 + $0x6c] sm:$0xf]
  %v99 = vld [vmem:[%s1 + $0x70] sm:$0xf]
  %v100 = vld [vmem:[%s1 + $0x74] sm:$0xf]
  %v101 = vld [vmem:[%s1 + $0x78] sm:$0xf]
  %v102 = vld [vmem:[%s1 + $0x7c] sm:$0xf]
  %v103 = vld [vmem:[%s1 + $0x80] sm:$0xf]
  %v104 = vld [vmem:[%s1 + $0x84] sm:$0xf]
  %v105 = vld [vmem:[%s1 + $0x88] sm:$0xf]
  %v106 = vld [vmem:[%s1 + $0x8c] sm:$0xf]
  %v107 = vld [vmem:[%s1 + $0x90] sm:$0xf]
  %v108 = vld [vmem:[%s1 + $0x94] sm:$0xf]
  %v109 = vld [vmem:[%s1 + $0x98] sm:$0xf]
  %v110 = vld [vmem:[%s1 + $0x9c] sm:$0xf]
  %v111 = vld [vmem:[%s1 + $0xa0] sm:$0xf]
  %v112 = vld [vmem:[%s1 + $0xa4] sm:$0xf]
  %v113 = vld [vmem:[%s1 + $0xa8] sm:$0xf]
  %v114 = vld [vmem:[%s1 + $0xac] sm:$0xf]
  %v115 = vld [vmem:[%s1 + $0xb0] sm:$0xf]
  %v116 = vld [vmem:[%s1 + $0xb4] sm:$0xf]
  %v117 = vld [vmem:[%s1 + $0xb8] sm:$0xf]
  %v118 = vld [vmem:[%s1 + $0xbc] sm:$0xf]
  %v119 = vld [vmem:[%s1 + $0xc0] sm:$0xf]
  %v120 = vld [vmem:[%s1 + $0xc4] sm:$0xf]
  %v121 = vld [vmem:[%s1 + $0xc8] sm:$0xf]
  %v122 = vld [vmem:[%s1 + $0xcc] sm:$0xf]
  %v123 = vld [vmem:[%s1 + $0xd0] sm:$0xf]
  %v124 = vld [vmem:[%s1 + $0xd4] sm:$0xf]
  %v125 = vld [vmem:[%s1 + $0xd8] sm:$0xf]
  %v126 = vld [vmem:[%s1 + $0xdc] sm:$0xf]
  %v127 = vld [vmem:[%s1 + $0xe0] sm:$0xf]
  %v128 = vld [vmem:[%s1 + $0xe4] sm:$0xf]
  %v129 = vld [vmem:[%s1 + $0xe8] sm:$0xf]
  %v130 = vld [vmem:[%s1 + $0xec] sm:$0xf]
  %v131 = vld [vmem:[%s1 + $0xf0] sm:$0xf]
  %v132 = vld [vmem:[%s1 + $0xf4] sm:$0xf]
  %v133 = vld [vmem:[%s1 + $0xf8] sm:$0xf]
  %v134 = vld [vmem:[%s1 + $0xfc] sm:$0xf]
  %v135 = vld [vmem:[%s1 + $0x100] sm:$0xf]
  %v136 = vld [vmem:[%s1 + $0x104] sm:$0xf]
  %v137 = vld [vmem:[%s1 + $0x108] sm:$0xf]
  %v138 = vld [vmem:[%s1 + $0x10c] sm:$0xf]
  %v139 = vld [vmem:[%s1 + $0x110] sm:$0xf]
  %v140 = vld [vmem:[%s1 + $0x114] sm:$0xf]
  %v141 = vld [vmem:[%s1 + $0x118] sm:$0xf]
  %v142 = vld [vmem:[%s1 + $0x11c] sm:$0xf]
  %v143 = vld [vmem:[%s1 + $0x120] sm:$0xf]
  %v144 = vld [vmem:[%s1 + $0x124] sm:$0xf]
  %v145 = vld [vmem:[%s1 + $0x128] sm:$0xf]
  %v146 = vld [vmem:[%s1 + $0x12c] sm:$0xf]
  %v147 = vld [vmem:[%s1 + $0x130] sm:$0xf]
  %v148 = vld [vmem:[%s1 + $0x134] sm:$0xf]
  %v149 = vld [vmem:[%s1 + $0x138] sm:$0xf]
  %v150 = vld [vmem:[%s1 + $0x13c] sm:$0xf]
  %v151 = vld [vmem:[%s1 + $0x140] sm:$0xf]
  %v152 = vld [vmem:[%s1 + $0x144] sm:$0xf]
  %v153 = vld [vmem:[%s1 + $0x148] sm:$0xf]
  %v154 = vld [vmem:[%s1 + $0x14c] sm:$0xf]
  %v155 = vld [vmem:[%s1 + $0x150] sm:$0xf]
  %v156 = vld [vmem:[%s1 + $0x154] sm:$0xf]
  %v157 = vld [vmem:[%s1 + $0x158] sm:$0xf]
  %v158 = vld [vmem:[%s1 + $0x15c] sm:$0xf]
  %v159 = vld [vmem:[%s1 + $0x160] sm:$0xf]
  %v160 = vld [vmem:[%s1 + $0x164] sm:$0xf]
  %v161 = vld [vmem:[%s1 + $0x168] sm:$0xf]
  %v162 = vld [vmem:[%s1 + $0x16c] sm:$0xf]
  %v163 = vld [vmem:[%s1 + $0x170] sm:$0xf]
  %v164 = vld [vmem:[%s1 + $0x174] sm:$0xf]
  %v165 = vld [vmem:[%s1 + $0x178] sm:$0xf]
  %v166 = vld [vmem:[%s1 + $0x17c] sm:$0xf]
  %v167 = vld [vmem:[%s1 + $0x180] sm:$0xf]
  %v168 = vld [vmem:[%s1 + $0x184] sm:$0xf]
  %v169 = vld [vmem:[%s1 + $0x188] sm:$0xf]
  %v170 = vld [vmem:[%s1 + $0x18c] sm:$0xf]
  %v171 = vld [vmem:[%s1 + $0x190] sm:$0xf]
  %v172 = vld [vmem:[%s1 + $0x194] sm:$0xf]
  %v173 = vld [vmem:[%s1 + $0x198] sm:$0xf]
  %v174 = vld [vmem:[%s1 + $0x19c] sm:$0xf]
  %v175 = vld [vmem:[%s1 + $0x1a0] sm:$0xf]
  %v176 = vld [vmem:[%s1 + $0x1a4] sm:$0xf]
  %v177 = vld [vmem:[%s1 + $0x1a8] sm:$0xf]
  %v178 = vld [vmem:[%s1 + $0x1ac] sm:$0xf]
  %v179 = vld [vmem:[%s1 + $0x1b0] sm:$0xf]
  %v180 = vld [vmem:[%s1 + $0x1b4] sm:$0xf]
  %v181 = vld [vmem:[%s1 + $0x1b8] sm:$0xf]
  %v182 = vld [vmem:[%s1 + $0x1bc] sm:$0xf]
  %v183 = vld [vmem:[%s1 + $0x1c0] sm:$0xf]
  %v184 = vld [vmem:[%s1 + $0x1c4] sm:$0xf]
  %v185 = vld [vmem:[%s1 + $0x1c8] sm:$0xf]
  %v186 = vld [vmem:[%s1 + $0x1cc] sm:$0xf]
  %v187 = vld [vmem:[%s1 + $0x1d0] sm:$0xf]
  %v188 = vld [vmem:[%s1 + $0x1d4] sm:$0xf]
  %v189 = vld [vmem:[%s1 + $0x1d8] sm:$0xf]
  %v190 = vld [vmem:[%s1 + $0x1dc] sm:$0xf]
  %v191 = vld [vmem:[%s1 + $0x1e0] sm:$0xf]
  %v192 = vld [vmem:[%s1 + $0x1e4] sm:$0xf]
  %v193 = vld [vmem:[%s1 + $0x1e8] sm:$0xf]
  %v194 = vld [vmem:[%s1 + $0x1ec] sm:$0xf]
  %v195 = vld [vmem:[%s1 + $0x1f0] sm:$0xf]
  %v196 = vld [vmem:[%s1 + $0x1f4] sm:$0xf]
  %v197 = vld [vmem:[%s1 + $0x1f8] sm:$0xf]
  %v198 = vld [vmem:[%s1 + $0x1fc] sm:$0xf]
  %v199 = vld [vmem:[%s1 + $0x200] sm:$0xf]
  %v200 = vld [vmem:[%s1 + $0x204] sm:$0xf]
  %v201 = vld [vmem:[%s1 + $0x208] sm:$0xf]
  %v202 = vld [vmem:[%s1 + $0x20c] sm:$0xf]
  %v203 = vld [vmem:[%s1 + $0x210] sm:$0xf]
  %v204 = vld [vmem:[%s1 + $0x214] sm:$0xf]
  %v205 = vld [vmem:[%s1 + $0x218] sm:$0xf]
  %v206 = vld [vmem:[%s1 + $0x21c] sm:$0xf]
  %v207 = vld [vmem:[%s1 + $0x220] sm:$0xf]
  %v208 = vld [vmem:[%s1 + $0x224] sm:$0xf]
  %v209 = vld [vmem:[%s1 + $0x228] sm:$0xf]
  %v210 = vld [vmem:[%s1 + $0x22c] sm:$0xf]
  %v211 = vld [vmem:[%s1 + $0x230] sm:$0xf]
  %v212 = vld [vmem:[%s1 + $0x234] sm:$0xf]
  %v213 = vld [vmem:[%s1 + $0x238] sm:$0xf]
  %v214 = vld [vmem:[%s1 + $0x23c] sm:$0xf]
  %v215 = vld [vmem:[%s1 + $0x240] sm:$0xf]
  %v216 = vld [vmem:[%s1 + $0x244] sm:$0xf]
  %v217 = vld [vmem:[%s1 + $0x248] sm:$0xf]
  %v218 = vld [vmem:[%s1 + $0x24c] sm:$0xf]
  %v219 = vld [vmem:[%s1 + $0x250] sm:$0xf]
  %v220 = vld [vmem:[%s1 + $0x254] sm:$0xf]
  %v221 = vld [vmem:[%s1 + $0x258] sm:$0xf]
  %v222 = vld [vmem:[%s1 + $0x25c] sm:$0xf]
  %v223 = vld [vmem:[%s1 + $0x260] sm:$0xf]
  %v224 = vld [vmem:[%s1 + $0x264] sm:$0xf]
  %v225 = vld [vmem:[%s1 + $0x268] sm:$0xf]
  %v226 = vld [vmem:[%s1 + $0x26c] sm:$0xf]
  %v227 = vld [vmem:[%s1 + $0x270] sm:$0xf]
  %v228 = vld [vmem:[%s1 + $0x274] sm:$0xf]
  %v229 = vld [vmem:[%s1 + $0x278] sm:$0xf]
  %v230 = vld [vmem:[%s1 + $0x27c] sm:$0xf]
  %v231 = vld [vmem:[%s1 + $0x280] sm:$0xf]
  %v232 = vld [vmem:[%s1 + $0x284] sm:$0xf]
  %v233 = vld [vmem:[%s1 + $0x288] sm:$0xf]
  %v234 = vld [vmem:[%s1 + $0x28c] sm:$0xf]
  %v235 = vld [vmem:[%s1 + $0x290] sm:$0xf]
  %v236 = vld [vmem:[%s1 + $0x294] sm:$0xf]
  %v237 = vld [vmem:[%s1 + $0x298] sm:$0xf]
  %v238 = vld [vmem:[%s1 + $0x29c] sm:$0xf]
  %v239 = vld [vmem:[%s1 + $0x2a0] sm:$0xf]
  %v240 = vld [vmem:[%s1 + $0x2a4] sm:$0xf]
  %v241 = vld [vmem:[%s1 + $0x2a8] sm:$0xf]
  %v242 = vld [vmem:[%s1 + $0x2ac] sm:$0xf]
  %v243 = vld [vmem:[%s1 + $0x2b0] sm:$0xf]
  %v244 = vld [vmem:[%s1 + $0x2b4] sm:$0xf]
  %v245 = vld [vmem:[%s1 + $0x2b8] sm:$0xf]
  %v246 = vld [vmem:[%s1 + $0x2bc] sm:$0xf]
  %v247 = vld [vmem:[%s1 + $0x2c0] sm:$0xf]
  %v248 = vld [vmem:[%s1 + $0x2c4] sm:$0xf]
  %v249 = vld [vmem:[%s1 + $0x2c8] sm:$0xf]
  %v250 = vld [vmem:[%s1 + $0x2cc] sm:$0xf]
  %v251 = vld [vmem:[%s1 + $0x2d0] sm:$0xf]
  %v252 = vld [vmem:[%s1 + $0x2d4] sm:$0xf]
  %v253 = vld [vmem:[%s1 + $0x2d8] sm:$0xf]
  %v254 = vld [vmem:[%s1 + $0x2dc] sm:$0xf]
  %v255 = vld [vmem:[%s1 + $0x2e0] sm:$0xf]
  %v256 = vld [vmem:[%s1 + $0x2e4] sm:$0xf]
  %v257 = vld [vmem:[%s1 + $0x2e8] sm:$0xf]
  %v258 = vld [vmem:[%s1 + $0x2ec] sm:$0xf]
  %v259 = vld [vmem:[%s1 + $0x2f0] sm:$0xf]
  %v260 = vld [vmem:[%s1 + $0x2f4] sm:$0xf]
  %v261 = vld [vmem:[%s1 + $0x2f8] sm:$0xf]
  %v262 = vld [vmem:[%s1 + $0x2fc] sm:$0xf]
  %v263 = vld [vmem:[%s1 + $0x300] sm:$0xf]
  %v264 = vld [vmem:[%s1 + $0x304] sm:$0xf]
  %v265 = vld [vmem:[%s1 + $0x308] sm:$0xf]
  %v266 = vld [vmem:[%s1 + $0x30c] sm:$0xf]
  %v267 = vld [vmem:[%s1 + $0x310] sm:$0xf]
  %v268 = vld [vmem:[%s1 + $0x314] sm:$0xf]
  %v269 = vld [vmem:[%s1 + $0x318] sm:$0xf]
  %v270 = vld [vmem:[%s1 + $0x31c] sm:$0xf]
  %v271 = vld [vmem:[%s1 + $0x320] sm:$0xf]
  %v272 = vld [vmem:[%s1 + $0x324] sm:$0xf]
  %v273 = vld [vmem:[%s1 + $0x328] sm:$0xf]
  %v274 = vld [vmem:[%s1 + $0x32c] sm:$0xf]
  %v275 = vld [vmem:[%s1 + $0x330] sm:$0xf]
  %v276 = vld [vmem:[%s1 + $0x334] sm:$0xf]
  %v277 = vld [vmem:[%s1 + $0x338] sm:$0xf]
  %v278 = vld [vmem:[%s1 + $0x33c] sm:$0xf]
  %v279 = vld [vmem:[%s1 + $0x340] sm:$0xf]
  %v280 = vld [vmem:[%s1 + $0x344] sm:$0xf]
  %v281 = vld [vmem:[%s1 + $0x348] sm:$0xf]
  %v282 = vld [vmem:[%s1 + $0x34c] sm:$0xf]
  %v283 = vld [vmem:[%s1 + $0x350] sm:$0xf]
  %v284 = vld [vmem:[%s1 + $0x354] sm:$0xf]
  %v285 = vld [vmem:[%s1 + $0x358] sm:$0xf]
  %v286 = vld [vmem:[%s1 + $0x35c] sm:$0xf]
  %v287 = vld [vmem:[%s1 + $0x360] sm:$0xf]
  %v288 = vld [vmem:[%s1 + $0x364] sm:$0xf]
  %v289 = vld [vmem:[%s1 + $0x368] sm:$0xf]
  %v290 = vld [vmem:[%s1 + $0x36c] sm:$0xf]
  %v291 = vld [vmem:[%s1 + $0x370] sm:$0xf]
  %v292 = vld [vmem:[%s1 + $0x374] sm:$0xf]
  %v293 = vld [vmem:[%s1 + $0x378] sm:$0xf]
  %v294 = vld [vmem:[%s1 + $0x37c] sm:$0xf]
  %v295 = vld [vmem:[%s1 + $0x380] sm:$0xf]
  %v296 = vld [vmem:[%s1 + $0x384] sm:$0xf]
  %v297 = vld [vmem:[%s1 + $0x388] sm:$0xf]
  %v298 = vld [vmem:[%s1 + $0x38c] sm:$0xf]
  %v299 = vld [vmem:[%s1 + $0x390] sm:$0xf]
  %v300 = vld [vmem:[%s1 + $0x394] sm:$0xf]
  %v301 = vld [vmem:[%s1 + $0x398] sm:$0xf]
  %v302 = vld [vmem:[%s1 + $0x39c] sm:$0xf]
  %v303 = vld [vmem:[%s1 + $0x3a0] sm:$0xf]
  %v304 = vld [vmem:[%s1 + $0x3a4] sm:$0xf]
  %v305 = vld [vmem:[%s1 + $0x3a8] sm:$0xf]
  %v306 = vld [vmem:[%s1 + $0x3ac] sm:$0xf]
  %v307 = vld [vmem:[%s1 + $0x3b0] sm:$0xf]
  %v308 = vld [vmem:[%s1 + $0x3b4] sm:$0xf]
  %v309 = vld [vmem:[%s1 + $0x3b8] sm:$0xf]
  %v310 = vld [vmem:[%s1 + $0x3bc] sm:$0xf]
  %v311 = vld [vmem:[%s1 + $0x3c0] sm:$0xf]
  %v312 = vld [vmem:[%s1 + $0x3c4] sm:$0xf]
  %v313 = vld [vmem:[%s1 + $0x3c8] sm:$0xf]
  %v314 = vld [vmem:[%s1 + $0x3cc] sm:$0xf]
  %v315 = vld [vmem:[%s1 + $0x3d0] sm:$0xf]
  %v316 = vld [vmem:[%s1 + $0x3d4] sm:$0xf]
  %v317 = vld [vmem:[%s1 + $0x3d8] sm:$0xf]
  %v318 = vld [vmem:[%s1 + $0x3dc] sm:$0xf]
  %v319 = vld [vmem:[%s1 + $0x3e0] sm:$0xf]
  %v320 = vld [vmem:[%s1 + $0x3e4] sm:$0xf]
  %v321 = vld [vmem:[%s1 + $0x3e8] sm:$0xf]
  %v322 = vld [vmem:[%s1 + $0x3ec] sm:$0xf]
  %v323 = vld [vmem:[%s1 + $0x3f0] sm:$0xf]
  %v324 = vld [vmem:[%s1 + $0x3f4] sm:$0xf]
  %v325 = vld [vmem:[%s1 + $0x3f8] sm:$0xf]
  %v326 = vld [vmem:[%s1 + $0x3fc] sm:$0xf]
  %v327 = vld [vmem:[%s1 + $0x400] sm:$0xf]
  %v328 = vld [vmem:[%s1 + $0x404] sm:$0xf]
  %v329 = vld [vmem:[%s1 + $0x408] sm:$0xf]
  %v330 = vld [vmem:[%s1 + $0x40c] sm:$0xf]
  %v331 = vld [vmem:[%s1 + $0x410] sm:$0xf]
  %v332 = vld [vmem:[%s1 + $0x414] sm:$0xf]
  %v333 = vld [vmem:[%s1 + $0x418] sm:$0xf]
  %v334 = vld [vmem:[%s1 + $0x41c] sm:$0xf]
  %v335 = vld [vmem:[%s1 + $0x420] sm:$0xf]
  %v336 = vld [vmem:[%s1 + $0x424] sm:$0xf]
  %v337 = vld [vmem:[%s1 + $0x428] sm:$0xf]
  %v338 = vld [vmem:[%s1 + $0x42c] sm:$0xf]
  %v339 = vld [vmem:[%s1 + $0x430] sm:$0xf]
  %v340 = vld [vmem:[%s1 + $0x434] sm:$0xf]
  %v341 = vld [vmem:[%s1 + $0x438] sm:$0xf]
  %v342 = vld [vmem:[%s1 + $0x43c] sm:$0xf]
  %v343 = vld [vmem:[%s1 + $0x440] sm:$0xf]
  %v344 = vld [vmem:[%s1 + $0x444] sm:$0xf]
  %v345 = vld [vmem:[%s1 + $0x448] sm:$0xf]
  %v346 = vld [vmem:[%s1 + $0x44c] sm:$0xf]
  %v347 = vld [vmem:[%s1 + $0x450] sm:$0xf]
  %v348 = vld [vmem:[%s1 + $0x454] sm:$0xf]
  %v349 = vld [vmem:[%s1 + $0x458] sm:$0xf]
  %v350 = vld [vmem:[%s1 + $0x45c] sm:$0xf]
  %v351 = vld [vmem:[%s1 + $0x460] sm:$0xf]
  %v352 = vld [vmem:[%s1 + $0x464] sm:$0xf]
  %v353 = vld [vmem:[%s1 + $0x468] sm:$0xf]
  %v354 = vld [vmem:[%s1 + $0x46c] sm:$0xf]
  %v355 = vld [vmem:[%s1 + $0x470] sm:$0xf]
  %v356 = vld [vmem:[%s1 + $0x474] sm:$0xf]
  %v357 = vld [vmem:[%s1 + $0x478] sm:$0xf]
  %v358 = vld [vmem:[%s1 + $0x47c] sm:$0xf]
  %v359 = vld [vmem:[%s1 + $0x480] sm:$0xf]
  %v360 = vld [vmem:[%s1 + $0x484] sm:$0xf]
  %v361 = vld [vmem:[%s1 + $0x488] sm:$0xf]
  %v362 = vld [vmem:[%s1 + $0x48c] sm:$0xf]
  %v363 = vld [vmem:[%s1 + $0x490] sm:$0xf]
  %v364 = vld [vmem:[%s1 + $0x494] sm:$0xf]
  %v365 = vld [vmem:[%s1 + $0x498] sm:$0xf]
  %v366 = vld [vmem:[%s1 + $0x49c] sm:$0xf]
  %v367 = vld [vmem:[%s1 + $0x4a0] sm:$0xf]
  %v368 = vld [vmem:[%s1 + $0x4a4] sm:$0xf]
  %v369 = vld [vmem:[%s1 + $0x4a8] sm:$0xf]
  %v370 = vld [vmem:[%s1 + $0x4ac] sm:$0xf]
  %v371 = vld [vmem:[%s1 + $0x4b0] sm:$0xf]
  %v372 = vld [vmem:[%s1 + $0x4b4] sm:$0xf]
  %v373 = vld [vmem:[%s1 + $0x4b8] sm:$0xf]
  %v374 = vld [vmem:[%s1 + $0x4bc] sm:$0xf]
  %v375 = vld [vmem:[%s1 + $0x4c0] sm:$0xf]
  %v376 = vld [vmem:[%s1 + $0x4c4] sm:$0xf]
  %v377 = vld [vmem:[%s1 + $0x4c8] sm:$0xf]
  %v378 = vld [vmem:[%s1 + $0x4cc] sm:$0xf]
  %v379 = vld [vmem:[%s1 + $0x4d0] sm:$0xf]
  %v380 = vld [vmem:[%s1 + $0x4d4] sm:$0xf]
  %v381 = vld [vmem:[%s1 + $0x4d8] sm:$0xf]
  %v382 = vld [vmem:[%s1 + $0x4dc] sm:$0xf]
  %v383 = vld [vmem:[%s1 + $0x4e0] sm:$0xf]
  %v384 = vld [vmem:[%s1 + $0x4e4] sm:$0xf]
  %v385 = vld [vmem:[%s1 + $0x4e8] sm:$0xf]
  %v386 = vld [vmem:[%s1 + $0x4ec] sm:$0xf]
  %v387 = vld [vmem:[%s1 + $0x4f0] sm:$0xf]
  %v388 = vld [vmem:[%s1 + $0x4f4] sm:$0xf]
  %v389 = vld [vmem:[%s1 + $0x4f8] sm:$0xf]
  %v390 = vld [vmem:[%s1 + $0x4fc] sm:$0xf]
  %v391 = vld [vmem:[%s1 + $0x500] sm:$0xf]
  %v392 = vld [vmem:[%s1 + $0x504] sm:$0xf]
  %v393 = vld [vmem:[%s1 + $0x508] sm:$0xf]
  %v394 = vld [vmem:[%s1 + $0x50c] sm:$0xf]
  %v395 = vld [vmem:[%s1 + $0x510] sm:$0xf]
  %v396 = vld [vmem:[%s1 + $0x514] sm:$0xf]
  %v397 = vld [vmem:[%s1 + $0x518] sm:$0xf]
  %v398 = vld [vmem:[%s1 + $0x51c] sm:$0xf]
  %v399 = vld [vmem:[%s1 + $0x520] sm:$0xf]
  %v400 = vld [vmem:[%s1 + $0x524] sm:$0xf]
  %v401 = vld [vmem:[%s1 + $0x528] sm:$0xf]
  %v402 = vld [vmem:[%s1 + $0x52c] sm:$0xf]
  %v403 = vld [vmem:[%s1 + $0x530] sm:$0xf]
  %v404 = vld [vmem:[%s1 + $0x534] sm:$0xf]
  %v405 = vld [vmem:[%s1 + $0x538] sm:$0xf]
  %v406 = vld [vmem:[%s1 + $0x53c] sm:$0xf]
  %v407 = vld [vmem:[%s1 + $0x540] sm:$0xf]
  %v408 = vld [vmem:[%s1 + $0x544] sm:$0xf]
  %v409 = vld [vmem:[%s1 + $0x548] sm:$0xf]
  %v410 = vld [vmem:[%s1 + $0x54c] sm:$0xf]
  %v411 = vld [vmem:[%s1 + $0x550] sm:$0xf]
  %v412 = vld [vmem:[%s1 + $0x554] sm:$0xf]
  %v413 = vld [vmem:[%s1 + $0x558] sm:$0xf]
  %v414 = vld [vmem:[%s1 + $0x55c] sm:$0xf]
  %v415 = vld [vmem:[%s1 + $0x560] sm:$0xf]
  %v416 = vld [vmem:[%s1 + $0x564] sm:$0xf]
  %v417 = vld [vmem:[%s1 + $0x568] sm:$0xf]
  %v418 = vld [vmem:[%s1 + $0x56c] sm:$0xf]
  %v419 = vld [vmem:[%s1 + $0x570] sm:$0xf]
  %v420 = vld [vmem:[%s1 + $0x574] sm:$0xf]
  %v421 = vld [vmem:[%s1 + $0x578] sm:$0xf]
  %v422 = vld [vmem:[%s1 + $0x57c] sm:$0xf]
  %v423 = vld [vmem:[%s1 + $0x580] sm:$0xf]
  %v424 = vld [vmem:[%s1 + $0x584] sm:$0xf]
  %v425 = vld [vmem:[%s1 + $0x588] sm:$0xf]
  %v426 = vld [vmem:[%s1 + $0x58c] sm:$0xf]
  %v427 = vld [vmem:[%s1 + $0x590] sm:$0xf]
  %v428 = vld [vmem:[%s1 + $0x594] sm:$0xf]
  %v429 = vld [vmem:[%s1 + $0x598] sm:$0xf]
  %v430 = vld [vmem:[%s1 + $0x59c] sm:$0xf]
  %v431 = vld [vmem:[%s1 + $0x5a0] sm:$0xf]
  %v432 = vld [vmem:[%s1 + $0x5a4] sm:$0xf]
  %v433 = vld [vmem:[%s1 + $0x5a8] sm:$0xf]
  %v434 = vld [vmem:[%s1 + $0x5ac] sm:$0xf]
  %v435 = vld [vmem:[%s1 + $0x5b0] sm:$0xf]
  %v436 = vld [vmem:[%s1 + $0x5b4] sm:$0xf]
  %v437 = vld [vmem:[%s1 + $0x5b8] sm:$0xf]
  %v438 = vld [vmem:[%s1 + $0x5bc] sm:$0xf]
  %v439 = vld [vmem:[%s1 + $0x5c0] sm:$0xf]
  %v440 = vld [vmem:[%s1 + $0x5c4] sm:$0xf]
  %v441 = vld [vmem:[%s1 + $0x5c8] sm:$0xf]
  %v442 = vld [vmem:[%s1 + $0x5cc] sm:$0xf]
  %v443 = vld [vmem:[%s1 + $0x5d0] sm:$0xf]
  %v444 = vld [vmem:[%s1 + $0x5d4] sm:$0xf]
  %v445 = vld [vmem:[%s1 + $0x5d8] sm:$0xf]
  %v446 = vld [vmem:[%s1 + $0x5dc] sm:$0xf]
  %v447 = vld [vmem:[%s1 + $0x5e0] sm:$0xf]
  %v448 = vld [vmem:[%s1 + $0x5e4] sm:$0xf]
  %v449 = vld [vmem:[%s1 + $0x5e8] sm:$0xf]
  %v450 = vld [vmem:[%s1 + $0x5ec] sm:$0xf]
  %v451 = vld [vmem:[%s1 + $0x5f0] sm:$0xf]
  %v452 = vld [vmem:[%s1 + $0x5f4] sm:$0xf]
  %v453 = vld [vmem:[%s1 + $0x5f8] sm:$0xf]
  %v454 = vld [vmem:[%s1 + $0x5fc] sm:$0xf]
  %v455 = vld [vmem:[%s1 + $0x600] sm:$0xf]
  %v456 = vld [vmem:[%s1 + $0x604] sm:$0xf]
  %v457 = vld [vmem:[%s1 + $0x608] sm:$0xf]
  %v458 = vld [vmem:[%s1 + $0x60c] sm:$0xf]
  %v459 = vld [vmem:[%s1 + $0x610] sm:$0xf]
  %v460 = vld [vmem:[%s1 + $0x614] sm:$0xf]
  %v461 = vld [vmem:[%s1 + $0x618] sm:$0xf]
  %v462 = vld [vmem:[%s1 + $0x61c] sm:$0xf]
  %v463 = vld [vmem:[%s2] sm:$0x1]
  %v465 = vlaneseq
  %v466 = vshrl.u32 %v465, 7
  %v467 = vsub.s32 0, %v466
  %v468 = vrot.slane %v463, %v467
  %v862 = vunpack.c.l.b16 %v71
  %v863 = vunpack.c.l.b16 %v72
  %v864 = vunpack.c.l.b16 %v73
  %v865 = vunpack.c.l.b16 %v74
  %v866 = vunpack.c.l.b16 %v75
  %v867 = vunpack.c.l.b16 %v76
  %v868 = vunpack.c.l.b16 %v77
  %v869 = vunpack.c.l.b16 %v78
  %v870 = vunpack.c.l.b16 %v79
  %v871 = vunpack.c.l.b16 %v80
  %v872 = vunpack.c.l.b16 %v81
  %v873 = vunpack.c.l.b16 %v82
  %v874 = vunpack.c.l.b16 %v83
  %v875 = vunpack.c.l.b16 %v84
  %v876 = vunpack.c.l.b16 %v85
  %v877 = vunpack.c.l.b16 %v86
  %v878 = vunpack.c.l.b16 %v87
  %v879 = vunpack.c.l.b16 %v88
  %v880 = vunpack.c.l.b16 %v89
  %v881 = vunpack.c.l.b16 %v90
  %v882 = vunpack.c.l.b16 %v91
  %v883 = vunpack.c.l.b16 %v92
  %v884 = vunpack.c.l.b16 %v93
  %v885 = vunpack.c.l.b16 %v94
  %v886 = vunpack.c.l.b16 %v95
  %v887 = vunpack.c.l.b16 %v96
  %v888 = vunpack.c.l.b16 %v97
  %v889 = vunpack.c.l.b16 %v98
  %v890 = vunpack.c.l.b16 %v99
  %v891 = vunpack.c.l.b16 %v100
  %v892 = vunpack.c.l.b16 %v101
  %v893 = vunpack.c.l.b16 %v102
  %v894 = vunpack.c.l.b16 %v103
  %v895 = vunpack.c.l.b16 %v104
  %v896 = vunpack.c.l.b16 %v105
  %v897 = vunpack.c.l.b16 %v106
  %v898 = vunpack.c.l.b16 %v107
  %v899 = vunpack.c.l.b16 %v108
  %v900 = vunpack.c.l.b16 %v109
  %v901 = vunpack.c.l.b16 %v110
  %v902 = vunpack.c.l.b16 %v111
  %v903 = vunpack.c.l.b16 %v112
  %v904 = vunpack.c.l.b16 %v113
  %v905 = vunpack.c.l.b16 %v114
  %v906 = vunpack.c.l.b16 %v115
  %v907 = vunpack.c.l.b16 %v116
  %v908 = vunpack.c.l.b16 %v117
  %v909 = vunpack.c.l.b16 %v118
  %v910 = vunpack.c.l.b16 %v119
  %v911 = vunpack.c.l.b16 %v120
  %v912 = vunpack.c.l.b16 %v121
  %v913 = vunpack.c.l.b16 %v122
  %v914 = vunpack.c.l.b16 %v123
  %v915 = vunpack.c.l.b16 %v124
  %v916 = vunpack.c.l.b16 %v125
  %v917 = vunpack.c.l.b16 %v126
  %v918 = vunpack.c.l.b16 %v127
  %v919 = vunpack.c.l.b16 %v128
  %v920 = vunpack.c.l.b16 %v129
  %v921 = vunpack.c.l.b16 %v130
  %v922 = vunpack.c.l.b16 %v131
  %v923 = vunpack.c.l.b16 %v132
  %v924 = vunpack.c.l.b16 %v133
  %v925 = vunpack.c.l.b16 %v134
  %v926 = vunpack.c.l.b16 %v135
  %v927 = vunpack.c.l.b16 %v136
  %v928 = vunpack.c.l.b16 %v137
  %v929 = vunpack.c.l.b16 %v138
  %v930 = vunpack.c.l.b16 %v139
  %v931 = vunpack.c.l.b16 %v140
  %v932 = vunpack.c.l.b16 %v141
  %v933 = vunpack.c.l.b16 %v142
  %v934 = vunpack.c.l.b16 %v143
  %v935 = vunpack.c.l.b16 %v144
  %v936 = vunpack.c.l.b16 %v145
  %v937 = vunpack.c.l.b16 %v146
  %v938 = vunpack.c.l.b16 %v147
  %v939 = vunpack.c.l.b16 %v148
  %v940 = vunpack.c.l.b16 %v149
  %v941 = vunpack.c.l.b16 %v150
  %v942 = vunpack.c.l.b16 %v151
  %v943 = vunpack.c.l.b16 %v152
  %v944 = vunpack.c.l.b16 %v153
  %v945 = vunpack.c.l.b16 %v154
  %v946 = vunpack.c.l.b16 %v155
  %v947 = vunpack.c.l.b16 %v156
  %v948 = vunpack.c.l.b16 %v157
  %v949 = vunpack.c.l.b16 %v158
  %v950 = vunpack.c.l.b16 %v159
  %v951 = vunpack.c.l.b16 %v160
  %v952 = vunpack.c.l.b16 %v161
  %v953 = vunpack.c.l.b16 %v162
  %v954 = vunpack.c.l.b16 %v163
  %v955 = vunpack.c.l.b16 %v164
  %v956 = vunpack.c.l.b16 %v165
  %v957 = vunpack.c.l.b16 %v166
  %v958 = vunpack.c.l.b16 %v167
  %v959 = vunpack.c.l.b16 %v168
  %v960 = vunpack.c.l.b16 %v169
  %v961 = vunpack.c.l.b16 %v170
  %v962 = vunpack.c.l.b16 %v171
  %v963 = vunpack.c.l.b16 %v172
  %v964 = vunpack.c.l.b16 %v173
  %v965 = vunpack.c.l.b16 %v174
  %v966 = vunpack.c.l.b16 %v175
  %v967 = vunpack.c.l.b16 %v176
  %v968 = vunpack.c.l.b16 %v177
  %v969 = vunpack.c.l.b16 %v178
  %v970 = vunpack.c.l.b16 %v179
  %v971 = vunpack.c.l.b16 %v180
  %v972 = vunpack.c.l.b16 %v181
  %v973 = vunpack.c.l.b16 %v182
  %v974 = vunpack.c.l.b16 %v183
  %v975 = vunpack.c.l.b16 %v184
  %v976 = vunpack.c.l.b16 %v185
  %v977 = vunpack.c.l.b16 %v186
  %v978 = vunpack.c.l.b16 %v187
  %v979 = vunpack.c.l.b16 %v188
  %v980 = vunpack.c.l.b16 %v189
  %v981 = vunpack.c.l.b16 %v190
  %v982 = vunpack.c.l.b16 %v191
  %v983 = vunpack.c.l.b16 %v192
  %v984 = vunpack.c.l.b16 %v193
  %v985 = vunpack.c.l.b16 %v194
  %v986 = vunpack.c.l.b16 %v195
  %v987 = vunpack.c.l.b16 %v196
  %v988 = vunpack.c.l.b16 %v197
  %v989 = vunpack.c.l.b16 %v198
  %v990 = vunpack.c.l.b16 %v199
  %v991 = vunpack.c.l.b16 %v200
  %v992 = vunpack.c.l.b16 %v201
  %v993 = vunpack.c.l.b16 %v202
  %v994 = vunpack.c.l.b16 %v203
  %v995 = vunpack.c.l.b16 %v204
  %v996 = vunpack.c.l.b16 %v205
  %v997 = vunpack.c.l.b16 %v206
  %v998 = vunpack.c.l.b16 %v207
  %v999 = vunpack.c.l.b16 %v208
  %v1000 = vunpack.c.l.b16 %v209
  %v1001 = vunpack.c.l.b16 %v210
  %v1002 = vunpack.c.l.b16 %v211
  %v1003 = vunpack.c.l.b16 %v212
  %v1004 = vunpack.c.l.b16 %v213
  %v1005 = vunpack.c.l.b16 %v214
  %v1006 = vunpack.c.l.b16 %v215
  %v1007 = vunpack.c.l.b16 %v216
  %v1008 = vunpack.c.l.b16 %v217
  %v1009 = vunpack.c.l.b16 %v218
  %v1010 = vunpack.c.l.b16 %v219
  %v1011 = vunpack.c.l.b16 %v220
  %v1012 = vunpack.c.l.b16 %v221
  %v1013 = vunpack.c.l.b16 %v222
  %v1014 = vunpack.c.l.b16 %v223
  %v1015 = vunpack.c.l.b16 %v224
  %v1016 = vunpack.c.l.b16 %v225
  %v1017 = vunpack.c.l.b16 %v226
  %v1018 = vunpack.c.l.b16 %v227
  %v1019 = vunpack.c.l.b16 %v228
  %v1020 = vunpack.c.l.b16 %v229
  %v1021 = vunpack.c.l.b16 %v230
  %v1022 = vunpack.c.l.b16 %v231
  %v1023 = vunpack.c.l.b16 %v232
  %v1024 = vunpack.c.l.b16 %v233
  %v1025 = vunpack.c.l.b16 %v234
  %v1026 = vunpack.c.l.b16 %v235
  %v1027 = vunpack.c.l.b16 %v236
  %v1028 = vunpack.c.l.b16 %v237
  %v1029 = vunpack.c.l.b16 %v238
  %v1030 = vunpack.c.l.b16 %v239
  %v1031 = vunpack.c.l.b16 %v240
  %v1032 = vunpack.c.l.b16 %v241
  %v1033 = vunpack.c.l.b16 %v242
  %v1034 = vunpack.c.l.b16 %v243
  %v1035 = vunpack.c.l.b16 %v244
  %v1036 = vunpack.c.l.b16 %v245
  %v1037 = vunpack.c.l.b16 %v246
  %v1038 = vunpack.c.l.b16 %v247
  %v1039 = vunpack.c.l.b16 %v248
  %v1040 = vunpack.c.l.b16 %v249
  %v1041 = vunpack.c.l.b16 %v250
  %v1042 = vunpack.c.l.b16 %v251
  %v1043 = vunpack.c.l.b16 %v252
  %v1044 = vunpack.c.l.b16 %v253
  %v1045 = vunpack.c.l.b16 %v254
  %v1046 = vunpack.c.l.b16 %v255
  %v1047 = vunpack.c.l.b16 %v256
  %v1048 = vunpack.c.l.b16 %v257
  %v1049 = vunpack.c.l.b16 %v258
  %v1050 = vunpack.c.l.b16 %v259
  %v1051 = vunpack.c.l.b16 %v260
  %v1052 = vunpack.c.l.b16 %v261
  %v1053 = vunpack.c.l.b16 %v262
  %v1054 = vunpack.c.l.b16 %v263
  %v1055 = vunpack.c.l.b16 %v264
  %v1056 = vunpack.c.l.b16 %v265
  %v1057 = vunpack.c.l.b16 %v266
  %v1058 = vunpack.c.l.b16 %v267
  %v1059 = vunpack.c.l.b16 %v268
  %v1060 = vunpack.c.l.b16 %v269
  %v1061 = vunpack.c.l.b16 %v270
  %v1062 = vunpack.c.l.b16 %v271
  %v1063 = vunpack.c.l.b16 %v272
  %v1064 = vunpack.c.l.b16 %v273
  %v1065 = vunpack.c.l.b16 %v274
  %v1066 = vunpack.c.l.b16 %v275
  %v1067 = vunpack.c.l.b16 %v276
  %v1068 = vunpack.c.l.b16 %v277
  %v1069 = vunpack.c.l.b16 %v278
  %v1070 = vunpack.c.l.b16 %v279
  %v1071 = vunpack.c.l.b16 %v280
  %v1072 = vunpack.c.l.b16 %v281
  %v1073 = vunpack.c.l.b16 %v282
  %v1074 = vunpack.c.l.b16 %v283
  %v1075 = vunpack.c.l.b16 %v284
  %v1076 = vunpack.c.l.b16 %v285
  %v1077 = vunpack.c.l.b16 %v286
  %v1078 = vunpack.c.l.b16 %v287
  %v1079 = vunpack.c.l.b16 %v288
  %v1080 = vunpack.c.l.b16 %v289
  %v1081 = vunpack.c.l.b16 %v290
  %v1082 = vunpack.c.l.b16 %v291
  %v1083 = vunpack.c.l.b16 %v292
  %v1084 = vunpack.c.l.b16 %v293
  %v1085 = vunpack.c.l.b16 %v294
  %v1086 = vunpack.c.l.b16 %v295
  %v1087 = vunpack.c.l.b16 %v296
  %v1088 = vunpack.c.l.b16 %v297
  %v1089 = vunpack.c.l.b16 %v298
  %v1090 = vunpack.c.l.b16 %v299
  %v1091 = vunpack.c.l.b16 %v300
  %v1092 = vunpack.c.l.b16 %v301
  %v1093 = vunpack.c.l.b16 %v302
  %v1094 = vunpack.c.l.b16 %v303
  %v1095 = vunpack.c.l.b16 %v304
  %v1096 = vunpack.c.l.b16 %v305
  %v1097 = vunpack.c.l.b16 %v306
  %v1098 = vunpack.c.l.b16 %v307
  %v1099 = vunpack.c.l.b16 %v308
  %v1100 = vunpack.c.l.b16 %v309
  %v1101 = vunpack.c.l.b16 %v310
  %v1102 = vunpack.c.l.b16 %v311
  %v1103 = vunpack.c.l.b16 %v312
  %v1104 = vunpack.c.l.b16 %v313
  %v1105 = vunpack.c.l.b16 %v314
  %v1106 = vunpack.c.l.b16 %v315
  %v1107 = vunpack.c.l.b16 %v316
  %v1108 = vunpack.c.l.b16 %v317
  %v1109 = vunpack.c.l.b16 %v318
  %v1110 = vunpack.c.l.b16 %v319
  %v1111 = vunpack.c.l.b16 %v320
  %v1112 = vunpack.c.l.b16 %v321
  %v1113 = vunpack.c.l.b16 %v322
  %v1114 = vunpack.c.l.b16 %v323
  %v1115 = vunpack.c.l.b16 %v324
  %v1116 = vunpack.c.l.b16 %v325
  %v1117 = vunpack.c.l.b16 %v326
  %v1118 = vunpack.c.l.b16 %v327
  %v1119 = vunpack.c.l.b16 %v328
  %v1120 = vunpack.c.l.b16 %v329
  %v1121 = vunpack.c.l.b16 %v330
  %v1122 = vunpack.c.l.b16 %v331
  %v1123 = vunpack.c.l.b16 %v332
  %v1124 = vunpack.c.l.b16 %v333
  %v1125 = vunpack.c.l.b16 %v334
  %v1126 = vunpack.c.l.b16 %v335
  %v1127 = vunpack.c.l.b16 %v336
  %v1128 = vunpack.c.l.b16 %v337
  %v1129 = vunpack.c.l.b16 %v338
  %v1130 = vunpack.c.l.b16 %v339
  %v1131 = vunpack.c.l.b16 %v340
  %v1132 = vunpack.c.l.b16 %v341
  %v1133 = vunpack.c.l.b16 %v342
  %v1134 = vunpack.c.l.b16 %v343
  %v1135 = vunpack.c.l.b16 %v344
  %v1136 = vunpack.c.l.b16 %v345
  %v1137 = vunpack.c.l.b16 %v346
  %v1138 = vunpack.c.l.b16 %v347
  %v1139 = vunpack.c.l.b16 %v348
  %v1140 = vunpack.c.l.b16 %v349
  %v1141 = vunpack.c.l.b16 %v350
  %v1142 = vunpack.c.l.b16 %v351
  %v1143 = vunpack.c.l.b16 %v352
  %v1144 = vunpack.c.l.b16 %v353
  %v1145 = vunpack.c.l.b16 %v354
  %v1146 = vunpack.c.l.b16 %v355
  %v1147 = vunpack.c.l.b16 %v356
  %v1148 = vunpack.c.l.b16 %v357
  %v1149 = vunpack.c.l.b16 %v358
  %v1150 = vunpack.c.l.b16 %v359
  %v1151 = vunpack.c.l.b16 %v360
  %v1152 = vunpack.c.l.b16 %v361
  %v1153 = vunpack.c.l.b16 %v362
  %v1154 = vunpack.c.l.b16 %v363
  %v1155 = vunpack.c.l.b16 %v364
  %v1156 = vunpack.c.l.b16 %v365
  %v1157 = vunpack.c.l.b16 %v366
  %v1158 = vunpack.c.l.b16 %v367
  %v1159 = vunpack.c.l.b16 %v368
  %v1160 = vunpack.c.l.b16 %v369
  %v1161 = vunpack.c.l.b16 %v370
  %v1162 = vunpack.c.l.b16 %v371
  %v1163 = vunpack.c.l.b16 %v372
  %v1164 = vunpack.c.l.b16 %v373
  %v1165 = vunpack.c.l.b16 %v374
  %v1166 = vunpack.c.l.b16 %v375
  %v1167 = vunpack.c.l.b16 %v376
  %v1168 = vunpack.c.l.b16 %v377
  %v1169 = vunpack.c.l.b16 %v378
  %v1170 = vunpack.c.l.b16 %v379
  %v1171 = vunpack.c.l.b16 %v380
  %v1172 = vunpack.c.l.b16 %v381
  %v1173 = vunpack.c.l.b16 %v382
  %v1174 = vunpack.c.l.b16 %v383
  %v1175 = vunpack.c.l.b16 %v384
  %v1176 = vunpack.c.l.b16 %v385
  %v1177 = vunpack.c.l.b16 %v386
  %v1178 = vunpack.c.l.b16 %v387
  %v1179 = vunpack.c.l.b16 %v388
  %v1180 = vunpack.c.l.b16 %v389
  %v1181 = vunpack.c.l.b16 %v390
  %v1182 = vunpack.c.l.b16 %v391
  %v1183 = vunpack.c.l.b16 %v392
  %v1184 = vunpack.c.l.b16 %v393
  %v1185 = vunpack.c.l.b16 %v394
  %v1186 = vunpack.c.l.b16 %v395
  %v1187 = vunpack.c.l.b16 %v396
  %v1188 = vunpack.c.l.b16 %v397
  %v1189 = vunpack.c.l.b16 %v398
  %v1190 = vunpack.c.l.b16 %v399
  %v1191 = vunpack.c.l.b16 %v400
  %v1192 = vunpack.c.l.b16 %v401
  %v1193 = vunpack.c.l.b16 %v402
  %v1194 = vunpack.c.l.b16 %v403
  %v1195 = vunpack.c.l.b16 %v404
  %v1196 = vunpack.c.l.b16 %v405
  %v1197 = vunpack.c.l.b16 %v406
  %v1198 = vunpack.c.l.b16 %v407
  %v1199 = vunpack.c.l.b16 %v408
  %v1200 = vunpack.c.l.b16 %v409
  %v1201 = vunpack.c.l.b16 %v410
  %v1202 = vunpack.c.l.b16 %v411
  %v1203 = vunpack.c.l.b16 %v412
  %v1204 = vunpack.c.l.b16 %v413
  %v1205 = vunpack.c.l.b16 %v414
  %v1206 = vunpack.c.l.b16 %v415
  %v1207 = vunpack.c.l.b16 %v416
  %v1208 = vunpack.c.l.b16 %v417
  %v1209 = vunpack.c.l.b16 %v418
  %v1210 = vunpack.c.l.b16 %v419
  %v1211 = vunpack.c.l.b16 %v420
  %v1212 = vunpack.c.l.b16 %v421
  %v1213 = vunpack.c.l.b16 %v422
  %v1214 = vunpack.c.l.b16 %v423
  %v1215 = vunpack.c.l.b16 %v424
  %v1216 = vunpack.c.l.b16 %v425
  %v1217 = vunpack.c.l.b16 %v426
  %v1218 = vunpack.c.l.b16 %v427
  %v1219 = vunpack.c.l.b16 %v428
  %v1220 = vunpack.c.l.b16 %v429
  %v1221 = vunpack.c.l.b16 %v430
  %v1222 = vunpack.c.l.b16 %v431
  %v1223 = vunpack.c.l.b16 %v432
  %v1224 = vunpack.c.l.b16 %v433
  %v1225 = vunpack.c.l.b16 %v434
  %v1226 = vunpack.c.l.b16 %v435
  %v1227 = vunpack.c.l.b16 %v436
  %v1228 = vunpack.c.l.b16 %v437
  %v1229 = vunpack.c.l.b16 %v438
  %v1230 = vunpack.c.l.b16 %v439
  %v1231 = vunpack.c.l.b16 %v440
  %v1232 = vunpack.c.l.b16 %v441
  %v1233 = vunpack.c.l.b16 %v442
  %v1234 = vunpack.c.l.b16 %v443
  %v1235 = vunpack.c.l.b16 %v444
  %v1236 = vunpack.c.l.b16 %v445
  %v1237 = vunpack.c.l.b16 %v446
  %v1238 = vunpack.c.l.b16 %v447
  %v1239 = vunpack.c.l.b16 %v448
  %v1240 = vunpack.c.l.b16 %v449
  %v1241 = vunpack.c.l.b16 %v450
  %v1242 = vunpack.c.l.b16 %v451
  %v1243 = vunpack.c.l.b16 %v452
  %v1244 = vunpack.c.l.b16 %v453
  %v1245 = vunpack.c.l.b16 %v454
  %v1246 = vunpack.c.l.b16 %v455
  %v1247 = vunpack.c.l.b16 %v456
  %v1248 = vunpack.c.l.b16 %v457
  %v1249 = vunpack.c.l.b16 %v458
  %v1250 = vunpack.c.l.b16 %v459
  %v1251 = vunpack.c.l.b16 %v460
  %v1252 = vunpack.c.l.b16 %v461
  %v1253 = vunpack.c.l.b16 %v462
  %v1254 = vpack.c.b16 %v863, %v862
  %v1255 = vpack.c.b16 %v865, %v864
  %v1256 = vpack.c.b16 %v867, %v866
  %v1257 = vpack.c.b16 %v869, %v868
  %v1258 = vpack.c.b16 %v871, %v870
  %v1259 = vpack.c.b16 %v873, %v872
  %v1260 = vpack.c.b16 %v875, %v874
  %v1261 = vpack.c.b16 %v877, %v876
  %v1262 = vpack.c.b16 %v879, %v878
  %v1263 = vpack.c.b16 %v881, %v880
  %v1264 = vpack.c.b16 %v883, %v882
  %v1265 = vpack.c.b16 %v885, %v884
  %v1266 = vpack.c.b16 %v887, %v886
  %v1267 = vpack.c.b16 %v889, %v888
  %v1268 = vpack.c.b16 %v891, %v890
  %v1269 = vpack.c.b16 %v893, %v892
  %v1270 = vpack.c.b16 %v895, %v894
  %v1271 = vpack.c.b16 %v897, %v896
  %v1272 = vpack.c.b16 %v899, %v898
  %v1273 = vpack.c.b16 %v901, %v900
  %v1274 = vpack.c.b16 %v903, %v902
  %v1275 = vpack.c.b16 %v905, %v904
  %v1276 = vpack.c.b16 %v907, %v906
  %v1277 = vpack.c.b16 %v909, %v908
  %v1278 = vpack.c.b16 %v911, %v910
  %v1279 = vpack.c.b16 %v913, %v912
  %v1280 = vpack.c.b16 %v915, %v914
  %v1281 = vpack.c.b16 %v917, %v916
  %v1282 = vpack.c.b16 %v919, %v918
  %v1283 = vpack.c.b16 %v921, %v920
  %v1284 = vpack.c.b16 %v923, %v922
  %v1285 = vpack.c.b16 %v925, %v924
  %v1286 = vpack.c.b16 %v927, %v926
  %v1287 = vpack.c.b16 %v929, %v928
  %v1288 = vpack.c.b16 %v931, %v930
  %v1289 = vpack.c.b16 %v933, %v932
  %v1290 = vpack.c.b16 %v935, %v934
  %v1291 = vpack.c.b16 %v937, %v936
  %v1292 = vpack.c.b16 %v939, %v938
  %v1293 = vpack.c.b16 %v941, %v940
  %v1294 = vpack.c.b16 %v943, %v942
  %v1295 = vpack.c.b16 %v945, %v944
  %v1296 = vpack.c.b16 %v947, %v946
  %v1297 = vpack.c.b16 %v949, %v948
  %v1298 = vpack.c.b16 %v951, %v950
  %v1299 = vpack.c.b16 %v953, %v952
  %v1300 = vpack.c.b16 %v955, %v954
  %v1301 = vpack.c.b16 %v957, %v956
  %v1302 = vpack.c.b16 %v959, %v958
  %v1303 = vpack.c.b16 %v961, %v960
  %v1304 = vpack.c.b16 %v963, %v962
  %v1305 = vpack.c.b16 %v965, %v964
  %v1306 = vpack.c.b16 %v967, %v966
  %v1307 = vpack.c.b16 %v969, %v968
  %v1308 = vpack.c.b16 %v971, %v970
  %v1309 = vpack.c.b16 %v973, %v972
  %v1310 = vpack.c.b16 %v975, %v974
  %v1311 = vpack.c.b16 %v977, %v976
  %v1312 = vpack.c.b16 %v979, %v978
  %v1313 = vpack.c.b16 %v981, %v980
  %v1314 = vpack.c.b16 %v983, %v982
  %v1315 = vpack.c.b16 %v985, %v984
  %v1316 = vpack.c.b16 %v987, %v986
  %v1317 = vpack.c.b16 %v989, %v988
  %v1318 = vpack.c.b16 %v991, %v990
  %v1319 = vpack.c.b16 %v993, %v992
  %v1320 = vpack.c.b16 %v995, %v994
  %v1321 = vpack.c.b16 %v997, %v996
  %v1322 = vpack.c.b16 %v999, %v998
  %v1323 = vpack.c.b16 %v1001, %v1000
  %v1324 = vpack.c.b16 %v1003, %v1002
  %v1325 = vpack.c.b16 %v1005, %v1004
  %v1326 = vpack.c.b16 %v1007, %v1006
  %v1327 = vpack.c.b16 %v1009, %v1008
  %v1328 = vpack.c.b16 %v1011, %v1010
  %v1329 = vpack.c.b16 %v1013, %v1012
  %v1330 = vpack.c.b16 %v1015, %v1014
  %v1331 = vpack.c.b16 %v1017, %v1016
  %v1332 = vpack.c.b16 %v1019, %v1018
  %v1333 = vpack.c.b16 %v1021, %v1020
  %v1334 = vpack.c.b16 %v1023, %v1022
  %v1335 = vpack.c.b16 %v1025, %v1024
  %v1336 = vpack.c.b16 %v1027, %v1026
  %v1337 = vpack.c.b16 %v1029, %v1028
  %v1338 = vpack.c.b16 %v1031, %v1030
  %v1339 = vpack.c.b16 %v1033, %v1032
  %v1340 = vpack.c.b16 %v1035, %v1034
  %v1341 = vpack.c.b16 %v1037, %v1036
  %v1342 = vpack.c.b16 %v1039, %v1038
  %v1343 = vpack.c.b16 %v1041, %v1040
  %v1344 = vpack.c.b16 %v1043, %v1042
  %v1345 = vpack.c.b16 %v1045, %v1044
  %v1346 = vpack.c.b16 %v1047, %v1046
  %v1347 = vpack.c.b16 %v1049, %v1048
  %v1348 = vpack.c.b16 %v1051, %v1050
  %v1349 = vpack.c.b16 %v1053, %v1052
  %v1350 = vpack.c.b16 %v1055, %v1054
  %v1351 = vpack.c.b16 %v1057, %v1056
  %v1352 = vpack.c.b16 %v1059, %v1058
  %v1353 = vpack.c.b16 %v1061, %v1060
  %v1354 = vpack.c.b16 %v1063, %v1062
  %v1355 = vpack.c.b16 %v1065, %v1064
  %v1356 = vpack.c.b16 %v1067, %v1066
  %v1357 = vpack.c.b16 %v1069, %v1068
  %v1358 = vpack.c.b16 %v1071, %v1070
  %v1359 = vpack.c.b16 %v1073, %v1072
  %v1360 = vpack.c.b16 %v1075, %v1074
  %v1361 = vpack.c.b16 %v1077, %v1076
  %v1362 = vpack.c.b16 %v1079, %v1078
  %v1363 = vpack.c.b16 %v1081, %v1080
  %v1364 = vpack.c.b16 %v1083, %v1082
  %v1365 = vpack.c.b16 %v1085, %v1084
  %v1366 = vpack.c.b16 %v1087, %v1086
  %v1367 = vpack.c.b16 %v1089, %v1088
  %v1368 = vpack.c.b16 %v1091, %v1090
  %v1369 = vpack.c.b16 %v1093, %v1092
  %v1370 = vpack.c.b16 %v1095, %v1094
  %v1371 = vpack.c.b16 %v1097, %v1096
  %v1372 = vpack.c.b16 %v1099, %v1098
  %v1373 = vpack.c.b16 %v1101, %v1100
  %v1374 = vpack.c.b16 %v1103, %v1102
  %v1375 = vpack.c.b16 %v1105, %v1104
  %v1376 = vpack.c.b16 %v1107, %v1106
  %v1377 = vpack.c.b16 %v1109, %v1108
  %v1378 = vpack.c.b16 %v1111, %v1110
  %v1379 = vpack.c.b16 %v1113, %v1112
  %v1380 = vpack.c.b16 %v1115, %v1114
  %v1381 = vpack.c.b16 %v1117, %v1116
  %v1382 = vpack.c.b16 %v1119, %v1118
  %v1383 = vpack.c.b16 %v1121, %v1120
  %v1384 = vpack.c.b16 %v1123, %v1122
  %v1385 = vpack.c.b16 %v1125, %v1124
  %v1386 = vpack.c.b16 %v1127, %v1126
  %v1387 = vpack.c.b16 %v1129, %v1128
  %v1388 = vpack.c.b16 %v1131, %v1130
  %v1389 = vpack.c.b16 %v1133, %v1132
  %v1390 = vpack.c.b16 %v1135, %v1134
  %v1391 = vpack.c.b16 %v1137, %v1136
  %v1392 = vpack.c.b16 %v1139, %v1138
  %v1393 = vpack.c.b16 %v1141, %v1140
  %v1394 = vpack.c.b16 %v1143, %v1142
  %v1395 = vpack.c.b16 %v1145, %v1144
  %v1396 = vpack.c.b16 %v1147, %v1146
  %v1397 = vpack.c.b16 %v1149, %v1148
  %v1398 = vpack.c.b16 %v1151, %v1150
  %v1399 = vpack.c.b16 %v1153, %v1152
  %v1400 = vpack.c.b16 %v1155, %v1154
  %v1401 = vpack.c.b16 %v1157, %v1156
  %v1402 = vpack.c.b16 %v1159, %v1158
  %v1403 = vpack.c.b16 %v1161, %v1160
  %v1404 = vpack.c.b16 %v1163, %v1162
  %v1405 = vpack.c.b16 %v1165, %v1164
  %v1406 = vpack.c.b16 %v1167, %v1166
  %v1407 = vpack.c.b16 %v1169, %v1168
  %v1408 = vpack.c.b16 %v1171, %v1170
  %v1409 = vpack.c.b16 %v1173, %v1172
  %v1410 = vpack.c.b16 %v1175, %v1174
  %v1411 = vpack.c.b16 %v1177, %v1176
  %v1412 = vpack.c.b16 %v1179, %v1178
  %v1413 = vpack.c.b16 %v1181, %v1180
  %v1414 = vpack.c.b16 %v1183, %v1182
  %v1415 = vpack.c.b16 %v1185, %v1184
  %v1416 = vpack.c.b16 %v1187, %v1186
  %v1417 = vpack.c.b16 %v1189, %v1188
  %v1418 = vpack.c.b16 %v1191, %v1190
  %v1419 = vpack.c.b16 %v1193, %v1192
  %v1420 = vpack.c.b16 %v1195, %v1194
  %v1421 = vpack.c.b16 %v1197, %v1196
  %v1422 = vpack.c.b16 %v1199, %v1198
  %v1423 = vpack.c.b16 %v1201, %v1200
  %v1424 = vpack.c.b16 %v1203, %v1202
  %v1425 = vpack.c.b16 %v1205, %v1204
  %v1426 = vpack.c.b16 %v1207, %v1206
  %v1427 = vpack.c.b16 %v1209, %v1208
  %v1428 = vpack.c.b16 %v1211, %v1210
  %v1429 = vpack.c.b16 %v1213, %v1212
  %v1430 = vpack.c.b16 %v1215, %v1214
  %v1431 = vpack.c.b16 %v1217, %v1216
  %v1432 = vpack.c.b16 %v1219, %v1218
  %v1433 = vpack.c.b16 %v1221, %v1220
  %v1434 = vpack.c.b16 %v1223, %v1222
  %v1435 = vpack.c.b16 %v1225, %v1224
  %v1436 = vpack.c.b16 %v1227, %v1226
  %v1437 = vpack.c.b16 %v1229, %v1228
  %v1438 = vpack.c.b16 %v1231, %v1230
  %v1439 = vpack.c.b16 %v1233, %v1232
  %v1440 = vpack.c.b16 %v1235, %v1234
  %v1441 = vpack.c.b16 %v1237, %v1236
  %v1442 = vpack.c.b16 %v1239, %v1238
  %v1443 = vpack.c.b16 %v1241, %v1240
  %v1444 = vpack.c.b16 %v1243, %v1242
  %v1445 = vpack.c.b16 %v1245, %v1244
  %v1446 = vpack.c.b16 %v1247, %v1246
  %v1447 = vpack.c.b16 %v1249, %v1248
  %v1448 = vpack.c.b16 %v1251, %v1250
  %v1449 = vpack.c.b16 %v1253, %v1252
  %vm1646 = vcmask 523264
  %v1648 = vsel %vm1646, %v70, 0
  %1650 = vmatprep.subr.bf16.mxu0 0
  %1651 = vmatpush1.bf16.msra.mxu0 %v1254
  %1652 = vmatprep.subr.bf16.mxu0 0
  %1653 = vmatpush1.bf16.msra.mxu0 %v1255
  %1654 = vmatprep.subr.bf16.mxu0 0
  %1655 = vmatpush1.bf16.msra.mxu0 %v1256
  %1656 = vmatprep.subr.bf16.mxu0 0
  %1657 = vmatpush1.bf16.msra.mxu0 %v1257
  %1658 = vmatprep.subr.bf16.mxu0 0
  %1659 = vmatpush1.bf16.msra.mxu0 %v1258
  %1660 = vmatprep.subr.bf16.mxu0 0
  %1661 = vmatpush1.bf16.msra.mxu0 %v1259
  %1662 = vmatprep.subr.bf16.mxu0 0
  %1663 = vmatpush1.bf16.msra.mxu0 %v1260
  %1664 = vmatprep.subr.bf16.mxu0 0
  %1665 = vmatpush1.bf16.msra.mxu0 %v1261
  %1666 = vmatprep.subr.bf16.mxu0 0
  %1667 = vmatpush1.bf16.msra.mxu0 %v1262
  %1668 = vmatprep.subr.bf16.mxu0 0
  %1669 = vmatpush1.bf16.msra.mxu0 %v1263
  %1670 = vmatprep.subr.bf16.mxu0 0
  %1671 = vmatpush1.bf16.msra.mxu0 %v1264
  %1672 = vmatprep.subr.bf16.mxu0 0
  %1673 = vmatpush1.bf16.msra.mxu0 %v1265
  %1674 = vmatprep.subr.bf16.mxu0 0
  %1675 = vmatpush1.bf16.msra.mxu0 %v1266
  %1676 = vmatprep.subr.bf16.mxu0 0
  %1677 = vmatpush1.bf16.msra.mxu0 %v1267
  %1678 = vmatprep.subr.bf16.mxu0 0
  %1679 = vmatpush1.bf16.msra.mxu0 %v1268
  %1680 = vmatprep.subr.bf16.mxu0 0
  %1681 = vmatpush1.bf16.msra.mxu0 %v1269
  %1682 = vmatprep.mubr.bf16.mxu0 %v47
  %1683 = vmatmul.mubr.bf16.gmra.mrb[0].mxu0 %v46
  %v1684 = vpop.f32.mrb[0].mxu0
  %v1685 = vadd.f32 %v468, %v1684
  %v1686 = vpop.f32.mrb[0].mxu0
  %v1687 = vpop.f32.mrb[0].mxu0
  %v1688 = vpop.f32.mrb[0].mxu0
  %1689 = vdwg.mxu0
  %1690 = vmatprep.subr.bf16.mxu0 0
  %1691 = vmatpush1.bf16.msra.mxu0 %v1270
  %1692 = vmatprep.subr.bf16.mxu0 0
  %1693 = vmatpush1.bf16.msra.mxu0 %v1271
  %1694 = vmatprep.subr.bf16.mxu0 0
  %1695 = vmatpush1.bf16.msra.mxu0 %v1272
  %1696 = vmatprep.subr.bf16.mxu0 0
  %1697 = vmatpush1.bf16.msra.mxu0 %v1273
  %1698 = vmatprep.subr.bf16.mxu0 0
  %1699 = vmatpush1.bf16.msra.mxu0 %v1274
  %1700 = vmatprep.subr.bf16.mxu0 0
  %1701 = vmatpush1.bf16.msra.mxu0 %v1275
  %1702 = vmatprep.subr.bf16.mxu0 0
  %1703 = vmatpush1.bf16.msra.mxu0 %v1276
  %1704 = vmatprep.subr.bf16.mxu0 0
  %1705 = vmatpush1.bf16.msra.mxu0 %v1277
  %1706 = vmatprep.subr.bf16.mxu0 0
  %1707 = vmatpush1.bf16.msra.mxu0 %v1278
  %1708 = vmatprep.subr.bf16.mxu0 0
  %1709 = vmatpush1.bf16.msra.mxu0 %v1279
  %1710 = vmatprep.subr.bf16.mxu0 0
  %1711 = vmatpush1.bf16.msra.mxu0 %v1280
  %1712 = vmatprep.subr.bf16.mxu0 0
  %1713 = vmatpush1.bf16.msra.mxu0 %v1281
  %1714 = vmatprep.subr.bf16.mxu0 0
  %1715 = vmatpush1.bf16.msra.mxu0 %v1282
  %1716 = vmatprep.subr.bf16.mxu0 0
  %1717 = vmatpush1.bf16.msra.mxu0 %v1283
  %1718 = vmatprep.subr.bf16.mxu0 0
  %1719 = vmatpush1.bf16.msra.mxu0 %v1284
  %1720 = vmatprep.subr.bf16.mxu0 0
  %1721 = vmatpush1.bf16.msra.mxu0 %v1285
  %1722 = vmatprep.mubr.bf16.mxu0 %v49
  %1723 = vmatmul.mubr.bf16.gmra.mrb[0].mxu0 %v48
  %v1724 = vpop.f32.mrb[0].mxu0
  %v1725 = vadd.f32 %v1685, %v1724
  %v1726 = vpop.f32.mrb[0].mxu0
  %v1727 = vpop.f32.mrb[0].mxu0
  %v1728 = vpop.f32.mrb[0].mxu0
  %1729 = vdwg.mxu0
  %1730 = vmatprep.subr.bf16.mxu0 0
  %1731 = vmatpush1.bf16.msra.mxu0 %v1286
  %1732 = vmatprep.subr.bf16.mxu0 0
  %1733 = vmatpush1.bf16.msra.mxu0 %v1287
  %1734 = vmatprep.subr.bf16.mxu0 0
  %1735 = vmatpush1.bf16.msra.mxu0 %v1288
  %1736 = vmatprep.subr.bf16.mxu0 0
  %1737 = vmatpush1.bf16.msra.mxu0 %v1289
  %1738 = vmatprep.subr.bf16.mxu0 0
  %1739 = vmatpush1.bf16.msra.mxu0 %v1290
  %1740 = vmatprep.subr.bf16.mxu0 0
  %1741 = vmatpush1.bf16.msra.mxu0 %v1291
  %1742 = vmatprep.subr.bf16.mxu0 0
  %1743 = vmatpush1.bf16.msra.mxu0 %v1292
  %1744 = vmatprep.subr.bf16.mxu0 0
  %1745 = vmatpush1.bf16.msra.mxu0 %v1293
  %1746 = vmatprep.subr.bf16.mxu0 0
  %1747 = vmatpush1.bf16.msra.mxu0 %v1294
  %1748 = vmatprep.subr.bf16.mxu0 0
  %1749 = vmatpush1.bf16.msra.mxu0 %v1295
  %1750 = vmatprep.subr.bf16.mxu0 0
  %1751 = vmatpush1.bf16.msra.mxu0 %v1296
  %1752 = vmatprep.subr.bf16.mxu0 0
  %1753 = vmatpush1.bf16.msra.mxu0 %v1297
  %1754 = vmatprep.subr.bf16.mxu0 0
  %1755 = vmatpush1.bf16.msra.mxu0 %v1298
  %1756 = vmatprep.subr.bf16.mxu0 0
  %1757 = vmatpush1.bf16.msra.mxu0 %v1299
  %1758 = vmatprep.subr.bf16.mxu0 0
  %1759 = vmatpush1.bf16.msra.mxu0 %v1300
  %1760 = vmatprep.subr.bf16.mxu0 0
  %1761 = vmatpush1.bf16.msra.mxu0 %v1301
  %1762 = vmatprep.mubr.bf16.mxu0 %v51
  %1763 = vmatmul.mubr.bf16.gmra.mrb[0].mxu0 %v50
  %v1764 = vpop.f32.mrb[0].mxu0
  %v1765 = vadd.f32 %v1725, %v1764
  %v1766 = vpop.f32.mrb[0].mxu0
  %v1767 = vpop.f32.mrb[0].mxu0
  %v1768 = vpop.f32.mrb[0].mxu0
  %1769 = vdwg.mxu0
  %1770 = vmatprep.subr.bf16.mxu0 0
  %1771 = vmatpush1.bf16.msra.mxu0 %v1302
  %1772 = vmatprep.subr.bf16.mxu0 0
  %1773 = vmatpush1.bf16.msra.mxu0 %v1303
  %1774 = vmatprep.subr.bf16.mxu0 0
  %1775 = vmatpush1.bf16.msra.mxu0 %v1304
  %1776 = vmatprep.subr.bf16.mxu0 0
  %1777 = vmatpush1.bf16.msra.mxu0 %v1305
  %1778 = vmatprep.subr.bf16.mxu0 0
  %1779 = vmatpush1.bf16.msra.mxu0 %v1306
  %1780 = vmatprep.subr.bf16.mxu0 0
  %1781 = vmatpush1.bf16.msra.mxu0 %v1307
  %1782 = vmatprep.subr.bf16.mxu0 0
  %1783 = vmatpush1.bf16.msra.mxu0 %v1308
  %1784 = vmatprep.subr.bf16.mxu0 0
  %1785 = vmatpush1.bf16.msra.mxu0 %v1309
  %1786 = vmatprep.subr.bf16.mxu0 0
  %1787 = vmatpush1.bf16.msra.mxu0 %v1310
  %1788 = vmatprep.subr.bf16.mxu0 0
  %1789 = vmatpush1.bf16.msra.mxu0 %v1311
  %1790 = vmatprep.subr.bf16.mxu0 0
  %1791 = vmatpush1.bf16.msra.mxu0 %v1312
  %1792 = vmatprep.subr.bf16.mxu0 0
  %1793 = vmatpush1.bf16.msra.mxu0 %v1313
  %1794 = vmatprep.subr.bf16.mxu0 0
  %1795 = vmatpush1.bf16.msra.mxu0 %v1314
  %1796 = vmatprep.subr.bf16.mxu0 0
  %1797 = vmatpush1.bf16.msra.mxu0 %v1315
  %1798 = vmatprep.subr.bf16.mxu0 0
  %1799 = vmatpush1.bf16.msra.mxu0 %v1316
  %1800 = vmatprep.subr.bf16.mxu0 0
  %1801 = vmatpush1.bf16.msra.mxu0 %v1317
  %1802 = vmatprep.mubr.bf16.mxu0 %v53
  %1803 = vmatmul.mubr.bf16.gmra.mrb[0].mxu0 %v52
  %v1804 = vpop.f32.mrb[0].mxu0
  %v1805 = vadd.f32 %v1765, %v1804
  %v1806 = vpop.f32.mrb[0].mxu0
  %v1807 = vpop.f32.mrb[0].mxu0
  %v1808 = vpop.f32.mrb[0].mxu0
  %1809 = vdwg.mxu0
  %1810 = vmatprep.subr.bf16.mxu0 0
  %1811 = vmatpush1.bf16.msra.mxu0 %v1318
  %1812 = vmatprep.subr.bf16.mxu0 0
  %1813 = vmatpush1.bf16.msra.mxu0 %v1319
  %1814 = vmatprep.subr.bf16.mxu0 0
  %1815 = vmatpush1.bf16.msra.mxu0 %v1320
  %1816 = vmatprep.subr.bf16.mxu0 0
  %1817 = vmatpush1.bf16.msra.mxu0 %v1321
  %1818 = vmatprep.subr.bf16.mxu0 0
  %1819 = vmatpush1.bf16.msra.mxu0 %v1322
  %1820 = vmatprep.subr.bf16.mxu0 0
  %1821 = vmatpush1.bf16.msra.mxu0 %v1323
  %1822 = vmatprep.subr.bf16.mxu0 0
  %1823 = vmatpush1.bf16.msra.mxu0 %v1324
  %1824 = vmatprep.subr.bf16.mxu0 0
  %1825 = vmatpush1.bf16.msra.mxu0 %v1325
  %1826 = vmatprep.subr.bf16.mxu0 0
  %1827 = vmatpush1.bf16.msra.mxu0 %v1326
  %1828 = vmatprep.subr.bf16.mxu0 0
  %1829 = vmatpush1.bf16.msra.mxu0 %v1327
  %1830 = vmatprep.subr.bf16.mxu0 0
  %1831 = vmatpush1.bf16.msra.mxu0 %v1328
  %1832 = vmatprep.subr.bf16.mxu0 0
  %1833 = vmatpush1.bf16.msra.mxu0 %v1329
  %1834 = vmatprep.subr.bf16.mxu0 0
  %1835 = vmatpush1.bf16.msra.mxu0 %v1330
  %1836 = vmatprep.subr.bf16.mxu0 0
  %1837 = vmatpush1.bf16.msra.mxu0 %v1331
  %1838 = vmatprep.subr.bf16.mxu0 0
  %1839 = vmatpush1.bf16.msra.mxu0 %v1332
  %1840 = vmatprep.subr.bf16.mxu0 0
  %1841 = vmatpush1.bf16.msra.mxu0 %v1333
  %1842 = vmatprep.mubr.bf16.mxu0 %v55
  %1843 = vmatmul.mubr.bf16.gmra.mrb[0].mxu0 %v54
  %v1844 = vpop.f32.mrb[0].mxu0
  %v1845 = vadd.f32 %v1805, %v1844
  %v1846 = vpop.f32.mrb[0].mxu0
  %v1847 = vpop.f32.mrb[0].mxu0
  %v1848 = vpop.f32.mrb[0].mxu0
  %1849 = vdwg.mxu0
  %1850 = vmatprep.subr.bf16.mxu0 0
  %1851 = vmatpush1.bf16.msra.mxu0 %v1334
  %1852 = vmatprep.subr.bf16.mxu0 0
  %1853 = vmatpush1.bf16.msra.mxu0 %v1335
  %1854 = vmatprep.subr.bf16.mxu0 0
  %1855 = vmatpush1.bf16.msra.mxu0 %v1336
  %1856 = vmatprep.subr.bf16.mxu0 0
  %1857 = vmatpush1.bf16.msra.mxu0 %v1337
  %1858 = vmatprep.subr.bf16.mxu0 0
  %1859 = vmatpush1.bf16.msra.mxu0 %v1338
  %1860 = vmatprep.subr.bf16.mxu0 0
  %1861 = vmatpush1.bf16.msra.mxu0 %v1339
  %1862 = vmatprep.subr.bf16.mxu0 0
  %1863 = vmatpush1.bf16.msra.mxu0 %v1340
  %1864 = vmatprep.subr.bf16.mxu0 0
  %1865 = vmatpush1.bf16.msra.mxu0 %v1341
  %1866 = vmatprep.subr.bf16.mxu0 0
  %1867 = vmatpush1.bf16.msra.mxu0 %v1342
  %1868 = vmatprep.subr.bf16.mxu0 0
  %1869 = vmatpush1.bf16.msra.mxu0 %v1343
  %1870 = vmatprep.subr.bf16.mxu0 0
  %1871 = vmatpush1.bf16.msra.mxu0 %v1344
  %1872 = vmatprep.subr.bf16.mxu0 0
  %1873 = vmatpush1.bf16.msra.mxu0 %v1345
  %1874 = vmatprep.subr.bf16.mxu0 0
  %1875 = vmatpush1.bf16.msra.mxu0 %v1346
  %1876 = vmatprep.subr.bf16.mxu0 0
  %1877 = vmatpush1.bf16.msra.mxu0 %v1347
  %1878 = vmatprep.subr.bf16.mxu0 0
  %1879 = vmatpush1.bf16.msra.mxu0 %v1348
  %1880 = vmatprep.subr.bf16.mxu0 0
  %1881 = vmatpush1.bf16.msra.mxu0 %v1349
  %1882 = vmatprep.mubr.bf16.mxu0 %v57
  %1883 = vmatmul.mubr.bf16.gmra.mrb[0].mxu0 %v56
  %v1884 = vpop.f32.mrb[0].mxu0
  %v1885 = vadd.f32 %v1845, %v1884
  %v1886 = vpop.f32.mrb[0].mxu0
  %v1887 = vpop.f32.mrb[0].mxu0
  %v1888 = vpop.f32.mrb[0].mxu0
  %1889 = vdwg.mxu0
  %1890 = vmatprep.subr.bf16.mxu0 0
  %1891 = vmatpush1.bf16.msra.mxu0 %v1350
  %1892 = vmatprep.subr.bf16.mxu0 0
  %1893 = vmatpush1.bf16.msra.mxu0 %v1351
  %1894 = vmatprep.subr.bf16.mxu0 0
  %1895 = vmatpush1.bf16.msra.mxu0 %v1352
  %1896 = vmatprep.subr.bf16.mxu0 0
  %1897 = vmatpush1.bf16.msra.mxu0 %v1353
  %1898 = vmatprep.subr.bf16.mxu0 0
  %1899 = vmatpush1.bf16.msra.mxu0 %v1354
  %1900 = vmatprep.subr.bf16.mxu0 0
  %1901 = vmatpush1.bf16.msra.mxu0 %v1355
  %1902 = vmatprep.subr.bf16.mxu0 0
  %1903 = vmatpush1.bf16.msra.mxu0 %v1356
  %1904 = vmatprep.subr.bf16.mxu0 0
  %1905 = vmatpush1.bf16.msra.mxu0 %v1357
  %1906 = vmatprep.subr.bf16.mxu0 0
  %1907 = vmatpush1.bf16.msra.mxu0 %v1358
  %1908 = vmatprep.subr.bf16.mxu0 0
  %1909 = vmatpush1.bf16.msra.mxu0 %v1359
  %1910 = vmatprep.subr.bf16.mxu0 0
  %1911 = vmatpush1.bf16.msra.mxu0 %v1360
  %1912 = vmatprep.subr.bf16.mxu0 0
  %1913 = vmatpush1.bf16.msra.mxu0 %v1361
  %1914 = vmatprep.subr.bf16.mxu0 0
  %1915 = vmatpush1.bf16.msra.mxu0 %v1362
  %1916 = vmatprep.subr.bf16.mxu0 0
  %1917 = vmatpush1.bf16.msra.mxu0 %v1363
  %1918 = vmatprep.subr.bf16.mxu0 0
  %1919 = vmatpush1.bf16.msra.mxu0 %v1364
  %1920 = vmatprep.subr.bf16.mxu0 0
  %1921 = vmatpush1.bf16.msra.mxu0 %v1365
  %1922 = vmatprep.mubr.bf16.mxu0 %v59
  %1923 = vmatmul.mubr.bf16.gmra.mrb[0].mxu0 %v58
  %v1924 = vpop.f32.mrb[0].mxu0
  %v1925 = vadd.f32 %v1885, %v1924
  %v1926 = vpop.f32.mrb[0].mxu0
  %v1927 = vpop.f32.mrb[0].mxu0
  %v1928 = vpop.f32.mrb[0].mxu0
  %1929 = vdwg.mxu0
  %1930 = vmatprep.subr.bf16.mxu0 0
  %1931 = vmatpush1.bf16.msra.mxu0 %v1366
  %1932 = vmatprep.subr.bf16.mxu0 0
  %1933 = vmatpush1.bf16.msra.mxu0 %v1367
  %1934 = vmatprep.subr.bf16.mxu0 0
  %1935 = vmatpush1.bf16.msra.mxu0 %v1368
  %1936 = vmatprep.subr.bf16.mxu0 0
  %1937 = vmatpush1.bf16.msra.mxu0 %v1369
  %1938 = vmatprep.subr.bf16.mxu0 0
  %1939 = vmatpush1.bf16.msra.mxu0 %v1370
  %1940 = vmatprep.subr.bf16.mxu0 0
  %1941 = vmatpush1.bf16.msra.mxu0 %v1371
  %1942 = vmatprep.subr.bf16.mxu0 0
  %1943 = vmatpush1.bf16.msra.mxu0 %v1372
  %1944 = vmatprep.subr.bf16.mxu0 0
  %1945 = vmatpush1.bf16.msra.mxu0 %v1373
  %1946 = vmatprep.subr.bf16.mxu0 0
  %1947 = vmatpush1.bf16.msra.mxu0 %v1374
  %1948 = vmatprep.subr.bf16.mxu0 0
  %1949 = vmatpush1.bf16.msra.mxu0 %v1375
  %1950 = vmatprep.subr.bf16.mxu0 0
  %1951 = vmatpush1.bf16.msra.mxu0 %v1376
  %1952 = vmatprep.subr.bf16.mxu0 0
  %1953 = vmatpush1.bf16.msra.mxu0 %v1377
  %1954 = vmatprep.subr.bf16.mxu0 0
  %1955 = vmatpush1.bf16.msra.mxu0 %v1378
  %1956 = vmatprep.subr.bf16.mxu0 0
  %1957 = vmatpush1.bf16.msra.mxu0 %v1379
  %1958 = vmatprep.subr.bf16.mxu0 0
  %1959 = vmatpush1.bf16.msra.mxu0 %v1380
  %1960 = vmatprep.subr.bf16.mxu0 0
  %1961 = vmatpush1.bf16.msra.mxu0 %v1381
  %1962 = vmatprep.mubr.bf16.mxu0 %v61
  %1963 = vmatmul.mubr.bf16.gmra.mrb[0].mxu0 %v60
  %v1964 = vpop.f32.mrb[0].mxu0
  %v1965 = vadd.f32 %v1925, %v1964
  %v1966 = vpop.f32.mrb[0].mxu0
  %v1967 = vpop.f32.mrb[0].mxu0
  %v1968 = vpop.f32.mrb[0].mxu0
  %1969 = vdwg.mxu0
  %1970 = vmatprep.subr.bf16.mxu0 0
  %1971 = vmatpush1.bf16.msra.mxu0 %v1382
  %1972 = vmatprep.subr.bf16.mxu0 0
  %1973 = vmatpush1.bf16.msra.mxu0 %v1383
  %1974 = vmatprep.subr.bf16.mxu0 0
  %1975 = vmatpush1.bf16.msra.mxu0 %v1384
  %1976 = vmatprep.subr.bf16.mxu0 0
  %1977 = vmatpush1.bf16.msra.mxu0 %v1385
  %1978 = vmatprep.subr.bf16.mxu0 0
  %1979 = vmatpush1.bf16.msra.mxu0 %v1386
  %1980 = vmatprep.subr.bf16.mxu0 0
  %1981 = vmatpush1.bf16.msra.mxu0 %v1387
  %1982 = vmatprep.subr.bf16.mxu0 0
  %1983 = vmatpush1.bf16.msra.mxu0 %v1388
  %1984 = vmatprep.subr.bf16.mxu0 0
  %1985 = vmatpush1.bf16.msra.mxu0 %v1389
  %1986 = vmatprep.subr.bf16.mxu0 0
  %1987 = vmatpush1.bf16.msra.mxu0 %v1390
  %1988 = vmatprep.subr.bf16.mxu0 0
  %1989 = vmatpush1.bf16.msra.mxu0 %v1391
  %1990 = vmatprep.subr.bf16.mxu0 0
  %1991 = vmatpush1.bf16.msra.mxu0 %v1392
  %1992 = vmatprep.subr.bf16.mxu0 0
  %1993 = vmatpush1.bf16.msra.mxu0 %v1393
  %1994 = vmatprep.subr.bf16.mxu0 0
  %1995 = vmatpush1.bf16.msra.mxu0 %v1394
  %1996 = vmatprep.subr.bf16.mxu0 0
  %1997 = vmatpush1.bf16.msra.mxu0 %v1395
  %1998 = vmatprep.subr.bf16.mxu0 0
  %1999 = vmatpush1.bf16.msra.mxu0 %v1396
  %2000 = vmatprep.subr.bf16.mxu0 0
  %2001 = vmatpush1.bf16.msra.mxu0 %v1397
  %2002 = vmatprep.mubr.bf16.mxu0 %v63
  %2003 = vmatmul.mubr.bf16.gmra.mrb[0].mxu0 %v62
  %v2004 = vpop.f32.mrb[0].mxu0
  %v2005 = vadd.f32 %v1965, %v2004
  %v2006 = vpop.f32.mrb[0].mxu0
  %v2007 = vpop.f32.mrb[0].mxu0
  %v2008 = vpop.f32.mrb[0].mxu0
  %2009 = vdwg.mxu0
  %2010 = vmatprep.subr.bf16.mxu0 0
  %2011 = vmatpush1.bf16.msra.mxu0 %v1398
  %2012 = vmatprep.subr.bf16.mxu0 0
  %2013 = vmatpush1.bf16.msra.mxu0 %v1399
  %2014 = vmatprep.subr.bf16.mxu0 0
  %2015 = vmatpush1.bf16.msra.mxu0 %v1400
  %2016 = vmatprep.subr.bf16.mxu0 0
  %2017 = vmatpush1.bf16.msra.mxu0 %v1401
  %2018 = vmatprep.subr.bf16.mxu0 0
  %2019 = vmatpush1.bf16.msra.mxu0 %v1402
  %2020 = vmatprep.subr.bf16.mxu0 0
  %2021 = vmatpush1.bf16.msra.mxu0 %v1403
  %2022 = vmatprep.subr.bf16.mxu0 0
  %2023 = vmatpush1.bf16.msra.mxu0 %v1404
  %2024 = vmatprep.subr.bf16.mxu0 0
  %2025 = vmatpush1.bf16.msra.mxu0 %v1405
  %2026 = vmatprep.subr.bf16.mxu0 0
  %2027 = vmatpush1.bf16.msra.mxu0 %v1406
  %2028 = vmatprep.subr.bf16.mxu0 0
  %2029 = vmatpush1.bf16.msra.mxu0 %v1407
  %2030 = vmatprep.subr.bf16.mxu0 0
  %2031 = vmatpush1.bf16.msra.mxu0 %v1408
  %2032 = vmatprep.subr.bf16.mxu0 0
  %2033 = vmatpush1.bf16.msra.mxu0 %v1409
  %2034 = vmatprep.subr.bf16.mxu0 0
  %2035 = vmatpush1.bf16.msra.mxu0 %v1410
  %2036 = vmatprep.subr.bf16.mxu0 0
  %2037 = vmatpush1.bf16.msra.mxu0 %v1411
  %2038 = vmatprep.subr.bf16.mxu0 0
  %2039 = vmatpush1.bf16.msra.mxu0 %v1412
  %2040 = vmatprep.subr.bf16.mxu0 0
  %2041 = vmatpush1.bf16.msra.mxu0 %v1413
  %2042 = vmatprep.mubr.bf16.mxu0 %v65
  %2043 = vmatmul.mubr.bf16.gmra.mrb[0].mxu0 %v64
  %v2044 = vpop.f32.mrb[0].mxu0
  %v2045 = vadd.f32 %v2005, %v2044
  %v2046 = vpop.f32.mrb[0].mxu0
  %v2047 = vpop.f32.mrb[0].mxu0
  %v2048 = vpop.f32.mrb[0].mxu0
  %2049 = vdwg.mxu0
  %2050 = vmatprep.subr.bf16.mxu0 0
  %2051 = vmatpush1.bf16.msra.mxu0 %v1414
  %2052 = vmatprep.subr.bf16.mxu0 0
  %2053 = vmatpush1.bf16.msra.mxu0 %v1415
  %2054 = vmatprep.subr.bf16.mxu0 0
  %2055 = vmatpush1.bf16.msra.mxu0 %v1416
  %2056 = vmatprep.subr.bf16.mxu0 0
  %2057 = vmatpush1.bf16.msra.mxu0 %v1417
  %2058 = vmatprep.subr.bf16.mxu0 0
  %2059 = vmatpush1.bf16.msra.mxu0 %v1418
  %2060 = vmatprep.subr.bf16.mxu0 0
  %2061 = vmatpush1.bf16.msra.mxu0 %v1419
  %2062 = vmatprep.subr.bf16.mxu0 0
  %2063 = vmatpush1.bf16.msra.mxu0 %v1420
  %2064 = vmatprep.subr.bf16.mxu0 0
  %2065 = vmatpush1.bf16.msra.mxu0 %v1421
  %2066 = vmatprep.subr.bf16.mxu0 0
  %2067 = vmatpush1.bf16.msra.mxu0 %v1422
  %2068 = vmatprep.subr.bf16.mxu0 0
  %2069 = vmatpush1.bf16.msra.mxu0 %v1423
  %2070 = vmatprep.subr.bf16.mxu0 0
  %2071 = vmatpush1.bf16.msra.mxu0 %v1424
  %2072 = vmatprep.subr.bf16.mxu0 0
  %2073 = vmatpush1.bf16.msra.mxu0 %v1425
  %2074 = vmatprep.subr.bf16.mxu0 0
  %2075 = vmatpush1.bf16.msra.mxu0 %v1426
  %2076 = vmatprep.subr.bf16.mxu0 0
  %2077 = vmatpush1.bf16.msra.mxu0 %v1427
  %2078 = vmatprep.subr.bf16.mxu0 0
  %2079 = vmatpush1.bf16.msra.mxu0 %v1428
  %2080 = vmatprep.subr.bf16.mxu0 0
  %2081 = vmatpush1.bf16.msra.mxu0 %v1429
  %2082 = vmatprep.mubr.bf16.mxu0 %v67
  %2083 = vmatmul.mubr.bf16.gmra.mrb[0].mxu0 %v66
  %v2084 = vpop.f32.mrb[0].mxu0
  %v2085 = vadd.f32 %v2045, %v2084
  %v2086 = vpop.f32.mrb[0].mxu0
  %v2087 = vpop.f32.mrb[0].mxu0
  %v2088 = vpop.f32.mrb[0].mxu0
  %2089 = vdwg.mxu0
  %2090 = vmatprep.subr.bf16.mxu0 0
  %2091 = vmatpush1.bf16.msra.mxu0 %v1430
  %2092 = vmatprep.subr.bf16.mxu0 0
  %2093 = vmatpush1.bf16.msra.mxu0 %v1431
  %2094 = vmatprep.subr.bf16.mxu0 0
  %2095 = vmatpush1.bf16.msra.mxu0 %v1432
  %2096 = vmatprep.subr.bf16.mxu0 0
  %2097 = vmatpush1.bf16.msra.mxu0 %v1433
  %2098 = vmatprep.subr.bf16.mxu0 0
  %2099 = vmatpush1.bf16.msra.mxu0 %v1434
  %2100 = vmatprep.subr.bf16.mxu0 0
  %2101 = vmatpush1.bf16.msra.mxu0 %v1435
  %2102 = vmatprep.subr.bf16.mxu0 0
  %2103 = vmatpush1.bf16.msra.mxu0 %v1436
  %2104 = vmatprep.subr.bf16.mxu0 0
  %2105 = vmatpush1.bf16.msra.mxu0 %v1437
  %2106 = vmatprep.subr.bf16.mxu0 0
  %2107 = vmatpush1.bf16.msra.mxu0 %v1438
  %2108 = vmatprep.subr.bf16.mxu0 0
  %2109 = vmatpush1.bf16.msra.mxu0 %v1439
  %2110 = vmatprep.subr.bf16.mxu0 0
  %2111 = vmatpush1.bf16.msra.mxu0 %v1440
  %2112 = vmatprep.subr.bf16.mxu0 0
  %2113 = vmatpush1.bf16.msra.mxu0 %v1441
  %2114 = vmatprep.subr.bf16.mxu0 0
  %2115 = vmatpush1.bf16.msra.mxu0 %v1442
  %2116 = vmatprep.subr.bf16.mxu0 0
  %2117 = vmatpush1.bf16.msra.mxu0 %v1443
  %2118 = vmatprep.subr.bf16.mxu0 0
  %2119 = vmatpush1.bf16.msra.mxu0 %v1444
  %2120 = vmatprep.subr.bf16.mxu0 0
  %2121 = vmatpush1.bf16.msra.mxu0 %v1445
  %2122 = vmatprep.mubr.bf16.mxu0 %v69
  %2123 = vmatmul.mubr.bf16.gmra.mrb[0].mxu0 %v68
  %v2124 = vpop.f32.mrb[0].mxu0
  %v2125 = vadd.f32 %v2085, %v2124
  %v2126 = vpop.f32.mrb[0].mxu0
  %v2127 = vpop.f32.mrb[0].mxu0
  %v2128 = vpop.f32.mrb[0].mxu0
  %2129 = vdwg.mxu0
  %2130 = vmatprep.subr.bf16.mxu0 0
  %2131 = vmatpush1.bf16.msra.mxu0 %v1446
  %2132 = vmatprep.subr.bf16.mxu0 0
  %2133 = vmatpush1.bf16.msra.mxu0 %v1447
  %2134 = vmatprep.subr.bf16.mxu0 0
  %2135 = vmatpush1.bf16.msra.mxu0 %v1448
  %2136 = vmatprep.subr.bf16.mxu0 0
  %2137 = vmatpush1.bf16.msra.mxu0 %v1449
  %2138 = vmatprep.subr.bf16.mxu0 0
  %2139 = vmatpush1.bf16.msra.mxu0 0
  %2140 = vmatprep.subr.bf16.mxu0 0
  %2141 = vmatpush1.bf16.msra.mxu0 0
  %2142 = vmatprep.subr.bf16.mxu0 0
  %2143 = vmatpush1.bf16.msra.mxu0 0
  %2144 = vmatprep.subr.bf16.mxu0 0
  %2145 = vmatpush1.bf16.msra.mxu0 0
  %2146 = vmatprep.subr.bf16.mxu0 0
  %2147 = vmatpush1.bf16.msra.mxu0 0
  %2148 = vmatprep.subr.bf16.mxu0 0
  %2149 = vmatpush1.bf16.msra.mxu0 0
  %2150 = vmatprep.subr.bf16.mxu0 0
  %2151 = vmatpush1.bf16.msra.mxu0 0
  %2152 = vmatprep.subr.bf16.mxu0 0
  %2153 = vmatpush1.bf16.msra.mxu0 0
  %2154 = vmatprep.subr.bf16.mxu0 0
  %2155 = vmatpush1.bf16.msra.mxu0 0
  %2156 = vmatprep.subr.bf16.mxu0 0
  %2157 = vmatpush1.bf16.msra.mxu0 0
  %2158 = vmatprep.subr.bf16.mxu0 0
  %2159 = vmatpush1.bf16.msra.mxu0 0
  %2160 = vmatprep.subr.bf16.mxu0 0
  %2161 = vmatpush1.bf16.msra.mxu0 0
  %2162 = vmatprep.mubr.bf16.mxu0 0
  %2163 = vmatmul.mubr.bf16.gmra.mrb[0].mxu0 %v1648
  %v2164 = vpop.f32.mrb[0].mxu0
  %v2165 = vadd.f32 %v2125, %v2164
  %v2166 = vpop.f32.mrb[0].mxu0
  %v2167 = vpop.f32.mrb[0].mxu0
  %v2168 = vpop.f32.mrb[0].mxu0
  %2169 = vdwg.mxu0
  %v2170 = vmax.f32 %v2165, 0.0
  %v2171 = vpack.c.bf16 %v2170, %v2170
  %v2172 = vld [vmem:[%s3] sm:$0xf]
  %v2173 = vld [vmem:[%s3 + $0x4] sm:$0xf]
  %v2174 = vld [vmem:[%s3 + $0x8] sm:$0xf]
  %v2175 = vld [vmem:[%s3 + $0xc] sm:$0xf]
  %v2176 = vld [vmem:[%s3 + $0x10] sm:$0xf]
  %v2177 = vld [vmem:[%s3 + $0x14] sm:$0xf]
  %v2178 = vld [vmem:[%s3 + $0x18] sm:$0xf]
  %v2179 = vld [vmem:[%s3 + $0x1c] sm:$0xf]
  %v2180 = vld [vmem:[%s3 + $0x20] sm:$0xf]
  %v2181 = vld [vmem:[%s3 + $0x24] sm:$0xf]
  %v2182 = vld [vmem:[%s3 + $0x28] sm:$0xf]
  %v2183 = vld [vmem:[%s3 + $0x2c] sm:$0xf]
  %v2184 = vld [vmem:[%s3 + $0x30] sm:$0xf]
  %v2185 = vld [vmem:[%s3 + $0x34] sm:$0xf]
  %v2186 = vld [vmem:[%s3 + $0x38] sm:$0xf]
  %v2187 = vld [vmem:[%s3 + $0x3c] sm:$0xf]
  %v2188 = vld [vmem:[%s4] sm:$0x1]
  %v2190 = vlaneseq
  %v2191 = vshrl.u32 %v2190, 7
  %v2192 = vsub.s32 0, %v2191
  %v2193 = vrot.slane %v2188, %v2192
  %v2211 = vunpack.c.l.b16 %v2172
  %v2212 = vunpack.c.l.b16 %v2173
  %v2213 = vunpack.c.l.b16 %v2174
  %v2214 = vunpack.c.l.b16 %v2175
  %v2215 = vunpack.c.l.b16 %v2176
  %v2216 = vunpack.c.l.b16 %v2177
  %v2217 = vunpack.c.l.b16 %v2178
  %v2218 = vunpack.c.l.b16 %v2179
  %v2219 = vunpack.c.l.b16 %v2180
  %v2220 = vunpack.c.l.b16 %v2181
  %v2221 = vunpack.c.l.b16 %v2182
  %v2222 = vunpack.c.l.b16 %v2183
  %v2223 = vunpack.c.l.b16 %v2184
  %v2224 = vunpack.c.l.b16 %v2185
  %v2225 = vunpack.c.l.b16 %v2186
  %v2226 = vunpack.c.l.b16 %v2187
  %v2227 = vpack.c.b16 %v2212, %v2211
  %v2228 = vpack.c.b16 %v2214, %v2213
  %v2229 = vpack.c.b16 %v2216, %v2215
  %v2230 = vpack.c.b16 %v2218, %v2217
  %v2231 = vpack.c.b16 %v2220, %v2219
  %v2232 = vpack.c.b16 %v2222, %v2221
  %v2233 = vpack.c.b16 %v2224, %v2223
  %v2234 = vpack.c.b16 %v2226, %v2225
  %2243 = vmatprep.subr.bf16.mxu0 0
  %2244 = vmatpush1.bf16.msra.mxu0 %v2227
  %2245 = vmatprep.subr.bf16.mxu0 0
  %2246 = vmatpush1.bf16.msra.mxu0 %v2228
  %2247 = vmatprep.subr.bf16.mxu0 0
  %2248 = vmatpush1.bf16.msra.mxu0 %v2229
  %2249 = vmatprep.subr.bf16.mxu0 0
  %2250 = vmatpush1.bf16.msra.mxu0 %v2230
  %2251 = vmatprep.subr.bf16.mxu0 0
  %2252 = vmatpush1.bf16.msra.mxu0 %v2231
  %2253 = vmatprep.subr.bf16.mxu0 0
  %2254 = vmatpush1.bf16.msra.mxu0 %v2232
  %2255 = vmatprep.subr.bf16.mxu0 0
  %2256 = vmatpush1.bf16.msra.mxu0 %v2233
  %2257 = vmatprep.subr.bf16.mxu0 0
  %2258 = vmatpush1.bf16.msra.mxu0 %v2234
  %2259 = vmatprep.subr.bf16.mxu0 0
  %2260 = vmatpush1.bf16.msra.mxu0 0
  %2261 = vmatprep.subr.bf16.mxu0 0
  %2262 = vmatpush1.bf16.msra.mxu0 0
  %2263 = vmatprep.subr.bf16.mxu0 0
  %2264 = vmatpush1.bf16.msra.mxu0 0
  %2265 = vmatprep.subr.bf16.mxu0 0
  %2266 = vmatpush1.bf16.msra.mxu0 0
  %2267 = vmatprep.subr.bf16.mxu0 0
  %2268 = vmatpush1.bf16.msra.mxu0 0
  %2269 = vmatprep.subr.bf16.mxu0 0
  %2270 = vmatpush1.bf16.msra.mxu0 0
  %2271 = vmatprep.subr.bf16.mxu0 0
  %2272 = vmatpush1.bf16.msra.mxu0 0
  %2273 = vmatprep.subr.bf16.mxu0 0
  %2274 = vmatpush1.bf16.msra.mxu0 0
  %2275 = vmatprep.mubr.bf16.mxu0 0
  %2276 = vmatmul.mubr.bf16.gmra.mrb[0].mxu0 %v2171
  %v2277 = vpop.f32.mrb[0].mxu0
  %v2278 = vadd.f32 %v2193, %v2277
  %v2279 = vpop.f32.mrb[0].mxu0
  %v2280 = vpop.f32.mrb[0].mxu0
  %v2281 = vpop.f32.mrb[0].mxu0
  %2282 = vdwg.mxu0
  %vm2283 = vcmask 80896
  %2284 = vst.msk [vmem:[%s5] sm:$0xff] %vm2283, %v2278
  // Predicated region
  $region22: #{digit_recognizer_forward.5} parent=0 // pred_check
    _
  $region23: #{digit_recognizer_forward.5} parent=0 // pred_check_branch
    %2286 = sbr.rel (0) target = $region25
  $region24: #{digit_recognizer_forward.5} parent=0 // pred_region
    _
  $region25: #{digit_recognizer_forward.5} parent=0 // pred_fallthru
    _
  // Predicated region
  $region26: #{digit_recognizer_forward.5} parent=0 // pred_check
    _
  $region27: #{digit_recognizer_forward.5} parent=0 // pred_check_branch
    %2288 = sbr.rel (0) target = $region29
  $region28: #{digit_recognizer_forward.5} parent=0 // pred_region
    _
  $region29: #{digit_recognizer_forward.5} parent=0 // pred_fallthru
    _

// kernel: digit_recognizer_forward.3
$region0: #{digit_recognizer_forward.3}
  #allocation0 [shape = 'u32[]', space=smem, size = 0x4, offset = 0x4, fixed_abs, tag = 'smem constant byte address 0x4 - core index']
  #allocation1 [shape = 'u32[144,128]{1,0:T(1,128)}', space=vmem, size = 0x12000, scoped, tag = 'internal scratch']
  %s0 = inlined_call_operand.vmem [shape: f32[2,1024,1], index: 0, kind: input, shape index: {}]
  %s1 = inlined_call_operand.vmem [shape: f32[9,32], index: 1, kind: input, shape index: {}]
  %s2 = inlined_call_operand.vmem [shape: f32[1,32], index: 2, kind: input, shape index: {}]
  %s3 = inlined_call_operand.vmem [shape: f32[272,859], index: 3, kind: input, shape index: {}]
  %s4 = inlined_call_operand.vmem [shape: f32[2,272,32], index: 4, kind: output, shape index: {}]
  %s5 = sld [smem:[#allocation0]]
  $region49: #{digit_recognizer_forward.3} parent=0
    _
  %s7 = ssub.s32 1, %s5
  %s8 = scalar_select 0, %s7, %s5
  loop: start=0, step=1, limit=4
  $region2: #{digit_recognizer_forward.3} parent=0 // loop_pre_header
    _
  $region3: #{digit_recognizer_forward.3} parent=0 // loop_header
    %s10 = sphi 0, %s14
    %p11 = scmp.ge.s32.totalorder %s10, 4
    %s20 = sphi 0, %s22
    %s23 = sphi 0, %s20
    %s24 = sphi 0, %s23
    %s40 = sphi 0, %s24
    %s44 = sphi 0, %s44
    %s46 = sphi 0, %s44
    %s47 = sphi 0, %s46
    %s61 = sphi 0, %s47
    %s65 = sphi 0, %s65
    %s67 = sphi 0, %s65
    %s68 = sphi 0, %s67
    %s82 = sphi 0, %s68
    %s86 = sphi 0, %s86
    %s88 = sphi 0, %s86
    %s89 = sphi 0, %s88
    %s103 = sphi 0, %s89
    %s109 = sphi 0, %s111
    %s112 = sphi 0, %s109
    %s113 = sphi 0, %s112
    %s129 = sphi 0, %s113
  $region4: #{digit_recognizer_forward.3} parent=0 // loop_header_branch
    %13 = sbr.rel (%p11) target = $region8
  $region5: #{digit_recognizer_forward.3} parent=0 // loop_body
    %s15 = ssub.s32 %s10, 1
    %s16 = ssub.s32 %s10, 2
    %s17 = sadd.s32 %s10, 1
    %s18 = ssub.s32 %s10, %s17
    %p19 = scmp.eq.s32.totalorder %s18, 0
    %s21 = sadd.s32 %s20, 1
    %s22 = scalar_select %p19, %s20, %s21
    %p25 = pneg %p19
    %p26 = scmp.eq.s32.totalorder %s10, 1
    %p27 = por %p25, %p26
    %p28 = scmp.ne.s32.totalorder %s20, %s23
    %p29 = scmp.eq.s32.totalorder %s10, 0
    %p30 = por %p28, %p29
    %p31 = scmp.ne.s32.totalorder %s20, %s23
    %p32 = scmp.eq.s32.totalorder %s15, 1
    %p33 = por %p31, %p32
    %p34 = scmp.ne.s32.totalorder %s23, %s24
    %p35 = scmp.eq.s32.totalorder %s15, 0
    %p36 = por %p34, %p35
    %p37 = scmp.ne.s32.totalorder %s23, %s24
    %p38 = scmp.eq.s32.totalorder %s16, 1
    %p39 = por %p37, %p38
    %p41 = scmp.ne.s32.totalorder %s24, %s40
    %p42 = scmp.eq.s32.totalorder %s16, 0
    %p43 = por %p41, %p42
    %s45 = sadd.s32 %s44, 1
    %p48 = scmp.eq.s32.totalorder %s10, 1
    %p49 = scmp.ne.s32.totalorder %s44, %s46
    %p50 = scmp.eq.s32.totalorder %s10, 0
    %p51 = por %p49, %p50
    %p52 = scmp.ne.s32.totalorder %s44, %s46
    %p53 = scmp.eq.s32.totalorder %s15, 1
    %p54 = por %p52, %p53
    %p55 = scmp.ne.s32.totalorder %s46, %s47
    %p56 = scmp.eq.s32.totalorder %s15, 0
    %p57 = por %p55, %p56
    %p58 = scmp.ne.s32.totalorder %s46, %s47
    %p59 = scmp.eq.s32.totalorder %s16, 1
    %p60 = por %p58, %p59
    %p62 = scmp.ne.s32.totalorder %s47, %s61
    %p63 = scmp.eq.s32.totalorder %s16, 0
    %p64 = por %p62, %p63
    %s66 = sadd.s32 %s65, 1
    %p69 = scmp.eq.s32.totalorder %s10, 1
    %p70 = scmp.ne.s32.totalorder %s65, %s67
    %p71 = scmp.eq.s32.totalorder %s10, 0
    %p72 = por %p70, %p71
    %p73 = scmp.ne.s32.totalorder %s65, %s67
    %p74 = scmp.eq.s32.totalorder %s15, 1
    %p75 = por %p73, %p74
    %p76 = scmp.ne.s32.totalorder %s67, %s68
    %p77 = scmp.eq.s32.totalorder %s15, 0
    %p78 = por %p76, %p77
    %p79 = scmp.ne.s32.totalorder %s67, %s68
    %p80 = scmp.eq.s32.totalorder %s16, 1
    %p81 = por %p79, %p80
    %p83 = scmp.ne.s32.totalorder %s68, %s82
    %p84 = scmp.eq.s32.totalorder %s16, 0
    %p85 = por %p83, %p84
    %s87 = sadd.s32 %s86, 1
    %p90 = scmp.eq.s32.totalorder %s10, 1
    %p91 = scmp.ne.s32.totalorder %s86, %s88
    %p92 = scmp.eq.s32.totalorder %s10, 0
    %p93 = por %p91, %p92
    %p94 = scmp.ne.s32.totalorder %s86, %s88
    %p95 = scmp.eq.s32.totalorder %s15, 1
    %p96 = por %p94, %p95
    %p97 = scmp.ne.s32.totalorder %s88, %s89
    %p98 = scmp.eq.s32.totalorder %s15, 0
    %p99 = por %p97, %p98
    %p100 = scmp.ne.s32.totalorder %s88, %s89
    %p101 = scmp.eq.s32.totalorder %s16, 1
    %p102 = por %p100, %p101
    %p104 = scmp.ne.s32.totalorder %s89, %s103
    %p105 = scmp.eq.s32.totalorder %s16, 0
    %p106 = por %p104, %p105
    %s107 = ssub.s32 %s10, %s17
    %p108 = scmp.eq.s32.totalorder %s107, 0
    %s110 = sadd.s32 %s109, 1
    %s111 = scalar_select %p108, %s109, %s110
    %p114 = pneg %p108
    %p115 = scmp.eq.s32.totalorder %s10, 1
    %p116 = por %p114, %p115
    %p117 = scmp.ne.s32.totalorder %s109, %s112
    %p118 = scmp.eq.s32.totalorder %s10, 0
    %p119 = por %p117, %p118
    %p120 = scmp.ne.s32.totalorder %s109, %s112
    %p121 = scmp.eq.s32.totalorder %s15, 1
    %p122 = por %p120, %p121
    %p123 = scmp.ne.s32.totalorder %s112, %s113
    %p124 = scmp.eq.s32.totalorder %s15, 0
    %p125 = por %p123, %p124
    %p126 = scmp.ne.s32.totalorder %s112, %s113
    %p127 = scmp.eq.s32.totalorder %s16, 1
    %p128 = por %p126, %p127
    %p130 = scmp.ne.s32.totalorder %s113, %s129
    %p131 = scmp.eq.s32.totalorder %s16, 0
    %p132 = por %p130, %p131
    %p133 = scmp.le.s32.totalorder 1, %s10
    %p134 = scmp.lt.s32.totalorder %s10, 3
    %p135 = pnand %p133, %p134
    %p136 = pneg %p135
    // Predicated region
    $region9: #{digit_recognizer_forward.3} parent=5 // pred_check
      _
    $region10: #{digit_recognizer_forward.3} parent=5 // pred_check_branch
      %138 = sbr.rel (%p135) target = $region12
    $region11: #{digit_recognizer_forward.3} parent=5 // pred_region
      %s139 = ssub.s32 %s10, 1
      // Predicated region
      $region13: #{digit_recognizer_forward.3} parent=11 // pred_check
        %p140 = pneg %p57
      $region14: #{digit_recognizer_forward.3} parent=11 // pred_check_branch
        %142 = sbr.rel (%p140) target = $region16
      $region15: #{digit_recognizer_forward.3} parent=11 // pred_region
        _
      $region16: #{digit_recognizer_forward.3} parent=11 // pred_fallthru
        _
      // Predicated region
      $region17: #{digit_recognizer_forward.3} parent=11 // pred_check
        %p143 = pneg %p78
      $region18: #{digit_recognizer_forward.3} parent=11 // pred_check_branch
        %145 = sbr.rel (%p143) target = $region20
      $region19: #{digit_recognizer_forward.3} parent=11 // pred_region
        _
      $region20: #{digit_recognizer_forward.3} parent=11 // pred_fallthru
        _
      // Predicated region
      $region21: #{digit_recognizer_forward.3} parent=11 // pred_check
        %p146 = pneg %p99
      $region22: #{digit_recognizer_forward.3} parent=11 // pred_check_branch
        %148 = sbr.rel (%p146) target = $region24
      $region23: #{digit_recognizer_forward.3} parent=11 // pred_region
        _
      $region24: #{digit_recognizer_forward.3} parent=11 // pred_fallthru
        _
    $region12: #{digit_recognizer_forward.3} parent=5 // pred_fallthru
      _
    %p149 = scmp.lt.s32.totalorder %s10, 2
    // Predicated region
    $region25: #{digit_recognizer_forward.3} parent=5 // pred_check
      %p150 = pneg %p149
    $region26: #{digit_recognizer_forward.3} parent=5 // pred_check_branch
      %152 = sbr.rel (%p150) target = $region28
    $region27: #{digit_recognizer_forward.3} parent=5 // pred_region
      // Predicated region
      $region29: #{digit_recognizer_forward.3} parent=27 // pred_check
        %p153 = pneg %p30
      $region30: #{digit_recognizer_forward.3} parent=27 // pred_check_branch
        %155 = sbr.rel (%p153) target = $region32
      $region31: #{digit_recognizer_forward.3} parent=27 // pred_region
        %p156 = scmp.lt.s32.totalorder %s10, 1
        %s157 = scalar_select %p156, %s10, 1
        %s158 = smul.addr %s157, 128
        %s159 = smul.addr %s158, 8
        %s160 = scalar_lea.vmem %s0, %s159
      $region32: #{digit_recognizer_forward.3} parent=27 // pred_fallthru
        _
    $region28: #{digit_recognizer_forward.3} parent=5 // pred_fallthru
      _
    %p161 = scmp.le.s32.totalorder 1, %s10
    %p162 = scmp.lt.s32.totalorder %s10, 3
    %p163 = pnand %p161, %p162
    %p164 = pneg %p163
    // Predicated region
    $region33: #{digit_recognizer_forward.3} parent=5 // pred_check
      _
    $region34: #{digit_recognizer_forward.3} parent=5 // pred_check_branch
      %166 = sbr.rel (%p163) target = $region36
    $region35: #{digit_recognizer_forward.3} parent=5 // pred_region
      %s167 = ssub.s32 %s10, 1
      %p168 = scmp.lt.s32.totalorder %s15, 1
      %s169 = scalar_select %p168, %s15, 1
      %s170 = smul.addr %s169, 128
      %s171 = smul.addr %s170, 8
      %s172 = scalar_lea.vmem %s0, %s171
      %p173 = pneg %p36
      %p174 = pneg %p33
      %p175 = pneg %p57
      %p176 = pneg %p54
      %p177 = pneg %p78
      %p178 = pneg %p75
      %p179 = pneg %p99
      %p180 = pneg %p96
      %p181 = pneg %p125
      %p182 = pneg %p122
      %p183 = scmp.lt.s32.totalorder %s15, 1
      %s184 = scalar_select %p183, %s15, 1
      %s185 = smul.addr %s184, 34
      %s186 = smul.addr %s185, 8
      %s187 = scalar_lea.vmem %s4, %s186
      %p188 = scmp.lt.s32.totalorder %s15, 1
      %s189 = scalar_select %p188, %s15, 1
      %s190 = smul.addr %s189, 128
      %s191 = smul.addr %s190, 8
      %s192 = scalar_lea.vmem %s0, %s191
      %p193 = scmp.lt.s32.totalorder %s15, 1
      %s194 = scalar_select %p193, %s15, 1
      %s195 = smul.addr %s194, 34
      %s196 = smul.addr %s195, 8
      %s197 = scalar_lea.vmem %s4, %s196
      %v198 = vld [vmem:[%s192] sm:$0xff]
      %v199 = vld [vmem:[%s192 + $0x8] sm:$0xff]
      %v200 = vld [vmem:[%s192 + $0x10] sm:$0xff]
      %v201 = vld [vmem:[%s192 + $0x18] sm:$0xff]
      %v202 = vld [vmem:[%s192 + $0x20] sm:$0xff]
      %v203 = vld [vmem:[%s192 + $0x28] sm:$0xff]
      %v204 = vld [vmem:[%s192 + $0x30] sm:$0xff]
      %v205 = vld [vmem:[%s192 + $0x38] sm:$0xff]
      %v206 = vld [vmem:[%s192 + $0x40] sm:$0xff]
      %v207 = vld [vmem:[%s192 + $0x48] sm:$0xff]
      %v208 = vld [vmem:[%s192 + $0x50] sm:$0xff]
      %v209 = vld [vmem:[%s192 + $0x58] sm:$0xff]
      %v210 = vld [vmem:[%s192 + $0x60] sm:$0xff]
      %v211 = vld [vmem:[%s192 + $0x68] sm:$0xff]
      %v212 = vld [vmem:[%s192 + $0x70] sm:$0xff]
      %v213 = vld [vmem:[%s192 + $0x78] sm:$0xff]
      %v214 = vld [vmem:[%s192 + $0x80] sm:$0xff]
      %v215 = vld [vmem:[%s192 + $0x88] sm:$0xff]
      %v216 = vld [vmem:[%s192 + $0x90] sm:$0xff]
      %v217 = vld [vmem:[%s192 + $0x98] sm:$0xff]
      %v218 = vld [vmem:[%s192 + $0xa0] sm:$0xff]
      %v219 = vld [vmem:[%s192 + $0xa8] sm:$0xff]
      %v220 = vld [vmem:[%s192 + $0xb0] sm:$0xff]
      %v221 = vld [vmem:[%s192 + $0xb8] sm:$0xff]
      %v222 = vld [vmem:[%s192 + $0xc0] sm:$0xff]
      %v223 = vld [vmem:[%s192 + $0xc8] sm:$0xff]
      %v224 = vld [vmem:[%s192 + $0xd0] sm:$0xff]
      %v225 = vld [vmem:[%s192 + $0xd8] sm:$0xff]
      %v226 = vld [vmem:[%s192 + $0xe0] sm:$0xff]
      %v227 = vld [vmem:[%s192 + $0xe8] sm:$0xff]
      %v228 = vld [vmem:[%s192 + $0xf0] sm:$0xff]
      %v229 = vld [vmem:[%s192 + $0xf8] sm:$0xff]
      %v230 = vld [vmem:[%s192 + $0x100] sm:$0xff]
      %v231 = vld [vmem:[%s192 + $0x108] sm:$0xff]
      %v232 = vld [vmem:[%s192 + $0x110] sm:$0xff]
      %v233 = vld [vmem:[%s192 + $0x118] sm:$0xff]
      %v234 = vld [vmem:[%s192 + $0x120] sm:$0xff]
      %v235 = vld [vmem:[%s192 + $0x128] sm:$0xff]
      %v236 = vld [vmem:[%s192 + $0x130] sm:$0xff]
      %v237 = vld [vmem:[%s192 + $0x138] sm:$0xff]
      %v238 = vld [vmem:[%s192 + $0x140] sm:$0xff]
      %v239 = vld [vmem:[%s192 + $0x148] sm:$0xff]
      %v240 = vld [vmem:[%s192 + $0x150] sm:$0xff]
      %v241 = vld [vmem:[%s192 + $0x158] sm:$0xff]
      %v242 = vld [vmem:[%s192 + $0x160] sm:$0xff]
      %v243 = vld [vmem:[%s192 + $0x168] sm:$0xff]
      %v244 = vld [vmem:[%s192 + $0x170] sm:$0xff]
      %v245 = vld [vmem:[%s192 + $0x178] sm:$0xff]
      %v246 = vld [vmem:[%s192 + $0x180] sm:$0xff]
      %v247 = vld [vmem:[%s192 + $0x188] sm:$0xff]
      %v248 = vld [vmem:[%s192 + $0x190] sm:$0xff]
      %v249 = vld [vmem:[%s192 + $0x198] sm:$0xff]
      %v250 = vld [vmem:[%s192 + $0x1a0] sm:$0xff]
      %v251 = vld [vmem:[%s192 + $0x1a8] sm:$0xff]
      %v252 = vld [vmem:[%s192 + $0x1b0] sm:$0xff]
      %v253 = vld [vmem:[%s192 + $0x1b8] sm:$0xff]
      %v254 = vld [vmem:[%s192 + $0x1c0] sm:$0xff]
      %v255 = vld [vmem:[%s192 + $0x1c8] sm:$0xff]
      %v256 = vld [vmem:[%s192 + $0x1d0] sm:$0xff]
      %v257 = vld [vmem:[%s192 + $0x1d8] sm:$0xff]
      %v258 = vld [vmem:[%s192 + $0x1e0] sm:$0xff]
      %v259 = vld [vmem:[%s192 + $0x1e8] sm:$0xff]
      %v260 = vld [vmem:[%s192 + $0x1f0] sm:$0xff]
      %v261 = vld [vmem:[%s192 + $0x1f8] sm:$0xff]
      %v262 = vld [vmem:[%s192 + $0x200] sm:$0xff]
      %v263 = vld [vmem:[%s192 + $0x208] sm:$0xff]
      %v264 = vld [vmem:[%s192 + $0x210] sm:$0xff]
      %v265 = vld [vmem:[%s192 + $0x218] sm:$0xff]
      %v266 = vld [vmem:[%s192 + $0x220] sm:$0xff]
      %v267 = vld [vmem:[%s192 + $0x228] sm:$0xff]
      %v268 = vld [vmem:[%s192 + $0x230] sm:$0xff]
      %v269 = vld [vmem:[%s192 + $0x238] sm:$0xff]
      %v270 = vld [vmem:[%s192 + $0x240] sm:$0xff]
      %v271 = vld [vmem:[%s192 + $0x248] sm:$0xff]
      %v272 = vld [vmem:[%s192 + $0x250] sm:$0xff]
      %v273 = vld [vmem:[%s192 + $0x258] sm:$0xff]
      %v274 = vld [vmem:[%s192 + $0x260] sm:$0xff]
      %v275 = vld [vmem:[%s192 + $0x268] sm:$0xff]
      %v276 = vld [vmem:[%s192 + $0x270] sm:$0xff]
      %v277 = vld [vmem:[%s192 + $0x278] sm:$0xff]
      %v278 = vld [vmem:[%s192 + $0x280] sm:$0xff]
      %v279 = vld [vmem:[%s192 + $0x288] sm:$0xff]
      %v280 = vld [vmem:[%s192 + $0x290] sm:$0xff]
      %v281 = vld [vmem:[%s192 + $0x298] sm:$0xff]
      %v282 = vld [vmem:[%s192 + $0x2a0] sm:$0xff]
      %v283 = vld [vmem:[%s192 + $0x2a8] sm:$0xff]
      %v284 = vld [vmem:[%s192 + $0x2b0] sm:$0xff]
      %v285 = vld [vmem:[%s192 + $0x2b8] sm:$0xff]
      %v286 = vld [vmem:[%s192 + $0x2c0] sm:$0xff]
      %v287 = vld [vmem:[%s192 + $0x2c8] sm:$0xff]
      %v288 = vld [vmem:[%s192 + $0x2d0] sm:$0xff]
      %v289 = vld [vmem:[%s192 + $0x2d8] sm:$0xff]
      %v290 = vld [vmem:[%s192 + $0x2e0] sm:$0xff]
      %v291 = vld [vmem:[%s192 + $0x2e8] sm:$0xff]
      %v292 = vld [vmem:[%s192 + $0x2f0] sm:$0xff]
      %v293 = vld [vmem:[%s192 + $0x2f8] sm:$0xff]
      %v294 = vld [vmem:[%s192 + $0x300] sm:$0xff]
      %v295 = vld [vmem:[%s192 + $0x308] sm:$0xff]
      %v296 = vld [vmem:[%s192 + $0x310] sm:$0xff]
      %v297 = vld [vmem:[%s192 + $0x318] sm:$0xff]
      %v298 = vld [vmem:[%s192 + $0x320] sm:$0xff]
      %v299 = vld [vmem:[%s192 + $0x328] sm:$0xff]
      %v300 = vld [vmem:[%s192 + $0x330] sm:$0xff]
      %v301 = vld [vmem:[%s192 + $0x338] sm:$0xff]
      %v302 = vld [vmem:[%s192 + $0x340] sm:$0xff]
      %v303 = vld [vmem:[%s192 + $0x348] sm:$0xff]
      %v304 = vld [vmem:[%s192 + $0x350] sm:$0xff]
      %v305 = vld [vmem:[%s192 + $0x358] sm:$0xff]
      %v306 = vld [vmem:[%s192 + $0x360] sm:$0xff]
      %v307 = vld [vmem:[%s192 + $0x368] sm:$0xff]
      %v308 = vld [vmem:[%s192 + $0x370] sm:$0xff]
      %v309 = vld [vmem:[%s192 + $0x378] sm:$0xff]
      %v310 = vld [vmem:[%s192 + $0x380] sm:$0xff]
      %v311 = vld [vmem:[%s192 + $0x388] sm:$0xff]
      %v312 = vld [vmem:[%s192 + $0x390] sm:$0xff]
      %v313 = vld [vmem:[%s192 + $0x398] sm:$0xff]
      %v314 = vld [vmem:[%s192 + $0x3a0] sm:$0xff]
      %v315 = vld [vmem:[%s192 + $0x3a8] sm:$0xff]
      %v316 = vld [vmem:[%s192 + $0x3b0] sm:$0xff]
      %v317 = vld [vmem:[%s192 + $0x3b8] sm:$0xff]
      %v318 = vld [vmem:[%s192 + $0x3c0] sm:$0xff]
      %v319 = vld [vmem:[%s1] sm:$0xff]
      %v320 = vld [vmem:[%s1 + $0x8] sm:$0x1]
      %322 = vset.pattern.permute.xlu0 0
      %323 = vperm.xlu0 %322, %v198
      %v324 = vpop.permute.xlu0 %323
      %327 = vset.pattern.permute.xlu0 0
      %328 = vperm.xlu0 %327, %v199
      %v329 = vpop.permute.xlu0 %328
      %332 = vset.pattern.permute.xlu0 0
      %333 = vperm.xlu0 %332, %v200
      %v334 = vpop.permute.xlu0 %333
      %337 = vset.pattern.permute.xlu0 0
      %338 = vperm.xlu0 %337, %v201
      %v339 = vpop.permute.xlu0 %338
      %342 = vset.pattern.permute.xlu0 0
      %343 = vperm.xlu0 %342, %v202
      %v344 = vpop.permute.xlu0 %343
      %347 = vset.pattern.permute.xlu0 0
      %348 = vperm.xlu0 %347, %v203
      %v349 = vpop.permute.xlu0 %348
      %352 = vset.pattern.permute.xlu0 0
      %353 = vperm.xlu0 %352, %v204
      %v354 = vpop.permute.xlu0 %353
      %357 = vset.pattern.permute.xlu0 0
      %358 = vperm.xlu0 %357, %v205
      %v359 = vpop.permute.xlu0 %358
      %362 = vset.pattern.permute.xlu0 0
      %363 = vperm.xlu0 %362, %v206
      %v364 = vpop.permute.xlu0 %363
      %367 = vset.pattern.permute.xlu0 0
      %368 = vperm.xlu0 %367, %v207
      %v369 = vpop.permute.xlu0 %368
      %372 = vset.pattern.permute.xlu0 0
      %373 = vperm.xlu0 %372, %v208
      %v374 = vpop.permute.xlu0 %373
      %377 = vset.pattern.permute.xlu0 0
      %378 = vperm.xlu0 %377, %v209
      %v379 = vpop.permute.xlu0 %378
      %382 = vset.pattern.permute.xlu0 0
      %383 = vperm.xlu0 %382, %v210
      %v384 = vpop.permute.xlu0 %383
      %387 = vset.pattern.permute.xlu0 0
      %388 = vperm.xlu0 %387, %v211
      %v389 = vpop.permute.xlu0 %388
      %392 = vset.pattern.permute.xlu0 0
      %393 = vperm.xlu0 %392, %v212
      %v394 = vpop.permute.xlu0 %393
      %397 = vset.pattern.permute.xlu0 0
      %398 = vperm.xlu0 %397, %v213
      %v399 = vpop.permute.xlu0 %398
      %402 = vset.pattern.permute.xlu0 0
      %403 = vperm.xlu0 %402, %v214
      %v404 = vpop.permute.xlu0 %403
      %407 = vset.pattern.permute.xlu0 0
      %408 = vperm.xlu0 %407, %v215
      %v409 = vpop.permute.xlu0 %408
      %412 = vset.pattern.permute.xlu0 0
      %413 = vperm.xlu0 %412, %v216
      %v414 = vpop.permute.xlu0 %413
      %417 = vset.pattern.permute.xlu0 0
      %418 = vperm.xlu0 %417, %v217
      %v419 = vpop.permute.xlu0 %418
      %422 = vset.pattern.permute.xlu0 0
      %423 = vperm.xlu0 %422, %v218
      %v424 = vpop.permute.xlu0 %423
      %427 = vset.pattern.permute.xlu0 0
      %428 = vperm.xlu0 %427, %v219
      %v429 = vpop.permute.xlu0 %428
      %432 = vset.pattern.permute.xlu0 0
      %433 = vperm.xlu0 %432, %v220
      %v434 = vpop.permute.xlu0 %433
      %437 = vset.pattern.permute.xlu0 0
      %438 = vperm.xlu0 %437, %v221
      %v439 = vpop.permute.xlu0 %438
      %442 = vset.pattern.permute.xlu0 0
      %443 = vperm.xlu0 %442, %v222
      %v444 = vpop.permute.xlu0 %443
      %447 = vset.pattern.permute.xlu0 0
      %448 = vperm.xlu0 %447, %v223
      %v449 = vpop.permute.xlu0 %448
      %452 = vset.pattern.permute.xlu0 0
      %453 = vperm.xlu0 %452, %v224
      %v454 = vpop.permute.xlu0 %453
      %457 = vset.pattern.permute.xlu0 0
      %458 = vperm.xlu0 %457, %v225
      %v459 = vpop.permute.xlu0 %458
      %462 = vset.pattern.permute.xlu0 0
      %463 = vperm.xlu0 %462, %v226
      %v464 = vpop.permute.xlu0 %463
      %467 = vset.pattern.permute.xlu0 0
      %468 = vperm.xlu0 %467, %v227
      %v469 = vpop.permute.xlu0 %468
      %472 = vset.pattern.permute.xlu0 0
      %473 = vperm.xlu0 %472, %v228
      %v474 = vpop.permute.xlu0 %473
      %477 = vset.pattern.permute.xlu0 0
      %478 = vperm.xlu0 %477, %v229
      %v479 = vpop.permute.xlu0 %478
      %482 = vset.pattern.permute.xlu0 0
      %483 = vperm.xlu0 %482, %v230
      %v484 = vpop.permute.xlu0 %483
      %487 = vset.pattern.permute.xlu0 0
      %488 = vperm.xlu0 %487, %v231
      %v489 = vpop.permute.xlu0 %488
      %492 = vset.pattern.permute.xlu0 0
      %493 = vperm.xlu0 %492, %v232
      %v494 = vpop.permute.xlu0 %493
      %497 = vset.pattern.permute.xlu0 0
      %498 = vperm.xlu0 %497, %v233
      %v499 = vpop.permute.xlu0 %498
      %502 = vset.pattern.permute.xlu0 0
      %503 = vperm.xlu0 %502, %v234
      %v504 = vpop.permute.xlu0 %503
      %507 = vset.pattern.permute.xlu0 0
      %508 = vperm.xlu0 %507, %v235
      %v509 = vpop.permute.xlu0 %508
      %512 = vset.pattern.permute.xlu0 0
      %513 = vperm.xlu0 %512, %v236
      %v514 = vpop.permute.xlu0 %513
      %517 = vset.pattern.permute.xlu0 0
      %518 = vperm.xlu0 %517, %v237
      %v519 = vpop.permute.xlu0 %518
      %522 = vset.pattern.permute.xlu0 0
      %523 = vperm.xlu0 %522, %v238
      %v524 = vpop.permute.xlu0 %523
      %527 = vset.pattern.permute.xlu0 0
      %528 = vperm.xlu0 %527, %v239
      %v529 = vpop.permute.xlu0 %528
      %532 = vset.pattern.permute.xlu0 0
      %533 = vperm.xlu0 %532, %v240
      %v534 = vpop.permute.xlu0 %533
      %537 = vset.pattern.permute.xlu0 0
      %538 = vperm.xlu0 %537, %v241
      %v539 = vpop.permute.xlu0 %538
      %542 = vset.pattern.permute.xlu0 0
      %543 = vperm.xlu0 %542, %v242
      %v544 = vpop.permute.xlu0 %543
      %547 = vset.pattern.permute.xlu0 0
      %548 = vperm.xlu0 %547, %v243
      %v549 = vpop.permute.xlu0 %548
      %552 = vset.pattern.permute.xlu0 0
      %553 = vperm.xlu0 %552, %v244
      %v554 = vpop.permute.xlu0 %553
      %557 = vset.pattern.permute.xlu0 0
      %558 = vperm.xlu0 %557, %v245
      %v559 = vpop.permute.xlu0 %558
      %562 = vset.pattern.permute.xlu0 0
      %563 = vperm.xlu0 %562, %v246
      %v564 = vpop.permute.xlu0 %563
      %567 = vset.pattern.permute.xlu0 0
      %568 = vperm.xlu0 %567, %v247
      %v569 = vpop.permute.xlu0 %568
      %572 = vset.pattern.permute.xlu0 0
      %573 = vperm.xlu0 %572, %v248
      %v574 = vpop.permute.xlu0 %573
      %577 = vset.pattern.permute.xlu0 0
      %578 = vperm.xlu0 %577, %v249
      %v579 = vpop.permute.xlu0 %578
      %582 = vset.pattern.permute.xlu0 0
      %583 = vperm.xlu0 %582, %v250
      %v584 = vpop.permute.xlu0 %583
      %587 = vset.pattern.permute.xlu0 0
      %588 = vperm.xlu0 %587, %v251
      %v589 = vpop.permute.xlu0 %588
      %592 = vset.pattern.permute.xlu0 0
      %593 = vperm.xlu0 %592, %v252
      %v594 = vpop.permute.xlu0 %593
      %597 = vset.pattern.permute.xlu0 0
      %598 = vperm.xlu0 %597, %v253
      %v599 = vpop.permute.xlu0 %598
      %602 = vset.pattern.permute.xlu0 0
      %603 = vperm.xlu0 %602, %v254
      %v604 = vpop.permute.xlu0 %603
      %607 = vset.pattern.permute.xlu0 0
      %608 = vperm.xlu0 %607, %v255
      %v609 = vpop.permute.xlu0 %608
      %612 = vset.pattern.permute.xlu0 0
      %613 = vperm.xlu0 %612, %v256
      %v614 = vpop.permute.xlu0 %613
      %617 = vset.pattern.permute.xlu0 0
      %618 = vperm.xlu0 %617, %v257
      %v619 = vpop.permute.xlu0 %618
      %622 = vset.pattern.permute.xlu0 0
      %623 = vperm.xlu0 %622, %v258
      %v624 = vpop.permute.xlu0 %623
      %627 = vset.pattern.permute.xlu0 0
      %628 = vperm.xlu0 %627, %v259
      %v629 = vpop.permute.xlu0 %628
      %632 = vset.pattern.permute.xlu0 0
      %633 = vperm.xlu0 %632, %v260
      %v634 = vpop.permute.xlu0 %633
      %637 = vset.pattern.permute.xlu0 0
      %638 = vperm.xlu0 %637, %v261
      %v639 = vpop.permute.xlu0 %638
      %642 = vset.pattern.permute.xlu0 0
      %643 = vperm.xlu0 %642, %v262
      %v644 = vpop.permute.xlu0 %643
      %647 = vset.pattern.permute.xlu0 0
      %648 = vperm.xlu0 %647, %v263
      %v649 = vpop.permute.xlu0 %648
      %652 = vset.pattern.permute.xlu0 0
      %653 = vperm.xlu0 %652, %v264
      %v654 = vpop.permute.xlu0 %653
      %657 = vset.pattern.permute.xlu0 0
      %658 = vperm.xlu0 %657, %v265
      %v659 = vpop.permute.xlu0 %658
      %662 = vset.pattern.permute.xlu0 0
      %663 = vperm.xlu0 %662, %v266
      %v664 = vpop.permute.xlu0 %663
      %667 = vset.pattern.permute.xlu0 0
      %668 = vperm.xlu0 %667, %v267
      %v669 = vpop.permute.xlu0 %668
      %672 = vset.pattern.permute.xlu0 0
      %673 = vperm.xlu0 %672, %v268
      %v674 = vpop.permute.xlu0 %673
      %677 = vset.pattern.permute.xlu0 0
      %678 = vperm.xlu0 %677, %v269
      %v679 = vpop.permute.xlu0 %678
      %682 = vset.pattern.permute.xlu0 0
      %683 = vperm.xlu0 %682, %v270
      %v684 = vpop.permute.xlu0 %683
      %687 = vset.pattern.permute.xlu0 0
      %688 = vperm.xlu0 %687, %v271
      %v689 = vpop.permute.xlu0 %688
      %692 = vset.pattern.permute.xlu0 0
      %693 = vperm.xlu0 %692, %v272
      %v694 = vpop.permute.xlu0 %693
      %697 = vset.pattern.permute.xlu0 0
      %698 = vperm.xlu0 %697, %v273
      %v699 = vpop.permute.xlu0 %698
      %702 = vset.pattern.permute.xlu0 0
      %703 = vperm.xlu0 %702, %v274
      %v704 = vpop.permute.xlu0 %703
      %707 = vset.pattern.permute.xlu0 0
      %708 = vperm.xlu0 %707, %v275
      %v709 = vpop.permute.xlu0 %708
      %712 = vset.pattern.permute.xlu0 0
      %713 = vperm.xlu0 %712, %v276
      %v714 = vpop.permute.xlu0 %713
      %717 = vset.pattern.permute.xlu0 0
      %718 = vperm.xlu0 %717, %v277
      %v719 = vpop.permute.xlu0 %718
      %722 = vset.pattern.permute.xlu0 0
      %723 = vperm.xlu0 %722, %v278
      %v724 = vpop.permute.xlu0 %723
      %727 = vset.pattern.permute.xlu0 0
      %728 = vperm.xlu0 %727, %v279
      %v729 = vpop.permute.xlu0 %728
      %732 = vset.pattern.permute.xlu0 0
      %733 = vperm.xlu0 %732, %v280
      %v734 = vpop.permute.xlu0 %733
      %737 = vset.pattern.permute.xlu0 0
      %738 = vperm.xlu0 %737, %v281
      %v739 = vpop.permute.xlu0 %738
      %742 = vset.pattern.permute.xlu0 0
      %743 = vperm.xlu0 %742, %v282
      %v744 = vpop.permute.xlu0 %743
      %747 = vset.pattern.permute.xlu0 0
      %748 = vperm.xlu0 %747, %v283
      %v749 = vpop.permute.xlu0 %748
      %752 = vset.pattern.permute.xlu0 0
      %753 = vperm.xlu0 %752, %v284
      %v754 = vpop.permute.xlu0 %753
      %757 = vset.pattern.permute.xlu0 0
      %758 = vperm.xlu0 %757, %v285
      %v759 = vpop.permute.xlu0 %758
      %762 = vset.pattern.permute.xlu0 0
      %763 = vperm.xlu0 %762, %v286
      %v764 = vpop.permute.xlu0 %763
      %767 = vset.pattern.permute.xlu0 0
      %768 = vperm.xlu0 %767, %v287
      %v769 = vpop.permute.xlu0 %768
      %772 = vset.pattern.permute.xlu0 0
      %773 = vperm.xlu0 %772, %v288
      %v774 = vpop.permute.xlu0 %773
      %777 = vset.pattern.permute.xlu0 0
      %778 = vperm.xlu0 %777, %v289
      %v779 = vpop.permute.xlu0 %778
      %782 = vset.pattern.permute.xlu0 0
      %783 = vperm.xlu0 %782, %v290
      %v784 = vpop.permute.xlu0 %783
      %787 = vset.pattern.permute.xlu0 0
      %788 = vperm.xlu0 %787, %v291
      %v789 = vpop.permute.xlu0 %788
      %792 = vset.pattern.permute.xlu0 0
      %793 = vperm.xlu0 %792, %v292
      %v794 = vpop.permute.xlu0 %793
      %797 = vset.pattern.permute.xlu0 0
      %798 = vperm.xlu0 %797, %v293
      %v799 = vpop.permute.xlu0 %798
      %802 = vset.pattern.permute.xlu0 0
      %803 = vperm.xlu0 %802, %v294
      %v804 = vpop.permute.xlu0 %803
      %807 = vset.pattern.permute.xlu0 0
      %808 = vperm.xlu0 %807, %v295
      %v809 = vpop.permute.xlu0 %808
      %812 = vset.pattern.permute.xlu0 0
      %813 = vperm.xlu0 %812, %v296
      %v814 = vpop.permute.xlu0 %813
      %817 = vset.pattern.permute.xlu0 0
      %818 = vperm.xlu0 %817, %v297
      %v819 = vpop.permute.xlu0 %818
      %822 = vset.pattern.permute.xlu0 0
      %823 = vperm.xlu0 %822, %v298
      %v824 = vpop.permute.xlu0 %823
      %827 = vset.pattern.permute.xlu0 0
      %828 = vperm.xlu0 %827, %v299
      %v829 = vpop.permute.xlu0 %828
      %832 = vset.pattern.permute.xlu0 0
      %833 = vperm.xlu0 %832, %v300
      %v834 = vpop.permute.xlu0 %833
      %837 = vset.pattern.permute.xlu0 0
      %838 = vperm.xlu0 %837, %v301
      %v839 = vpop.permute.xlu0 %838
      %842 = vset.pattern.permute.xlu0 0
      %843 = vperm.xlu0 %842, %v302
      %v844 = vpop.permute.xlu0 %843
      %847 = vset.pattern.permute.xlu0 0
      %848 = vperm.xlu0 %847, %v303
      %v849 = vpop.permute.xlu0 %848
      %852 = vset.pattern.permute.xlu0 0
      %853 = vperm.xlu0 %852, %v304
      %v854 = vpop.permute.xlu0 %853
      %857 = vset.pattern.permute.xlu0 0
      %858 = vperm.xlu0 %857, %v305
      %v859 = vpop.permute.xlu0 %858
      %862 = vset.pattern.permute.xlu0 0
      %863 = vperm.xlu0 %862, %v306
      %v864 = vpop.permute.xlu0 %863
      %867 = vset.pattern.permute.xlu0 0
      %868 = vperm.xlu0 %867, %v307
      %v869 = vpop.permute.xlu0 %868
      %872 = vset.pattern.permute.xlu0 0
      %873 = vperm.xlu0 %872, %v308
      %v874 = vpop.permute.xlu0 %873
      %877 = vset.pattern.permute.xlu0 0
      %878 = vperm.xlu0 %877, %v309
      %v879 = vpop.permute.xlu0 %878
      %v881 = vlaneseq
      %v882 = vshrl.u32 %v881, 7
      %v883 = vsub.s32 0, %v882
      %v884 = vrot.slane %v319, %v883
      %v885 = vmul.f32 %v324, %v884
      %v886 = vmul.f32 %v329, %v884
      %v887 = vmul.f32 %v334, %v884
      %v888 = vmul.f32 %v339, %v884
      %v889 = vmul.f32 %v344, %v884
      %v890 = vmul.f32 %v349, %v884
      %v891 = vmul.f32 %v354, %v884
      %v892 = vmul.f32 %v359, %v884
      %v893 = vmul.f32 %v364, %v884
      %v894 = vmul.f32 %v369, %v884
      %v895 = vmul.f32 %v374, %v884
      %v896 = vmul.f32 %v379, %v884
      %v897 = vmul.f32 %v384, %v884
      %v898 = vmul.f32 %v389, %v884
      %v899 = vmul.f32 %v394, %v884
      %v900 = vmul.f32 %v399, %v884
      %v901 = vmul.f32 %v404, %v884
      %v902 = vmul.f32 %v409, %v884
      %v903 = vmul.f32 %v414, %v884
      %v904 = vmul.f32 %v419, %v884
      %v905 = vmul.f32 %v424, %v884
      %v906 = vmul.f32 %v429, %v884
      %v907 = vmul.f32 %v434, %v884
      %v908 = vmul.f32 %v439, %v884
      %v909 = vmul.f32 %v444, %v884
      %v910 = vmul.f32 %v449, %v884
      %v911 = vmul.f32 %v454, %v884
      %v912 = vmul.f32 %v459, %v884
      %v913 = vmul.f32 %v464, %v884
      %v914 = vmul.f32 %v469, %v884
      %v915 = vmul.f32 %v474, %v884
      %v916 = vmul.f32 %v479, %v884
      %v917 = vmul.f32 %v484, %v884
      %v918 = vmul.f32 %v489, %v884
      %v919 = vmul.f32 %v494, %v884
      %v920 = vmul.f32 %v499, %v884
      %v921 = vmul.f32 %v504, %v884
      %v922 = vmul.f32 %v509, %v884
      %v923 = vmul.f32 %v514, %v884
      %v924 = vmul.f32 %v519, %v884
      %v925 = vmul.f32 %v524, %v884
      %v926 = vmul.f32 %v529, %v884
      %v927 = vmul.f32 %v534, %v884
      %v928 = vmul.f32 %v539, %v884
      %v929 = vmul.f32 %v544, %v884
      %v930 = vmul.f32 %v549, %v884
      %v931 = vmul.f32 %v554, %v884
      %v932 = vmul.f32 %v559, %v884
      %v933 = vmul.f32 %v564, %v884
      %v934 = vmul.f32 %v569, %v884
      %v935 = vmul.f32 %v574, %v884
      %v936 = vmul.f32 %v579, %v884
      %v937 = vmul.f32 %v584, %v884
      %v938 = vmul.f32 %v589, %v884
      %v939 = vmul.f32 %v594, %v884
      %v940 = vmul.f32 %v599, %v884
      %v941 = vmul.f32 %v604, %v884
      %v942 = vmul.f32 %v609, %v884
      %v943 = vmul.f32 %v614, %v884
      %v944 = vmul.f32 %v619, %v884
      %v945 = vmul.f32 %v624, %v884
      %v946 = vmul.f32 %v629, %v884
      %v947 = vmul.f32 %v634, %v884
      %v948 = vmul.f32 %v639, %v884
      %v949 = vmul.f32 %v644, %v884
      %v950 = vmul.f32 %v649, %v884
      %v951 = vmul.f32 %v654, %v884
      %v952 = vmul.f32 %v659, %v884
      %v953 = vmul.f32 %v664, %v884
      %v954 = vmul.f32 %v669, %v884
      %v955 = vmul.f32 %v674, %v884
      %v956 = vmul.f32 %v679, %v884
      %v957 = vmul.f32 %v684, %v884
      %v958 = vmul.f32 %v689, %v884
      %v959 = vmul.f32 %v694, %v884
      %v960 = vmul.f32 %v699, %v884
      %v961 = vmul.f32 %v704, %v884
      %v962 = vmul.f32 %v709, %v884
      %v963 = vmul.f32 %v714, %v884
      %v964 = vmul.f32 %v719, %v884
      %v965 = vmul.f32 %v724, %v884
      %v966 = vmul.f32 %v729, %v884
      %v967 = vmul.f32 %v734, %v884
      %v968 = vmul.f32 %v739, %v884
      %v969 = vmul.f32 %v744, %v884
      %v970 = vmul.f32 %v749, %v884
      %v971 = vmul.f32 %v754, %v884
      %v972 = vmul.f32 %v759, %v884
      %v973 = vmul.f32 %v764, %v884
      %v974 = vmul.f32 %v769, %v884
      %v975 = vmul.f32 %v774, %v884
      %v976 = vmul.f32 %v779, %v884
      %v977 = vmul.f32 %v784, %v884
      %v978 = vmul.f32 %v789, %v884
      %v979 = vmul.f32 %v794, %v884
      %v980 = vmul.f32 %v799, %v884
      %v981 = vmul.f32 %v804, %v884
      %v982 = vmul.f32 %v809, %v884
      %v983 = vmul.f32 %v814, %v884
      %v984 = vmul.f32 %v819, %v884
      %v985 = vmul.f32 %v824, %v884
      %v986 = vmul.f32 %v829, %v884
      %v987 = vmul.f32 %v834, %v884
      %v988 = vmul.f32 %v839, %v884
      %v989 = vmul.f32 %v844, %v884
      %v990 = vmul.f32 %v849, %v884
      %v991 = vmul.f32 %v854, %v884
      %v992 = vmul.f32 %v859, %v884
      %v993 = vmul.f32 %v864, %v884
      %v994 = vmul.f32 %v869, %v884
      %v995 = vmul.f32 %v874, %v884
      %v996 = vmul.f32 %v879, %v884
      %v997 = vadd.f32 %v885, 0.0
      %v998 = vadd.f32 %v886, 0.0
      %v999 = vadd.f32 %v887, 0.0
      %v1000 = vadd.f32 %v888, 0.0
      %v1001 = vadd.f32 %v889, 0.0
      %v1002 = vadd.f32 %v890, 0.0
      %v1003 = vadd.f32 %v891, 0.0
      %v1004 = vadd.f32 %v892, 0.0
      %v1005 = vadd.f32 %v893, 0.0
      %v1006 = vadd.f32 %v894, 0.0
      %v1007 = vadd.f32 %v895, 0.0
      %v1008 = vadd.f32 %v896, 0.0
      %v1009 = vadd.f32 %v897, 0.0
      %v1010 = vadd.f32 %v898, 0.0
      %v1011 = vadd.f32 %v899, 0.0
      %v1012 = vadd.f32 %v900, 0.0
      %v1013 = vadd.f32 %v901, 0.0
      %v1014 = vadd.f32 %v902, 0.0
      %v1015 = vadd.f32 %v903, 0.0
      %v1016 = vadd.f32 %v904, 0.0
      %v1017 = vadd.f32 %v905, 0.0
      %v1018 = vadd.f32 %v906, 0.0
      %v1019 = vadd.f32 %v907, 0.0
      %v1020 = vadd.f32 %v908, 0.0
      %v1021 = vadd.f32 %v909, 0.0
      %v1022 = vadd.f32 %v910, 0.0
      %v1023 = vadd.f32 %v911, 0.0
      %v1024 = vadd.f32 %v912, 0.0
      %v1025 = vadd.f32 %v913, 0.0
      %v1026 = vadd.f32 %v914, 0.0
      %v1027 = vadd.f32 %v915, 0.0
      %v1028 = vadd.f32 %v916, 0.0
      %v1029 = vadd.f32 %v917, 0.0
      %v1030 = vadd.f32 %v918, 0.0
      %v1031 = vadd.f32 %v919, 0.0
      %v1032 = vadd.f32 %v920, 0.0
      %v1033 = vadd.f32 %v921, 0.0
      %v1034 = vadd.f32 %v922, 0.0
      %v1035 = vadd.f32 %v923, 0.0
      %v1036 = vadd.f32 %v924, 0.0
      %v1037 = vadd.f32 %v925, 0.0
      %v1038 = vadd.f32 %v926, 0.0
      %v1039 = vadd.f32 %v927, 0.0
      %v1040 = vadd.f32 %v928, 0.0
      %v1041 = vadd.f32 %v929, 0.0
      %v1042 = vadd.f32 %v930, 0.0
      %v1043 = vadd.f32 %v931, 0.0
      %v1044 = vadd.f32 %v932, 0.0
      %v1045 = vadd.f32 %v933, 0.0
      %v1046 = vadd.f32 %v934, 0.0
      %v1047 = vadd.f32 %v935, 0.0
      %v1048 = vadd.f32 %v936, 0.0
      %v1049 = vadd.f32 %v937, 0.0
      %v1050 = vadd.f32 %v938, 0.0
      %v1051 = vadd.f32 %v939, 0.0
      %v1052 = vadd.f32 %v940, 0.0
      %v1053 = vadd.f32 %v941, 0.0
      %v1054 = vadd.f32 %v942, 0.0
      %v1055 = vadd.f32 %v943, 0.0
      %v1056 = vadd.f32 %v944, 0.0
      %v1057 = vadd.f32 %v945, 0.0
      %v1058 = vadd.f32 %v946, 0.0
      %v1059 = vadd.f32 %v947, 0.0
      %v1060 = vadd.f32 %v948, 0.0
      %v1061 = vadd.f32 %v949, 0.0
      %v1062 = vadd.f32 %v950, 0.0
      %v1063 = vadd.f32 %v951, 0.0
      %v1064 = vadd.f32 %v952, 0.0
      %v1065 = vadd.f32 %v953, 0.0
      %v1066 = vadd.f32 %v954, 0.0
      %v1067 = vadd.f32 %v955, 0.0
      %v1068 = vadd.f32 %v956, 0.0
      %v1069 = vadd.f32 %v957, 0.0
      %v1070 = vadd.f32 %v958, 0.0
      %v1071 = vadd.f32 %v959, 0.0
      %v1072 = vadd.f32 %v960, 0.0
      %v1073 = vadd.f32 %v961, 0.0
      %v1074 = vadd.f32 %v962, 0.0
      %v1075 = vadd.f32 %v963, 0.0
      %v1076 = vadd.f32 %v964, 0.0
      %v1077 = vadd.f32 %v965, 0.0
      %v1078 = vadd.f32 %v966, 0.0
      %v1079 = vadd.f32 %v967, 0.0
      %v1080 = vadd.f32 %v968, 0.0
      %v1081 = vadd.f32 %v969, 0.0
      %v1082 = vadd.f32 %v970, 0.0
      %v1083 = vadd.f32 %v971, 0.0
      %v1084 = vadd.f32 %v972, 0.0
      %v1085 = vadd.f32 %v973, 0.0
      %v1086 = vadd.f32 %v974, 0.0
      %v1087 = vadd.f32 %v975, 0.0
      %v1088 = vadd.f32 %v976, 0.0
      %v1089 = vadd.f32 %v977, 0.0
      %v1090 = vadd.f32 %v978, 0.0
      %v1091 = vadd.f32 %v979, 0.0
      %v1092 = vadd.f32 %v980, 0.0
      %v1093 = vadd.f32 %v981, 0.0
      %v1094 = vadd.f32 %v982, 0.0
      %v1095 = vadd.f32 %v983, 0.0
      %v1096 = vadd.f32 %v984, 0.0
      %v1097 = vadd.f32 %v985, 0.0
      %v1098 = vadd.f32 %v986, 0.0
      %v1099 = vadd.f32 %v987, 0.0
      %v1100 = vadd.f32 %v988, 0.0
      %v1101 = vadd.f32 %v989, 0.0
      %v1102 = vadd.f32 %v990, 0.0
      %v1103 = vadd.f32 %v991, 0.0
      %v1104 = vadd.f32 %v992, 0.0
      %v1105 = vadd.f32 %v993, 0.0
      %v1106 = vadd.f32 %v994, 0.0
      %v1107 = vadd.f32 %v995, 0.0
      %v1108 = vadd.f32 %v996, 0.0
      %1110 = vset.pattern.permute.xlu0 0
      %1111 = vperm.xlu0 %1110, %v310
      %v1112 = vpop.permute.xlu0 %1111
      %v1114 = vlaneseq
      %v1115 = vshrl.u32 %v1114, 7
      %v1116 = vsub.s32 1, %v1115
      %v1117 = vrot.slane %v319, %v1116
      %v1118 = vmul.f32 %v324, %v1117
      %v1119 = vmul.f32 %v329, %v1117
      %v1120 = vmul.f32 %v334, %v1117
      %v1121 = vmul.f32 %v339, %v1117
      %v1122 = vmul.f32 %v344, %v1117
      %v1123 = vmul.f32 %v349, %v1117
      %v1124 = vmul.f32 %v354, %v1117
      %v1125 = vmul.f32 %v359, %v1117
      %v1126 = vmul.f32 %v364, %v1117
      %v1127 = vmul.f32 %v369, %v1117
      %v1128 = vmul.f32 %v374, %v1117
      %v1129 = vmul.f32 %v379, %v1117
      %v1130 = vmul.f32 %v384, %v1117
      %v1131 = vmul.f32 %v389, %v1117
      %v1132 = vmul.f32 %v394, %v1117
      %v1133 = vmul.f32 %v399, %v1117
      %v1134 = vmul.f32 %v404, %v1117
      %v1135 = vmul.f32 %v409, %v1117
      %v1136 = vmul.f32 %v414, %v1117
      %v1137 = vmul.f32 %v419, %v1117
      %v1138 = vmul.f32 %v424, %v1117
      %v1139 = vmul.f32 %v429, %v1117
      %v1140 = vmul.f32 %v434, %v1117
      %v1141 = vmul.f32 %v439, %v1117
      %v1142 = vmul.f32 %v444, %v1117
      %v1143 = vmul.f32 %v449, %v1117
      %v1144 = vmul.f32 %v454, %v1117
      %v1145 = vmul.f32 %v459, %v1117
      %v1146 = vmul.f32 %v464, %v1117
      %v1147 = vmul.f32 %v469, %v1117
      %v1148 = vmul.f32 %v474, %v1117
      %v1149 = vmul.f32 %v479, %v1117
      %v1150 = vmul.f32 %v484, %v1117
      %v1151 = vmul.f32 %v489, %v1117
      %v1152 = vmul.f32 %v494, %v1117
      %v1153 = vmul.f32 %v499, %v1117
      %v1154 = vmul.f32 %v504, %v1117
      %v1155 = vmul.f32 %v509, %v1117
      %v1156 = vmul.f32 %v514, %v1117
      %v1157 = vmul.f32 %v519, %v1117
      %v1158 = vmul.f32 %v524, %v1117
      %v1159 = vmul.f32 %v529, %v1117
      %v1160 = vmul.f32 %v534, %v1117
      %v1161 = vmul.f32 %v539, %v1117
      %v1162 = vmul.f32 %v544, %v1117
      %v1163 = vmul.f32 %v549, %v1117
      %v1164 = vmul.f32 %v554, %v1117
      %v1165 = vmul.f32 %v559, %v1117
      %v1166 = vmul.f32 %v564, %v1117
      %v1167 = vmul.f32 %v569, %v1117
      %v1168 = vmul.f32 %v574, %v1117
      %v1169 = vmul.f32 %v579, %v1117
      %v1170 = vmul.f32 %v584, %v1117
      %v1171 = vmul.f32 %v589, %v1117
      %v1172 = vmul.f32 %v594, %v1117
      %v1173 = vmul.f32 %v599, %v1117
      %v1174 = vmul.f32 %v604, %v1117
      %v1175 = vmul.f32 %v609, %v1117
      %v1176 = vmul.f32 %v614, %v1117
      %v1177 = vmul.f32 %v619, %v1117
      %v1178 = vmul.f32 %v624, %v1117
      %v1179 = vmul.f32 %v629, %v1117
      %v1180 = vmul.f32 %v634, %v1117
      %v1181 = vmul.f32 %v639, %v1117
      %v1182 = vmul.f32 %v644, %v1117
      %v1183 = vmul.f32 %v649, %v1117
      %v1184 = vmul.f32 %v654, %v1117
      %v1185 = vmul.f32 %v659, %v1117
      %v1186 = vmul.f32 %v664, %v1117
      %v1187 = vmul.f32 %v669, %v1117
      %v1188 = vmul.f32 %v674, %v1117
      %v1189 = vmul.f32 %v679, %v1117
      %v1190 = vmul.f32 %v684, %v1117
      %v1191 = vmul.f32 %v689, %v1117
      %v1192 = vmul.f32 %v694, %v1117
      %v1193 = vmul.f32 %v699, %v1117
      %v1194 = vmul.f32 %v704, %v1117
      %v1195 = vmul.f32 %v709, %v1117
      %v1196 = vmul.f32 %v714, %v1117
      %v1197 = vmul.f32 %v719, %v1117
      %v1198 = vmul.f32 %v724, %v1117
      %v1199 = vmul.f32 %v729, %v1117
      %v1200 = vmul.f32 %v734, %v1117
      %v1201 = vmul.f32 %v739, %v1117
      %v1202 = vmul.f32 %v744, %v1117
      %v1203 = vmul.f32 %v749, %v1117
      %v1204 = vmul.f32 %v754, %v1117
      %v1205 = vmul.f32 %v759, %v1117
      %v1206 = vmul.f32 %v764, %v1117
      %v1207 = vmul.f32 %v769, %v1117
      %v1208 = vmul.f32 %v774, %v1117
      %v1209 = vmul.f32 %v779, %v1117
      %v1210 = vmul.f32 %v784, %v1117
      %v1211 = vmul.f32 %v789, %v1117
      %v1212 = vmul.f32 %v794, %v1117
      %v1213 = vmul.f32 %v799, %v1117
      %v1214 = vmul.f32 %v804, %v1117
      %v1215 = vmul.f32 %v809, %v1117
      %v1216 = vmul.f32 %v814, %v1117
      %v1217 = vmul.f32 %v819, %v1117
      %v1218 = vmul.f32 %v824, %v1117
      %v1219 = vmul.f32 %v829, %v1117
      %v1220 = vmul.f32 %v834, %v1117
      %v1221 = vmul.f32 %v839, %v1117
      %v1222 = vmul.f32 %v844, %v1117
      %v1223 = vmul.f32 %v849, %v1117
      %v1224 = vmul.f32 %v854, %v1117
      %v1225 = vmul.f32 %v859, %v1117
      %v1226 = vmul.f32 %v864, %v1117
      %v1227 = vmul.f32 %v869, %v1117
      %v1228 = vmul.f32 %v874, %v1117
      %v1229 = vmul.f32 %v879, %v1117
      %v1230 = vmul.f32 %v1112, %v1117
      %vm1344 = vcmask 1046528
      %v1345 = vrot.slane %v1118, 1
      %v1346 = vrot.slane %v1119, 1
      %v1347 = vsel %vm1344, %v1345, %v1346
      %v1348 = vrot.slane %v1120, 1
      %v1349 = vsel %vm1344, %v1346, %v1348
      %v1350 = vrot.slane %v1121, 1
      %v1351 = vsel %vm1344, %v1348, %v1350
      %v1352 = vrot.slane %v1122, 1
      %v1353 = vsel %vm1344, %v1350, %v1352
      %v1354 = vrot.slane %v1123, 1
      %v1355 = vsel %vm1344, %v1352, %v1354
      %v1356 = vrot.slane %v1124, 1
      %v1357 = vsel %vm1344, %v1354, %v1356
      %v1358 = vrot.slane %v1125, 1
      %v1359 = vsel %vm1344, %v1356, %v1358
      %v1360 = vrot.slane %v1126, 1
      %v1361 = vsel %vm1344, %v1358, %v1360
      %v1362 = vrot.slane %v1127, 1
      %v1363 = vsel %vm1344, %v1360, %v1362
      %v1364 = vrot.slane %v1128, 1
      %v1365 = vsel %vm1344, %v1362, %v1364
      %v1366 = vrot.slane %v1129, 1
      %v1367 = vsel %vm1344, %v1364, %v1366
      %v1368 = vrot.slane %v1130, 1
      %v1369 = vsel %vm1344, %v1366, %v1368
      %v1370 = vrot.slane %v1131, 1
      %v1371 = vsel %vm1344, %v1368, %v1370
      %v1372 = vrot.slane %v1132, 1
      %v1373 = vsel %vm1344, %v1370, %v1372
      %v1374 = vrot.slane %v1133, 1
      %v1375 = vsel %vm1344, %v1372, %v1374
      %v1376 = vrot.slane %v1134, 1
      %v1377 = vsel %vm1344, %v1374, %v1376
      %v1378 = vrot.slane %v1135, 1
      %v1379 = vsel %vm1344, %v1376, %v1378
      %v1380 = vrot.slane %v1136, 1
      %v1381 = vsel %vm1344, %v1378, %v1380
      %v1382 = vrot.slane %v1137, 1
      %v1383 = vsel %vm1344, %v1380, %v1382
      %v1384 = vrot.slane %v1138, 1
      %v1385 = vsel %vm1344, %v1382, %v1384
      %v1386 = vrot.slane %v1139, 1
      %v1387 = vsel %vm1344, %v1384, %v1386
      %v1388 = vrot.slane %v1140, 1
      %v1389 = vsel %vm1344, %v1386, %v1388
      %v1390 = vrot.slane %v1141, 1
      %v1391 = vsel %vm1344, %v1388, %v1390
      %v1392 = vrot.slane %v1142, 1
      %v1393 = vsel %vm1344, %v1390, %v1392
      %v1394 = vrot.slane %v1143, 1
      %v1395 = vsel %vm1344, %v1392, %v1394
      %v1396 = vrot.slane %v1144, 1
      %v1397 = vsel %vm1344, %v1394, %v1396
      %v1398 = vrot.slane %v1145, 1
      %v1399 = vsel %vm1344, %v1396, %v1398
      %v1400 = vrot.slane %v1146, 1
      %v1401 = vsel %vm1344, %v1398, %v1400
      %v1402 = vrot.slane %v1147, 1
      %v1403 = vsel %vm1344, %v1400, %v1402
      %v1404 = vrot.slane %v1148, 1
      %v1405 = vsel %vm1344, %v1402, %v1404
      %v1406 = vrot.slane %v1149, 1
      %v1407 = vsel %vm1344, %v1404, %v1406
      %v1408 = vrot.slane %v1150, 1
      %v1409 = vsel %vm1344, %v1406, %v1408
      %v1410 = vrot.slane %v1151, 1
      %v1411 = vsel %vm1344, %v1408, %v1410
      %v1412 = vrot.slane %v1152, 1
      %v1413 = vsel %vm1344, %v1410, %v1412
      %v1414 = vrot.slane %v1153, 1
      %v1415 = vsel %vm1344, %v1412, %v1414
      %v1416 = vrot.slane %v1154, 1
      %v1417 = vsel %vm1344, %v1414, %v1416
      %v1418 = vrot.slane %v1155, 1
      %v1419 = vsel %vm1344, %v1416, %v1418
      %v1420 = vrot.slane %v1156, 1
      %v1421 = vsel %vm1344, %v1418, %v1420
      %v1422 = vrot.slane %v1157, 1
      %v1423 = vsel %vm1344, %v1420, %v1422
      %v1424 = vrot.slane %v1158, 1
      %v1425 = vsel %vm1344, %v1422, %v1424
      %v1426 = vrot.slane %v1159, 1
      %v1427 = vsel %vm1344, %v1424, %v1426
      %v1428 = vrot.slane %v1160, 1
      %v1429 = vsel %vm1344, %v1426, %v1428
      %v1430 = vrot.slane %v1161, 1
      %v1431 = vsel %vm1344, %v1428, %v1430
      %v1432 = vrot.slane %v1162, 1
      %v1433 = vsel %vm1344, %v1430, %v1432
      %v1434 = vrot.slane %v1163, 1
      %v1435 = vsel %vm1344, %v1432, %v1434
      %v1436 = vrot.slane %v1164, 1
      %v1437 = vsel %vm1344, %v1434, %v1436
      %v1438 = vrot.slane %v1165, 1
      %v1439 = vsel %vm1344, %v1436, %v1438
      %v1440 = vrot.slane %v1166, 1
      %v1441 = vsel %vm1344, %v1438, %v1440
      %v1442 = vrot.slane %v1167, 1
      %v1443 = vsel %vm1344, %v1440, %v1442
      %v1444 = vrot.slane %v1168, 1
      %v1445 = vsel %vm1344, %v1442, %v1444
      %v1446 = vrot.slane %v1169, 1
      %v1447 = vsel %vm1344, %v1444, %v1446
      %v1448 = vrot.slane %v1170, 1
      %v1449 = vsel %vm1344, %v1446, %v1448
      %v1450 = vrot.slane %v1171, 1
      %v1451 = vsel %vm1344, %v1448, %v1450
      %v1452 = vrot.slane %v1172, 1
      %v1453 = vsel %vm1344, %v1450, %v1452
      %v1454 = vrot.slane %v1173, 1
      %v1455 = vsel %vm1344, %v1452, %v1454
      %v1456 = vrot.slane %v1174, 1
      %v1457 = vsel %vm1344, %v1454, %v1456
      %v1458 = vrot.slane %v1175, 1
      %v1459 = vsel %vm1344, %v1456, %v1458
      %v1460 = vrot.slane %v1176, 1
      %v1461 = vsel %vm1344, %v1458, %v1460
      %v1462 = vrot.slane %v1177, 1
      %v1463 = vsel %vm1344, %v1460, %v1462
      %v1464 = vrot.slane %v1178, 1
      %v1465 = vsel %vm1344, %v1462, %v1464
      %v1466 = vrot.slane %v1179, 1
      %v1467 = vsel %vm1344, %v1464, %v1466
      %v1468 = vrot.slane %v1180, 1
      %v1469 = vsel %vm1344, %v1466, %v1468
      %v1470 = vrot.slane %v1181, 1
      %v1471 = vsel %vm1344, %v1468, %v1470
      %v1472 = vrot.slane %v1182, 1
      %v1473 = vsel %vm1344, %v1470, %v1472
      %v1474 = vrot.slane %v1183, 1
      %v1475 = vsel %vm1344, %v1472, %v1474
      %v1476 = vrot.slane %v1184, 1
      %v1477 = vsel %vm1344, %v1474, %v1476
      %v1478 = vrot.slane %v1185, 1
      %v1479 = vsel %vm1344, %v1476, %v1478
      %v1480 = vrot.slane %v1186, 1
      %v1481 = vsel %vm1344, %v1478, %v1480
      %v1482 = vrot.slane %v1187, 1
      %v1483 = vsel %vm1344, %v1480, %v1482
      %v1484 = vrot.slane %v1188, 1
      %v1485 = vsel %vm1344, %v1482, %v1484
      %v1486 = vrot.slane %v1189, 1
      %v1487 = vsel %vm1344, %v1484, %v1486
      %v1488 = vrot.slane %v1190, 1
      %v1489 = vsel %vm1344, %v1486, %v1488
      %v1490 = vrot.slane %v1191, 1
      %v1491 = vsel %vm1344, %v1488, %v1490
      %v1492 = vrot.slane %v1192, 1
      %v1493 = vsel %vm1344, %v1490, %v1492
      %v1494 = vrot.slane %v1193, 1
      %v1495 = vsel %vm1344, %v1492, %v1494
      %v1496 = vrot.slane %v1194, 1
      %v1497 = vsel %vm1344, %v1494, %v1496
      %v1498 = vrot.slane %v1195, 1
      %v1499 = vsel %vm1344, %v1496, %v1498
      %v1500 = vrot.slane %v1196, 1
      %v1501 = vsel %vm1344, %v1498, %v1500
      %v1502 = vrot.slane %v1197, 1
      %v1503 = vsel %vm1344, %v1500, %v1502
      %v1504 = vrot.slane %v1198, 1
      %v1505 = vsel %vm1344, %v1502, %v1504
      %v1506 = vrot.slane %v1199, 1
      %v1507 = vsel %vm1344, %v1504, %v1506
      %v1508 = vrot.slane %v1200, 1
      %v1509 = vsel %vm1344, %v1506, %v1508
      %v1510 = vrot.slane %v1201, 1
      %v1511 = vsel %vm1344, %v1508, %v1510
      %v1512 = vrot.slane %v1202, 1
      %v1513 = vsel %vm1344, %v1510, %v1512
      %v1514 = vrot.slane %v1203, 1
      %v1515 = vsel %vm1344, %v1512, %v1514
      %v1516 = vrot.slane %v1204, 1
      %v1517 = vsel %vm1344, %v1514, %v1516
      %v1518 = vrot.slane %v1205, 1
      %v1519 = vsel %vm1344, %v1516, %v1518
      %v1520 = vrot.slane %v1206, 1
      %v1521 = vsel %vm1344, %v1518, %v1520
      %v1522 = vrot.slane %v1207, 1
      %v1523 = vsel %vm1344, %v1520, %v1522
      %v1524 = vrot.slane %v1208, 1
      %v1525 = vsel %vm1344, %v1522, %v1524
      %v1526 = vrot.slane %v1209, 1
      %v1527 = vsel %vm1344, %v1524, %v1526
      %v1528 = vrot.slane %v1210, 1
      %v1529 = vsel %vm1344, %v1526, %v1528
      %v1530 = vrot.slane %v1211, 1
      %v1531 = vsel %vm1344, %v1528, %v1530
      %v1532 = vrot.slane %v1212, 1
      %v1533 = vsel %vm1344, %v1530, %v1532
      %v1534 = vrot.slane %v1213, 1
      %v1535 = vsel %vm1344, %v1532, %v1534
      %v1536 = vrot.slane %v1214, 1
      %v1537 = vsel %vm1344, %v1534, %v1536
      %v1538 = vrot.slane %v1215, 1
      %v1539 = vsel %vm1344, %v1536, %v1538
      %v1540 = vrot.slane %v1216, 1
      %v1541 = vsel %vm1344, %v1538, %v1540
      %v1542 = vrot.slane %v1217, 1
      %v1543 = vsel %vm1344, %v1540, %v1542
      %v1544 = vrot.slane %v1218, 1
      %v1545 = vsel %vm1344, %v1542, %v1544
      %v1546 = vrot.slane %v1219, 1
      %v1547 = vsel %vm1344, %v1544, %v1546
      %v1548 = vrot.slane %v1220, 1
      %v1549 = vsel %vm1344, %v1546, %v1548
      %v1550 = vrot.slane %v1221, 1
      %v1551 = vsel %vm1344, %v1548, %v1550
      %v1552 = vrot.slane %v1222, 1
      %v1553 = vsel %vm1344, %v1550, %v1552
      %v1554 = vrot.slane %v1223, 1
      %v1555 = vsel %vm1344, %v1552, %v1554
      %v1556 = vrot.slane %v1224, 1
      %v1557 = vsel %vm1344, %v1554, %v1556
      %v1558 = vrot.slane %v1225, 1
      %v1559 = vsel %vm1344, %v1556, %v1558
      %v1560 = vrot.slane %v1226, 1
      %v1561 = vsel %vm1344, %v1558, %v1560
      %v1562 = vrot.slane %v1227, 1
      %v1563 = vsel %vm1344, %v1560, %v1562
      %v1564 = vrot.slane %v1228, 1
      %v1565 = vsel %vm1344, %v1562, %v1564
      %v1566 = vrot.slane %v1229, 1
      %v1567 = vsel %vm1344, %v1564, %v1566
      %v1568 = vrot.slane %v1230, 1
      %v1569 = vsel %vm1344, %v1566, %v1568
      %v1682 = vadd.f32 %v997, %v1347
      %v1683 = vadd.f32 %v998, %v1349
      %v1684 = vadd.f32 %v999, %v1351
      %v1685 = vadd.f32 %v1000, %v1353
      %v1686 = vadd.f32 %v1001, %v1355
      %v1687 = vadd.f32 %v1002, %v1357
      %v1688 = vadd.f32 %v1003, %v1359
      %v1689 = vadd.f32 %v1004, %v1361
      %v1690 = vadd.f32 %v1005, %v1363
      %v1691 = vadd.f32 %v1006, %v1365
      %v1692 = vadd.f32 %v1007, %v1367
      %v1693 = vadd.f32 %v1008, %v1369
      %v1694 = vadd.f32 %v1009, %v1371
      %v1695 = vadd.f32 %v1010, %v1373
      %v1696 = vadd.f32 %v1011, %v1375
      %v1697 = vadd.f32 %v1012, %v1377
      %v1698 = vadd.f32 %v1013, %v1379
      %v1699 = vadd.f32 %v1014, %v1381
      %v1700 = vadd.f32 %v1015, %v1383
      %v1701 = vadd.f32 %v1016, %v1385
      %v1702 = vadd.f32 %v1017, %v1387
      %v1703 = vadd.f32 %v1018, %v1389
      %v1704 = vadd.f32 %v1019, %v1391
      %v1705 = vadd.f32 %v1020, %v1393
      %v1706 = vadd.f32 %v1021, %v1395
      %v1707 = vadd.f32 %v1022, %v1397
      %v1708 = vadd.f32 %v1023, %v1399
      %v1709 = vadd.f32 %v1024, %v1401
      %v1710 = vadd.f32 %v1025, %v1403
      %v1711 = vadd.f32 %v1026, %v1405
      %v1712 = vadd.f32 %v1027, %v1407
      %v1713 = vadd.f32 %v1028, %v1409
      %v1714 = vadd.f32 %v1029, %v1411
      %v1715 = vadd.f32 %v1030, %v1413
      %v1716 = vadd.f32 %v1031, %v1415
      %v1717 = vadd.f32 %v1032, %v1417
      %v1718 = vadd.f32 %v1033, %v1419
      %v1719 = vadd.f32 %v1034, %v1421
      %v1720 = vadd.f32 %v1035, %v1423
      %v1721 = vadd.f32 %v1036, %v1425
      %v1722 = vadd.f32 %v1037, %v1427
      %v1723 = vadd.f32 %v1038, %v1429
      %v1724 = vadd.f32 %v1039, %v1431
      %v1725 = vadd.f32 %v1040, %v1433
      %v1726 = vadd.f32 %v1041, %v1435
      %v1727 = vadd.f32 %v1042, %v1437
      %v1728 = vadd.f32 %v1043, %v1439
      %v1729 = vadd.f32 %v1044, %v1441
      %v1730 = vadd.f32 %v1045, %v1443
      %v1731 = vadd.f32 %v1046, %v1445
      %v1732 = vadd.f32 %v1047, %v1447
      %v1733 = vadd.f32 %v1048, %v1449
      %v1734 = vadd.f32 %v1049, %v1451
      %v1735 = vadd.f32 %v1050, %v1453
      %v1736 = vadd.f32 %v1051, %v1455
      %v1737 = vadd.f32 %v1052, %v1457
      %v1738 = vadd.f32 %v1053, %v1459
      %v1739 = vadd.f32 %v1054, %v1461
      %v1740 = vadd.f32 %v1055, %v1463
      %v1741 = vadd.f32 %v1056, %v1465
      %v1742 = vadd.f32 %v1057, %v1467
      %v1743 = vadd.f32 %v1058, %v1469
      %v1744 = vadd.f32 %v1059, %v1471
      %v1745 = vadd.f32 %v1060, %v1473
      %v1746 = vadd.f32 %v1061, %v1475
      %v1747 = vadd.f32 %v1062, %v1477
      %v1748 = vadd.f32 %v1063, %v1479
      %v1749 = vadd.f32 %v1064, %v1481
      %v1750 = vadd.f32 %v1065, %v1483
      %v1751 = vadd.f32 %v1066, %v1485
      %v1752 = vadd.f32 %v1067, %v1487
      %v1753 = vadd.f32 %v1068, %v1489
      %v1754 = vadd.f32 %v1069, %v1491
      %v1755 = vadd.f32 %v1070, %v1493
      %v1756 = vadd.f32 %v1071, %v1495
      %v1757 = vadd.f32 %v1072, %v1497
      %v1758 = vadd.f32 %v1073, %v1499
      %v1759 = vadd.f32 %v1074, %v1501
      %v1760 = vadd.f32 %v1075, %v1503
      %v1761 = vadd.f32 %v1076, %v1505
      %v1762 = vadd.f32 %v1077, %v1507
      %v1763 = vadd.f32 %v1078, %v1509
      %v1764 = vadd.f32 %v1079, %v1511
      %v1765 = vadd.f32 %v1080, %v1513
      %v1766 = vadd.f32 %v1081, %v1515
      %v1767 = vadd.f32 %v1082, %v1517
      %v1768 = vadd.f32 %v1083, %v1519
      %v1769 = vadd.f32 %v1084, %v1521
      %v1770 = vadd.f32 %v1085, %v1523
      %v1771 = vadd.f32 %v1086, %v1525
      %v1772 = vadd.f32 %v1087, %v1527
      %v1773 = vadd.f32 %v1088, %v1529
      %v1774 = vadd.f32 %v1089, %v1531
      %v1775 = vadd.f32 %v1090, %v1533
      %v1776 = vadd.f32 %v1091, %v1535
      %v1777 = vadd.f32 %v1092, %v1537
      %v1778 = vadd.f32 %v1093, %v1539
      %v1779 = vadd.f32 %v1094, %v1541
      %v1780 = vadd.f32 %v1095, %v1543
      %v1781 = vadd.f32 %v1096, %v1545
      %v1782 = vadd.f32 %v1097, %v1547
      %v1783 = vadd.f32 %v1098, %v1549
      %v1784 = vadd.f32 %v1099, %v1551
      %v1785 = vadd.f32 %v1100, %v1553
      %v1786 = vadd.f32 %v1101, %v1555
      %v1787 = vadd.f32 %v1102, %v1557
      %v1788 = vadd.f32 %v1103, %v1559
      %v1789 = vadd.f32 %v1104, %v1561
      %v1790 = vadd.f32 %v1105, %v1563
      %v1791 = vadd.f32 %v1106, %v1565
      %v1792 = vadd.f32 %v1107, %v1567
      %v1793 = vadd.f32 %v1108, %v1569
      %v1794 = vlaneseq
      %v1795 = vshrl.u32 %v1794, 7
      %v1796 = vsub.s32 2, %v1795
      %v1797 = vrot.slane %v319, %v1796
      %v1798 = vmul.f32 %v324, %v1797
      %v1799 = vmul.f32 %v329, %v1797
      %v1800 = vmul.f32 %v334, %v1797
      %v1801 = vmul.f32 %v339, %v1797
      %v1802 = vmul.f32 %v344, %v1797
      %v1803 = vmul.f32 %v349, %v1797
      %v1804 = vmul.f32 %v354, %v1797
      %v1805 = vmul.f32 %v359, %v1797
      %v1806 = vmul.f32 %v364, %v1797
      %v1807 = vmul.f32 %v369, %v1797
      %v1808 = vmul.f32 %v374, %v1797
      %v1809 = vmul.f32 %v379, %v1797
      %v1810 = vmul.f32 %v384, %v1797
      %v1811 = vmul.f32 %v389, %v1797
      %v1812 = vmul.f32 %v394, %v1797
      %v1813 = vmul.f32 %v399, %v1797
      %v1814 = vmul.f32 %v404, %v1797
      %v1815 = vmul.f32 %v409, %v1797
      %v1816 = vmul.f32 %v414, %v1797
      %v1817 = vmul.f32 %v419, %v1797
      %v1818 = vmul.f32 %v424, %v1797
      %v1819 = vmul.f32 %v429, %v1797
      %v1820 = vmul.f32 %v434, %v1797
      %v1821 = vmul.f32 %v439, %v1797
      %v1822 = vmul.f32 %v444, %v1797
      %v1823 = vmul.f32 %v449, %v1797
      %v1824 = vmul.f32 %v454, %v1797
      %v1825 = vmul.f32 %v459, %v1797
      %v1826 = vmul.f32 %v464, %v1797
      %v1827 = vmul.f32 %v469, %v1797
      %v1828 = vmul.f32 %v474, %v1797
      %v1829 = vmul.f32 %v479, %v1797
      %v1830 = vmul.f32 %v484, %v1797
      %v1831 = vmul.f32 %v489, %v1797
      %v1832 = vmul.f32 %v494, %v1797
      %v1833 = vmul.f32 %v499, %v1797
      %v1834 = vmul.f32 %v504, %v1797
      %v1835 = vmul.f32 %v509, %v1797
      %v1836 = vmul.f32 %v514, %v1797
      %v1837 = vmul.f32 %v519, %v1797
      %v1838 = vmul.f32 %v524, %v1797
      %v1839 = vmul.f32 %v529, %v1797
      %v1840 = vmul.f32 %v534, %v1797
      %v1841 = vmul.f32 %v539, %v1797
      %v1842 = vmul.f32 %v544, %v1797
      %v1843 = vmul.f32 %v549, %v1797
      %v1844 = vmul.f32 %v554, %v1797
      %v1845 = vmul.f32 %v559, %v1797
      %v1846 = vmul.f32 %v564, %v1797
      %v1847 = vmul.f32 %v569, %v1797
      %v1848 = vmul.f32 %v574, %v1797
      %v1849 = vmul.f32 %v579, %v1797
      %v1850 = vmul.f32 %v584, %v1797
      %v1851 = vmul.f32 %v589, %v1797
      %v1852 = vmul.f32 %v594, %v1797
      %v1853 = vmul.f32 %v599, %v1797
      %v1854 = vmul.f32 %v604, %v1797
      %v1855 = vmul.f32 %v609, %v1797
      %v1856 = vmul.f32 %v614, %v1797
      %v1857 = vmul.f32 %v619, %v1797
      %v1858 = vmul.f32 %v624, %v1797
      %v1859 = vmul.f32 %v629, %v1797
      %v1860 = vmul.f32 %v634, %v1797
      %v1861 = vmul.f32 %v639, %v1797
      %v1862 = vmul.f32 %v644, %v1797
      %v1863 = vmul.f32 %v649, %v1797
      %v1864 = vmul.f32 %v654, %v1797
      %v1865 = vmul.f32 %v659, %v1797
      %v1866 = vmul.f32 %v664, %v1797
      %v1867 = vmul.f32 %v669, %v1797
      %v1868 = vmul.f32 %v674, %v1797
      %v1869 = vmul.f32 %v679, %v1797
      %v1870 = vmul.f32 %v684, %v1797
      %v1871 = vmul.f32 %v689, %v1797
      %v1872 = vmul.f32 %v694, %v1797
      %v1873 = vmul.f32 %v699, %v1797
      %v1874 = vmul.f32 %v704, %v1797
      %v1875 = vmul.f32 %v709, %v1797
      %v1876 = vmul.f32 %v714, %v1797
      %v1877 = vmul.f32 %v719, %v1797
      %v1878 = vmul.f32 %v724, %v1797
      %v1879 = vmul.f32 %v729, %v1797
      %v1880 = vmul.f32 %v734, %v1797
      %v1881 = vmul.f32 %v739, %v1797
      %v1882 = vmul.f32 %v744, %v1797
      %v1883 = vmul.f32 %v749, %v1797
      %v1884 = vmul.f32 %v754, %v1797
      %v1885 = vmul.f32 %v759, %v1797
      %v1886 = vmul.f32 %v764, %v1797
      %v1887 = vmul.f32 %v769, %v1797
      %v1888 = vmul.f32 %v774, %v1797
      %v1889 = vmul.f32 %v779, %v1797
      %v1890 = vmul.f32 %v784, %v1797
      %v1891 = vmul.f32 %v789, %v1797
      %v1892 = vmul.f32 %v794, %v1797
      %v1893 = vmul.f32 %v799, %v1797
      %v1894 = vmul.f32 %v804, %v1797
      %v1895 = vmul.f32 %v809, %v1797
      %v1896 = vmul.f32 %v814, %v1797
      %v1897 = vmul.f32 %v819, %v1797
      %v1898 = vmul.f32 %v824, %v1797
      %v1899 = vmul.f32 %v829, %v1797
      %v1900 = vmul.f32 %v834, %v1797
      %v1901 = vmul.f32 %v839, %v1797
      %v1902 = vmul.f32 %v844, %v1797
      %v1903 = vmul.f32 %v849, %v1797
      %v1904 = vmul.f32 %v854, %v1797
      %v1905 = vmul.f32 %v859, %v1797
      %v1906 = vmul.f32 %v864, %v1797
      %v1907 = vmul.f32 %v869, %v1797
      %v1908 = vmul.f32 %v874, %v1797
      %v1909 = vmul.f32 %v879, %v1797
      %v1910 = vmul.f32 %v1112, %v1797
      %vm2024 = vcmask 1045504
      %v2025 = vrot.slane %v1798, 2
      %v2026 = vrot.slane %v1799, 2
      %v2027 = vsel %vm2024, %v2025, %v2026
      %v2028 = vrot.slane %v1800, 2
      %v2029 = vsel %vm2024, %v2026, %v2028
      %v2030 = vrot.slane %v1801, 2
      %v2031 = vsel %vm2024, %v2028, %v2030
      %v2032 = vrot.slane %v1802, 2
      %v2033 = vsel %vm2024, %v2030, %v2032
      %v2034 = vrot.slane %v1803, 2
      %v2035 = vsel %vm2024, %v2032, %v2034
      %v2036 = vrot.slane %v1804, 2
      %v2037 = vsel %vm2024, %v2034, %v2036
      %v2038 = vrot.slane %v1805, 2
      %v2039 = vsel %vm2024, %v2036, %v2038
      %v2040 = vrot.slane %v1806, 2
      %v2041 = vsel %vm2024, %v2038, %v2040
      %v2042 = vrot.slane %v1807, 2
      %v2043 = vsel %vm2024, %v2040, %v2042
      %v2044 = vrot.slane %v1808, 2
      %v2045 = vsel %vm2024, %v2042, %v2044
      %v2046 = vrot.slane %v1809, 2
      %v2047 = vsel %vm2024, %v2044, %v2046
      %v2048 = vrot.slane %v1810, 2
      %v2049 = vsel %vm2024, %v2046, %v2048
      %v2050 = vrot.slane %v1811, 2
      %v2051 = vsel %vm2024, %v2048, %v2050
      %v2052 = vrot.slane %v1812, 2
      %v2053 = vsel %vm2024, %v2050, %v2052
      %v2054 = vrot.slane %v1813, 2
      %v2055 = vsel %vm2024, %v2052, %v2054
      %v2056 = vrot.slane %v1814, 2
      %v2057 = vsel %vm2024, %v2054, %v2056
      %v2058 = vrot.slane %v1815, 2
      %v2059 = vsel %vm2024, %v2056, %v2058
      %v2060 = vrot.slane %v1816, 2
      %v2061 = vsel %vm2024, %v2058, %v2060
      %v2062 = vrot.slane %v1817, 2
      %v2063 = vsel %vm2024, %v2060, %v2062
      %v2064 = vrot.slane %v1818, 2
      %v2065 = vsel %vm2024, %v2062, %v2064
      %v2066 = vrot.slane %v1819, 2
      %v2067 = vsel %vm2024, %v2064, %v2066
      %v2068 = vrot.slane %v1820, 2
      %v2069 = vsel %vm2024, %v2066, %v2068
      %v2070 = vrot.slane %v1821, 2
      %v2071 = vsel %vm2024, %v2068, %v2070
      %v2072 = vrot.slane %v1822, 2
      %v2073 = vsel %vm2024, %v2070, %v2072
      %v2074 = vrot.slane %v1823, 2
      %v2075 = vsel %vm2024, %v2072, %v2074
      %v2076 = vrot.slane %v1824, 2
      %v2077 = vsel %vm2024, %v2074, %v2076
      %v2078 = vrot.slane %v1825, 2
      %v2079 = vsel %vm2024, %v2076, %v2078
      %v2080 = vrot.slane %v1826, 2
      %v2081 = vsel %vm2024, %v2078, %v2080
      %v2082 = vrot.slane %v1827, 2
      %v2083 = vsel %vm2024, %v2080, %v2082
      %v2084 = vrot.slane %v1828, 2
      %v2085 = vsel %vm2024, %v2082, %v2084
      %v2086 = vrot.slane %v1829, 2
      %v2087 = vsel %vm2024, %v2084, %v2086
      %v2088 = vrot.slane %v1830, 2
      %v2089 = vsel %vm2024, %v2086, %v2088
      %v2090 = vrot.slane %v1831, 2
      %v2091 = vsel %vm2024, %v2088, %v2090
      %v2092 = vrot.slane %v1832, 2
      %v2093 = vsel %vm2024, %v2090, %v2092
      %v2094 = vrot.slane %v1833, 2
      %v2095 = vsel %vm2024, %v2092, %v2094
      %v2096 = vrot.slane %v1834, 2
      %v2097 = vsel %vm2024, %v2094, %v2096
      %v2098 = vrot.slane %v1835, 2
      %v2099 = vsel %vm2024, %v2096, %v2098
      %v2100 = vrot.slane %v1836, 2
      %v2101 = vsel %vm2024, %v2098, %v2100
      %v2102 = vrot.slane %v1837, 2
      %v2103 = vsel %vm2024, %v2100, %v2102
      %v2104 = vrot.slane %v1838, 2
      %v2105 = vsel %vm2024, %v2102, %v2104
      %v2106 = vrot.slane %v1839, 2
      %v2107 = vsel %vm2024, %v2104, %v2106
      %v2108 = vrot.slane %v1840, 2
      %v2109 = vsel %vm2024, %v2106, %v2108
      %v2110 = vrot.slane %v1841, 2
      %v2111 = vsel %vm2024, %v2108, %v2110
      %v2112 = vrot.slane %v1842, 2
      %v2113 = vsel %vm2024, %v2110, %v2112
      %v2114 = vrot.slane %v1843, 2
      %v2115 = vsel %vm2024, %v2112, %v2114
      %v2116 = vrot.slane %v1844, 2
      %v2117 = vsel %vm2024, %v2114, %v2116
      %v2118 = vrot.slane %v1845, 2
      %v2119 = vsel %vm2024, %v2116, %v2118
      %v2120 = vrot.slane %v1846, 2
      %v2121 = vsel %vm2024, %v2118, %v2120
      %v2122 = vrot.slane %v1847, 2
      %v2123 = vsel %vm2024, %v2120, %v2122
      %v2124 = vrot.slane %v1848, 2
      %v2125 = vsel %vm2024, %v2122, %v2124
      %v2126 = vrot.slane %v1849, 2
      %v2127 = vsel %vm2024, %v2124, %v2126
      %v2128 = vrot.slane %v1850, 2
      %v2129 = vsel %vm2024, %v2126, %v2128
      %v2130 = vrot.slane %v1851, 2
      %v2131 = vsel %vm2024, %v2128, %v2130
      %v2132 = vrot.slane %v1852, 2
      %v2133 = vsel %vm2024, %v2130, %v2132
      %v2134 = vrot.slane %v1853, 2
      %v2135 = vsel %vm2024, %v2132, %v2134
      %v2136 = vrot.slane %v1854, 2
      %v2137 = vsel %vm2024, %v2134, %v2136
      %v2138 = vrot.slane %v1855, 2
      %v2139 = vsel %vm2024, %v2136, %v2138
      %v2140 = vrot.slane %v1856, 2
      %v2141 = vsel %vm2024, %v2138, %v2140
      %v2142 = vrot.slane %v1857, 2
      %v2143 = vsel %vm2024, %v2140, %v2142
      %v2144 = vrot.slane %v1858, 2
      %v2145 = vsel %vm2024, %v2142, %v2144
      %v2146 = vrot.slane %v1859, 2
      %v2147 = vsel %vm2024, %v2144, %v2146
      %v2148 = vrot.slane %v1860, 2
      %v2149 = vsel %vm2024, %v2146, %v2148
      %v2150 = vrot.slane %v1861, 2
      %v2151 = vsel %vm2024, %v2148, %v2150
      %v2152 = vrot.slane %v1862, 2
      %v2153 = vsel %vm2024, %v2150, %v2152
      %v2154 = vrot.slane %v1863, 2
      %v2155 = vsel %vm2024, %v2152, %v2154
      %v2156 = vrot.slane %v1864, 2
      %v2157 = vsel %vm2024, %v2154, %v2156
      %v2158 = vrot.slane %v1865, 2
      %v2159 = vsel %vm2024, %v2156, %v2158
      %v2160 = vrot.slane %v1866, 2
      %v2161 = vsel %vm2024, %v2158, %v2160
      %v2162 = vrot.slane %v1867, 2
      %v2163 = vsel %vm2024, %v2160, %v2162
      %v2164 = vrot.slane %v1868, 2
      %v2165 = vsel %vm2024, %v2162, %v2164
      %v2166 = vrot.slane %v1869, 2
      %v2167 = vsel %vm2024, %v2164, %v2166
      %v2168 = vrot.slane %v1870, 2
      %v2169 = vsel %vm2024, %v2166, %v2168
      %v2170 = vrot.slane %v1871, 2
      %v2171 = vsel %vm2024, %v2168, %v2170
      %v2172 = vrot.slane %v1872, 2
      %v2173 = vsel %vm2024, %v2170, %v2172
      %v2174 = vrot.slane %v1873, 2
      %v2175 = vsel %vm2024, %v2172, %v2174
      %v2176 = vrot.slane %v1874, 2
      %v2177 = vsel %vm2024, %v2174, %v2176
      %v2178 = vrot.slane %v1875, 2
      %v2179 = vsel %vm2024, %v2176, %v2178
      %v2180 = vrot.slane %v1876, 2
      %v2181 = vsel %vm2024, %v2178, %v2180
      %v2182 = vrot.slane %v1877, 2
      %v2183 = vsel %vm2024, %v2180, %v2182
      %v2184 = vrot.slane %v1878, 2
      %v2185 = vsel %vm2024, %v2182, %v2184
      %v2186 = vrot.slane %v1879, 2
      %v2187 = vsel %vm2024, %v2184, %v2186
      %v2188 = vrot.slane %v1880, 2
      %v2189 = vsel %vm2024, %v2186, %v2188
      %v2190 = vrot.slane %v1881, 2
      %v2191 = vsel %vm2024, %v2188, %v2190
      %v2192 = vrot.slane %v1882, 2
      %v2193 = vsel %vm2024, %v2190, %v2192
      %v2194 = vrot.slane %v1883, 2
      %v2195 = vsel %vm2024, %v2192, %v2194
      %v2196 = vrot.slane %v1884, 2
      %v2197 = vsel %vm2024, %v2194, %v2196
      %v2198 = vrot.slane %v1885, 2
      %v2199 = vsel %vm2024, %v2196, %v2198
      %v2200 = vrot.slane %v1886, 2
      %v2201 = vsel %vm2024, %v2198, %v2200
      %v2202 = vrot.slane %v1887, 2
      %v2203 = vsel %vm2024, %v2200, %v2202
      %v2204 = vrot.slane %v1888, 2
      %v2205 = vsel %vm2024, %v2202, %v2204
      %v2206 = vrot.slane %v1889, 2
      %v2207 = vsel %vm2024, %v2204, %v2206
      %v2208 = vrot.slane %v1890, 2
      %v2209 = vsel %vm2024, %v2206, %v2208
      %v2210 = vrot.slane %v1891, 2
      %v2211 = vsel %vm2024, %v2208, %v2210
      %v2212 = vrot.slane %v1892, 2
      %v2213 = vsel %vm2024, %v2210, %v2212
      %v2214 = vrot.slane %v1893, 2
      %v2215 = vsel %vm2024, %v2212, %v2214
      %v2216 = vrot.slane %v1894, 2
      %v2217 = vsel %vm2024, %v2214, %v2216
      %v2218 = vrot.slane %v1895, 2
      %v2219 = vsel %vm2024, %v2216, %v2218
      %v2220 = vrot.slane %v1896, 2
      %v2221 = vsel %vm2024, %v2218, %v2220
      %v2222 = vrot.slane %v1897, 2
      %v2223 = vsel %vm2024, %v2220, %v2222
      %v2224 = vrot.slane %v1898, 2
      %v2225 = vsel %vm2024, %v2222, %v2224
      %v2226 = vrot.slane %v1899, 2
      %v2227 = vsel %vm2024, %v2224, %v2226
      %v2228 = vrot.slane %v1900, 2
      %v2229 = vsel %vm2024, %v2226, %v2228
      %v2230 = vrot.slane %v1901, 2
      %v2231 = vsel %vm2024, %v2228, %v2230
      %v2232 = vrot.slane %v1902, 2
      %v2233 = vsel %vm2024, %v2230, %v2232
      %v2234 = vrot.slane %v1903, 2
      %v2235 = vsel %vm2024, %v2232, %v2234
      %v2236 = vrot.slane %v1904, 2
      %v2237 = vsel %vm2024, %v2234, %v2236
      %v2238 = vrot.slane %v1905, 2
      %v2239 = vsel %vm2024, %v2236, %v2238
      %v2240 = vrot.slane %v1906, 2
      %v2241 = vsel %vm2024, %v2238, %v2240
      %v2242 = vrot.slane %v1907, 2
      %v2243 = vsel %vm2024, %v2240, %v2242
      %v2244 = vrot.slane %v1908, 2
      %v2245 = vsel %vm2024, %v2242, %v2244
      %v2246 = vrot.slane %v1909, 2
      %v2247 = vsel %vm2024, %v2244, %v2246
      %v2248 = vrot.slane %v1910, 2
      %v2249 = vsel %vm2024, %v2246, %v2248
      %v2362 = vadd.f32 %v1682, %v2027
      %v2363 = vadd.f32 %v1683, %v2029
      %v2364 = vadd.f32 %v1684, %v2031
      %v2365 = vadd.f32 %v1685, %v2033
      %v2366 = vadd.f32 %v1686, %v2035
      %v2367 = vadd.f32 %v1687, %v2037
      %v2368 = vadd.f32 %v1688, %v2039
      %v2369 = vadd.f32 %v1689, %v2041
      %v2370 = vadd.f32 %v1690, %v2043
      %v2371 = vadd.f32 %v1691, %v2045
      %v2372 = vadd.f32 %v1692, %v2047
      %v2373 = vadd.f32 %v1693, %v2049
      %v2374 = vadd.f32 %v1694, %v2051
      %v2375 = vadd.f32 %v1695, %v2053
      %v2376 = vadd.f32 %v1696, %v2055
      %v2377 = vadd.f32 %v1697, %v2057
      %v2378 = vadd.f32 %v1698, %v2059
      %v2379 = vadd.f32 %v1699, %v2061
      %v2380 = vadd.f32 %v1700, %v2063
      %v2381 = vadd.f32 %v1701, %v2065
      %v2382 = vadd.f32 %v1702, %v2067
      %v2383 = vadd.f32 %v1703, %v2069
      %v2384 = vadd.f32 %v1704, %v2071
      %v2385 = vadd.f32 %v1705, %v2073
      %v2386 = vadd.f32 %v1706, %v2075
      %v2387 = vadd.f32 %v1707, %v2077
      %v2388 = vadd.f32 %v1708, %v2079
      %v2389 = vadd.f32 %v1709, %v2081
      %v2390 = vadd.f32 %v1710, %v2083
      %v2391 = vadd.f32 %v1711, %v2085
      %v2392 = vadd.f32 %v1712, %v2087
      %v2393 = vadd.f32 %v1713, %v2089
      %v2394 = vadd.f32 %v1714, %v2091
      %v2395 = vadd.f32 %v1715, %v2093
      %v2396 = vadd.f32 %v1716, %v2095
      %v2397 = vadd.f32 %v1717, %v2097
      %v2398 = vadd.f32 %v1718, %v2099
      %v2399 = vadd.f32 %v1719, %v2101
      %v2400 = vadd.f32 %v1720, %v2103
      %v2401 = vadd.f32 %v1721, %v2105
      %v2402 = vadd.f32 %v1722, %v2107
      %v2403 = vadd.f32 %v1723, %v2109
      %v2404 = vadd.f32 %v1724, %v2111
      %v2405 = vadd.f32 %v1725, %v2113
      %v2406 = vadd.f32 %v1726, %v2115
      %v2407 = vadd.f32 %v1727, %v2117
      %v2408 = vadd.f32 %v1728, %v2119
      %v2409 = vadd.f32 %v1729, %v2121
      %v2410 = vadd.f32 %v1730, %v2123
      %v2411 = vadd.f32 %v1731, %v2125
      %v2412 = vadd.f32 %v1732, %v2127
      %v2413 = vadd.f32 %v1733, %v2129
      %v2414 = vadd.f32 %v1734, %v2131
      %v2415 = vadd.f32 %v1735, %v2133
      %v2416 = vadd.f32 %v1736, %v2135
      %v2417 = vadd.f32 %v1737, %v2137
      %v2418 = vadd.f32 %v1738, %v2139
      %v2419 = vadd.f32 %v1739, %v2141
      %v2420 = vadd.f32 %v1740, %v2143
      %v2421 = vadd.f32 %v1741, %v2145
      %v2422 = vadd.f32 %v1742, %v2147
      %v2423 = vadd.f32 %v1743, %v2149
      %v2424 = vadd.f32 %v1744, %v2151
      %v2425 = vadd.f32 %v1745, %v2153
      %v2426 = vadd.f32 %v1746, %v2155
      %v2427 = vadd.f32 %v1747, %v2157
      %v2428 = vadd.f32 %v1748, %v2159
      %v2429 = vadd.f32 %v1749, %v2161
      %v2430 = vadd.f32 %v1750, %v2163
      %v2431 = vadd.f32 %v1751, %v2165
      %v2432 = vadd.f32 %v1752, %v2167
      %v2433 = vadd.f32 %v1753, %v2169
      %v2434 = vadd.f32 %v1754, %v2171
      %v2435 = vadd.f32 %v1755, %v2173
      %v2436 = vadd.f32 %v1756, %v2175
      %v2437 = vadd.f32 %v1757, %v2177
      %v2438 = vadd.f32 %v1758, %v2179
      %v2439 = vadd.f32 %v1759, %v2181
      %v2440 = vadd.f32 %v1760, %v2183
      %v2441 = vadd.f32 %v1761, %v2185
      %v2442 = vadd.f32 %v1762, %v2187
      %v2443 = vadd.f32 %v1763, %v2189
      %v2444 = vadd.f32 %v1764, %v2191
      %v2445 = vadd.f32 %v1765, %v2193
      %v2446 = vadd.f32 %v1766, %v2195
      %v2447 = vadd.f32 %v1767, %v2197
      %v2448 = vadd.f32 %v1768, %v2199
      %v2449 = vadd.f32 %v1769, %v2201
      %v2450 = vadd.f32 %v1770, %v2203
      %v2451 = vadd.f32 %v1771, %v2205
      %v2452 = vadd.f32 %v1772, %v2207
      %v2453 = vadd.f32 %v1773, %v2209
      %v2454 = vadd.f32 %v1774, %v2211
      %v2455 = vadd.f32 %v1775, %v2213
      %v2456 = vadd.f32 %v1776, %v2215
      %v2457 = vadd.f32 %v1777, %v2217
      %v2458 = vadd.f32 %v1778, %v2219
      %v2459 = vadd.f32 %v1779, %v2221
      %v2460 = vadd.f32 %v1780, %v2223
      %v2461 = vadd.f32 %v1781, %v2225
      %v2462 = vadd.f32 %v1782, %v2227
      %v2463 = vadd.f32 %v1783, %v2229
      %v2464 = vadd.f32 %v1784, %v2231
      %v2465 = vadd.f32 %v1785, %v2233
      %v2466 = vadd.f32 %v1786, %v2235
      %v2467 = vadd.f32 %v1787, %v2237
      %v2468 = vadd.f32 %v1788, %v2239
      %v2469 = vadd.f32 %v1789, %v2241
      %v2470 = vadd.f32 %v1790, %v2243
      %v2471 = vadd.f32 %v1791, %v2245
      %v2472 = vadd.f32 %v1792, %v2247
      %v2473 = vadd.f32 %v1793, %v2249
      %2475 = vset.pattern.permute.xlu0 0
      %2476 = vperm.xlu0 %2475, %v311
      %v2477 = vpop.permute.xlu0 %2476
      %2480 = vset.pattern.permute.xlu0 0
      %2481 = vperm.xlu0 %2480, %v312
      %v2482 = vpop.permute.xlu0 %2481
      %2485 = vset.pattern.permute.xlu0 0
      %2486 = vperm.xlu0 %2485, %v313
      %v2487 = vpop.permute.xlu0 %2486
      %v2489 = vlaneseq
      %v2490 = vshrl.u32 %v2489, 7
      %v2491 = vsub.s32 3, %v2490
      %v2492 = vrot.slane %v319, %v2491
      %v2493 = vmul.f32 %v344, %v2492
      %v2494 = vmul.f32 %v349, %v2492
      %v2495 = vmul.f32 %v354, %v2492
      %v2496 = vmul.f32 %v359, %v2492
      %v2497 = vmul.f32 %v364, %v2492
      %v2498 = vmul.f32 %v369, %v2492
      %v2499 = vmul.f32 %v374, %v2492
      %v2500 = vmul.f32 %v379, %v2492
      %v2501 = vmul.f32 %v384, %v2492
      %v2502 = vmul.f32 %v389, %v2492
      %v2503 = vmul.f32 %v394, %v2492
      %v2504 = vmul.f32 %v399, %v2492
      %v2505 = vmul.f32 %v404, %v2492
      %v2506 = vmul.f32 %v409, %v2492
      %v2507 = vmul.f32 %v414, %v2492
      %v2508 = vmul.f32 %v419, %v2492
      %v2509 = vmul.f32 %v424, %v2492
      %v2510 = vmul.f32 %v429, %v2492
      %v2511 = vmul.f32 %v434, %v2492
      %v2512 = vmul.f32 %v439, %v2492
      %v2513 = vmul.f32 %v444, %v2492
      %v2514 = vmul.f32 %v449, %v2492
      %v2515 = vmul.f32 %v454, %v2492
      %v2516 = vmul.f32 %v459, %v2492
      %v2517 = vmul.f32 %v464, %v2492
      %v2518 = vmul.f32 %v469, %v2492
      %v2519 = vmul.f32 %v474, %v2492
      %v2520 = vmul.f32 %v479, %v2492
      %v2521 = vmul.f32 %v484, %v2492
      %v2522 = vmul.f32 %v489, %v2492
      %v2523 = vmul.f32 %v494, %v2492
      %v2524 = vmul.f32 %v499, %v2492
      %v2525 = vmul.f32 %v504, %v2492
      %v2526 = vmul.f32 %v509, %v2492
      %v2527 = vmul.f32 %v514, %v2492
      %v2528 = vmul.f32 %v519, %v2492
      %v2529 = vmul.f32 %v524, %v2492
      %v2530 = vmul.f32 %v529, %v2492
      %v2531 = vmul.f32 %v534, %v2492
      %v2532 = vmul.f32 %v539, %v2492
      %v2533 = vmul.f32 %v544, %v2492
      %v2534 = vmul.f32 %v549, %v2492
      %v2535 = vmul.f32 %v554, %v2492
      %v2536 = vmul.f32 %v559, %v2492
      %v2537 = vmul.f32 %v564, %v2492
      %v2538 = vmul.f32 %v569, %v2492
      %v2539 = vmul.f32 %v574, %v2492
      %v2540 = vmul.f32 %v579, %v2492
      %v2541 = vmul.f32 %v584, %v2492
      %v2542 = vmul.f32 %v589, %v2492
      %v2543 = vmul.f32 %v594, %v2492
      %v2544 = vmul.f32 %v599, %v2492
      %v2545 = vmul.f32 %v604, %v2492
      %v2546 = vmul.f32 %v609, %v2492
      %v2547 = vmul.f32 %v614, %v2492
      %v2548 = vmul.f32 %v619, %v2492
      %v2549 = vmul.f32 %v624, %v2492
      %v2550 = vmul.f32 %v629, %v2492
      %v2551 = vmul.f32 %v634, %v2492
      %v2552 = vmul.f32 %v639, %v2492
      %v2553 = vmul.f32 %v644, %v2492
      %v2554 = vmul.f32 %v649, %v2492
      %v2555 = vmul.f32 %v654, %v2492
      %v2556 = vmul.f32 %v659, %v2492
      %v2557 = vmul.f32 %v664, %v2492
      %v2558 = vmul.f32 %v669, %v2492
      %v2559 = vmul.f32 %v674, %v2492
      %v2560 = vmul.f32 %v679, %v2492
      %v2561 = vmul.f32 %v684, %v2492
      %v2562 = vmul.f32 %v689, %v2492
      %v2563 = vmul.f32 %v694, %v2492
      %v2564 = vmul.f32 %v699, %v2492
      %v2565 = vmul.f32 %v704, %v2492
      %v2566 = vmul.f32 %v709, %v2492
      %v2567 = vmul.f32 %v714, %v2492
      %v2568 = vmul.f32 %v719, %v2492
      %v2569 = vmul.f32 %v724, %v2492
      %v2570 = vmul.f32 %v729, %v2492
      %v2571 = vmul.f32 %v734, %v2492
      %v2572 = vmul.f32 %v739, %v2492
      %v2573 = vmul.f32 %v744, %v2492
      %v2574 = vmul.f32 %v749, %v2492
      %v2575 = vmul.f32 %v754, %v2492
      %v2576 = vmul.f32 %v759, %v2492
      %v2577 = vmul.f32 %v764, %v2492
      %v2578 = vmul.f32 %v769, %v2492
      %v2579 = vmul.f32 %v774, %v2492
      %v2580 = vmul.f32 %v779, %v2492
      %v2581 = vmul.f32 %v784, %v2492
      %v2582 = vmul.f32 %v789, %v2492
      %v2583 = vmul.f32 %v794, %v2492
      %v2584 = vmul.f32 %v799, %v2492
      %v2585 = vmul.f32 %v804, %v2492
      %v2586 = vmul.f32 %v809, %v2492
      %v2587 = vmul.f32 %v814, %v2492
      %v2588 = vmul.f32 %v819, %v2492
      %v2589 = vmul.f32 %v824, %v2492
      %v2590 = vmul.f32 %v829, %v2492
      %v2591 = vmul.f32 %v834, %v2492
      %v2592 = vmul.f32 %v839, %v2492
      %v2593 = vmul.f32 %v844, %v2492
      %v2594 = vmul.f32 %v849, %v2492
      %v2595 = vmul.f32 %v854, %v2492
      %v2596 = vmul.f32 %v859, %v2492
      %v2597 = vmul.f32 %v864, %v2492
      %v2598 = vmul.f32 %v869, %v2492
      %v2599 = vmul.f32 %v874, %v2492
      %v2600 = vmul.f32 %v879, %v2492
      %v2601 = vmul.f32 %v1112, %v2492
      %v2602 = vmul.f32 %v2477, %v2492
      %v2603 = vmul.f32 %v2482, %v2492
      %v2604 = vmul.f32 %v2487, %v2492
      %v2605 = vadd.f32 %v2362, %v2493
      %v2606 = vadd.f32 %v2363, %v2494
      %v2607 = vadd.f32 %v2364, %v2495
      %v2608 = vadd.f32 %v2365, %v2496
      %v2609 = vadd.f32 %v2366, %v2497
      %v2610 = vadd.f32 %v2367, %v2498
      %v2611 = vadd.f32 %v2368, %v2499
      %v2612 = vadd.f32 %v2369, %v2500
      %v2613 = vadd.f32 %v2370, %v2501
      %v2614 = vadd.f32 %v2371, %v2502
      %v2615 = vadd.f32 %v2372, %v2503
      %v2616 = vadd.f32 %v2373, %v2504
      %v2617 = vadd.f32 %v2374, %v2505
      %v2618 = vadd.f32 %v2375, %v2506
      %v2619 = vadd.f32 %v2376, %v2507
      %v2620 = vadd.f32 %v2377, %v2508
      %v2621 = vadd.f32 %v2378, %v2509
      %v2622 = vadd.f32 %v2379, %v2510
      %v2623 = vadd.f32 %v2380, %v2511
      %v2624 = vadd.f32 %v2381, %v2512
      %v2625 = vadd.f32 %v2382, %v2513
      %v2626 = vadd.f32 %v2383, %v2514
      %v2627 = vadd.f32 %v2384, %v2515
      %v2628 = vadd.f32 %v2385, %v2516
      %v2629 = vadd.f32 %v2386, %v2517
      %v2630 = vadd.f32 %v2387, %v2518
      %v2631 = vadd.f32 %v2388, %v2519
      %v2632 = vadd.f32 %v2389, %v2520
      %v2633 = vadd.f32 %v2390, %v2521
      %v2634 = vadd.f32 %v2391, %v2522
      %v2635 = vadd.f32 %v2392, %v2523
      %v2636 = vadd.f32 %v2393, %v2524
      %v2637 = vadd.f32 %v2394, %v2525
      %v2638 = vadd.f32 %v2395, %v2526
      %v2639 = vadd.f32 %v2396, %v2527
      %v2640 = vadd.f32 %v2397, %v2528
      %v2641 = vadd.f32 %v2398, %v2529
      %v2642 = vadd.f32 %v2399, %v2530
      %v2643 = vadd.f32 %v2400, %v2531
      %v2644 = vadd.f32 %v2401, %v2532
      %v2645 = vadd.f32 %v2402, %v2533
      %v2646 = vadd.f32 %v2403, %v2534
      %v2647 = vadd.f32 %v2404, %v2535
      %v2648 = vadd.f32 %v2405, %v2536
      %v2649 = vadd.f32 %v2406, %v2537
      %v2650 = vadd.f32 %v2407, %v2538
      %v2651 = vadd.f32 %v2408, %v2539
      %v2652 = vadd.f32 %v2409, %v2540
      %v2653 = vadd.f32 %v2410, %v2541
      %v2654 = vadd.f32 %v2411, %v2542
      %v2655 = vadd.f32 %v2412, %v2543
      %v2656 = vadd.f32 %v2413, %v2544
      %v2657 = vadd.f32 %v2414, %v2545
      %v2658 = vadd.f32 %v2415, %v2546
      %v2659 = vadd.f32 %v2416, %v2547
      %v2660 = vadd.f32 %v2417, %v2548
      %v2661 = vadd.f32 %v2418, %v2549
      %v2662 = vadd.f32 %v2419, %v2550
      %v2663 = vadd.f32 %v2420, %v2551
      %v2664 = vadd.f32 %v2421, %v2552
      %v2665 = vadd.f32 %v2422, %v2553
      %v2666 = vadd.f32 %v2423, %v2554
      %v2667 = vadd.f32 %v2424, %v2555
      %v2668 = vadd.f32 %v2425, %v2556
      %v2669 = vadd.f32 %v2426, %v2557
      %v2670 = vadd.f32 %v2427, %v2558
      %v2671 = vadd.f32 %v2428, %v2559
      %v2672 = vadd.f32 %v2429, %v2560
      %v2673 = vadd.f32 %v2430, %v2561
      %v2674 = vadd.f32 %v2431, %v2562
      %v2675 = vadd.f32 %v2432, %v2563
      %v2676 = vadd.f32 %v2433, %v2564
      %v2677 = vadd.f32 %v2434, %v2565
      %v2678 = vadd.f32 %v2435, %v2566
      %v2679 = vadd.f32 %v2436, %v2567
      %v2680 = vadd.f32 %v2437, %v2568
      %v2681 = vadd.f32 %v2438, %v2569
      %v2682 = vadd.f32 %v2439, %v2570
      %v2683 = vadd.f32 %v2440, %v2571
      %v2684 = vadd.f32 %v2441, %v2572
      %v2685 = vadd.f32 %v2442, %v2573
      %v2686 = vadd.f32 %v2443, %v2574
      %v2687 = vadd.f32 %v2444, %v2575
      %v2688 = vadd.f32 %v2445, %v2576
      %v2689 = vadd.f32 %v2446, %v2577
      %v2690 = vadd.f32 %v2447, %v2578
      %v2691 = vadd.f32 %v2448, %v2579
      %v2692 = vadd.f32 %v2449, %v2580
      %v2693 = vadd.f32 %v2450, %v2581
      %v2694 = vadd.f32 %v2451, %v2582
      %v2695 = vadd.f32 %v2452, %v2583
      %v2696 = vadd.f32 %v2453, %v2584
      %v2697 = vadd.f32 %v2454, %v2585
      %v2698 = vadd.f32 %v2455, %v2586
      %v2699 = vadd.f32 %v2456, %v2587
      %v2700 = vadd.f32 %v2457, %v2588
      %v2701 = vadd.f32 %v2458, %v2589
      %v2702 = vadd.f32 %v2459, %v2590
      %v2703 = vadd.f32 %v2460, %v2591
      %v2704 = vadd.f32 %v2461, %v2592
      %v2705 = vadd.f32 %v2462, %v2593
      %v2706 = vadd.f32 %v2463, %v2594
      %v2707 = vadd.f32 %v2464, %v2595
      %v2708 = vadd.f32 %v2465, %v2596
      %v2709 = vadd.f32 %v2466, %v2597
      %v2710 = vadd.f32 %v2467, %v2598
      %v2711 = vadd.f32 %v2468, %v2599
      %v2712 = vadd.f32 %v2469, %v2600
      %v2713 = vadd.f32 %v2470, %v2601
      %v2714 = vadd.f32 %v2471, %v2602
      %v2715 = vadd.f32 %v2472, %v2603
      %v2716 = vadd.f32 %v2473, %v2604
      %2718 = vset.pattern.permute.xlu0 0
      %2719 = vperm.xlu0 %2718, %v314
      %v2720 = vpop.permute.xlu0 %2719
      %v2722 = vlaneseq
      %v2723 = vshrl.u32 %v2722, 7
      %v2724 = vsub.s32 4, %v2723
      %v2725 = vrot.slane %v319, %v2724
      %v2726 = vmul.f32 %v344, %v2725
      %v2727 = vmul.f32 %v349, %v2725
      %v2728 = vmul.f32 %v354, %v2725
      %v2729 = vmul.f32 %v359, %v2725
      %v2730 = vmul.f32 %v364, %v2725
      %v2731 = vmul.f32 %v369, %v2725
      %v2732 = vmul.f32 %v374, %v2725
      %v2733 = vmul.f32 %v379, %v2725
      %v2734 = vmul.f32 %v384, %v2725
      %v2735 = vmul.f32 %v389, %v2725
      %v2736 = vmul.f32 %v394, %v2725
      %v2737 = vmul.f32 %v399, %v2725
      %v2738 = vmul.f32 %v404, %v2725
      %v2739 = vmul.f32 %v409, %v2725
      %v2740 = vmul.f32 %v414, %v2725
      %v2741 = vmul.f32 %v419, %v2725
      %v2742 = vmul.f32 %v424, %v2725
      %v2743 = vmul.f32 %v429, %v2725
      %v2744 = vmul.f32 %v434, %v2725
      %v2745 = vmul.f32 %v439, %v2725
      %v2746 = vmul.f32 %v444, %v2725
      %v2747 = vmul.f32 %v449, %v2725
      %v2748 = vmul.f32 %v454, %v2725
      %v2749 = vmul.f32 %v459, %v2725
      %v2750 = vmul.f32 %v464, %v2725
      %v2751 = vmul.f32 %v469, %v2725
      %v2752 = vmul.f32 %v474, %v2725
      %v2753 = vmul.f32 %v479, %v2725
      %v2754 = vmul.f32 %v484, %v2725
      %v2755 = vmul.f32 %v489, %v2725
      %v2756 = vmul.f32 %v494, %v2725
      %v2757 = vmul.f32 %v499, %v2725
      %v2758 = vmul.f32 %v504, %v2725
      %v2759 = vmul.f32 %v509, %v2725
      %v2760 = vmul.f32 %v514, %v2725
      %v2761 = vmul.f32 %v519, %v2725
      %v2762 = vmul.f32 %v524, %v2725
      %v2763 = vmul.f32 %v529, %v2725
      %v2764 = vmul.f32 %v534, %v2725
      %v2765 = vmul.f32 %v539, %v2725
      %v2766 = vmul.f32 %v544, %v2725
      %v2767 = vmul.f32 %v549, %v2725
      %v2768 = vmul.f32 %v554, %v2725
      %v2769 = vmul.f32 %v559, %v2725
      %v2770 = vmul.f32 %v564, %v2725
      %v2771 = vmul.f32 %v569, %v2725
      %v2772 = vmul.f32 %v574, %v2725
      %v2773 = vmul.f32 %v579, %v2725
      %v2774 = vmul.f32 %v584, %v2725
      %v2775 = vmul.f32 %v589, %v2725
      %v2776 = vmul.f32 %v594, %v2725
      %v2777 = vmul.f32 %v599, %v2725
      %v2778 = vmul.f32 %v604, %v2725
      %v2779 = vmul.f32 %v609, %v2725
      %v2780 = vmul.f32 %v614, %v2725
      %v2781 = vmul.f32 %v619, %v2725
      %v2782 = vmul.f32 %v624, %v2725
      %v2783 = vmul.f32 %v629, %v2725
      %v2784 = vmul.f32 %v634, %v2725
      %v2785 = vmul.f32 %v639, %v2725
      %v2786 = vmul.f32 %v644, %v2725
      %v2787 = vmul.f32 %v649, %v2725
      %v2788 = vmul.f32 %v654, %v2725
      %v2789 = vmul.f32 %v659, %v2725
      %v2790 = vmul.f32 %v664, %v2725
      %v2791 = vmul.f32 %v669, %v2725
      %v2792 = vmul.f32 %v674, %v2725
      %v2793 = vmul.f32 %v679, %v2725
      %v2794 = vmul.f32 %v684, %v2725
      %v2795 = vmul.f32 %v689, %v2725
      %v2796 = vmul.f32 %v694, %v2725
      %v2797 = vmul.f32 %v699, %v2725
      %v2798 = vmul.f32 %v704, %v2725
      %v2799 = vmul.f32 %v709, %v2725
      %v2800 = vmul.f32 %v714, %v2725
      %v2801 = vmul.f32 %v719, %v2725
      %v2802 = vmul.f32 %v724, %v2725
      %v2803 = vmul.f32 %v729, %v2725
      %v2804 = vmul.f32 %v734, %v2725
      %v2805 = vmul.f32 %v739, %v2725
      %v2806 = vmul.f32 %v744, %v2725
      %v2807 = vmul.f32 %v749, %v2725
      %v2808 = vmul.f32 %v754, %v2725
      %v2809 = vmul.f32 %v759, %v2725
      %v2810 = vmul.f32 %v764, %v2725
      %v2811 = vmul.f32 %v769, %v2725
      %v2812 = vmul.f32 %v774, %v2725
      %v2813 = vmul.f32 %v779, %v2725
      %v2814 = vmul.f32 %v784, %v2725
      %v2815 = vmul.f32 %v789, %v2725
      %v2816 = vmul.f32 %v794, %v2725
      %v2817 = vmul.f32 %v799, %v2725
      %v2818 = vmul.f32 %v804, %v2725
      %v2819 = vmul.f32 %v809, %v2725
      %v2820 = vmul.f32 %v814, %v2725
      %v2821 = vmul.f32 %v819, %v2725
      %v2822 = vmul.f32 %v824, %v2725
      %v2823 = vmul.f32 %v829, %v2725
      %v2824 = vmul.f32 %v834, %v2725
      %v2825 = vmul.f32 %v839, %v2725
      %v2826 = vmul.f32 %v844, %v2725
      %v2827 = vmul.f32 %v849, %v2725
      %v2828 = vmul.f32 %v854, %v2725
      %v2829 = vmul.f32 %v859, %v2725
      %v2830 = vmul.f32 %v864, %v2725
      %v2831 = vmul.f32 %v869, %v2725
      %v2832 = vmul.f32 %v874, %v2725
      %v2833 = vmul.f32 %v879, %v2725
      %v2834 = vmul.f32 %v1112, %v2725
      %v2835 = vmul.f32 %v2477, %v2725
      %v2836 = vmul.f32 %v2482, %v2725
      %v2837 = vmul.f32 %v2487, %v2725
      %v2838 = vmul.f32 %v2720, %v2725
      %v2952 = vrot.slane %v2726, 1
      %v2953 = vrot.slane %v2727, 1
      %v2954 = vsel %vm1344, %v2952, %v2953
      %v2955 = vrot.slane %v2728, 1
      %v2956 = vsel %vm1344, %v2953, %v2955
      %v2957 = vrot.slane %v2729, 1
      %v2958 = vsel %vm1344, %v2955, %v2957
      %v2959 = vrot.slane %v2730, 1
      %v2960 = vsel %vm1344, %v2957, %v2959
      %v2961 = vrot.slane %v2731, 1
      %v2962 = vsel %vm1344, %v2959, %v2961
      %v2963 = vrot.slane %v2732, 1
      %v2964 = vsel %vm1344, %v2961, %v2963
      %v2965 = vrot.slane %v2733, 1
      %v2966 = vsel %vm1344, %v2963, %v2965
      %v2967 = vrot.slane %v2734, 1
      %v2968 = vsel %vm1344, %v2965, %v2967
      %v2969 = vrot.slane %v2735, 1
      %v2970 = vsel %vm1344, %v2967, %v2969
      %v2971 = vrot.slane %v2736, 1
      %v2972 = vsel %vm1344, %v2969, %v2971
      %v2973 = vrot.slane %v2737, 1
      %v2974 = vsel %vm1344, %v2971, %v2973
      %v2975 = vrot.slane %v2738, 1
      %v2976 = vsel %vm1344, %v2973, %v2975
      %v2977 = vrot.slane %v2739, 1
      %v2978 = vsel %vm1344, %v2975, %v2977
      %v2979 = vrot.slane %v2740, 1
      %v2980 = vsel %vm1344, %v2977, %v2979
      %v2981 = vrot.slane %v2741, 1
      %v2982 = vsel %vm1344, %v2979, %v2981
      %v2983 = vrot.slane %v2742, 1
      %v2984 = vsel %vm1344, %v2981, %v2983
      %v2985 = vrot.slane %v2743, 1
      %v2986 = vsel %vm1344, %v2983, %v2985
      %v2987 = vrot.slane %v2744, 1
      %v2988 = vsel %vm1344, %v2985, %v2987
      %v2989 = vrot.slane %v2745, 1
      %v2990 = vsel %vm1344, %v2987, %v2989
      %v2991 = vrot.slane %v2746, 1
      %v2992 = vsel %vm1344, %v2989, %v2991
      %v2993 = vrot.slane %v2747, 1
      %v2994 = vsel %vm1344, %v2991, %v2993
      %v2995 = vrot.slane %v2748, 1
      %v2996 = vsel %vm1344, %v2993, %v2995
      %v2997 = vrot.slane %v2749, 1
      %v2998 = vsel %vm1344, %v2995, %v2997
      %v2999 = vrot.slane %v2750, 1
      %v3000 = vsel %vm1344, %v2997, %v2999
      %v3001 = vrot.slane %v2751, 1
      %v3002 = vsel %vm1344, %v2999, %v3001
      %v3003 = vrot.slane %v2752, 1
      %v3004 = vsel %vm1344, %v3001, %v3003
      %v3005 = vrot.slane %v2753, 1
      %v3006 = vsel %vm1344, %v3003, %v3005
      %v3007 = vrot.slane %v2754, 1
      %v3008 = vsel %vm1344, %v3005, %v3007
      %v3009 = vrot.slane %v2755, 1
      %v3010 = vsel %vm1344, %v3007, %v3009
      %v3011 = vrot.slane %v2756, 1
      %v3012 = vsel %vm1344, %v3009, %v3011
      %v3013 = vrot.slane %v2757, 1
      %v3014 = vsel %vm1344, %v3011, %v3013
      %v3015 = vrot.slane %v2758, 1
      %v3016 = vsel %vm1344, %v3013, %v3015
      %v3017 = vrot.slane %v2759, 1
      %v3018 = vsel %vm1344, %v3015, %v3017
      %v3019 = vrot.slane %v2760, 1
      %v3020 = vsel %vm1344, %v3017, %v3019
      %v3021 = vrot.slane %v2761, 1
      %v3022 = vsel %vm1344, %v3019, %v3021
      %v3023 = vrot.slane %v2762, 1
      %v3024 = vsel %vm1344, %v3021, %v3023
      %v3025 = vrot.slane %v2763, 1
      %v3026 = vsel %vm1344, %v3023, %v3025
      %v3027 = vrot.slane %v2764, 1
      %v3028 = vsel %vm1344, %v3025, %v3027
      %v3029 = vrot.slane %v2765, 1
      %v3030 = vsel %vm1344, %v3027, %v3029
      %v3031 = vrot.slane %v2766, 1
      %v3032 = vsel %vm1344, %v3029, %v3031
      %v3033 = vrot.slane %v2767, 1
      %v3034 = vsel %vm1344, %v3031, %v3033
      %v3035 = vrot.slane %v2768, 1
      %v3036 = vsel %vm1344, %v3033, %v3035
      %v3037 = vrot.slane %v2769, 1
      %v3038 = vsel %vm1344, %v3035, %v3037
      %v3039 = vrot.slane %v2770, 1
      %v3040 = vsel %vm1344, %v3037, %v3039
      %v3041 = vrot.slane %v2771, 1
      %v3042 = vsel %vm1344, %v3039, %v3041
      %v3043 = vrot.slane %v2772, 1
      %v3044 = vsel %vm1344, %v3041, %v3043
      %v3045 = vrot.slane %v2773, 1
      %v3046 = vsel %vm1344, %v3043, %v3045
      %v3047 = vrot.slane %v2774, 1
      %v3048 = vsel %vm1344, %v3045, %v3047
      %v3049 = vrot.slane %v2775, 1
      %v3050 = vsel %vm1344, %v3047, %v3049
      %v3051 = vrot.slane %v2776, 1
      %v3052 = vsel %vm1344, %v3049, %v3051
      %v3053 = vrot.slane %v2777, 1
      %v3054 = vsel %vm1344, %v3051, %v3053
      %v3055 = vrot.slane %v2778, 1
      %v3056 = vsel %vm1344, %v3053, %v3055
      %v3057 = vrot.slane %v2779, 1
      %v3058 = vsel %vm1344, %v3055, %v3057
      %v3059 = vrot.slane %v2780, 1
      %v3060 = vsel %vm1344, %v3057, %v3059
      %v3061 = vrot.slane %v2781, 1
      %v3062 = vsel %vm1344, %v3059, %v3061
      %v3063 = vrot.slane %v2782, 1
      %v3064 = vsel %vm1344, %v3061, %v3063
      %v3065 = vrot.slane %v2783, 1
      %v3066 = vsel %vm1344, %v3063, %v3065
      %v3067 = vrot.slane %v2784, 1
      %v3068 = vsel %vm1344, %v3065, %v3067
      %v3069 = vrot.slane %v2785, 1
      %v3070 = vsel %vm1344, %v3067, %v3069
      %v3071 = vrot.slane %v2786, 1
      %v3072 = vsel %vm1344, %v3069, %v3071
      %v3073 = vrot.slane %v2787, 1
      %v3074 = vsel %vm1344, %v3071, %v3073
      %v3075 = vrot.slane %v2788, 1
      %v3076 = vsel %vm1344, %v3073, %v3075
      %v3077 = vrot.slane %v2789, 1
      %v3078 = vsel %vm1344, %v3075, %v3077
      %v3079 = vrot.slane %v2790, 1
      %v3080 = vsel %vm1344, %v3077, %v3079
      %v3081 = vrot.slane %v2791, 1
      %v3082 = vsel %vm1344, %v3079, %v3081
      %v3083 = vrot.slane %v2792, 1
      %v3084 = vsel %vm1344, %v3081, %v3083
      %v3085 = vrot.slane %v2793, 1
      %v3086 = vsel %vm1344, %v3083, %v3085
      %v3087 = vrot.slane %v2794, 1
      %v3088 = vsel %vm1344, %v3085, %v3087
      %v3089 = vrot.slane %v2795, 1
      %v3090 = vsel %vm1344, %v3087, %v3089
      %v3091 = vrot.slane %v2796, 1
      %v3092 = vsel %vm1344, %v3089, %v3091
      %v3093 = vrot.slane %v2797, 1
      %v3094 = vsel %vm1344, %v3091, %v3093
      %v3095 = vrot.slane %v2798, 1
      %v3096 = vsel %vm1344, %v3093, %v3095
      %v3097 = vrot.slane %v2799, 1
      %v3098 = vsel %vm1344, %v3095, %v3097
      %v3099 = vrot.slane %v2800, 1
      %v3100 = vsel %vm1344, %v3097, %v3099
      %v3101 = vrot.slane %v2801, 1
      %v3102 = vsel %vm1344, %v3099, %v3101
      %v3103 = vrot.slane %v2802, 1
      %v3104 = vsel %vm1344, %v3101, %v3103
      %v3105 = vrot.slane %v2803, 1
      %v3106 = vsel %vm1344, %v3103, %v3105
      %v3107 = vrot.slane %v2804, 1
      %v3108 = vsel %vm1344, %v3105, %v3107
      %v3109 = vrot.slane %v2805, 1
      %v3110 = vsel %vm1344, %v3107, %v3109
      %v3111 = vrot.slane %v2806, 1
      %v3112 = vsel %vm1344, %v3109, %v3111
      %v3113 = vrot.slane %v2807, 1
      %v3114 = vsel %vm1344, %v3111, %v3113
      %v3115 = vrot.slane %v2808, 1
      %v3116 = vsel %vm1344, %v3113, %v3115
      %v3117 = vrot.slane %v2809, 1
      %v3118 = vsel %vm1344, %v3115, %v3117
      %v3119 = vrot.slane %v2810, 1
      %v3120 = vsel %vm1344, %v3117, %v3119
      %v3121 = vrot.slane %v2811, 1
      %v3122 = vsel %vm1344, %v3119, %v3121
      %v3123 = vrot.slane %v2812, 1
      %v3124 = vsel %vm1344, %v3121, %v3123
      %v3125 = vrot.slane %v2813, 1
      %v3126 = vsel %vm1344, %v3123, %v3125
      %v3127 = vrot.slane %v2814, 1
      %v3128 = vsel %vm1344, %v3125, %v3127
      %v3129 = vrot.slane %v2815, 1
      %v3130 = vsel %vm1344, %v3127, %v3129
      %v3131 = vrot.slane %v2816, 1
      %v3132 = vsel %vm1344, %v3129, %v3131
      %v3133 = vrot.slane %v2817, 1
      %v3134 = vsel %vm1344, %v3131, %v3133
      %v3135 = vrot.slane %v2818, 1
      %v3136 = vsel %vm1344, %v3133, %v3135
      %v3137 = vrot.slane %v2819, 1
      %v3138 = vsel %vm1344, %v3135, %v3137
      %v3139 = vrot.slane %v2820, 1
      %v3140 = vsel %vm1344, %v3137, %v3139
      %v3141 = vrot.slane %v2821, 1
      %v3142 = vsel %vm1344, %v3139, %v3141
      %v3143 = vrot.slane %v2822, 1
      %v3144 = vsel %vm1344, %v3141, %v3143
      %v3145 = vrot.slane %v2823, 1
      %v3146 = vsel %vm1344, %v3143, %v3145
      %v3147 = vrot.slane %v2824, 1
      %v3148 = vsel %vm1344, %v3145, %v3147
      %v3149 = vrot.slane %v2825, 1
      %v3150 = vsel %vm1344, %v3147, %v3149
      %v3151 = vrot.slane %v2826, 1
      %v3152 = vsel %vm1344, %v3149, %v3151
      %v3153 = vrot.slane %v2827, 1
      %v3154 = vsel %vm1344, %v3151, %v3153
      %v3155 = vrot.slane %v2828, 1
      %v3156 = vsel %vm1344, %v3153, %v3155
      %v3157 = vrot.slane %v2829, 1
      %v3158 = vsel %vm1344, %v3155, %v3157
      %v3159 = vrot.slane %v2830, 1
      %v3160 = vsel %vm1344, %v3157, %v3159
      %v3161 = vrot.slane %v2831, 1
      %v3162 = vsel %vm1344, %v3159, %v3161
      %v3163 = vrot.slane %v2832, 1
      %v3164 = vsel %vm1344, %v3161, %v3163
      %v3165 = vrot.slane %v2833, 1
      %v3166 = vsel %vm1344, %v3163, %v3165
      %v3167 = vrot.slane %v2834, 1
      %v3168 = vsel %vm1344, %v3165, %v3167
      %v3169 = vrot.slane %v2835, 1
      %v3170 = vsel %vm1344, %v3167, %v3169
      %v3171 = vrot.slane %v2836, 1
      %v3172 = vsel %vm1344, %v3169, %v3171
      %v3173 = vrot.slane %v2837, 1
      %v3174 = vsel %vm1344, %v3171, %v3173
      %v3175 = vrot.slane %v2838, 1
      %v3176 = vsel %vm1344, %v3173, %v3175
      %v3289 = vadd.f32 %v2605, %v2954
      %v3290 = vadd.f32 %v2606, %v2956
      %v3291 = vadd.f32 %v2607, %v2958
      %v3292 = vadd.f32 %v2608, %v2960
      %v3293 = vadd.f32 %v2609, %v2962
      %v3294 = vadd.f32 %v2610, %v2964
      %v3295 = vadd.f32 %v2611, %v2966
      %v3296 = vadd.f32 %v2612, %v2968
      %v3297 = vadd.f32 %v2613, %v2970
      %v3298 = vadd.f32 %v2614, %v2972
      %v3299 = vadd.f32 %v2615, %v2974
      %v3300 = vadd.f32 %v2616, %v2976
      %v3301 = vadd.f32 %v2617, %v2978
      %v3302 = vadd.f32 %v2618, %v2980
      %v3303 = vadd.f32 %v2619, %v2982
      %v3304 = vadd.f32 %v2620, %v2984
      %v3305 = vadd.f32 %v2621, %v2986
      %v3306 = vadd.f32 %v2622, %v2988
      %v3307 = vadd.f32 %v2623, %v2990
      %v3308 = vadd.f32 %v2624, %v2992
      %v3309 = vadd.f32 %v2625, %v2994
      %v3310 = vadd.f32 %v2626, %v2996
      %v3311 = vadd.f32 %v2627, %v2998
      %v3312 = vadd.f32 %v2628, %v3000
      %v3313 = vadd.f32 %v2629, %v3002
      %v3314 = vadd.f32 %v2630, %v3004
      %v3315 = vadd.f32 %v2631, %v3006
      %v3316 = vadd.f32 %v2632, %v3008
      %v3317 = vadd.f32 %v2633, %v3010
      %v3318 = vadd.f32 %v2634, %v3012
      %v3319 = vadd.f32 %v2635, %v3014
      %v3320 = vadd.f32 %v2636, %v3016
      %v3321 = vadd.f32 %v2637, %v3018
      %v3322 = vadd.f32 %v2638, %v3020
      %v3323 = vadd.f32 %v2639, %v3022
      %v3324 = vadd.f32 %v2640, %v3024
      %v3325 = vadd.f32 %v2641, %v3026
      %v3326 = vadd.f32 %v2642, %v3028
      %v3327 = vadd.f32 %v2643, %v3030
      %v3328 = vadd.f32 %v2644, %v3032
      %v3329 = vadd.f32 %v2645, %v3034
      %v3330 = vadd.f32 %v2646, %v3036
      %v3331 = vadd.f32 %v2647, %v3038
      %v3332 = vadd.f32 %v2648, %v3040
      %v3333 = vadd.f32 %v2649, %v3042
      %v3334 = vadd.f32 %v2650, %v3044
      %v3335 = vadd.f32 %v2651, %v3046
      %v3336 = vadd.f32 %v2652, %v3048
      %v3337 = vadd.f32 %v2653, %v3050
      %v3338 = vadd.f32 %v2654, %v3052
      %v3339 = vadd.f32 %v2655, %v3054
      %v3340 = vadd.f32 %v2656, %v3056
      %v3341 = vadd.f32 %v2657, %v3058
      %v3342 = vadd.f32 %v2658, %v3060
      %v3343 = vadd.f32 %v2659, %v3062
      %v3344 = vadd.f32 %v2660, %v3064
      %v3345 = vadd.f32 %v2661, %v3066
      %v3346 = vadd.f32 %v2662, %v3068
      %v3347 = vadd.f32 %v2663, %v3070
      %v3348 = vadd.f32 %v2664, %v3072
      %v3349 = vadd.f32 %v2665, %v3074
      %v3350 = vadd.f32 %v2666, %v3076
      %v3351 = vadd.f32 %v2667, %v3078
      %v3352 = vadd.f32 %v2668, %v3080
      %v3353 = vadd.f32 %v2669, %v3082
      %v3354 = vadd.f32 %v2670, %v3084
      %v3355 = vadd.f32 %v2671, %v3086
      %v3356 = vadd.f32 %v2672, %v3088
      %v3357 = vadd.f32 %v2673, %v3090
      %v3358 = vadd.f32 %v2674, %v3092
      %v3359 = vadd.f32 %v2675, %v3094
      %v3360 = vadd.f32 %v2676, %v3096
      %v3361 = vadd.f32 %v2677, %v3098
      %v3362 = vadd.f32 %v2678, %v3100
      %v3363 = vadd.f32 %v2679, %v3102
      %v3364 = vadd.f32 %v2680, %v3104
      %v3365 = vadd.f32 %v2681, %v3106
      %v3366 = vadd.f32 %v2682, %v3108
      %v3367 = vadd.f32 %v2683, %v3110
      %v3368 = vadd.f32 %v2684, %v3112
      %v3369 = vadd.f32 %v2685, %v3114
      %v3370 = vadd.f32 %v2686, %v3116
      %v3371 = vadd.f32 %v2687, %v3118
      %v3372 = vadd.f32 %v2688, %v3120
      %v3373 = vadd.f32 %v2689, %v3122
      %v3374 = vadd.f32 %v2690, %v3124
      %v3375 = vadd.f32 %v2691, %v3126
      %v3376 = vadd.f32 %v2692, %v3128
      %v3377 = vadd.f32 %v2693, %v3130
      %v3378 = vadd.f32 %v2694, %v3132
      %v3379 = vadd.f32 %v2695, %v3134
      %v3380 = vadd.f32 %v2696, %v3136
      %v3381 = vadd.f32 %v2697, %v3138
      %v3382 = vadd.f32 %v2698, %v3140
      %v3383 = vadd.f32 %v2699, %v3142
      %v3384 = vadd.f32 %v2700, %v3144
      %v3385 = vadd.f32 %v2701, %v3146
      %v3386 = vadd.f32 %v2702, %v3148
      %v3387 = vadd.f32 %v2703, %v3150
      %v3388 = vadd.f32 %v2704, %v3152
      %v3389 = vadd.f32 %v2705, %v3154
      %v3390 = vadd.f32 %v2706, %v3156
      %v3391 = vadd.f32 %v2707, %v3158
      %v3392 = vadd.f32 %v2708, %v3160
      %v3393 = vadd.f32 %v2709, %v3162
      %v3394 = vadd.f32 %v2710, %v3164
      %v3395 = vadd.f32 %v2711, %v3166
      %v3396 = vadd.f32 %v2712, %v3168
      %v3397 = vadd.f32 %v2713, %v3170
      %v3398 = vadd.f32 %v2714, %v3172
      %v3399 = vadd.f32 %v2715, %v3174
      %v3400 = vadd.f32 %v2716, %v3176
      %v3401 = vlaneseq
      %v3402 = vshrl.u32 %v3401, 7
      %v3403 = vsub.s32 5, %v3402
      %v3404 = vrot.slane %v319, %v3403
      %v3405 = vmul.f32 %v344, %v3404
      %v3406 = vmul.f32 %v349, %v3404
      %v3407 = vmul.f32 %v354, %v3404
      %v3408 = vmul.f32 %v359, %v3404
      %v3409 = vmul.f32 %v364, %v3404
      %v3410 = vmul.f32 %v369, %v3404
      %v3411 = vmul.f32 %v374, %v3404
      %v3412 = vmul.f32 %v379, %v3404
      %v3413 = vmul.f32 %v384, %v3404
      %v3414 = vmul.f32 %v389, %v3404
      %v3415 = vmul.f32 %v394, %v3404
      %v3416 = vmul.f32 %v399, %v3404
      %v3417 = vmul.f32 %v404, %v3404
      %v3418 = vmul.f32 %v409, %v3404
      %v3419 = vmul.f32 %v414, %v3404
      %v3420 = vmul.f32 %v419, %v3404
      %v3421 = vmul.f32 %v424, %v3404
      %v3422 = vmul.f32 %v429, %v3404
      %v3423 = vmul.f32 %v434, %v3404
      %v3424 = vmul.f32 %v439, %v3404
      %v3425 = vmul.f32 %v444, %v3404
      %v3426 = vmul.f32 %v449, %v3404
      %v3427 = vmul.f32 %v454, %v3404
      %v3428 = vmul.f32 %v459, %v3404
      %v3429 = vmul.f32 %v464, %v3404
      %v3430 = vmul.f32 %v469, %v3404
      %v3431 = vmul.f32 %v474, %v3404
      %v3432 = vmul.f32 %v479, %v3404
      %v3433 = vmul.f32 %v484, %v3404
      %v3434 = vmul.f32 %v489, %v3404
      %v3435 = vmul.f32 %v494, %v3404
      %v3436 = vmul.f32 %v499, %v3404
      %v3437 = vmul.f32 %v504, %v3404
      %v3438 = vmul.f32 %v509, %v3404
      %v3439 = vmul.f32 %v514, %v3404
      %v3440 = vmul.f32 %v519, %v3404
      %v3441 = vmul.f32 %v524, %v3404
      %v3442 = vmul.f32 %v529, %v3404
      %v3443 = vmul.f32 %v534, %v3404
      %v3444 = vmul.f32 %v539, %v3404
      %v3445 = vmul.f32 %v544, %v3404
      %v3446 = vmul.f32 %v549, %v3404
      %v3447 = vmul.f32 %v554, %v3404
      %v3448 = vmul.f32 %v559, %v3404
      %v3449 = vmul.f32 %v564, %v3404
      %v3450 = vmul.f32 %v569, %v3404
      %v3451 = vmul.f32 %v574, %v3404
      %v3452 = vmul.f32 %v579, %v3404
      %v3453 = vmul.f32 %v584, %v3404
      %v3454 = vmul.f32 %v589, %v3404
      %v3455 = vmul.f32 %v594, %v3404
      %v3456 = vmul.f32 %v599, %v3404
      %v3457 = vmul.f32 %v604, %v3404
      %v3458 = vmul.f32 %v609, %v3404
      %v3459 = vmul.f32 %v614, %v3404
      %v3460 = vmul.f32 %v619, %v3404
      %v3461 = vmul.f32 %v624, %v3404
      %v3462 = vmul.f32 %v629, %v3404
      %v3463 = vmul.f32 %v634, %v3404
      %v3464 = vmul.f32 %v639, %v3404
      %v3465 = vmul.f32 %v644, %v3404
      %v3466 = vmul.f32 %v649, %v3404
      %v3467 = vmul.f32 %v654, %v3404
      %v3468 = vmul.f32 %v659, %v3404
      %v3469 = vmul.f32 %v664, %v3404
      %v3470 = vmul.f32 %v669, %v3404
      %v3471 = vmul.f32 %v674, %v3404
      %v3472 = vmul.f32 %v679, %v3404
      %v3473 = vmul.f32 %v684, %v3404
      %v3474 = vmul.f32 %v689, %v3404
      %v3475 = vmul.f32 %v694, %v3404
      %v3476 = vmul.f32 %v699, %v3404
      %v3477 = vmul.f32 %v704, %v3404
      %v3478 = vmul.f32 %v709, %v3404
      %v3479 = vmul.f32 %v714, %v3404
      %v3480 = vmul.f32 %v719, %v3404
      %v3481 = vmul.f32 %v724, %v3404
      %v3482 = vmul.f32 %v729, %v3404
      %v3483 = vmul.f32 %v734, %v3404
      %v3484 = vmul.f32 %v739, %v3404
      %v3485 = vmul.f32 %v744, %v3404
      %v3486 = vmul.f32 %v749, %v3404
      %v3487 = vmul.f32 %v754, %v3404
      %v3488 = vmul.f32 %v759, %v3404
      %v3489 = vmul.f32 %v764, %v3404
      %v3490 = vmul.f32 %v769, %v3404
      %v3491 = vmul.f32 %v774, %v3404
      %v3492 = vmul.f32 %v779, %v3404
      %v3493 = vmul.f32 %v784, %v3404
      %v3494 = vmul.f32 %v789, %v3404
      %v3495 = vmul.f32 %v794, %v3404
      %v3496 = vmul.f32 %v799, %v3404
      %v3497 = vmul.f32 %v804, %v3404
      %v3498 = vmul.f32 %v809, %v3404
      %v3499 = vmul.f32 %v814, %v3404
      %v3500 = vmul.f32 %v819, %v3404
      %v3501 = vmul.f32 %v824, %v3404
      %v3502 = vmul.f32 %v829, %v3404
      %v3503 = vmul.f32 %v834, %v3404
      %v3504 = vmul.f32 %v839, %v3404
      %v3505 = vmul.f32 %v844, %v3404
      %v3506 = vmul.f32 %v849, %v3404
      %v3507 = vmul.f32 %v854, %v3404
      %v3508 = vmul.f32 %v859, %v3404
      %v3509 = vmul.f32 %v864, %v3404
      %v3510 = vmul.f32 %v869, %v3404
      %v3511 = vmul.f32 %v874, %v3404
      %v3512 = vmul.f32 %v879, %v3404
      %v3513 = vmul.f32 %v1112, %v3404
      %v3514 = vmul.f32 %v2477, %v3404
      %v3515 = vmul.f32 %v2482, %v3404
      %v3516 = vmul.f32 %v2487, %v3404
      %v3517 = vmul.f32 %v2720, %v3404
      %v3631 = vrot.slane %v3405, 2
      %v3632 = vrot.slane %v3406, 2
      %v3633 = vsel %vm2024, %v3631, %v3632
      %v3634 = vrot.slane %v3407, 2
      %v3635 = vsel %vm2024, %v3632, %v3634
      %v3636 = vrot.slane %v3408, 2
      %v3637 = vsel %vm2024, %v3634, %v3636
      %v3638 = vrot.slane %v3409, 2
      %v3639 = vsel %vm2024, %v3636, %v3638
      %v3640 = vrot.slane %v3410, 2
      %v3641 = vsel %vm2024, %v3638, %v3640
      %v3642 = vrot.slane %v3411, 2
      %v3643 = vsel %vm2024, %v3640, %v3642
      %v3644 = vrot.slane %v3412, 2
      %v3645 = vsel %vm2024, %v3642, %v3644
      %v3646 = vrot.slane %v3413, 2
      %v3647 = vsel %vm2024, %v3644, %v3646
      %v3648 = vrot.slane %v3414, 2
      %v3649 = vsel %vm2024, %v3646, %v3648
      %v3650 = vrot.slane %v3415, 2
      %v3651 = vsel %vm2024, %v3648, %v3650
      %v3652 = vrot.slane %v3416, 2
      %v3653 = vsel %vm2024, %v3650, %v3652
      %v3654 = vrot.slane %v3417, 2
      %v3655 = vsel %vm2024, %v3652, %v3654
      %v3656 = vrot.slane %v3418, 2
      %v3657 = vsel %vm2024, %v3654, %v3656
      %v3658 = vrot.slane %v3419, 2
      %v3659 = vsel %vm2024, %v3656, %v3658
      %v3660 = vrot.slane %v3420, 2
      %v3661 = vsel %vm2024, %v3658, %v3660
      %v3662 = vrot.slane %v3421, 2
      %v3663 = vsel %vm2024, %v3660, %v3662
      %v3664 = vrot.slane %v3422, 2
      %v3665 = vsel %vm2024, %v3662, %v3664
      %v3666 = vrot.slane %v3423, 2
      %v3667 = vsel %vm2024, %v3664, %v3666
      %v3668 = vrot.slane %v3424, 2
      %v3669 = vsel %vm2024, %v3666, %v3668
      %v3670 = vrot.slane %v3425, 2
      %v3671 = vsel %vm2024, %v3668, %v3670
      %v3672 = vrot.slane %v3426, 2
      %v3673 = vsel %vm2024, %v3670, %v3672
      %v3674 = vrot.slane %v3427, 2
      %v3675 = vsel %vm2024, %v3672, %v3674
      %v3676 = vrot.slane %v3428, 2
      %v3677 = vsel %vm2024, %v3674, %v3676
      %v3678 = vrot.slane %v3429, 2
      %v3679 = vsel %vm2024, %v3676, %v3678
      %v3680 = vrot.slane %v3430, 2
      %v3681 = vsel %vm2024, %v3678, %v3680
      %v3682 = vrot.slane %v3431, 2
      %v3683 = vsel %vm2024, %v3680, %v3682
      %v3684 = vrot.slane %v3432, 2
      %v3685 = vsel %vm2024, %v3682, %v3684
      %v3686 = vrot.slane %v3433, 2
      %v3687 = vsel %vm2024, %v3684, %v3686
      %v3688 = vrot.slane %v3434, 2
      %v3689 = vsel %vm2024, %v3686, %v3688
      %v3690 = vrot.slane %v3435, 2
      %v3691 = vsel %vm2024, %v3688, %v3690
      %v3692 = vrot.slane %v3436, 2
      %v3693 = vsel %vm2024, %v3690, %v3692
      %v3694 = vrot.slane %v3437, 2
      %v3695 = vsel %vm2024, %v3692, %v3694
      %v3696 = vrot.slane %v3438, 2
      %v3697 = vsel %vm2024, %v3694, %v3696
      %v3698 = vrot.slane %v3439, 2
      %v3699 = vsel %vm2024, %v3696, %v3698
      %v3700 = vrot.slane %v3440, 2
      %v3701 = vsel %vm2024, %v3698, %v3700
      %v3702 = vrot.slane %v3441, 2
      %v3703 = vsel %vm2024, %v3700, %v3702
      %v3704 = vrot.slane %v3442, 2
      %v3705 = vsel %vm2024, %v3702, %v3704
      %v3706 = vrot.slane %v3443, 2
      %v3707 = vsel %vm2024, %v3704, %v3706
      %v3708 = vrot.slane %v3444, 2
      %v3709 = vsel %vm2024, %v3706, %v3708
      %v3710 = vrot.slane %v3445, 2
      %v3711 = vsel %vm2024, %v3708, %v3710
      %v3712 = vrot.slane %v3446, 2
      %v3713 = vsel %vm2024, %v3710, %v3712
      %v3714 = vrot.slane %v3447, 2
      %v3715 = vsel %vm2024, %v3712, %v3714
      %v3716 = vrot.slane %v3448, 2
      %v3717 = vsel %vm2024, %v3714, %v3716
      %v3718 = vrot.slane %v3449, 2
      %v3719 = vsel %vm2024, %v3716, %v3718
      %v3720 = vrot.slane %v3450, 2
      %v3721 = vsel %vm2024, %v3718, %v3720
      %v3722 = vrot.slane %v3451, 2
      %v3723 = vsel %vm2024, %v3720, %v3722
      %v3724 = vrot.slane %v3452, 2
      %v3725 = vsel %vm2024, %v3722, %v3724
      %v3726 = vrot.slane %v3453, 2
      %v3727 = vsel %vm2024, %v3724, %v3726
      %v3728 = vrot.slane %v3454, 2
      %v3729 = vsel %vm2024, %v3726, %v3728
      %v3730 = vrot.slane %v3455, 2
      %v3731 = vsel %vm2024, %v3728, %v3730
      %v3732 = vrot.slane %v3456, 2
      %v3733 = vsel %vm2024, %v3730, %v3732
      %v3734 = vrot.slane %v3457, 2
      %v3735 = vsel %vm2024, %v3732, %v3734
      %v3736 = vrot.slane %v3458, 2
      %v3737 = vsel %vm2024, %v3734, %v3736
      %v3738 = vrot.slane %v3459, 2
      %v3739 = vsel %vm2024, %v3736, %v3738
      %v3740 = vrot.slane %v3460, 2
      %v3741 = vsel %vm2024, %v3738, %v3740
      %v3742 = vrot.slane %v3461, 2
      %v3743 = vsel %vm2024, %v3740, %v3742
      %v3744 = vrot.slane %v3462, 2
      %v3745 = vsel %vm2024, %v3742, %v3744
      %v3746 = vrot.slane %v3463, 2
      %v3747 = vsel %vm2024, %v3744, %v3746
      %v3748 = vrot.slane %v3464, 2
      %v3749 = vsel %vm2024, %v3746, %v3748
      %v3750 = vrot.slane %v3465, 2
      %v3751 = vsel %vm2024, %v3748, %v3750
      %v3752 = vrot.slane %v3466, 2
      %v3753 = vsel %vm2024, %v3750, %v3752
      %v3754 = vrot.slane %v3467, 2
      %v3755 = vsel %vm2024, %v3752, %v3754
      %v3756 = vrot.slane %v3468, 2
      %v3757 = vsel %vm2024, %v3754, %v3756
      %v3758 = vrot.slane %v3469, 2
      %v3759 = vsel %vm2024, %v3756, %v3758
      %v3760 = vrot.slane %v3470, 2
      %v3761 = vsel %vm2024, %v3758, %v3760
      %v3762 = vrot.slane %v3471, 2
      %v3763 = vsel %vm2024, %v3760, %v3762
      %v3764 = vrot.slane %v3472, 2
      %v3765 = vsel %vm2024, %v3762, %v3764
      %v3766 = vrot.slane %v3473, 2
      %v3767 = vsel %vm2024, %v3764, %v3766
      %v3768 = vrot.slane %v3474, 2
      %v3769 = vsel %vm2024, %v3766, %v3768
      %v3770 = vrot.slane %v3475, 2
      %v3771 = vsel %vm2024, %v3768, %v3770
      %v3772 = vrot.slane %v3476, 2
      %v3773 = vsel %vm2024, %v3770, %v3772
      %v3774 = vrot.slane %v3477, 2
      %v3775 = vsel %vm2024, %v3772, %v3774
      %v3776 = vrot.slane %v3478, 2
      %v3777 = vsel %vm2024, %v3774, %v3776
      %v3778 = vrot.slane %v3479, 2
      %v3779 = vsel %vm2024, %v3776, %v3778
      %v3780 = vrot.slane %v3480, 2
      %v3781 = vsel %vm2024, %v3778, %v3780
      %v3782 = vrot.slane %v3481, 2
      %v3783 = vsel %vm2024, %v3780, %v3782
      %v3784 = vrot.slane %v3482, 2
      %v3785 = vsel %vm2024, %v3782, %v3784
      %v3786 = vrot.slane %v3483, 2
      %v3787 = vsel %vm2024, %v3784, %v3786
      %v3788 = vrot.slane %v3484, 2
      %v3789 = vsel %vm2024, %v3786, %v3788
      %v3790 = vrot.slane %v3485, 2
      %v3791 = vsel %vm2024, %v3788, %v3790
      %v3792 = vrot.slane %v3486, 2
      %v3793 = vsel %vm2024, %v3790, %v3792
      %v3794 = vrot.slane %v3487, 2
      %v3795 = vsel %vm2024, %v3792, %v3794
      %v3796 = vrot.slane %v3488, 2
      %v3797 = vsel %vm2024, %v3794, %v3796
      %v3798 = vrot.slane %v3489, 2
      %v3799 = vsel %vm2024, %v3796, %v3798
      %v3800 = vrot.slane %v3490, 2
      %v3801 = vsel %vm2024, %v3798, %v3800
      %v3802 = vrot.slane %v3491, 2
      %v3803 = vsel %vm2024, %v3800, %v3802
      %v3804 = vrot.slane %v3492, 2
      %v3805 = vsel %vm2024, %v3802, %v3804
      %v3806 = vrot.slane %v3493, 2
      %v3807 = vsel %vm2024, %v3804, %v3806
      %v3808 = vrot.slane %v3494, 2
      %v3809 = vsel %vm2024, %v3806, %v3808
      %v3810 = vrot.slane %v3495, 2
      %v3811 = vsel %vm2024, %v3808, %v3810
      %v3812 = vrot.slane %v3496, 2
      %v3813 = vsel %vm2024, %v3810, %v3812
      %v3814 = vrot.slane %v3497, 2
      %v3815 = vsel %vm2024, %v3812, %v3814
      %v3816 = vrot.slane %v3498, 2
      %v3817 = vsel %vm2024, %v3814, %v3816
      %v3818 = vrot.slane %v3499, 2
      %v3819 = vsel %vm2024, %v3816, %v3818
      %v3820 = vrot.slane %v3500, 2
      %v3821 = vsel %vm2024, %v3818, %v3820
      %v3822 = vrot.slane %v3501, 2
      %v3823 = vsel %vm2024, %v3820, %v3822
      %v3824 = vrot.slane %v3502, 2
      %v3825 = vsel %vm2024, %v3822, %v3824
      %v3826 = vrot.slane %v3503, 2
      %v3827 = vsel %vm2024, %v3824, %v3826
      %v3828 = vrot.slane %v3504, 2
      %v3829 = vsel %vm2024, %v3826, %v3828
      %v3830 = vrot.slane %v3505, 2
      %v3831 = vsel %vm2024, %v3828, %v3830
      %v3832 = vrot.slane %v3506, 2
      %v3833 = vsel %vm2024, %v3830, %v3832
      %v3834 = vrot.slane %v3507, 2
      %v3835 = vsel %vm2024, %v3832, %v3834
      %v3836 = vrot.slane %v3508, 2
      %v3837 = vsel %vm2024, %v3834, %v3836
      %v3838 = vrot.slane %v3509, 2
      %v3839 = vsel %vm2024, %v3836, %v3838
      %v3840 = vrot.slane %v3510, 2
      %v3841 = vsel %vm2024, %v3838, %v3840
      %v3842 = vrot.slane %v3511, 2
      %v3843 = vsel %vm2024, %v3840, %v3842
      %v3844 = vrot.slane %v3512, 2
      %v3845 = vsel %vm2024, %v3842, %v3844
      %v3846 = vrot.slane %v3513, 2
      %v3847 = vsel %vm2024, %v3844, %v3846
      %v3848 = vrot.slane %v3514, 2
      %v3849 = vsel %vm2024, %v3846, %v3848
      %v3850 = vrot.slane %v3515, 2
      %v3851 = vsel %vm2024, %v3848, %v3850
      %v3852 = vrot.slane %v3516, 2
      %v3853 = vsel %vm2024, %v3850, %v3852
      %v3854 = vrot.slane %v3517, 2
      %v3855 = vsel %vm2024, %v3852, %v3854
      %v3968 = vadd.f32 %v3289, %v3633
      %v3969 = vadd.f32 %v3290, %v3635
      %v3970 = vadd.f32 %v3291, %v3637
      %v3971 = vadd.f32 %v3292, %v3639
      %v3972 = vadd.f32 %v3293, %v3641
      %v3973 = vadd.f32 %v3294, %v3643
      %v3974 = vadd.f32 %v3295, %v3645
      %v3975 = vadd.f32 %v3296, %v3647
      %v3976 = vadd.f32 %v3297, %v3649
      %v3977 = vadd.f32 %v3298, %v3651
      %v3978 = vadd.f32 %v3299, %v3653
      %v3979 = vadd.f32 %v3300, %v3655
      %v3980 = vadd.f32 %v3301, %v3657
      %v3981 = vadd.f32 %v3302, %v3659
      %v3982 = vadd.f32 %v3303, %v3661
      %v3983 = vadd.f32 %v3304, %v3663
      %v3984 = vadd.f32 %v3305, %v3665
      %v3985 = vadd.f32 %v3306, %v3667
      %v3986 = vadd.f32 %v3307, %v3669
      %v3987 = vadd.f32 %v3308, %v3671
      %v3988 = vadd.f32 %v3309, %v3673
      %v3989 = vadd.f32 %v3310, %v3675
      %v3990 = vadd.f32 %v3311, %v3677
      %v3991 = vadd.f32 %v3312, %v3679
      %v3992 = vadd.f32 %v3313, %v3681
      %v3993 = vadd.f32 %v3314, %v3683
      %v3994 = vadd.f32 %v3315, %v3685
      %v3995 = vadd.f32 %v3316, %v3687
      %v3996 = vadd.f32 %v3317, %v3689
      %v3997 = vadd.f32 %v3318, %v3691
      %v3998 = vadd.f32 %v3319, %v3693
      %v3999 = vadd.f32 %v3320, %v3695
      %v4000 = vadd.f32 %v3321, %v3697
      %v4001 = vadd.f32 %v3322, %v3699
      %v4002 = vadd.f32 %v3323, %v3701
      %v4003 = vadd.f32 %v3324, %v3703
      %v4004 = vadd.f32 %v3325, %v3705
      %v4005 = vadd.f32 %v3326, %v3707
      %v4006 = vadd.f32 %v3327, %v3709
      %v4007 = vadd.f32 %v3328, %v3711
      %v4008 = vadd.f32 %v3329, %v3713
      %v4009 = vadd.f32 %v3330, %v3715
      %v4010 = vadd.f32 %v3331, %v3717
      %v4011 = vadd.f32 %v3332, %v3719
      %v4012 = vadd.f32 %v3333, %v3721
      %v4013 = vadd.f32 %v3334, %v3723
      %v4014 = vadd.f32 %v3335, %v3725
      %v4015 = vadd.f32 %v3336, %v3727
      %v4016 = vadd.f32 %v3337, %v3729
      %v4017 = vadd.f32 %v3338, %v3731
      %v4018 = vadd.f32 %v3339, %v3733
      %v4019 = vadd.f32 %v3340, %v3735
      %v4020 = vadd.f32 %v3341, %v3737
      %v4021 = vadd.f32 %v3342, %v3739
      %v4022 = vadd.f32 %v3343, %v3741
      %v4023 = vadd.f32 %v3344, %v3743
      %v4024 = vadd.f32 %v3345, %v3745
      %v4025 = vadd.f32 %v3346, %v3747
      %v4026 = vadd.f32 %v3347, %v3749
      %v4027 = vadd.f32 %v3348, %v3751
      %v4028 = vadd.f32 %v3349, %v3753
      %v4029 = vadd.f32 %v3350, %v3755
      %v4030 = vadd.f32 %v3351, %v3757
      %v4031 = vadd.f32 %v3352, %v3759
      %v4032 = vadd.f32 %v3353, %v3761
      %v4033 = vadd.f32 %v3354, %v3763
      %v4034 = vadd.f32 %v3355, %v3765
      %v4035 = vadd.f32 %v3356, %v3767
      %v4036 = vadd.f32 %v3357, %v3769
      %v4037 = vadd.f32 %v3358, %v3771
      %v4038 = vadd.f32 %v3359, %v3773
      %v4039 = vadd.f32 %v3360, %v3775
      %v4040 = vadd.f32 %v3361, %v3777
      %v4041 = vadd.f32 %v3362, %v3779
      %v4042 = vadd.f32 %v3363, %v3781
      %v4043 = vadd.f32 %v3364, %v3783
      %v4044 = vadd.f32 %v3365, %v3785
      %v4045 = vadd.f32 %v3366, %v3787
      %v4046 = vadd.f32 %v3367, %v3789
      %v4047 = vadd.f32 %v3368, %v3791
      %v4048 = vadd.f32 %v3369, %v3793
      %v4049 = vadd.f32 %v3370, %v3795
      %v4050 = vadd.f32 %v3371, %v3797
      %v4051 = vadd.f32 %v3372, %v3799
      %v4052 = vadd.f32 %v3373, %v3801
      %v4053 = vadd.f32 %v3374, %v3803
      %v4054 = vadd.f32 %v3375, %v3805
      %v4055 = vadd.f32 %v3376, %v3807
      %v4056 = vadd.f32 %v3377, %v3809
      %v4057 = vadd.f32 %v3378, %v3811
      %v4058 = vadd.f32 %v3379, %v3813
      %v4059 = vadd.f32 %v3380, %v3815
      %v4060 = vadd.f32 %v3381, %v3817
      %v4061 = vadd.f32 %v3382, %v3819
      %v4062 = vadd.f32 %v3383, %v3821
      %v4063 = vadd.f32 %v3384, %v3823
      %v4064 = vadd.f32 %v3385, %v3825
      %v4065 = vadd.f32 %v3386, %v3827
      %v4066 = vadd.f32 %v3387, %v3829
      %v4067 = vadd.f32 %v3388, %v3831
      %v4068 = vadd.f32 %v3389, %v3833
      %v4069 = vadd.f32 %v3390, %v3835
      %v4070 = vadd.f32 %v3391, %v3837
      %v4071 = vadd.f32 %v3392, %v3839
      %v4072 = vadd.f32 %v3393, %v3841
      %v4073 = vadd.f32 %v3394, %v3843
      %v4074 = vadd.f32 %v3395, %v3845
      %v4075 = vadd.f32 %v3396, %v3847
      %v4076 = vadd.f32 %v3397, %v3849
      %v4077 = vadd.f32 %v3398, %v3851
      %v4078 = vadd.f32 %v3399, %v3853
      %v4079 = vadd.f32 %v3400, %v3855
      %4081 = vset.pattern.permute.xlu0 0
      %4082 = vperm.xlu0 %4081, %v315
      %v4083 = vpop.permute.xlu0 %4082
      %4086 = vset.pattern.permute.xlu0 0
      %4087 = vperm.xlu0 %4086, %v316
      %v4088 = vpop.permute.xlu0 %4087
      %4091 = vset.pattern.permute.xlu0 0
      %4092 = vperm.xlu0 %4091, %v317
      %v4093 = vpop.permute.xlu0 %4092
      %v4095 = vlaneseq
      %v4096 = vshrl.u32 %v4095, 7
      %v4097 = vsub.s32 6, %v4096
      %v4098 = vrot.slane %v319, %v4097
      %v4099 = vmul.f32 %v364, %v4098
      %v4100 = vmul.f32 %v369, %v4098
      %v4101 = vmul.f32 %v374, %v4098
      %v4102 = vmul.f32 %v379, %v4098
      %v4103 = vmul.f32 %v384, %v4098
      %v4104 = vmul.f32 %v389, %v4098
      %v4105 = vmul.f32 %v394, %v4098
      %v4106 = vmul.f32 %v399, %v4098
      %v4107 = vmul.f32 %v404, %v4098
      %v4108 = vmul.f32 %v409, %v4098
      %v4109 = vmul.f32 %v414, %v4098
      %v4110 = vmul.f32 %v419, %v4098
      %v4111 = vmul.f32 %v424, %v4098
      %v4112 = vmul.f32 %v429, %v4098
      %v4113 = vmul.f32 %v434, %v4098
      %v4114 = vmul.f32 %v439, %v4098
      %v4115 = vmul.f32 %v444, %v4098
      %v4116 = vmul.f32 %v449, %v4098
      %v4117 = vmul.f32 %v454, %v4098
      %v4118 = vmul.f32 %v459, %v4098
      %v4119 = vmul.f32 %v464, %v4098
      %v4120 = vmul.f32 %v469, %v4098
      %v4121 = vmul.f32 %v474, %v4098
      %v4122 = vmul.f32 %v479, %v4098
      %v4123 = vmul.f32 %v484, %v4098
      %v4124 = vmul.f32 %v489, %v4098
      %v4125 = vmul.f32 %v494, %v4098
      %v4126 = vmul.f32 %v499, %v4098
      %v4127 = vmul.f32 %v504, %v4098
      %v4128 = vmul.f32 %v509, %v4098
      %v4129 = vmul.f32 %v514, %v4098
      %v4130 = vmul.f32 %v519, %v4098
      %v4131 = vmul.f32 %v524, %v4098
      %v4132 = vmul.f32 %v529, %v4098
      %v4133 = vmul.f32 %v534, %v4098
      %v4134 = vmul.f32 %v539, %v4098
      %v4135 = vmul.f32 %v544, %v4098
      %v4136 = vmul.f32 %v549, %v4098
      %v4137 = vmul.f32 %v554, %v4098
      %v4138 = vmul.f32 %v559, %v4098
      %v4139 = vmul.f32 %v564, %v4098
      %v4140 = vmul.f32 %v569, %v4098
      %v4141 = vmul.f32 %v574, %v4098
      %v4142 = vmul.f32 %v579, %v4098
      %v4143 = vmul.f32 %v584, %v4098
      %v4144 = vmul.f32 %v589, %v4098
      %v4145 = vmul.f32 %v594, %v4098
      %v4146 = vmul.f32 %v599, %v4098
      %v4147 = vmul.f32 %v604, %v4098
      %v4148 = vmul.f32 %v609, %v4098
      %v4149 = vmul.f32 %v614, %v4098
      %v4150 = vmul.f32 %v619, %v4098
      %v4151 = vmul.f32 %v624, %v4098
      %v4152 = vmul.f32 %v629, %v4098
      %v4153 = vmul.f32 %v634, %v4098
      %v4154 = vmul.f32 %v639, %v4098
      %v4155 = vmul.f32 %v644, %v4098
      %v4156 = vmul.f32 %v649, %v4098
      %v4157 = vmul.f32 %v654, %v4098
      %v4158 = vmul.f32 %v659, %v4098
      %v4159 = vmul.f32 %v664, %v4098
      %v4160 = vmul.f32 %v669, %v4098
      %v4161 = vmul.f32 %v674, %v4098
      %v4162 = vmul.f32 %v679, %v4098
      %v4163 = vmul.f32 %v684, %v4098
      %v4164 = vmul.f32 %v689, %v4098
      %v4165 = vmul.f32 %v694, %v4098
      %v4166 = vmul.f32 %v699, %v4098
      %v4167 = vmul.f32 %v704, %v4098
      %v4168 = vmul.f32 %v709, %v4098
      %v4169 = vmul.f32 %v714, %v4098
      %v4170 = vmul.f32 %v719, %v4098
      %v4171 = vmul.f32 %v724, %v4098
      %v4172 = vmul.f32 %v729, %v4098
      %v4173 = vmul.f32 %v734, %v4098
      %v4174 = vmul.f32 %v739, %v4098
      %v4175 = vmul.f32 %v744, %v4098
      %v4176 = vmul.f32 %v749, %v4098
      %v4177 = vmul.f32 %v754, %v4098
      %v4178 = vmul.f32 %v759, %v4098
      %v4179 = vmul.f32 %v764, %v4098
      %v4180 = vmul.f32 %v769, %v4098
      %v4181 = vmul.f32 %v774, %v4098
      %v4182 = vmul.f32 %v779, %v4098
      %v4183 = vmul.f32 %v784, %v4098
      %v4184 = vmul.f32 %v789, %v4098
      %v4185 = vmul.f32 %v794, %v4098
      %v4186 = vmul.f32 %v799, %v4098
      %v4187 = vmul.f32 %v804, %v4098
      %v4188 = vmul.f32 %v809, %v4098
      %v4189 = vmul.f32 %v814, %v4098
      %v4190 = vmul.f32 %v819, %v4098
      %v4191 = vmul.f32 %v824, %v4098
      %v4192 = vmul.f32 %v829, %v4098
      %v4193 = vmul.f32 %v834, %v4098
      %v4194 = vmul.f32 %v839, %v4098
      %v4195 = vmul.f32 %v844, %v4098
      %v4196 = vmul.f32 %v849, %v4098
      %v4197 = vmul.f32 %v854, %v4098
      %v4198 = vmul.f32 %v859, %v4098
      %v4199 = vmul.f32 %v864, %v4098
      %v4200 = vmul.f32 %v869, %v4098
      %v4201 = vmul.f32 %v874, %v4098
      %v4202 = vmul.f32 %v879, %v4098
      %v4203 = vmul.f32 %v1112, %v4098
      %v4204 = vmul.f32 %v2477, %v4098
      %v4205 = vmul.f32 %v2482, %v4098
      %v4206 = vmul.f32 %v2487, %v4098
      %v4207 = vmul.f32 %v2720, %v4098
      %v4208 = vmul.f32 %v4083, %v4098
      %v4209 = vmul.f32 %v4088, %v4098
      %v4210 = vmul.f32 %v4093, %v4098
      %v4211 = vadd.f32 %v3968, %v4099
      %v4212 = vadd.f32 %v3969, %v4100
      %v4213 = vadd.f32 %v3970, %v4101
      %v4214 = vadd.f32 %v3971, %v4102
      %v4215 = vadd.f32 %v3972, %v4103
      %v4216 = vadd.f32 %v3973, %v4104
      %v4217 = vadd.f32 %v3974, %v4105
      %v4218 = vadd.f32 %v3975, %v4106
      %v4219 = vadd.f32 %v3976, %v4107
      %v4220 = vadd.f32 %v3977, %v4108
      %v4221 = vadd.f32 %v3978, %v4109
      %v4222 = vadd.f32 %v3979, %v4110
      %v4223 = vadd.f32 %v3980, %v4111
      %v4224 = vadd.f32 %v3981, %v4112
      %v4225 = vadd.f32 %v3982, %v4113
      %v4226 = vadd.f32 %v3983, %v4114
      %v4227 = vadd.f32 %v3984, %v4115
      %v4228 = vadd.f32 %v3985, %v4116
      %v4229 = vadd.f32 %v3986, %v4117
      %v4230 = vadd.f32 %v3987, %v4118
      %v4231 = vadd.f32 %v3988, %v4119
      %v4232 = vadd.f32 %v3989, %v4120
      %v4233 = vadd.f32 %v3990, %v4121
      %v4234 = vadd.f32 %v3991, %v4122
      %v4235 = vadd.f32 %v3992, %v4123
      %v4236 = vadd.f32 %v3993, %v4124
      %v4237 = vadd.f32 %v3994, %v4125
      %v4238 = vadd.f32 %v3995, %v4126
      %v4239 = vadd.f32 %v3996, %v4127
      %v4240 = vadd.f32 %v3997, %v4128
      %v4241 = vadd.f32 %v3998, %v4129
      %v4242 = vadd.f32 %v3999, %v4130
      %v4243 = vadd.f32 %v4000, %v4131
      %v4244 = vadd.f32 %v4001, %v4132
      %v4245 = vadd.f32 %v4002, %v4133
      %v4246 = vadd.f32 %v4003, %v4134
      %v4247 = vadd.f32 %v4004, %v4135
      %v4248 = vadd.f32 %v4005, %v4136
      %v4249 = vadd.f32 %v4006, %v4137
      %v4250 = vadd.f32 %v4007, %v4138
      %v4251 = vadd.f32 %v4008, %v4139
      %v4252 = vadd.f32 %v4009, %v4140
      %v4253 = vadd.f32 %v4010, %v4141
      %v4254 = vadd.f32 %v4011, %v4142
      %v4255 = vadd.f32 %v4012, %v4143
      %v4256 = vadd.f32 %v4013, %v4144
      %v4257 = vadd.f32 %v4014, %v4145
      %v4258 = vadd.f32 %v4015, %v4146
      %v4259 = vadd.f32 %v4016, %v4147
      %v4260 = vadd.f32 %v4017, %v4148
      %v4261 = vadd.f32 %v4018, %v4149
      %v4262 = vadd.f32 %v4019, %v4150
      %v4263 = vadd.f32 %v4020, %v4151
      %v4264 = vadd.f32 %v4021, %v4152
      %v4265 = vadd.f32 %v4022, %v4153
      %v4266 = vadd.f32 %v4023, %v4154
      %v4267 = vadd.f32 %v4024, %v4155
      %v4268 = vadd.f32 %v4025, %v4156
      %v4269 = vadd.f32 %v4026, %v4157
      %v4270 = vadd.f32 %v4027, %v4158
      %v4271 = vadd.f32 %v4028, %v4159
      %v4272 = vadd.f32 %v4029, %v4160
      %v4273 = vadd.f32 %v4030, %v4161
      %v4274 = vadd.f32 %v4031, %v4162
      %v4275 = vadd.f32 %v4032, %v4163
      %v4276 = vadd.f32 %v4033, %v4164
      %v4277 = vadd.f32 %v4034, %v4165
      %v4278 = vadd.f32 %v4035, %v4166
      %v4279 = vadd.f32 %v4036, %v4167
      %v4280 = vadd.f32 %v4037, %v4168
      %v4281 = vadd.f32 %v4038, %v4169
      %v4282 = vadd.f32 %v4039, %v4170
      %v4283 = vadd.f32 %v4040, %v4171
      %v4284 = vadd.f32 %v4041, %v4172
      %v4285 = vadd.f32 %v4042, %v4173
      %v4286 = vadd.f32 %v4043, %v4174
      %v4287 = vadd.f32 %v4044, %v4175
      %v4288 = vadd.f32 %v4045, %v4176
      %v4289 = vadd.f32 %v4046, %v4177
      %v4290 = vadd.f32 %v4047, %v4178
      %v4291 = vadd.f32 %v4048, %v4179
      %v4292 = vadd.f32 %v4049, %v4180
      %v4293 = vadd.f32 %v4050, %v4181
      %v4294 = vadd.f32 %v4051, %v4182
      %v4295 = vadd.f32 %v4052, %v4183
      %v4296 = vadd.f32 %v4053, %v4184
      %v4297 = vadd.f32 %v4054, %v4185
      %v4298 = vadd.f32 %v4055, %v4186
      %v4299 = vadd.f32 %v4056, %v4187
      %v4300 = vadd.f32 %v4057, %v4188
      %v4301 = vadd.f32 %v4058, %v4189
      %v4302 = vadd.f32 %v4059, %v4190
      %v4303 = vadd.f32 %v4060, %v4191
      %v4304 = vadd.f32 %v4061, %v4192
      %v4305 = vadd.f32 %v4062, %v4193
      %v4306 = vadd.f32 %v4063, %v4194
      %v4307 = vadd.f32 %v4064, %v4195
      %v4308 = vadd.f32 %v4065, %v4196
      %v4309 = vadd.f32 %v4066, %v4197
      %v4310 = vadd.f32 %v4067, %v4198
      %v4311 = vadd.f32 %v4068, %v4199
      %v4312 = vadd.f32 %v4069, %v4200
      %v4313 = vadd.f32 %v4070, %v4201
      %v4314 = vadd.f32 %v4071, %v4202
      %v4315 = vadd.f32 %v4072, %v4203
      %v4316 = vadd.f32 %v4073, %v4204
      %v4317 = vadd.f32 %v4074, %v4205
      %v4318 = vadd.f32 %v4075, %v4206
      %v4319 = vadd.f32 %v4076, %v4207
      %v4320 = vadd.f32 %v4077, %v4208
      %v4321 = vadd.f32 %v4078, %v4209
      %v4322 = vadd.f32 %v4079, %v4210
      %4324 = vset.pattern.permute.xlu0 0
      %4325 = vperm.xlu0 %4324, %v318
      %v4326 = vpop.permute.xlu0 %4325
      %v4328 = vlaneseq
      %v4329 = vshrl.u32 %v4328, 7
      %v4330 = vsub.s32 7, %v4329
      %v4331 = vrot.slane %v319, %v4330
      %v4332 = vmul.f32 %v364, %v4331
      %v4333 = vmul.f32 %v369, %v4331
      %v4334 = vmul.f32 %v374, %v4331
      %v4335 = vmul.f32 %v379, %v4331
      %v4336 = vmul.f32 %v384, %v4331
      %v4337 = vmul.f32 %v389, %v4331
      %v4338 = vmul.f32 %v394, %v4331
      %v4339 = vmul.f32 %v399, %v4331
      %v4340 = vmul.f32 %v404, %v4331
      %v4341 = vmul.f32 %v409, %v4331
      %v4342 = vmul.f32 %v414, %v4331
      %v4343 = vmul.f32 %v419, %v4331
      %v4344 = vmul.f32 %v424, %v4331
      %v4345 = vmul.f32 %v429, %v4331
      %v4346 = vmul.f32 %v434, %v4331
      %v4347 = vmul.f32 %v439, %v4331
      %v4348 = vmul.f32 %v444, %v4331
      %v4349 = vmul.f32 %v449, %v4331
      %v4350 = vmul.f32 %v454, %v4331
      %v4351 = vmul.f32 %v459, %v4331
      %v4352 = vmul.f32 %v464, %v4331
      %v4353 = vmul.f32 %v469, %v4331
      %v4354 = vmul.f32 %v474, %v4331
      %v4355 = vmul.f32 %v479, %v4331
      %v4356 = vmul.f32 %v484, %v4331
      %v4357 = vmul.f32 %v489, %v4331
      %v4358 = vmul.f32 %v494, %v4331
      %v4359 = vmul.f32 %v499, %v4331
      %v4360 = vmul.f32 %v504, %v4331
      %v4361 = vmul.f32 %v509, %v4331
      %v4362 = vmul.f32 %v514, %v4331
      %v4363 = vmul.f32 %v519, %v4331
      %v4364 = vmul.f32 %v524, %v4331
      %v4365 = vmul.f32 %v529, %v4331
      %v4366 = vmul.f32 %v534, %v4331
      %v4367 = vmul.f32 %v539, %v4331
      %v4368 = vmul.f32 %v544, %v4331
      %v4369 = vmul.f32 %v549, %v4331
      %v4370 = vmul.f32 %v554, %v4331
      %v4371 = vmul.f32 %v559, %v4331
      %v4372 = vmul.f32 %v564, %v4331
      %v4373 = vmul.f32 %v569, %v4331
      %v4374 = vmul.f32 %v574, %v4331
      %v4375 = vmul.f32 %v579, %v4331
      %v4376 = vmul.f32 %v584, %v4331
      %v4377 = vmul.f32 %v589, %v4331
      %v4378 = vmul.f32 %v594, %v4331
      %v4379 = vmul.f32 %v599, %v4331
      %v4380 = vmul.f32 %v604, %v4331
      %v4381 = vmul.f32 %v609, %v4331
      %v4382 = vmul.f32 %v614, %v4331
      %v4383 = vmul.f32 %v619, %v4331
      %v4384 = vmul.f32 %v624, %v4331
      %v4385 = vmul.f32 %v629, %v4331
      %v4386 = vmul.f32 %v634, %v4331
      %v4387 = vmul.f32 %v639, %v4331
      %v4388 = vmul.f32 %v644, %v4331
      %v4389 = vmul.f32 %v649, %v4331
      %v4390 = vmul.f32 %v654, %v4331
      %v4391 = vmul.f32 %v659, %v4331
      %v4392 = vmul.f32 %v664, %v4331
      %v4393 = vmul.f32 %v669, %v4331
      %v4394 = vmul.f32 %v674, %v4331
      %v4395 = vmul.f32 %v679, %v4331
      %v4396 = vmul.f32 %v684, %v4331
      %v4397 = vmul.f32 %v689, %v4331
      %v4398 = vmul.f32 %v694, %v4331
      %v4399 = vmul.f32 %v699, %v4331
      %v4400 = vmul.f32 %v704, %v4331
      %v4401 = vmul.f32 %v709, %v4331
      %v4402 = vmul.f32 %v714, %v4331
      %v4403 = vmul.f32 %v719, %v4331
      %v4404 = vmul.f32 %v724, %v4331
      %v4405 = vmul.f32 %v729, %v4331
      %v4406 = vmul.f32 %v734, %v4331
      %v4407 = vmul.f32 %v739, %v4331
      %v4408 = vmul.f32 %v744, %v4331
      %v4409 = vmul.f32 %v749, %v4331
      %v4410 = vmul.f32 %v754, %v4331
      %v4411 = vmul.f32 %v759, %v4331
      %v4412 = vmul.f32 %v764, %v4331
      %v4413 = vmul.f32 %v769, %v4331
      %v4414 = vmul.f32 %v774, %v4331
      %v4415 = vmul.f32 %v779, %v4331
      %v4416 = vmul.f32 %v784, %v4331
      %v4417 = vmul.f32 %v789, %v4331
      %v4418 = vmul.f32 %v794, %v4331
      %v4419 = vmul.f32 %v799, %v4331
      %v4420 = vmul.f32 %v804, %v4331
      %v4421 = vmul.f32 %v809, %v4331
      %v4422 = vmul.f32 %v814, %v4331
      %v4423 = vmul.f32 %v819, %v4331
      %v4424 = vmul.f32 %v824, %v4331
      %v4425 = vmul.f32 %v829, %v4331
      %v4426 = vmul.f32 %v834, %v4331
      %v4427 = vmul.f32 %v839, %v4331
      %v4428 = vmul.f32 %v844, %v4331
      %v4429 = vmul.f32 %v849, %v4331
      %v4430 = vmul.f32 %v854, %v4331
      %v4431 = vmul.f32 %v859, %v4331
      %v4432 = vmul.f32 %v864, %v4331
      %v4433 = vmul.f32 %v869, %v4331
      %v4434 = vmul.f32 %v874, %v4331
      %v4435 = vmul.f32 %v879, %v4331
      %v4436 = vmul.f32 %v1112, %v4331
      %v4437 = vmul.f32 %v2477, %v4331
      %v4438 = vmul.f32 %v2482, %v4331
      %v4439 = vmul.f32 %v2487, %v4331
      %v4440 = vmul.f32 %v2720, %v4331
      %v4441 = vmul.f32 %v4083, %v4331
      %v4442 = vmul.f32 %v4088, %v4331
      %v4443 = vmul.f32 %v4093, %v4331
      %v4444 = vmul.f32 %v4326, %v4331
      %v4558 = vrot.slane %v4332, 1
      %v4559 = vrot.slane %v4333, 1
      %v4560 = vsel %vm1344, %v4558, %v4559
      %v4561 = vrot.slane %v4334, 1
      %v4562 = vsel %vm1344, %v4559, %v4561
      %v4563 = vrot.slane %v4335, 1
      %v4564 = vsel %vm1344, %v4561, %v4563
      %v4565 = vrot.slane %v4336, 1
      %v4566 = vsel %vm1344, %v4563, %v4565
      %v4567 = vrot.slane %v4337, 1
      %v4568 = vsel %vm1344, %v4565, %v4567
      %v4569 = vrot.slane %v4338, 1
      %v4570 = vsel %vm1344, %v4567, %v4569
      %v4571 = vrot.slane %v4339, 1
      %v4572 = vsel %vm1344, %v4569, %v4571
      %v4573 = vrot.slane %v4340, 1
      %v4574 = vsel %vm1344, %v4571, %v4573
      %v4575 = vrot.slane %v4341, 1
      %v4576 = vsel %vm1344, %v4573, %v4575
      %v4577 = vrot.slane %v4342, 1
      %v4578 = vsel %vm1344, %v4575, %v4577
      %v4579 = vrot.slane %v4343, 1
      %v4580 = vsel %vm1344, %v4577, %v4579
      %v4581 = vrot.slane %v4344, 1
      %v4582 = vsel %vm1344, %v4579, %v4581
      %v4583 = vrot.slane %v4345, 1
      %v4584 = vsel %vm1344, %v4581, %v4583
      %v4585 = vrot.slane %v4346, 1
      %v4586 = vsel %vm1344, %v4583, %v4585
      %v4587 = vrot.slane %v4347, 1
      %v4588 = vsel %vm1344, %v4585, %v4587
      %v4589 = vrot.slane %v4348, 1
      %v4590 = vsel %vm1344, %v4587, %v4589
      %v4591 = vrot.slane %v4349, 1
      %v4592 = vsel %vm1344, %v4589, %v4591
      %v4593 = vrot.slane %v4350, 1
      %v4594 = vsel %vm1344, %v4591, %v4593
      %v4595 = vrot.slane %v4351, 1
      %v4596 = vsel %vm1344, %v4593, %v4595
      %v4597 = vrot.slane %v4352, 1
      %v4598 = vsel %vm1344, %v4595, %v4597
      %v4599 = vrot.slane %v4353, 1
      %v4600 = vsel %vm1344, %v4597, %v4599
      %v4601 = vrot.slane %v4354, 1
      %v4602 = vsel %vm1344, %v4599, %v4601
      %v4603 = vrot.slane %v4355, 1
      %v4604 = vsel %vm1344, %v4601, %v4603
      %v4605 = vrot.slane %v4356, 1
      %v4606 = vsel %vm1344, %v4603, %v4605
      %v4607 = vrot.slane %v4357, 1
      %v4608 = vsel %vm1344, %v4605, %v4607
      %v4609 = vrot.slane %v4358, 1
      %v4610 = vsel %vm1344, %v4607, %v4609
      %v4611 = vrot.slane %v4359, 1
      %v4612 = vsel %vm1344, %v4609, %v4611
      %v4613 = vrot.slane %v4360, 1
      %v4614 = vsel %vm1344, %v4611, %v4613
      %v4615 = vrot.slane %v4361, 1
      %v4616 = vsel %vm1344, %v4613, %v4615
      %v4617 = vrot.slane %v4362, 1
      %v4618 = vsel %vm1344, %v4615, %v4617
      %v4619 = vrot.slane %v4363, 1
      %v4620 = vsel %vm1344, %v4617, %v4619
      %v4621 = vrot.slane %v4364, 1
      %v4622 = vsel %vm1344, %v4619, %v4621
      %v4623 = vrot.slane %v4365, 1
      %v4624 = vsel %vm1344, %v4621, %v4623
      %v4625 = vrot.slane %v4366, 1
      %v4626 = vsel %vm1344, %v4623, %v4625
      %v4627 = vrot.slane %v4367, 1
      %v4628 = vsel %vm1344, %v4625, %v4627
      %v4629 = vrot.slane %v4368, 1
      %v4630 = vsel %vm1344, %v4627, %v4629
      %v4631 = vrot.slane %v4369, 1
      %v4632 = vsel %vm1344, %v4629, %v4631
      %v4633 = vrot.slane %v4370, 1
      %v4634 = vsel %vm1344, %v4631, %v4633
      %v4635 = vrot.slane %v4371, 1
      %v4636 = vsel %vm1344, %v4633, %v4635
      %v4637 = vrot.slane %v4372, 1
      %v4638 = vsel %vm1344, %v4635, %v4637
      %v4639 = vrot.slane %v4373, 1
      %v4640 = vsel %vm1344, %v4637, %v4639
      %v4641 = vrot.slane %v4374, 1
      %v4642 = vsel %vm1344, %v4639, %v4641
      %v4643 = vrot.slane %v4375, 1
      %v4644 = vsel %vm1344, %v4641, %v4643
      %v4645 = vrot.slane %v4376, 1
      %v4646 = vsel %vm1344, %v4643, %v4645
      %v4647 = vrot.slane %v4377, 1
      %v4648 = vsel %vm1344, %v4645, %v4647
      %v4649 = vrot.slane %v4378, 1
      %v4650 = vsel %vm1344, %v4647, %v4649
      %v4651 = vrot.slane %v4379, 1
      %v4652 = vsel %vm1344, %v4649, %v4651
      %v4653 = vrot.slane %v4380, 1
      %v4654 = vsel %vm1344, %v4651, %v4653
      %v4655 = vrot.slane %v4381, 1
      %v4656 = vsel %vm1344, %v4653, %v4655
      %v4657 = vrot.slane %v4382, 1
      %v4658 = vsel %vm1344, %v4655, %v4657
      %v4659 = vrot.slane %v4383, 1
      %v4660 = vsel %vm1344, %v4657, %v4659
      %v4661 = vrot.slane %v4384, 1
      %v4662 = vsel %vm1344, %v4659, %v4661
      %v4663 = vrot.slane %v4385, 1
      %v4664 = vsel %vm1344, %v4661, %v4663
      %v4665 = vrot.slane %v4386, 1
      %v4666 = vsel %vm1344, %v4663, %v4665
      %v4667 = vrot.slane %v4387, 1
      %v4668 = vsel %vm1344, %v4665, %v4667
      %v4669 = vrot.slane %v4388, 1
      %v4670 = vsel %vm1344, %v4667, %v4669
      %v4671 = vrot.slane %v4389, 1
      %v4672 = vsel %vm1344, %v4669, %v4671
      %v4673 = vrot.slane %v4390, 1
      %v4674 = vsel %vm1344, %v4671, %v4673
      %v4675 = vrot.slane %v4391, 1
      %v4676 = vsel %vm1344, %v4673, %v4675
      %v4677 = vrot.slane %v4392, 1
      %v4678 = vsel %vm1344, %v4675, %v4677
      %v4679 = vrot.slane %v4393, 1
      %v4680 = vsel %vm1344, %v4677, %v4679
      %v4681 = vrot.slane %v4394, 1
      %v4682 = vsel %vm1344, %v4679, %v4681
      %v4683 = vrot.slane %v4395, 1
      %v4684 = vsel %vm1344, %v4681, %v4683
      %v4685 = vrot.slane %v4396, 1
      %v4686 = vsel %vm1344, %v4683, %v4685
      %v4687 = vrot.slane %v4397, 1
      %v4688 = vsel %vm1344, %v4685, %v4687
      %v4689 = vrot.slane %v4398, 1
      %v4690 = vsel %vm1344, %v4687, %v4689
      %v4691 = vrot.slane %v4399, 1
      %v4692 = vsel %vm1344, %v4689, %v4691
      %v4693 = vrot.slane %v4400, 1
      %v4694 = vsel %vm1344, %v4691, %v4693
      %v4695 = vrot.slane %v4401, 1
      %v4696 = vsel %vm1344, %v4693, %v4695
      %v4697 = vrot.slane %v4402, 1
      %v4698 = vsel %vm1344, %v4695, %v4697
      %v4699 = vrot.slane %v4403, 1
      %v4700 = vsel %vm1344, %v4697, %v4699
      %v4701 = vrot.slane %v4404, 1
      %v4702 = vsel %vm1344, %v4699, %v4701
      %v4703 = vrot.slane %v4405, 1
      %v4704 = vsel %vm1344, %v4701, %v4703
      %v4705 = vrot.slane %v4406, 1
      %v4706 = vsel %vm1344, %v4703, %v4705
      %v4707 = vrot.slane %v4407, 1
      %v4708 = vsel %vm1344, %v4705, %v4707
      %v4709 = vrot.slane %v4408, 1
      %v4710 = vsel %vm1344, %v4707, %v4709
      %v4711 = vrot.slane %v4409, 1
      %v4712 = vsel %vm1344, %v4709, %v4711
      %v4713 = vrot.slane %v4410, 1
      %v4714 = vsel %vm1344, %v4711, %v4713
      %v4715 = vrot.slane %v4411, 1
      %v4716 = vsel %vm1344, %v4713, %v4715
      %v4717 = vrot.slane %v4412, 1
      %v4718 = vsel %vm1344, %v4715, %v4717
      %v4719 = vrot.slane %v4413, 1
      %v4720 = vsel %vm1344, %v4717, %v4719
      %v4721 = vrot.slane %v4414, 1
      %v4722 = vsel %vm1344, %v4719, %v4721
      %v4723 = vrot.slane %v4415, 1
      %v4724 = vsel %vm1344, %v4721, %v4723
      %v4725 = vrot.slane %v4416, 1
      %v4726 = vsel %vm1344, %v4723, %v4725
      %v4727 = vrot.slane %v4417, 1
      %v4728 = vsel %vm1344, %v4725, %v4727
      %v4729 = vrot.slane %v4418, 1
      %v4730 = vsel %vm1344, %v4727, %v4729
      %v4731 = vrot.slane %v4419, 1
      %v4732 = vsel %vm1344, %v4729, %v4731
      %v4733 = vrot.slane %v4420, 1
      %v4734 = vsel %vm1344, %v4731, %v4733
      %v4735 = vrot.slane %v4421, 1
      %v4736 = vsel %vm1344, %v4733, %v4735
      %v4737 = vrot.slane %v4422, 1
      %v4738 = vsel %vm1344, %v4735, %v4737
      %v4739 = vrot.slane %v4423, 1
      %v4740 = vsel %vm1344, %v4737, %v4739
      %v4741 = vrot.slane %v4424, 1
      %v4742 = vsel %vm1344, %v4739, %v4741
      %v4743 = vrot.slane %v4425, 1
      %v4744 = vsel %vm1344, %v4741, %v4743
      %v4745 = vrot.slane %v4426, 1
      %v4746 = vsel %vm1344, %v4743, %v4745
      %v4747 = vrot.slane %v4427, 1
      %v4748 = vsel %vm1344, %v4745, %v4747
      %v4749 = vrot.slane %v4428, 1
      %v4750 = vsel %vm1344, %v4747, %v4749
      %v4751 = vrot.slane %v4429, 1
      %v4752 = vsel %vm1344, %v4749, %v4751
      %v4753 = vrot.slane %v4430, 1
      %v4754 = vsel %vm1344, %v4751, %v4753
      %v4755 = vrot.slane %v4431, 1
      %v4756 = vsel %vm1344, %v4753, %v4755
      %v4757 = vrot.slane %v4432, 1
      %v4758 = vsel %vm1344, %v4755, %v4757
      %v4759 = vrot.slane %v4433, 1
      %v4760 = vsel %vm1344, %v4757, %v4759
      %v4761 = vrot.slane %v4434, 1
      %v4762 = vsel %vm1344, %v4759, %v4761
      %v4763 = vrot.slane %v4435, 1
      %v4764 = vsel %vm1344, %v4761, %v4763
      %v4765 = vrot.slane %v4436, 1
      %v4766 = vsel %vm1344, %v4763, %v4765
      %v4767 = vrot.slane %v4437, 1
      %v4768 = vsel %vm1344, %v4765, %v4767
      %v4769 = vrot.slane %v4438, 1
      %v4770 = vsel %vm1344, %v4767, %v4769
      %v4771 = vrot.slane %v4439, 1
      %v4772 = vsel %vm1344, %v4769, %v4771
      %v4773 = vrot.slane %v4440, 1
      %v4774 = vsel %vm1344, %v4771, %v4773
      %v4775 = vrot.slane %v4441, 1
      %v4776 = vsel %vm1344, %v4773, %v4775
      %v4777 = vrot.slane %v4442, 1
      %v4778 = vsel %vm1344, %v4775, %v4777
      %v4779 = vrot.slane %v4443, 1
      %v4780 = vsel %vm1344, %v4777, %v4779
      %v4781 = vrot.slane %v4444, 1
      %v4782 = vsel %vm1344, %v4779, %v4781
      %v4895 = vadd.f32 %v4211, %v4560
      %v4896 = vadd.f32 %v4212, %v4562
      %v4897 = vadd.f32 %v4213, %v4564
      %v4898 = vadd.f32 %v4214, %v4566
      %v4899 = vadd.f32 %v4215, %v4568
      %v4900 = vadd.f32 %v4216, %v4570
      %v4901 = vadd.f32 %v4217, %v4572
      %v4902 = vadd.f32 %v4218, %v4574
      %v4903 = vadd.f32 %v4219, %v4576
      %v4904 = vadd.f32 %v4220, %v4578
      %v4905 = vadd.f32 %v4221, %v4580
      %v4906 = vadd.f32 %v4222, %v4582
      %v4907 = vadd.f32 %v4223, %v4584
      %v4908 = vadd.f32 %v4224, %v4586
      %v4909 = vadd.f32 %v4225, %v4588
      %v4910 = vadd.f32 %v4226, %v4590
      %v4911 = vadd.f32 %v4227, %v4592
      %v4912 = vadd.f32 %v4228, %v4594
      %v4913 = vadd.f32 %v4229, %v4596
      %v4914 = vadd.f32 %v4230, %v4598
      %v4915 = vadd.f32 %v4231, %v4600
      %v4916 = vadd.f32 %v4232, %v4602
      %v4917 = vadd.f32 %v4233, %v4604
      %v4918 = vadd.f32 %v4234, %v4606
      %v4919 = vadd.f32 %v4235, %v4608
      %v4920 = vadd.f32 %v4236, %v4610
      %v4921 = vadd.f32 %v4237, %v4612
      %v4922 = vadd.f32 %v4238, %v4614
      %v4923 = vadd.f32 %v4239, %v4616
      %v4924 = vadd.f32 %v4240, %v4618
      %v4925 = vadd.f32 %v4241, %v4620
      %v4926 = vadd.f32 %v4242, %v4622
      %v4927 = vadd.f32 %v4243, %v4624
      %v4928 = vadd.f32 %v4244, %v4626
      %v4929 = vadd.f32 %v4245, %v4628
      %v4930 = vadd.f32 %v4246, %v4630
      %v4931 = vadd.f32 %v4247, %v4632
      %v4932 = vadd.f32 %v4248, %v4634
      %v4933 = vadd.f32 %v4249, %v4636
      %v4934 = vadd.f32 %v4250, %v4638
      %v4935 = vadd.f32 %v4251, %v4640
      %v4936 = vadd.f32 %v4252, %v4642
      %v4937 = vadd.f32 %v4253, %v4644
      %v4938 = vadd.f32 %v4254, %v4646
      %v4939 = vadd.f32 %v4255, %v4648
      %v4940 = vadd.f32 %v4256, %v4650
      %v4941 = vadd.f32 %v4257, %v4652
      %v4942 = vadd.f32 %v4258, %v4654
      %v4943 = vadd.f32 %v4259, %v4656
      %v4944 = vadd.f32 %v4260, %v4658
      %v4945 = vadd.f32 %v4261, %v4660
      %v4946 = vadd.f32 %v4262, %v4662
      %v4947 = vadd.f32 %v4263, %v4664
      %v4948 = vadd.f32 %v4264, %v4666
      %v4949 = vadd.f32 %v4265, %v4668
      %v4950 = vadd.f32 %v4266, %v4670
      %v4951 = vadd.f32 %v4267, %v4672
      %v4952 = vadd.f32 %v4268, %v4674
      %v4953 = vadd.f32 %v4269, %v4676
      %v4954 = vadd.f32 %v4270, %v4678
      %v4955 = vadd.f32 %v4271, %v4680
      %v4956 = vadd.f32 %v4272, %v4682
      %v4957 = vadd.f32 %v4273, %v4684
      %v4958 = vadd.f32 %v4274, %v4686
      %v4959 = vadd.f32 %v4275, %v4688
      %v4960 = vadd.f32 %v4276, %v4690
      %v4961 = vadd.f32 %v4277, %v4692
      %v4962 = vadd.f32 %v4278, %v4694
      %v4963 = vadd.f32 %v4279, %v4696
      %v4964 = vadd.f32 %v4280, %v4698
      %v4965 = vadd.f32 %v4281, %v4700
      %v4966 = vadd.f32 %v4282, %v4702
      %v4967 = vadd.f32 %v4283, %v4704
      %v4968 = vadd.f32 %v4284, %v4706
      %v4969 = vadd.f32 %v4285, %v4708
      %v4970 = vadd.f32 %v4286, %v4710
      %v4971 = vadd.f32 %v4287, %v4712
      %v4972 = vadd.f32 %v4288, %v4714
      %v4973 = vadd.f32 %v4289, %v4716
      %v4974 = vadd.f32 %v4290, %v4718
      %v4975 = vadd.f32 %v4291, %v4720
      %v4976 = vadd.f32 %v4292, %v4722
      %v4977 = vadd.f32 %v4293, %v4724
      %v4978 = vadd.f32 %v4294, %v4726
      %v4979 = vadd.f32 %v4295, %v4728
      %v4980 = vadd.f32 %v4296, %v4730
      %v4981 = vadd.f32 %v4297, %v4732
      %v4982 = vadd.f32 %v4298, %v4734
      %v4983 = vadd.f32 %v4299, %v4736
      %v4984 = vadd.f32 %v4300, %v4738
      %v4985 = vadd.f32 %v4301, %v4740
      %v4986 = vadd.f32 %v4302, %v4742
      %v4987 = vadd.f32 %v4303, %v4744
      %v4988 = vadd.f32 %v4304, %v4746
      %v4989 = vadd.f32 %v4305, %v4748
      %v4990 = vadd.f32 %v4306, %v4750
      %v4991 = vadd.f32 %v4307, %v4752
      %v4992 = vadd.f32 %v4308, %v4754
      %v4993 = vadd.f32 %v4309, %v4756
      %v4994 = vadd.f32 %v4310, %v4758
      %v4995 = vadd.f32 %v4311, %v4760
      %v4996 = vadd.f32 %v4312, %v4762
      %v4997 = vadd.f32 %v4313, %v4764
      %v4998 = vadd.f32 %v4314, %v4766
      %v4999 = vadd.f32 %v4315, %v4768
      %v5000 = vadd.f32 %v4316, %v4770
      %v5001 = vadd.f32 %v4317, %v4772
      %v5002 = vadd.f32 %v4318, %v4774
      %v5003 = vadd.f32 %v4319, %v4776
      %v5004 = vadd.f32 %v4320, %v4778
      %v5005 = vadd.f32 %v4321, %v4780
      %v5006 = vadd.f32 %v4322, %v4782
      %v5007 = vlaneseq
      %v5008 = vshrl.u32 %v5007, 7
      %v5009 = vsub.s32 0, %v5008
      %v5010 = vrot.slane %v320, %v5009
      %v5011 = vmul.f32 %v364, %v5010
      %v5012 = vmul.f32 %v369, %v5010
      %v5013 = vmul.f32 %v374, %v5010
      %v5014 = vmul.f32 %v379, %v5010
      %v5015 = vmul.f32 %v384, %v5010
      %v5016 = vmul.f32 %v389, %v5010
      %v5017 = vmul.f32 %v394, %v5010
      %v5018 = vmul.f32 %v399, %v5010
      %v5019 = vmul.f32 %v404, %v5010
      %v5020 = vmul.f32 %v409, %v5010
      %v5021 = vmul.f32 %v414, %v5010
      %v5022 = vmul.f32 %v419, %v5010
      %v5023 = vmul.f32 %v424, %v5010
      %v5024 = vmul.f32 %v429, %v5010
      %v5025 = vmul.f32 %v434, %v5010
      %v5026 = vmul.f32 %v439, %v5010
      %v5027 = vmul.f32 %v444, %v5010
      %v5028 = vmul.f32 %v449, %v5010
      %v5029 = vmul.f32 %v454, %v5010
      %v5030 = vmul.f32 %v459, %v5010
      %v5031 = vmul.f32 %v464, %v5010
      %v5032 = vmul.f32 %v469, %v5010
      %v5033 = vmul.f32 %v474, %v5010
      %v5034 = vmul.f32 %v479, %v5010
      %v5035 = vmul.f32 %v484, %v5010
      %v5036 = vmul.f32 %v489, %v5010
      %v5037 = vmul.f32 %v494, %v5010
      %v5038 = vmul.f32 %v499, %v5010
      %v5039 = vmul.f32 %v504, %v5010
      %v5040 = vmul.f32 %v509, %v5010
      %v5041 = vmul.f32 %v514, %v5010
      %v5042 = vmul.f32 %v519, %v5010
      %v5043 = vmul.f32 %v524, %v5010
      %v5044 = vmul.f32 %v529, %v5010
      %v5045 = vmul.f32 %v534, %v5010
      %v5046 = vmul.f32 %v539, %v5010
      %v5047 = vmul.f32 %v544, %v5010
      %v5048 = vmul.f32 %v549, %v5010
      %v5049 = vmul.f32 %v554, %v5010
      %v5050 = vmul.f32 %v559, %v5010
      %v5051 = vmul.f32 %v564, %v5010
      %v5052 = vmul.f32 %v569, %v5010
      %v5053 = vmul.f32 %v574, %v5010
      %v5054 = vmul.f32 %v579, %v5010
      %v5055 = vmul.f32 %v584, %v5010
      %v5056 = vmul.f32 %v589, %v5010
      %v5057 = vmul.f32 %v594, %v5010
      %v5058 = vmul.f32 %v599, %v5010
      %v5059 = vmul.f32 %v604, %v5010
      %v5060 = vmul.f32 %v609, %v5010
      %v5061 = vmul.f32 %v614, %v5010
      %v5062 = vmul.f32 %v619, %v5010
      %v5063 = vmul.f32 %v624, %v5010
      %v5064 = vmul.f32 %v629, %v5010
      %v5065 = vmul.f32 %v634, %v5010
      %v5066 = vmul.f32 %v639, %v5010
      %v5067 = vmul.f32 %v644, %v5010
      %v5068 = vmul.f32 %v649, %v5010
      %v5069 = vmul.f32 %v654, %v5010
      %v5070 = vmul.f32 %v659, %v5010
      %v5071 = vmul.f32 %v664, %v5010
      %v5072 = vmul.f32 %v669, %v5010
      %v5073 = vmul.f32 %v674, %v5010
      %v5074 = vmul.f32 %v679, %v5010
      %v5075 = vmul.f32 %v684, %v5010
      %v5076 = vmul.f32 %v689, %v5010
      %v5077 = vmul.f32 %v694, %v5010
      %v5078 = vmul.f32 %v699, %v5010
      %v5079 = vmul.f32 %v704, %v5010
      %v5080 = vmul.f32 %v709, %v5010
      %v5081 = vmul.f32 %v714, %v5010
      %v5082 = vmul.f32 %v719, %v5010
      %v5083 = vmul.f32 %v724, %v5010
      %v5084 = vmul.f32 %v729, %v5010
      %v5085 = vmul.f32 %v734, %v5010
      %v5086 = vmul.f32 %v739, %v5010
      %v5087 = vmul.f32 %v744, %v5010
      %v5088 = vmul.f32 %v749, %v5010
      %v5089 = vmul.f32 %v754, %v5010
      %v5090 = vmul.f32 %v759, %v5010
      %v5091 = vmul.f32 %v764, %v5010
      %v5092 = vmul.f32 %v769, %v5010
      %v5093 = vmul.f32 %v774, %v5010
      %v5094 = vmul.f32 %v779, %v5010
      %v5095 = vmul.f32 %v784, %v5010
      %v5096 = vmul.f32 %v789, %v5010
      %v5097 = vmul.f32 %v794, %v5010
      %v5098 = vmul.f32 %v799, %v5010
      %v5099 = vmul.f32 %v804, %v5010
      %v5100 = vmul.f32 %v809, %v5010
      %v5101 = vmul.f32 %v814, %v5010
      %v5102 = vmul.f32 %v819, %v5010
      %v5103 = vmul.f32 %v824, %v5010
      %v5104 = vmul.f32 %v829, %v5010
      %v5105 = vmul.f32 %v834, %v5010
      %v5106 = vmul.f32 %v839, %v5010
      %v5107 = vmul.f32 %v844, %v5010
      %v5108 = vmul.f32 %v849, %v5010
      %v5109 = vmul.f32 %v854, %v5010
      %v5110 = vmul.f32 %v859, %v5010
      %v5111 = vmul.f32 %v864, %v5010
      %v5112 = vmul.f32 %v869, %v5010
      %v5113 = vmul.f32 %v874, %v5010
      %v5114 = vmul.f32 %v879, %v5010
      %v5115 = vmul.f32 %v1112, %v5010
      %v5116 = vmul.f32 %v2477, %v5010
      %v5117 = vmul.f32 %v2482, %v5010
      %v5118 = vmul.f32 %v2487, %v5010
      %v5119 = vmul.f32 %v2720, %v5010
      %v5120 = vmul.f32 %v4083, %v5010
      %v5121 = vmul.f32 %v4088, %v5010
      %v5122 = vmul.f32 %v4093, %v5010
      %v5123 = vmul.f32 %v4326, %v5010
      %v5237 = vrot.slane %v5011, 2
      %v5238 = vrot.slane %v5012, 2
      %v5239 = vsel %vm2024, %v5237, %v5238
      %v5240 = vrot.slane %v5013, 2
      %v5241 = vsel %vm2024, %v5238, %v5240
      %v5242 = vrot.slane %v5014, 2
      %v5243 = vsel %vm2024, %v5240, %v5242
      %v5244 = vrot.slane %v5015, 2
      %v5245 = vsel %vm2024, %v5242, %v5244
      %v5246 = vrot.slane %v5016, 2
      %v5247 = vsel %vm2024, %v5244, %v5246
      %v5248 = vrot.slane %v5017, 2
      %v5249 = vsel %vm2024, %v5246, %v5248
      %v5250 = vrot.slane %v5018, 2
      %v5251 = vsel %vm2024, %v5248, %v5250
      %v5252 = vrot.slane %v5019, 2
      %v5253 = vsel %vm2024, %v5250, %v5252
      %v5254 = vrot.slane %v5020, 2
      %v5255 = vsel %vm2024, %v5252, %v5254
      %v5256 = vrot.slane %v5021, 2
      %v5257 = vsel %vm2024, %v5254, %v5256
      %v5258 = vrot.slane %v5022, 2
      %v5259 = vsel %vm2024, %v5256, %v5258
      %v5260 = vrot.slane %v5023, 2
      %v5261 = vsel %vm2024, %v5258, %v5260
      %v5262 = vrot.slane %v5024, 2
      %v5263 = vsel %vm2024, %v5260, %v5262
      %v5264 = vrot.slane %v5025, 2
      %v5265 = vsel %vm2024, %v5262, %v5264
      %v5266 = vrot.slane %v5026, 2
      %v5267 = vsel %vm2024, %v5264, %v5266
      %v5268 = vrot.slane %v5027, 2
      %v5269 = vsel %vm2024, %v5266, %v5268
      %v5270 = vrot.slane %v5028, 2
      %v5271 = vsel %vm2024, %v5268, %v5270
      %v5272 = vrot.slane %v5029, 2
      %v5273 = vsel %vm2024, %v5270, %v5272
      %v5274 = vrot.slane %v5030, 2
      %v5275 = vsel %vm2024, %v5272, %v5274
      %v5276 = vrot.slane %v5031, 2
      %v5277 = vsel %vm2024, %v5274, %v5276
      %v5278 = vrot.slane %v5032, 2
      %v5279 = vsel %vm2024, %v5276, %v5278
      %v5280 = vrot.slane %v5033, 2
      %v5281 = vsel %vm2024, %v5278, %v5280
      %v5282 = vrot.slane %v5034, 2
      %v5283 = vsel %vm2024, %v5280, %v5282
      %v5284 = vrot.slane %v5035, 2
      %v5285 = vsel %vm2024, %v5282, %v5284
      %v5286 = vrot.slane %v5036, 2
      %v5287 = vsel %vm2024, %v5284, %v5286
      %v5288 = vrot.slane %v5037, 2
      %v5289 = vsel %vm2024, %v5286, %v5288
      %v5290 = vrot.slane %v5038, 2
      %v5291 = vsel %vm2024, %v5288, %v5290
      %v5292 = vrot.slane %v5039, 2
      %v5293 = vsel %vm2024, %v5290, %v5292
      %v5294 = vrot.slane %v5040, 2
      %v5295 = vsel %vm2024, %v5292, %v5294
      %v5296 = vrot.slane %v5041, 2
      %v5297 = vsel %vm2024, %v5294, %v5296
      %v5298 = vrot.slane %v5042, 2
      %v5299 = vsel %vm2024, %v5296, %v5298
      %v5300 = vrot.slane %v5043, 2
      %v5301 = vsel %vm2024, %v5298, %v5300
      %v5302 = vrot.slane %v5044, 2
      %v5303 = vsel %vm2024, %v5300, %v5302
      %v5304 = vrot.slane %v5045, 2
      %v5305 = vsel %vm2024, %v5302, %v5304
      %v5306 = vrot.slane %v5046, 2
      %v5307 = vsel %vm2024, %v5304, %v5306
      %v5308 = vrot.slane %v5047, 2
      %v5309 = vsel %vm2024, %v5306, %v5308
      %v5310 = vrot.slane %v5048, 2
      %v5311 = vsel %vm2024, %v5308, %v5310
      %v5312 = vrot.slane %v5049, 2
      %v5313 = vsel %vm2024, %v5310, %v5312
      %v5314 = vrot.slane %v5050, 2
      %v5315 = vsel %vm2024, %v5312, %v5314
      %v5316 = vrot.slane %v5051, 2
      %v5317 = vsel %vm2024, %v5314, %v5316
      %v5318 = vrot.slane %v5052, 2
      %v5319 = vsel %vm2024, %v5316, %v5318
      %v5320 = vrot.slane %v5053, 2
      %v5321 = vsel %vm2024, %v5318, %v5320
      %v5322 = vrot.slane %v5054, 2
      %v5323 = vsel %vm2024, %v5320, %v5322
      %v5324 = vrot.slane %v5055, 2
      %v5325 = vsel %vm2024, %v5322, %v5324
      %v5326 = vrot.slane %v5056, 2
      %v5327 = vsel %vm2024, %v5324, %v5326
      %v5328 = vrot.slane %v5057, 2
      %v5329 = vsel %vm2024, %v5326, %v5328
      %v5330 = vrot.slane %v5058, 2
      %v5331 = vsel %vm2024, %v5328, %v5330
      %v5332 = vrot.slane %v5059, 2
      %v5333 = vsel %vm2024, %v5330, %v5332
      %v5334 = vrot.slane %v5060, 2
      %v5335 = vsel %vm2024, %v5332, %v5334
      %v5336 = vrot.slane %v5061, 2
      %v5337 = vsel %vm2024, %v5334, %v5336
      %v5338 = vrot.slane %v5062, 2
      %v5339 = vsel %vm2024, %v5336, %v5338
      %v5340 = vrot.slane %v5063, 2
      %v5341 = vsel %vm2024, %v5338, %v5340
      %v5342 = vrot.slane %v5064, 2
      %v5343 = vsel %vm2024, %v5340, %v5342
      %v5344 = vrot.slane %v5065, 2
      %v5345 = vsel %vm2024, %v5342, %v5344
      %v5346 = vrot.slane %v5066, 2
      %v5347 = vsel %vm2024, %v5344, %v5346
      %v5348 = vrot.slane %v5067, 2
      %v5349 = vsel %vm2024, %v5346, %v5348
      %v5350 = vrot.slane %v5068, 2
      %v5351 = vsel %vm2024, %v5348, %v5350
      %v5352 = vrot.slane %v5069, 2
      %v5353 = vsel %vm2024, %v5350, %v5352
      %v5354 = vrot.slane %v5070, 2
      %v5355 = vsel %vm2024, %v5352, %v5354
      %v5356 = vrot.slane %v5071, 2
      %v5357 = vsel %vm2024, %v5354, %v5356
      %v5358 = vrot.slane %v5072, 2
      %v5359 = vsel %vm2024, %v5356, %v5358
      %v5360 = vrot.slane %v5073, 2
      %v5361 = vsel %vm2024, %v5358, %v5360
      %v5362 = vrot.slane %v5074, 2
      %v5363 = vsel %vm2024, %v5360, %v5362
      %v5364 = vrot.slane %v5075, 2
      %v5365 = vsel %vm2024, %v5362, %v5364
      %v5366 = vrot.slane %v5076, 2
      %v5367 = vsel %vm2024, %v5364, %v5366
      %v5368 = vrot.slane %v5077, 2
      %v5369 = vsel %vm2024, %v5366, %v5368
      %v5370 = vrot.slane %v5078, 2
      %v5371 = vsel %vm2024, %v5368, %v5370
      %v5372 = vrot.slane %v5079, 2
      %v5373 = vsel %vm2024, %v5370, %v5372
      %v5374 = vrot.slane %v5080, 2
      %v5375 = vsel %vm2024, %v5372, %v5374
      %v5376 = vrot.slane %v5081, 2
      %v5377 = vsel %vm2024, %v5374, %v5376
      %v5378 = vrot.slane %v5082, 2
      %v5379 = vsel %vm2024, %v5376, %v5378
      %v5380 = vrot.slane %v5083, 2
      %v5381 = vsel %vm2024, %v5378, %v5380
      %v5382 = vrot.slane %v5084, 2
      %v5383 = vsel %vm2024, %v5380, %v5382
      %v5384 = vrot.slane %v5085, 2
      %v5385 = vsel %vm2024, %v5382, %v5384
      %v5386 = vrot.slane %v5086, 2
      %v5387 = vsel %vm2024, %v5384, %v5386
      %v5388 = vrot.slane %v5087, 2
      %v5389 = vsel %vm2024, %v5386, %v5388
      %v5390 = vrot.slane %v5088, 2
      %v5391 = vsel %vm2024, %v5388, %v5390
      %v5392 = vrot.slane %v5089, 2
      %v5393 = vsel %vm2024, %v5390, %v5392
      %v5394 = vrot.slane %v5090, 2
      %v5395 = vsel %vm2024, %v5392, %v5394
      %v5396 = vrot.slane %v5091, 2
      %v5397 = vsel %vm2024, %v5394, %v5396
      %v5398 = vrot.slane %v5092, 2
      %v5399 = vsel %vm2024, %v5396, %v5398
      %v5400 = vrot.slane %v5093, 2
      %v5401 = vsel %vm2024, %v5398, %v5400
      %v5402 = vrot.slane %v5094, 2
      %v5403 = vsel %vm2024, %v5400, %v5402
      %v5404 = vrot.slane %v5095, 2
      %v5405 = vsel %vm2024, %v5402, %v5404
      %v5406 = vrot.slane %v5096, 2
      %v5407 = vsel %vm2024, %v5404, %v5406
      %v5408 = vrot.slane %v5097, 2
      %v5409 = vsel %vm2024, %v5406, %v5408
      %v5410 = vrot.slane %v5098, 2
      %v5411 = vsel %vm2024, %v5408, %v5410
      %v5412 = vrot.slane %v5099, 2
      %v5413 = vsel %vm2024, %v5410, %v5412
      %v5414 = vrot.slane %v5100, 2
      %v5415 = vsel %vm2024, %v5412, %v5414
      %v5416 = vrot.slane %v5101, 2
      %v5417 = vsel %vm2024, %v5414, %v5416
      %v5418 = vrot.slane %v5102, 2
      %v5419 = vsel %vm2024, %v5416, %v5418
      %v5420 = vrot.slane %v5103, 2
      %v5421 = vsel %vm2024, %v5418, %v5420
      %v5422 = vrot.slane %v5104, 2
      %v5423 = vsel %vm2024, %v5420, %v5422
      %v5424 = vrot.slane %v5105, 2
      %v5425 = vsel %vm2024, %v5422, %v5424
      %v5426 = vrot.slane %v5106, 2
      %v5427 = vsel %vm2024, %v5424, %v5426
      %v5428 = vrot.slane %v5107, 2
      %v5429 = vsel %vm2024, %v5426, %v5428
      %v5430 = vrot.slane %v5108, 2
      %v5431 = vsel %vm2024, %v5428, %v5430
      %v5432 = vrot.slane %v5109, 2
      %v5433 = vsel %vm2024, %v5430, %v5432
      %v5434 = vrot.slane %v5110, 2
      %v5435 = vsel %vm2024, %v5432, %v5434
      %v5436 = vrot.slane %v5111, 2
      %v5437 = vsel %vm2024, %v5434, %v5436
      %v5438 = vrot.slane %v5112, 2
      %v5439 = vsel %vm2024, %v5436, %v5438
      %v5440 = vrot.slane %v5113, 2
      %v5441 = vsel %vm2024, %v5438, %v5440
      %v5442 = vrot.slane %v5114, 2
      %v5443 = vsel %vm2024, %v5440, %v5442
      %v5444 = vrot.slane %v5115, 2
      %v5445 = vsel %vm2024, %v5442, %v5444
      %v5446 = vrot.slane %v5116, 2
      %v5447 = vsel %vm2024, %v5444, %v5446
      %v5448 = vrot.slane %v5117, 2
      %v5449 = vsel %vm2024, %v5446, %v5448
      %v5450 = vrot.slane %v5118, 2
      %v5451 = vsel %vm2024, %v5448, %v5450
      %v5452 = vrot.slane %v5119, 2
      %v5453 = vsel %vm2024, %v5450, %v5452
      %v5454 = vrot.slane %v5120, 2
      %v5455 = vsel %vm2024, %v5452, %v5454
      %v5456 = vrot.slane %v5121, 2
      %v5457 = vsel %vm2024, %v5454, %v5456
      %v5458 = vrot.slane %v5122, 2
      %v5459 = vsel %vm2024, %v5456, %v5458
      %v5460 = vrot.slane %v5123, 2
      %v5461 = vsel %vm2024, %v5458, %v5460
      %v5574 = vadd.f32 %v4895, %v5239
      %v5575 = vadd.f32 %v4896, %v5241
      %v5576 = vadd.f32 %v4897, %v5243
      %v5577 = vadd.f32 %v4898, %v5245
      %v5578 = vadd.f32 %v4899, %v5247
      %v5579 = vadd.f32 %v4900, %v5249
      %v5580 = vadd.f32 %v4901, %v5251
      %v5581 = vadd.f32 %v4902, %v5253
      %v5582 = vadd.f32 %v4903, %v5255
      %v5583 = vadd.f32 %v4904, %v5257
      %v5584 = vadd.f32 %v4905, %v5259
      %v5585 = vadd.f32 %v4906, %v5261
      %v5586 = vadd.f32 %v4907, %v5263
      %v5587 = vadd.f32 %v4908, %v5265
      %v5588 = vadd.f32 %v4909, %v5267
      %v5589 = vadd.f32 %v4910, %v5269
      %v5590 = vadd.f32 %v4911, %v5271
      %v5591 = vadd.f32 %v4912, %v5273
      %v5592 = vadd.f32 %v4913, %v5275
      %v5593 = vadd.f32 %v4914, %v5277
      %v5594 = vadd.f32 %v4915, %v5279
      %v5595 = vadd.f32 %v4916, %v5281
      %v5596 = vadd.f32 %v4917, %v5283
      %v5597 = vadd.f32 %v4918, %v5285
      %v5598 = vadd.f32 %v4919, %v5287
      %v5599 = vadd.f32 %v4920, %v5289
      %v5600 = vadd.f32 %v4921, %v5291
      %v5601 = vadd.f32 %v4922, %v5293
      %v5602 = vadd.f32 %v4923, %v5295
      %v5603 = vadd.f32 %v4924, %v5297
      %v5604 = vadd.f32 %v4925, %v5299
      %v5605 = vadd.f32 %v4926, %v5301
      %v5606 = vadd.f32 %v4927, %v5303
      %v5607 = vadd.f32 %v4928, %v5305
      %v5608 = vadd.f32 %v4929, %v5307
      %v5609 = vadd.f32 %v4930, %v5309
      %v5610 = vadd.f32 %v4931, %v5311
      %v5611 = vadd.f32 %v4932, %v5313
      %v5612 = vadd.f32 %v4933, %v5315
      %v5613 = vadd.f32 %v4934, %v5317
      %v5614 = vadd.f32 %v4935, %v5319
      %v5615 = vadd.f32 %v4936, %v5321
      %v5616 = vadd.f32 %v4937, %v5323
      %v5617 = vadd.f32 %v4938, %v5325
      %v5618 = vadd.f32 %v4939, %v5327
      %v5619 = vadd.f32 %v4940, %v5329
      %v5620 = vadd.f32 %v4941, %v5331
      %v5621 = vadd.f32 %v4942, %v5333
      %v5622 = vadd.f32 %v4943, %v5335
      %v5623 = vadd.f32 %v4944, %v5337
      %v5624 = vadd.f32 %v4945, %v5339
      %v5625 = vadd.f32 %v4946, %v5341
      %v5626 = vadd.f32 %v4947, %v5343
      %v5627 = vadd.f32 %v4948, %v5345
      %v5628 = vadd.f32 %v4949, %v5347
      %v5629 = vadd.f32 %v4950, %v5349
      %v5630 = vadd.f32 %v4951, %v5351
      %v5631 = vadd.f32 %v4952, %v5353
      %v5632 = vadd.f32 %v4953, %v5355
      %v5633 = vadd.f32 %v4954, %v5357
      %v5634 = vadd.f32 %v4955, %v5359
      %v5635 = vadd.f32 %v4956, %v5361
      %v5636 = vadd.f32 %v4957, %v5363
      %v5637 = vadd.f32 %v4958, %v5365
      %v5638 = vadd.f32 %v4959, %v5367
      %v5639 = vadd.f32 %v4960, %v5369
      %v5640 = vadd.f32 %v4961, %v5371
      %v5641 = vadd.f32 %v4962, %v5373
      %v5642 = vadd.f32 %v4963, %v5375
      %v5643 = vadd.f32 %v4964, %v5377
      %v5644 = vadd.f32 %v4965, %v5379
      %v5645 = vadd.f32 %v4966, %v5381
      %v5646 = vadd.f32 %v4967, %v5383
      %v5647 = vadd.f32 %v4968, %v5385
      %v5648 = vadd.f32 %v4969, %v5387
      %v5649 = vadd.f32 %v4970, %v5389
      %v5650 = vadd.f32 %v4971, %v5391
      %v5651 = vadd.f32 %v4972, %v5393
      %v5652 = vadd.f32 %v4973, %v5395
      %v5653 = vadd.f32 %v4974, %v5397
      %v5654 = vadd.f32 %v4975, %v5399
      %v5655 = vadd.f32 %v4976, %v5401
      %v5656 = vadd.f32 %v4977, %v5403
      %v5657 = vadd.f32 %v4978, %v5405
      %v5658 = vadd.f32 %v4979, %v5407
      %v5659 = vadd.f32 %v4980, %v5409
      %v5660 = vadd.f32 %v4981, %v5411
      %v5661 = vadd.f32 %v4982, %v5413
      %v5662 = vadd.f32 %v4983, %v5415
      %v5663 = vadd.f32 %v4984, %v5417
      %v5664 = vadd.f32 %v4985, %v5419
      %v5665 = vadd.f32 %v4986, %v5421
      %v5666 = vadd.f32 %v4987, %v5423
      %v5667 = vadd.f32 %v4988, %v5425
      %v5668 = vadd.f32 %v4989, %v5427
      %v5669 = vadd.f32 %v4990, %v5429
      %v5670 = vadd.f32 %v4991, %v5431
      %v5671 = vadd.f32 %v4992, %v5433
      %v5672 = vadd.f32 %v4993, %v5435
      %v5673 = vadd.f32 %v4994, %v5437
      %v5674 = vadd.f32 %v4995, %v5439
      %v5675 = vadd.f32 %v4996, %v5441
      %v5676 = vadd.f32 %v4997, %v5443
      %v5677 = vadd.f32 %v4998, %v5445
      %v5678 = vadd.f32 %v4999, %v5447
      %v5679 = vadd.f32 %v5000, %v5449
      %v5680 = vadd.f32 %v5001, %v5451
      %v5681 = vadd.f32 %v5002, %v5453
      %v5682 = vadd.f32 %v5003, %v5455
      %v5683 = vadd.f32 %v5004, %v5457
      %v5684 = vadd.f32 %v5005, %v5459
      %v5685 = vadd.f32 %v5006, %v5461
      %v5686 = vld [vmem:[%s2] sm:$0x1]
      %v5688 = vlaneseq
      %v5689 = vshrl.u32 %v5688, 7
      %v5690 = vsub.s32 0, %v5689
      %v5691 = vrot.slane %v5686, %v5690
      %v5693 = vadd.f32 %v5574, %v5691
      %v5694 = vadd.f32 %v5575, %v5691
      %v5695 = vadd.f32 %v5576, %v5691
      %v5696 = vadd.f32 %v5577, %v5691
      %v5697 = vadd.f32 %v5578, %v5691
      %v5698 = vadd.f32 %v5579, %v5691
      %v5699 = vadd.f32 %v5580, %v5691
      %v5700 = vadd.f32 %v5581, %v5691
      %v5701 = vadd.f32 %v5582, %v5691
      %v5702 = vadd.f32 %v5583, %v5691
      %v5703 = vadd.f32 %v5584, %v5691
      %v5704 = vadd.f32 %v5585, %v5691
      %v5705 = vadd.f32 %v5586, %v5691
      %v5706 = vadd.f32 %v5587, %v5691
      %v5707 = vadd.f32 %v5588, %v5691
      %v5708 = vadd.f32 %v5589, %v5691
      %v5709 = vadd.f32 %v5590, %v5691
      %v5710 = vadd.f32 %v5591, %v5691
      %v5711 = vadd.f32 %v5592, %v5691
      %v5712 = vadd.f32 %v5593, %v5691
      %v5713 = vadd.f32 %v5594, %v5691
      %v5714 = vadd.f32 %v5595, %v5691
      %v5715 = vadd.f32 %v5596, %v5691
      %v5716 = vadd.f32 %v5597, %v5691
      %v5717 = vadd.f32 %v5598, %v5691
      %v5718 = vadd.f32 %v5599, %v5691
      %v5719 = vadd.f32 %v5600, %v5691
      %v5720 = vadd.f32 %v5601, %v5691
      %v5721 = vadd.f32 %v5602, %v5691
      %v5722 = vadd.f32 %v5603, %v5691
      %v5723 = vadd.f32 %v5604, %v5691
      %v5724 = vadd.f32 %v5605, %v5691
      %v5725 = vadd.f32 %v5606, %v5691
      %v5726 = vadd.f32 %v5607, %v5691
      %v5727 = vadd.f32 %v5608, %v5691
      %v5728 = vadd.f32 %v5609, %v5691
      %v5729 = vadd.f32 %v5610, %v5691
      %v5730 = vadd.f32 %v5611, %v5691
      %v5731 = vadd.f32 %v5612, %v5691
      %v5732 = vadd.f32 %v5613, %v5691
      %v5733 = vadd.f32 %v5614, %v5691
      %v5734 = vadd.f32 %v5615, %v5691
      %v5735 = vadd.f32 %v5616, %v5691
      %v5736 = vadd.f32 %v5617, %v5691
      %v5737 = vadd.f32 %v5618, %v5691
      %v5738 = vadd.f32 %v5619, %v5691
      %v5739 = vadd.f32 %v5620, %v5691
      %v5740 = vadd.f32 %v5621, %v5691
      %v5741 = vadd.f32 %v5622, %v5691
      %v5742 = vadd.f32 %v5623, %v5691
      %v5743 = vadd.f32 %v5624, %v5691
      %v5744 = vadd.f32 %v5625, %v5691
      %v5745 = vadd.f32 %v5626, %v5691
      %v5746 = vadd.f32 %v5627, %v5691
      %v5747 = vadd.f32 %v5628, %v5691
      %v5748 = vadd.f32 %v5629, %v5691
      %v5749 = vadd.f32 %v5630, %v5691
      %v5750 = vadd.f32 %v5631, %v5691
      %v5751 = vadd.f32 %v5632, %v5691
      %v5752 = vadd.f32 %v5633, %v5691
      %v5753 = vadd.f32 %v5634, %v5691
      %v5754 = vadd.f32 %v5635, %v5691
      %v5755 = vadd.f32 %v5636, %v5691
      %v5756 = vadd.f32 %v5637, %v5691
      %v5757 = vadd.f32 %v5638, %v5691
      %v5758 = vadd.f32 %v5639, %v5691
      %v5759 = vadd.f32 %v5640, %v5691
      %v5760 = vadd.f32 %v5641, %v5691
      %v5761 = vadd.f32 %v5642, %v5691
      %v5762 = vadd.f32 %v5643, %v5691
      %v5763 = vadd.f32 %v5644, %v5691
      %v5764 = vadd.f32 %v5645, %v5691
      %v5765 = vadd.f32 %v5646, %v5691
      %v5766 = vadd.f32 %v5647, %v5691
      %v5767 = vadd.f32 %v5648, %v5691
      %v5768 = vadd.f32 %v5649, %v5691
      %v5769 = vadd.f32 %v5650, %v5691
      %v5770 = vadd.f32 %v5651, %v5691
      %v5771 = vadd.f32 %v5652, %v5691
      %v5772 = vadd.f32 %v5653, %v5691
      %v5773 = vadd.f32 %v5654, %v5691
      %v5774 = vadd.f32 %v5655, %v5691
      %v5775 = vadd.f32 %v5656, %v5691
      %v5776 = vadd.f32 %v5657, %v5691
      %v5777 = vadd.f32 %v5658, %v5691
      %v5778 = vadd.f32 %v5659, %v5691
      %v5779 = vadd.f32 %v5660, %v5691
      %v5780 = vadd.f32 %v5661, %v5691
      %v5781 = vadd.f32 %v5662, %v5691
      %v5782 = vadd.f32 %v5663, %v5691
      %v5783 = vadd.f32 %v5664, %v5691
      %v5784 = vadd.f32 %v5665, %v5691
      %v5785 = vadd.f32 %v5666, %v5691
      %v5786 = vadd.f32 %v5667, %v5691
      %v5787 = vadd.f32 %v5668, %v5691
      %v5788 = vadd.f32 %v5669, %v5691
      %v5789 = vadd.f32 %v5670, %v5691
      %v5790 = vadd.f32 %v5671, %v5691
      %v5791 = vadd.f32 %v5672, %v5691
      %v5792 = vadd.f32 %v5673, %v5691
      %v5793 = vadd.f32 %v5674, %v5691
      %v5794 = vadd.f32 %v5675, %v5691
      %v5795 = vadd.f32 %v5676, %v5691
      %v5796 = vadd.f32 %v5677, %v5691
      %v5797 = vadd.f32 %v5678, %v5691
      %v5798 = vadd.f32 %v5679, %v5691
      %v5799 = vadd.f32 %v5680, %v5691
      %v5800 = vadd.f32 %v5681, %v5691
      %v5801 = vadd.f32 %v5682, %v5691
      %v5802 = vadd.f32 %v5683, %v5691
      %v5803 = vadd.f32 %v5684, %v5691
      %v5804 = vadd.f32 %v5685, %v5691
      %v5805 = vmax.f32 %v5693, 0.0
      %v5806 = vmax.f32 %v5694, 0.0
      %v5807 = vmax.f32 %v5695, 0.0
      %v5808 = vmax.f32 %v5696, 0.0
      %v5809 = vmax.f32 %v5697, 0.0
      %v5810 = vmax.f32 %v5698, 0.0
      %v5811 = vmax.f32 %v5699, 0.0
      %v5812 = vmax.f32 %v5700, 0.0
      %v5813 = vmax.f32 %v5701, 0.0
      %v5814 = vmax.f32 %v5702, 0.0
      %v5815 = vmax.f32 %v5703, 0.0
      %v5816 = vmax.f32 %v5704, 0.0
      %v5817 = vmax.f32 %v5705, 0.0
      %v5818 = vmax.f32 %v5706, 0.0
      %v5819 = vmax.f32 %v5707, 0.0
      %v5820 = vmax.f32 %v5708, 0.0
      %v5821 = vmax.f32 %v5709, 0.0
      %v5822 = vmax.f32 %v5710, 0.0
      %v5823 = vmax.f32 %v5711, 0.0
      %v5824 = vmax.f32 %v5712, 0.0
      %v5825 = vmax.f32 %v5713, 0.0
      %v5826 = vmax.f32 %v5714, 0.0
      %v5827 = vmax.f32 %v5715, 0.0
      %v5828 = vmax.f32 %v5716, 0.0
      %v5829 = vmax.f32 %v5717, 0.0
      %v5830 = vmax.f32 %v5718, 0.0
      %v5831 = vmax.f32 %v5719, 0.0
      %v5832 = vmax.f32 %v5720, 0.0
      %v5833 = vmax.f32 %v5721, 0.0
      %v5834 = vmax.f32 %v5722, 0.0
      %v5835 = vmax.f32 %v5723, 0.0
      %v5836 = vmax.f32 %v5724, 0.0
      %v5837 = vmax.f32 %v5725, 0.0
      %v5838 = vmax.f32 %v5726, 0.0
      %v5839 = vmax.f32 %v5727, 0.0
      %v5840 = vmax.f32 %v5728, 0.0
      %v5841 = vmax.f32 %v5729, 0.0
      %v5842 = vmax.f32 %v5730, 0.0
      %v5843 = vmax.f32 %v5731, 0.0
      %v5844 = vmax.f32 %v5732, 0.0
      %v5845 = vmax.f32 %v5733, 0.0
      %v5846 = vmax.f32 %v5734, 0.0
      %v5847 = vmax.f32 %v5735, 0.0
      %v5848 = vmax.f32 %v5736, 0.0
      %v5849 = vmax.f32 %v5737, 0.0
      %v5850 = vmax.f32 %v5738, 0.0
      %v5851 = vmax.f32 %v5739, 0.0
      %v5852 = vmax.f32 %v5740, 0.0
      %v5853 = vmax.f32 %v5741, 0.0
      %v5854 = vmax.f32 %v5742, 0.0
      %v5855 = vmax.f32 %v5743, 0.0
      %v5856 = vmax.f32 %v5744, 0.0
      %v5857 = vmax.f32 %v5745, 0.0
      %v5858 = vmax.f32 %v5746, 0.0
      %v5859 = vmax.f32 %v5747, 0.0
      %v5860 = vmax.f32 %v5748, 0.0
      %v5861 = vmax.f32 %v5749, 0.0
      %v5862 = vmax.f32 %v5750, 0.0
      %v5863 = vmax.f32 %v5751, 0.0
      %v5864 = vmax.f32 %v5752, 0.0
      %v5865 = vmax.f32 %v5753, 0.0
      %v5866 = vmax.f32 %v5754, 0.0
      %v5867 = vmax.f32 %v5755, 0.0
      %v5868 = vmax.f32 %v5756, 0.0
      %v5869 = vmax.f32 %v5757, 0.0
      %v5870 = vmax.f32 %v5758, 0.0
      %v5871 = vmax.f32 %v5759, 0.0
      %v5872 = vmax.f32 %v5760, 0.0
      %v5873 = vmax.f32 %v5761, 0.0
      %v5874 = vmax.f32 %v5762, 0.0
      %v5875 = vmax.f32 %v5763, 0.0
      %v5876 = vmax.f32 %v5764, 0.0
      %v5877 = vmax.f32 %v5765, 0.0
      %v5878 = vmax.f32 %v5766, 0.0
      %v5879 = vmax.f32 %v5767, 0.0
      %v5880 = vmax.f32 %v5768, 0.0
      %v5881 = vmax.f32 %v5769, 0.0
      %v5882 = vmax.f32 %v5770, 0.0
      %v5883 = vmax.f32 %v5771, 0.0
      %v5884 = vmax.f32 %v5772, 0.0
      %v5885 = vmax.f32 %v5773, 0.0
      %v5886 = vmax.f32 %v5774, 0.0
      %v5887 = vmax.f32 %v5775, 0.0
      %v5888 = vmax.f32 %v5776, 0.0
      %v5889 = vmax.f32 %v5777, 0.0
      %v5890 = vmax.f32 %v5778, 0.0
      %v5891 = vmax.f32 %v5779, 0.0
      %v5892 = vmax.f32 %v5780, 0.0
      %v5893 = vmax.f32 %v5781, 0.0
      %v5894 = vmax.f32 %v5782, 0.0
      %v5895 = vmax.f32 %v5783, 0.0
      %v5896 = vmax.f32 %v5784, 0.0
      %v5897 = vmax.f32 %v5785, 0.0
      %v5898 = vmax.f32 %v5786, 0.0
      %v5899 = vmax.f32 %v5787, 0.0
      %v5900 = vmax.f32 %v5788, 0.0
      %v5901 = vmax.f32 %v5789, 0.0
      %v5902 = vmax.f32 %v5790, 0.0
      %v5903 = vmax.f32 %v5791, 0.0
      %v5904 = vmax.f32 %v5792, 0.0
      %v5905 = vmax.f32 %v5793, 0.0
      %v5906 = vmax.f32 %v5794, 0.0
      %v5907 = vmax.f32 %v5795, 0.0
      %v5908 = vmax.f32 %v5796, 0.0
      %v5909 = vmax.f32 %v5797, 0.0
      %v5910 = vmax.f32 %v5798, 0.0
      %v5911 = vmax.f32 %v5799, 0.0
      %v5912 = vmax.f32 %v5800, 0.0
      %v5913 = vmax.f32 %v5801, 0.0
      %v5914 = vmax.f32 %v5802, 0.0
      %v5915 = vmax.f32 %v5803, 0.0
      %v5916 = vmax.f32 %v5804, 0.0
      %v6025 = vrot.slane %v5805, 1
      %v6026 = vrot.slane %v5806, 1
      %v6027 = vsel %vm1344, %v6025, %v6026
      %v6028 = vrot.slane %v5807, 1
      %v6029 = vsel %vm1344, %v6026, %v6028
      %v6030 = vrot.slane %v5808, 1
      %v6031 = vsel %vm1344, %v6028, %v6030
      %v6032 = vrot.slane %v5809, 1
      %v6033 = vsel %vm1344, %v6030, %v6032
      %v6034 = vrot.slane %v5810, 1
      %v6035 = vsel %vm1344, %v6032, %v6034
      %v6036 = vrot.slane %v5811, 1
      %v6037 = vsel %vm1344, %v6034, %v6036
      %v6038 = vrot.slane %v5812, 1
      %v6039 = vsel %vm1344, %v6036, %v6038
      %v6040 = vrot.slane %v5813, 1
      %v6041 = vsel %vm1344, %v6038, %v6040
      %v6042 = vrot.slane %v5814, 1
      %v6043 = vsel %vm1344, %v6040, %v6042
      %v6044 = vrot.slane %v5815, 1
      %v6045 = vsel %vm1344, %v6042, %v6044
      %v6046 = vrot.slane %v5816, 1
      %v6047 = vsel %vm1344, %v6044, %v6046
      %v6048 = vrot.slane %v5817, 1
      %v6049 = vsel %vm1344, %v6046, %v6048
      %v6050 = vrot.slane %v5818, 1
      %v6051 = vsel %vm1344, %v6048, %v6050
      %v6052 = vrot.slane %v5819, 1
      %v6053 = vsel %vm1344, %v6050, %v6052
      %v6054 = vrot.slane %v5820, 1
      %v6055 = vsel %vm1344, %v6052, %v6054
      %v6056 = vrot.slane %v5821, 1
      %v6057 = vsel %vm1344, %v6054, %v6056
      %v6058 = vrot.slane %v5822, 1
      %v6059 = vsel %vm1344, %v6056, %v6058
      %v6060 = vrot.slane %v5823, 1
      %v6061 = vsel %vm1344, %v6058, %v6060
      %v6062 = vrot.slane %v5824, 1
      %v6063 = vsel %vm1344, %v6060, %v6062
      %v6064 = vrot.slane %v5825, 1
      %v6065 = vsel %vm1344, %v6062, %v6064
      %v6066 = vrot.slane %v5826, 1
      %v6067 = vsel %vm1344, %v6064, %v6066
      %v6068 = vrot.slane %v5827, 1
      %v6069 = vsel %vm1344, %v6066, %v6068
      %v6070 = vrot.slane %v5828, 1
      %v6071 = vsel %vm1344, %v6068, %v6070
      %v6072 = vrot.slane %v5829, 1
      %v6073 = vsel %vm1344, %v6070, %v6072
      %v6074 = vrot.slane %v5830, 1
      %v6075 = vsel %vm1344, %v6072, %v6074
      %v6076 = vrot.slane %v5831, 1
      %v6077 = vsel %vm1344, %v6074, %v6076
      %v6078 = vrot.slane %v5832, 1
      %v6079 = vsel %vm1344, %v6076, %v6078
      %v6080 = vrot.slane %v5833, 1
      %v6081 = vsel %vm1344, %v6078, %v6080
      %v6082 = vrot.slane %v5834, 1
      %v6083 = vsel %vm1344, %v6080, %v6082
      %v6084 = vrot.slane %v5835, 1
      %v6085 = vsel %vm1344, %v6082, %v6084
      %v6086 = vrot.slane %v5836, 1
      %v6087 = vsel %vm1344, %v6084, %v6086
      %v6088 = vrot.slane %v5837, 1
      %v6089 = vsel %vm1344, %v6086, %v6088
      %v6090 = vrot.slane %v5838, 1
      %v6091 = vsel %vm1344, %v6088, %v6090
      %v6092 = vrot.slane %v5839, 1
      %v6093 = vsel %vm1344, %v6090, %v6092
      %v6094 = vrot.slane %v5840, 1
      %v6095 = vsel %vm1344, %v6092, %v6094
      %v6096 = vrot.slane %v5841, 1
      %v6097 = vsel %vm1344, %v6094, %v6096
      %v6098 = vrot.slane %v5842, 1
      %v6099 = vsel %vm1344, %v6096, %v6098
      %v6100 = vrot.slane %v5843, 1
      %v6101 = vsel %vm1344, %v6098, %v6100
      %v6102 = vrot.slane %v5844, 1
      %v6103 = vsel %vm1344, %v6100, %v6102
      %v6104 = vrot.slane %v5845, 1
      %v6105 = vsel %vm1344, %v6102, %v6104
      %v6106 = vrot.slane %v5846, 1
      %v6107 = vsel %vm1344, %v6104, %v6106
      %v6108 = vrot.slane %v5847, 1
      %v6109 = vsel %vm1344, %v6106, %v6108
      %v6110 = vrot.slane %v5848, 1
      %v6111 = vsel %vm1344, %v6108, %v6110
      %v6112 = vrot.slane %v5849, 1
      %v6113 = vsel %vm1344, %v6110, %v6112
      %v6114 = vrot.slane %v5850, 1
      %v6115 = vsel %vm1344, %v6112, %v6114
      %v6116 = vrot.slane %v5851, 1
      %v6117 = vsel %vm1344, %v6114, %v6116
      %v6118 = vrot.slane %v5852, 1
      %v6119 = vsel %vm1344, %v6116, %v6118
      %v6120 = vrot.slane %v5853, 1
      %v6121 = vsel %vm1344, %v6118, %v6120
      %v6122 = vrot.slane %v5854, 1
      %v6123 = vsel %vm1344, %v6120, %v6122
      %v6124 = vrot.slane %v5855, 1
      %v6125 = vsel %vm1344, %v6122, %v6124
      %v6126 = vrot.slane %v5856, 1
      %v6127 = vsel %vm1344, %v6124, %v6126
      %v6128 = vrot.slane %v5857, 1
      %v6129 = vsel %vm1344, %v6126, %v6128
      %v6130 = vrot.slane %v5858, 1
      %v6131 = vsel %vm1344, %v6128, %v6130
      %v6132 = vrot.slane %v5859, 1
      %v6133 = vsel %vm1344, %v6130, %v6132
      %v6134 = vrot.slane %v5860, 1
      %v6135 = vsel %vm1344, %v6132, %v6134
      %v6136 = vrot.slane %v5861, 1
      %v6137 = vsel %vm1344, %v6134, %v6136
      %v6138 = vrot.slane %v5862, 1
      %v6139 = vsel %vm1344, %v6136, %v6138
      %v6140 = vrot.slane %v5863, 1
      %v6141 = vsel %vm1344, %v6138, %v6140
      %v6142 = vrot.slane %v5864, 1
      %v6143 = vsel %vm1344, %v6140, %v6142
      %v6144 = vrot.slane %v5865, 1
      %v6145 = vsel %vm1344, %v6142, %v6144
      %v6146 = vrot.slane %v5866, 1
      %v6147 = vsel %vm1344, %v6144, %v6146
      %v6148 = vrot.slane %v5867, 1
      %v6149 = vsel %vm1344, %v6146, %v6148
      %v6150 = vrot.slane %v5868, 1
      %v6151 = vsel %vm1344, %v6148, %v6150
      %v6152 = vrot.slane %v5869, 1
      %v6153 = vsel %vm1344, %v6150, %v6152
      %v6154 = vrot.slane %v5870, 1
      %v6155 = vsel %vm1344, %v6152, %v6154
      %v6156 = vrot.slane %v5871, 1
      %v6157 = vsel %vm1344, %v6154, %v6156
      %v6158 = vrot.slane %v5872, 1
      %v6159 = vsel %vm1344, %v6156, %v6158
      %v6160 = vrot.slane %v5873, 1
      %v6161 = vsel %vm1344, %v6158, %v6160
      %v6162 = vrot.slane %v5874, 1
      %v6163 = vsel %vm1344, %v6160, %v6162
      %v6164 = vrot.slane %v5875, 1
      %v6165 = vsel %vm1344, %v6162, %v6164
      %v6166 = vrot.slane %v5876, 1
      %v6167 = vsel %vm1344, %v6164, %v6166
      %v6168 = vrot.slane %v5877, 1
      %v6169 = vsel %vm1344, %v6166, %v6168
      %v6170 = vrot.slane %v5878, 1
      %v6171 = vsel %vm1344, %v6168, %v6170
      %v6172 = vrot.slane %v5879, 1
      %v6173 = vsel %vm1344, %v6170, %v6172
      %v6174 = vrot.slane %v5880, 1
      %v6175 = vsel %vm1344, %v6172, %v6174
      %v6176 = vrot.slane %v5881, 1
      %v6177 = vsel %vm1344, %v6174, %v6176
      %v6178 = vrot.slane %v5882, 1
      %v6179 = vsel %vm1344, %v6176, %v6178
      %v6180 = vrot.slane %v5883, 1
      %v6181 = vsel %vm1344, %v6178, %v6180
      %v6182 = vrot.slane %v5884, 1
      %v6183 = vsel %vm1344, %v6180, %v6182
      %v6184 = vrot.slane %v5885, 1
      %v6185 = vsel %vm1344, %v6182, %v6184
      %v6186 = vrot.slane %v5886, 1
      %v6187 = vsel %vm1344, %v6184, %v6186
      %v6188 = vrot.slane %v5887, 1
      %v6189 = vsel %vm1344, %v6186, %v6188
      %v6190 = vrot.slane %v5888, 1
      %v6191 = vsel %vm1344, %v6188, %v6190
      %v6192 = vrot.slane %v5889, 1
      %v6193 = vsel %vm1344, %v6190, %v6192
      %v6194 = vrot.slane %v5890, 1
      %v6195 = vsel %vm1344, %v6192, %v6194
      %v6196 = vrot.slane %v5891, 1
      %v6197 = vsel %vm1344, %v6194, %v6196
      %v6198 = vrot.slane %v5892, 1
      %v6199 = vsel %vm1344, %v6196, %v6198
      %v6200 = vrot.slane %v5893, 1
      %v6201 = vsel %vm1344, %v6198, %v6200
      %v6202 = vrot.slane %v5894, 1
      %v6203 = vsel %vm1344, %v6200, %v6202
      %v6204 = vrot.slane %v5895, 1
      %v6205 = vsel %vm1344, %v6202, %v6204
      %v6206 = vrot.slane %v5896, 1
      %v6207 = vsel %vm1344, %v6204, %v6206
      %v6208 = vrot.slane %v5897, 1
      %v6209 = vsel %vm1344, %v6206, %v6208
      %v6210 = vrot.slane %v5898, 1
      %v6211 = vsel %vm1344, %v6208, %v6210
      %v6212 = vrot.slane %v5899, 1
      %v6213 = vsel %vm1344, %v6210, %v6212
      %v6214 = vrot.slane %v5900, 1
      %v6215 = vsel %vm1344, %v6212, %v6214
      %v6216 = vrot.slane %v5901, 1
      %v6217 = vsel %vm1344, %v6214, %v6216
      %v6218 = vrot.slane %v5902, 1
      %v6219 = vsel %vm1344, %v6216, %v6218
      %v6220 = vrot.slane %v5903, 1
      %v6221 = vsel %vm1344, %v6218, %v6220
      %v6222 = vrot.slane %v5904, 1
      %v6223 = vsel %vm1344, %v6220, %v6222
      %v6224 = vrot.slane %v5905, 1
      %v6225 = vsel %vm1344, %v6222, %v6224
      %v6226 = vrot.slane %v5906, 1
      %v6227 = vsel %vm1344, %v6224, %v6226
      %v6228 = vrot.slane %v5907, 1
      %v6229 = vsel %vm1344, %v6226, %v6228
      %v6230 = vrot.slane %v5908, 1
      %v6231 = vsel %vm1344, %v6228, %v6230
      %v6232 = vrot.slane %v5909, 1
      %v6233 = vsel %vm1344, %v6230, %v6232
      %v6234 = vrot.slane %v5910, 1
      %v6235 = vsel %vm1344, %v6232, %v6234
      %v6236 = vrot.slane %v5911, 1
      %v6237 = vsel %vm1344, %v6234, %v6236
      %v6238 = vrot.slane %v5912, 1
      %v6239 = vsel %vm1344, %v6236, %v6238
      %v6348 = vmax.f32 %v5805, %v6027
      %v6349 = vmax.f32 %v5806, %v6029
      %v6350 = vmax.f32 %v5807, %v6031
      %v6351 = vmax.f32 %v5808, %v6033
      %v6352 = vmax.f32 %v5809, %v6035
      %v6353 = vmax.f32 %v5810, %v6037
      %v6354 = vmax.f32 %v5811, %v6039
      %v6355 = vmax.f32 %v5812, %v6041
      %v6356 = vmax.f32 %v5813, %v6043
      %v6357 = vmax.f32 %v5814, %v6045
      %v6358 = vmax.f32 %v5815, %v6047
      %v6359 = vmax.f32 %v5816, %v6049
      %v6360 = vmax.f32 %v5817, %v6051
      %v6361 = vmax.f32 %v5818, %v6053
      %v6362 = vmax.f32 %v5819, %v6055
      %v6363 = vmax.f32 %v5820, %v6057
      %v6364 = vmax.f32 %v5821, %v6059
      %v6365 = vmax.f32 %v5822, %v6061
      %v6366 = vmax.f32 %v5823, %v6063
      %v6367 = vmax.f32 %v5824, %v6065
      %v6368 = vmax.f32 %v5825, %v6067
      %v6369 = vmax.f32 %v5826, %v6069
      %v6370 = vmax.f32 %v5827, %v6071
      %v6371 = vmax.f32 %v5828, %v6073
      %v6372 = vmax.f32 %v5829, %v6075
      %v6373 = vmax.f32 %v5830, %v6077
      %v6374 = vmax.f32 %v5831, %v6079
      %v6375 = vmax.f32 %v5832, %v6081
      %v6376 = vmax.f32 %v5833, %v6083
      %v6377 = vmax.f32 %v5834, %v6085
      %v6378 = vmax.f32 %v5835, %v6087
      %v6379 = vmax.f32 %v5836, %v6089
      %v6380 = vmax.f32 %v5837, %v6091
      %v6381 = vmax.f32 %v5838, %v6093
      %v6382 = vmax.f32 %v5839, %v6095
      %v6383 = vmax.f32 %v5840, %v6097
      %v6384 = vmax.f32 %v5841, %v6099
      %v6385 = vmax.f32 %v5842, %v6101
      %v6386 = vmax.f32 %v5843, %v6103
      %v6387 = vmax.f32 %v5844, %v6105
      %v6388 = vmax.f32 %v5845, %v6107
      %v6389 = vmax.f32 %v5846, %v6109
      %v6390 = vmax.f32 %v5847, %v6111
      %v6391 = vmax.f32 %v5848, %v6113
      %v6392 = vmax.f32 %v5849, %v6115
      %v6393 = vmax.f32 %v5850, %v6117
      %v6394 = vmax.f32 %v5851, %v6119
      %v6395 = vmax.f32 %v5852, %v6121
      %v6396 = vmax.f32 %v5853, %v6123
      %v6397 = vmax.f32 %v5854, %v6125
      %v6398 = vmax.f32 %v5855, %v6127
      %v6399 = vmax.f32 %v5856, %v6129
      %v6400 = vmax.f32 %v5857, %v6131
      %v6401 = vmax.f32 %v5858, %v6133
      %v6402 = vmax.f32 %v5859, %v6135
      %v6403 = vmax.f32 %v5860, %v6137
      %v6404 = vmax.f32 %v5861, %v6139
      %v6405 = vmax.f32 %v5862, %v6141
      %v6406 = vmax.f32 %v5863, %v6143
      %v6407 = vmax.f32 %v5864, %v6145
      %v6408 = vmax.f32 %v5865, %v6147
      %v6409 = vmax.f32 %v5866, %v6149
      %v6410 = vmax.f32 %v5867, %v6151
      %v6411 = vmax.f32 %v5868, %v6153
      %v6412 = vmax.f32 %v5869, %v6155
      %v6413 = vmax.f32 %v5870, %v6157
      %v6414 = vmax.f32 %v5871, %v6159
      %v6415 = vmax.f32 %v5872, %v6161
      %v6416 = vmax.f32 %v5873, %v6163
      %v6417 = vmax.f32 %v5874, %v6165
      %v6418 = vmax.f32 %v5875, %v6167
      %v6419 = vmax.f32 %v5876, %v6169
      %v6420 = vmax.f32 %v5877, %v6171
      %v6421 = vmax.f32 %v5878, %v6173
      %v6422 = vmax.f32 %v5879, %v6175
      %v6423 = vmax.f32 %v5880, %v6177
      %v6424 = vmax.f32 %v5881, %v6179
      %v6425 = vmax.f32 %v5882, %v6181
      %v6426 = vmax.f32 %v5883, %v6183
      %v6427 = vmax.f32 %v5884, %v6185
      %v6428 = vmax.f32 %v5885, %v6187
      %v6429 = vmax.f32 %v5886, %v6189
      %v6430 = vmax.f32 %v5887, %v6191
      %v6431 = vmax.f32 %v5888, %v6193
      %v6432 = vmax.f32 %v5889, %v6195
      %v6433 = vmax.f32 %v5890, %v6197
      %v6434 = vmax.f32 %v5891, %v6199
      %v6435 = vmax.f32 %v5892, %v6201
      %v6436 = vmax.f32 %v5893, %v6203
      %v6437 = vmax.f32 %v5894, %v6205
      %v6438 = vmax.f32 %v5895, %v6207
      %v6439 = vmax.f32 %v5896, %v6209
      %v6440 = vmax.f32 %v5897, %v6211
      %v6441 = vmax.f32 %v5898, %v6213
      %v6442 = vmax.f32 %v5899, %v6215
      %v6443 = vmax.f32 %v5900, %v6217
      %v6444 = vmax.f32 %v5901, %v6219
      %v6445 = vmax.f32 %v5902, %v6221
      %v6446 = vmax.f32 %v5903, %v6223
      %v6447 = vmax.f32 %v5904, %v6225
      %v6448 = vmax.f32 %v5905, %v6227
      %v6449 = vmax.f32 %v5906, %v6229
      %v6450 = vmax.f32 %v5907, %v6231
      %v6451 = vmax.f32 %v5908, %v6233
      %v6452 = vmax.f32 %v5909, %v6235
      %v6453 = vmax.f32 %v5910, %v6237
      %v6454 = vmax.f32 %v5911, %v6239
      %v6455 = vmax.f32 %v5912, %v6238
      %v6460 = vrot.slane %v5913, 1
      %v6461 = vsel %vm1344, %v6238, %v6460
      %v6462 = vrot.slane %v5914, 1
      %v6463 = vsel %vm1344, %v6460, %v6462
      %v6464 = vrot.slane %v5915, 1
      %v6465 = vsel %vm1344, %v6462, %v6464
      %v6466 = vrot.slane %v5916, 1
      %v6467 = vsel %vm1344, %v6464, %v6466
      %v6473 = vmax.f32 %v5912, %v6461
      %v6474 = vmax.f32 %v5913, %v6463
      %v6475 = vmax.f32 %v5914, %v6465
      %v6476 = vmax.f32 %v5915, %v6467
      %v6477 = vmax.f32 %v5916, %v6466
      %v6478 = vmax.f32 %v6348, %v6352
      %v6479 = vmax.f32 %v6349, %v6353
      %v6480 = vmax.f32 %v6350, %v6354
      %v6481 = vmax.f32 %v6351, %v6355
      %v6482 = vmax.f32 %v6352, %v6356
      %v6483 = vmax.f32 %v6353, %v6357
      %v6484 = vmax.f32 %v6354, %v6358
      %v6485 = vmax.f32 %v6355, %v6359
      %v6486 = vmax.f32 %v6356, %v6360
      %v6487 = vmax.f32 %v6357, %v6361
      %v6488 = vmax.f32 %v6358, %v6362
      %v6489 = vmax.f32 %v6359, %v6363
      %v6490 = vmax.f32 %v6360, %v6364
      %v6491 = vmax.f32 %v6361, %v6365
      %v6492 = vmax.f32 %v6362, %v6366
      %v6493 = vmax.f32 %v6363, %v6367
      %v6494 = vmax.f32 %v6364, %v6368
      %v6495 = vmax.f32 %v6365, %v6369
      %v6496 = vmax.f32 %v6366, %v6370
      %v6497 = vmax.f32 %v6367, %v6371
      %v6498 = vmax.f32 %v6368, %v6372
      %v6499 = vmax.f32 %v6369, %v6373
      %v6500 = vmax.f32 %v6370, %v6374
      %v6501 = vmax.f32 %v6371, %v6375
      %v6502 = vmax.f32 %v6372, %v6376
      %v6503 = vmax.f32 %v6373, %v6377
      %v6504 = vmax.f32 %v6374, %v6378
      %v6505 = vmax.f32 %v6375, %v6379
      %v6506 = vmax.f32 %v6376, %v6380
      %v6507 = vmax.f32 %v6377, %v6381
      %v6508 = vmax.f32 %v6378, %v6382
      %v6509 = vmax.f32 %v6379, %v6383
      %v6510 = vmax.f32 %v6380, %v6384
      %v6511 = vmax.f32 %v6381, %v6385
      %v6512 = vmax.f32 %v6382, %v6386
      %v6513 = vmax.f32 %v6383, %v6387
      %v6514 = vmax.f32 %v6384, %v6388
      %v6515 = vmax.f32 %v6385, %v6389
      %v6516 = vmax.f32 %v6386, %v6390
      %v6517 = vmax.f32 %v6387, %v6391
      %v6518 = vmax.f32 %v6388, %v6392
      %v6519 = vmax.f32 %v6389, %v6393
      %v6520 = vmax.f32 %v6390, %v6394
      %v6521 = vmax.f32 %v6391, %v6395
      %v6522 = vmax.f32 %v6392, %v6396
      %v6523 = vmax.f32 %v6393, %v6397
      %v6524 = vmax.f32 %v6394, %v6398
      %v6525 = vmax.f32 %v6395, %v6399
      %v6526 = vmax.f32 %v6396, %v6400
      %v6527 = vmax.f32 %v6397, %v6401
      %v6528 = vmax.f32 %v6398, %v6402
      %v6529 = vmax.f32 %v6399, %v6403
      %v6530 = vmax.f32 %v6400, %v6404
      %v6531 = vmax.f32 %v6401, %v6405
      %v6532 = vmax.f32 %v6402, %v6406
      %v6533 = vmax.f32 %v6403, %v6407
      %v6534 = vmax.f32 %v6404, %v6408
      %v6535 = vmax.f32 %v6405, %v6409
      %v6536 = vmax.f32 %v6406, %v6410
      %v6537 = vmax.f32 %v6407, %v6411
      %v6538 = vmax.f32 %v6408, %v6412
      %v6539 = vmax.f32 %v6409, %v6413
      %v6540 = vmax.f32 %v6410, %v6414
      %v6541 = vmax.f32 %v6411, %v6415
      %v6542 = vmax.f32 %v6412, %v6416
      %v6543 = vmax.f32 %v6413, %v6417
      %v6544 = vmax.f32 %v6414, %v6418
      %v6545 = vmax.f32 %v6415, %v6419
      %v6546 = vmax.f32 %v6416, %v6420
      %v6547 = vmax.f32 %v6417, %v6421
      %v6548 = vmax.f32 %v6418, %v6422
      %v6549 = vmax.f32 %v6419, %v6423
      %v6550 = vmax.f32 %v6420, %v6424
      %v6551 = vmax.f32 %v6421, %v6425
      %v6552 = vmax.f32 %v6422, %v6426
      %v6553 = vmax.f32 %v6423, %v6427
      %v6554 = vmax.f32 %v6424, %v6428
      %v6555 = vmax.f32 %v6425, %v6429
      %v6556 = vmax.f32 %v6426, %v6430
      %v6557 = vmax.f32 %v6427, %v6431
      %v6558 = vmax.f32 %v6428, %v6432
      %v6559 = vmax.f32 %v6429, %v6433
      %v6560 = vmax.f32 %v6430, %v6434
      %v6561 = vmax.f32 %v6431, %v6435
      %v6562 = vmax.f32 %v6432, %v6436
      %v6563 = vmax.f32 %v6433, %v6437
      %v6564 = vmax.f32 %v6434, %v6438
      %v6565 = vmax.f32 %v6435, %v6439
      %v6566 = vmax.f32 %v6436, %v6440
      %v6567 = vmax.f32 %v6437, %v6441
      %v6568 = vmax.f32 %v6438, %v6442
      %v6569 = vmax.f32 %v6439, %v6443
      %v6570 = vmax.f32 %v6440, %v6444
      %v6571 = vmax.f32 %v6441, %v6445
      %v6572 = vmax.f32 %v6442, %v6446
      %v6573 = vmax.f32 %v6443, %v6447
      %v6574 = vmax.f32 %v6444, %v6448
      %v6575 = vmax.f32 %v6445, %v6449
      %v6576 = vmax.f32 %v6446, %v6450
      %v6577 = vmax.f32 %v6447, %v6451
      %v6578 = vmax.f32 %v6448, %v6452
      %v6579 = vmax.f32 %v6449, %v6453
      %v6580 = vmax.f32 %v6450, %v6454
      %v6581 = vmax.f32 %v6451, %v6473
      %v6582 = vmax.f32 %v6452, %v6474
      %v6583 = vmax.f32 %v6453, %v6475
      %v6584 = vmax.f32 %v6454, %v6476
      %v6585 = vmax.f32 %v6455, %v6477
      %v6586 = vld [vmem:[%s3] sm:$0xff]
      %v6587 = vld [vmem:[%s3 + $0x8] sm:$0xff]
      %v6588 = vld [vmem:[%s3 + $0x10] sm:$0xff]
      %v6589 = vld [vmem:[%s3 + $0x18] sm:$0xff]
      %v6590 = vld [vmem:[%s3 + $0x20] sm:$0xff]
      %v6591 = vld [vmem:[%s3 + $0x28] sm:$0xff]
      %v6592 = vld [vmem:[%s3 + $0x30] sm:$0xff]
      %v6593 = vld [vmem:[%s3 + $0x38] sm:$0xff]
      %v6594 = vld [vmem:[%s3 + $0x40] sm:$0xff]
      %v6595 = vld [vmem:[%s3 + $0x48] sm:$0xff]
      %v6596 = vld [vmem:[%s3 + $0x50] sm:$0xff]
      %v6597 = vld [vmem:[%s3 + $0x58] sm:$0xff]
      %v6598 = vld [vmem:[%s3 + $0x60] sm:$0xff]
      %v6599 = vld [vmem:[%s3 + $0x68] sm:$0xff]
      %v6600 = vld [vmem:[%s3 + $0x70] sm:$0xff]
      %v6601 = vld [vmem:[%s3 + $0x78] sm:$0xff]
      %v6602 = vld [vmem:[%s3 + $0x80] sm:$0xff]
      %v6603 = vld [vmem:[%s3 + $0x88] sm:$0xff]
      %v6604 = vld [vmem:[%s3 + $0x90] sm:$0xff]
      %v6605 = vld [vmem:[%s3 + $0x98] sm:$0xff]
      %v6606 = vld [vmem:[%s3 + $0xa0] sm:$0xff]
      %v6607 = vld [vmem:[%s3 + $0xa8] sm:$0xff]
      %v6608 = vld [vmem:[%s3 + $0xb0] sm:$0xff]
      %v6609 = vld [vmem:[%s3 + $0xb8] sm:$0xff]
      %v6610 = vld [vmem:[%s3 + $0xc0] sm:$0xff]
      %v6611 = vld [vmem:[%s3 + $0xc8] sm:$0xff]
      %v6612 = vld [vmem:[%s3 + $0xd0] sm:$0xff]
      %v6613 = vld [vmem:[%s3 + $0xd8] sm:$0xff]
      %v6614 = vld [vmem:[%s3 + $0xe0] sm:$0xff]
      %v6615 = vld [vmem:[%s3 + $0xe8] sm:$0xff]
      %v6616 = vld [vmem:[%s3 + $0xf0] sm:$0xff]
      %v6617 = vld [vmem:[%s3 + $0xf8] sm:$0xff]
      %v6618 = vld [vmem:[%s3 + $0x100] sm:$0xff]
      %v6619 = vld [vmem:[%s3 + $0x108] sm:$0xff]
      %v6620 = vld [vmem:[%s3 + $0x110] sm:$0xff]
      %v6621 = vld [vmem:[%s3 + $0x118] sm:$0xff]
      %v6622 = vld [vmem:[%s3 + $0x120] sm:$0xff]
      %v6623 = vld [vmem:[%s3 + $0x128] sm:$0xff]
      %v6624 = vld [vmem:[%s3 + $0x130] sm:$0xff]
      %v6625 = vld [vmem:[%s3 + $0x138] sm:$0xff]
      %v6626 = vld [vmem:[%s3 + $0x140] sm:$0xff]
      %v6627 = vld [vmem:[%s3 + $0x148] sm:$0xff]
      %v6628 = vld [vmem:[%s3 + $0x150] sm:$0xff]
      %v6629 = vld [vmem:[%s3 + $0x158] sm:$0xff]
      %v6630 = vld [vmem:[%s3 + $0x160] sm:$0xff]
      %v6631 = vld [vmem:[%s3 + $0x168] sm:$0xff]
      %v6632 = vld [vmem:[%s3 + $0x170] sm:$0xff]
      %v6633 = vld [vmem:[%s3 + $0x178] sm:$0xff]
      %v6634 = vld [vmem:[%s3 + $0x180] sm:$0xff]
      %v6635 = vld [vmem:[%s3 + $0x188] sm:$0xff]
      %v6636 = vld [vmem:[%s3 + $0x190] sm:$0xff]
      %v6637 = vld [vmem:[%s3 + $0x198] sm:$0xff]
      %v6638 = vld [vmem:[%s3 + $0x1a0] sm:$0xff]
      %v6639 = vld [vmem:[%s3 + $0x1a8] sm:$0xff]
      %v6640 = vld [vmem:[%s3 + $0x1b0] sm:$0xff]
      %v6641 = vld [vmem:[%s3 + $0x1b8] sm:$0xff]
      %v6642 = vld [vmem:[%s3 + $0x1c0] sm:$0xff]
      %v6643 = vld [vmem:[%s3 + $0x1c8] sm:$0xff]
      %v6644 = vld [vmem:[%s3 + $0x1d0] sm:$0xff]
      %v6645 = vld [vmem:[%s3 + $0x1d8] sm:$0xff]
      %v6646 = vld [vmem:[%s3 + $0x1e0] sm:$0xff]
      %v6647 = vld [vmem:[%s3 + $0x1e8] sm:$0xff]
      %v6648 = vld [vmem:[%s3 + $0x1f0] sm:$0xff]
      %v6649 = vld [vmem:[%s3 + $0x1f8] sm:$0xff]
      %v6650 = vld [vmem:[%s3 + $0x200] sm:$0xff]
      %v6651 = vld [vmem:[%s3 + $0x208] sm:$0xff]
      %v6652 = vld [vmem:[%s3 + $0x210] sm:$0xff]
      %v6653 = vld [vmem:[%s3 + $0x218] sm:$0xff]
      %v6654 = vld [vmem:[%s3 + $0x220] sm:$0xff]
      %v6655 = vld [vmem:[%s3 + $0x228] sm:$0xff]
      %v6656 = vld [vmem:[%s3 + $0x230] sm:$0xff]
      %v6657 = vld [vmem:[%s3 + $0x238] sm:$0xff]
      %v6658 = vld [vmem:[%s3 + $0x240] sm:$0xff]
      %v6659 = vld [vmem:[%s3 + $0x248] sm:$0xff]
      %v6660 = vld [vmem:[%s3 + $0x250] sm:$0xff]
      %v6661 = vld [vmem:[%s3 + $0x258] sm:$0xff]
      %v6662 = vld [vmem:[%s3 + $0x260] sm:$0xff]
      %v6663 = vld [vmem:[%s3 + $0x268] sm:$0xff]
      %v6664 = vld [vmem:[%s3 + $0x270] sm:$0xff]
      %v6665 = vld [vmem:[%s3 + $0x278] sm:$0xff]
      %v6666 = vld [vmem:[%s3 + $0x280] sm:$0xff]
      %v6667 = vld [vmem:[%s3 + $0x288] sm:$0xff]
      %v6668 = vld [vmem:[%s3 + $0x290] sm:$0xff]
      %v6669 = vld [vmem:[%s3 + $0x298] sm:$0xff]
      %v6670 = vld [vmem:[%s3 + $0x2a0] sm:$0xff]
      %v6671 = vld [vmem:[%s3 + $0x2a8] sm:$0xff]
      %v6672 = vld [vmem:[%s3 + $0x2b0] sm:$0xff]
      %v6673 = vld [vmem:[%s3 + $0x2b8] sm:$0xff]
      %v6674 = vld [vmem:[%s3 + $0x2c0] sm:$0xff]
      %v6675 = vld [vmem:[%s3 + $0x2c8] sm:$0xff]
      %v6676 = vld [vmem:[%s3 + $0x2d0] sm:$0xff]
      %v6677 = vld [vmem:[%s3 + $0x2d8] sm:$0xff]
      %v6678 = vld [vmem:[%s3 + $0x2e0] sm:$0xff]
      %v6679 = vld [vmem:[%s3 + $0x2e8] sm:$0xff]
      %v6680 = vld [vmem:[%s3 + $0x2f0] sm:$0xff]
      %v6681 = vld [vmem:[%s3 + $0x2f8] sm:$0xff]
      %v6682 = vld [vmem:[%s3 + $0x300] sm:$0xff]
      %v6683 = vld [vmem:[%s3 + $0x308] sm:$0xff]
      %v6684 = vld [vmem:[%s3 + $0x310] sm:$0xff]
      %v6685 = vld [vmem:[%s3 + $0x318] sm:$0xff]
      %v6686 = vld [vmem:[%s3 + $0x320] sm:$0xff]
      %v6687 = vld [vmem:[%s3 + $0x328] sm:$0xff]
      %v6688 = vld [vmem:[%s3 + $0x330] sm:$0xff]
      %v6689 = vld [vmem:[%s3 + $0x338] sm:$0xff]
      %v6690 = vld [vmem:[%s3 + $0x340] sm:$0xff]
      %v6691 = vld [vmem:[%s3 + $0x348] sm:$0xff]
      %v6692 = vld [vmem:[%s3 + $0x350] sm:$0xff]
      %v6693 = vld [vmem:[%s3 + $0x358] sm:$0xff]
      %v6694 = vld [vmem:[%s3 + $0x360] sm:$0xff]
      %v6695 = vld [vmem:[%s3 + $0x368] sm:$0xff]
      %v6696 = vld [vmem:[%s3 + $0x370] sm:$0xff]
      %v6697 = vld [vmem:[%s3 + $0x378] sm:$0xff]
      %v6698 = vld [vmem:[%s3 + $0x380] sm:$0xff]
      %v6699 = vld [vmem:[%s3 + $0x388] sm:$0xff]
      %v6700 = vld [vmem:[%s3 + $0x390] sm:$0xff]
      %v6701 = vld [vmem:[%s3 + $0x398] sm:$0xff]
      %v6702 = vld [vmem:[%s3 + $0x3a0] sm:$0xff]
      %v6703 = vld [vmem:[%s3 + $0x3a8] sm:$0xff]
      %v6704 = vld [vmem:[%s3 + $0x3b0] sm:$0xff]
      %v6705 = vld [vmem:[%s3 + $0x3b8] sm:$0xff]
      %v6706 = vld [vmem:[%s3 + $0x3c0] sm:$0xff]
      %v6707 = vld [vmem:[%s3 + $0x3c8] sm:$0xff]
      %v6708 = vld [vmem:[%s3 + $0x3d0] sm:$0xff]
      %v6709 = vld [vmem:[%s3 + $0x3d8] sm:$0xff]
      %v6710 = vld [vmem:[%s3 + $0x3e0] sm:$0xff]
      %v6711 = vld [vmem:[%s3 + $0x3e8] sm:$0xff]
      %v6712 = vld [vmem:[%s3 + $0x3f0] sm:$0xff]
      %v6713 = vld [vmem:[%s3 + $0x3f8] sm:$0xff]
      %v6714 = vld [vmem:[%s3 + $0x400] sm:$0xff]
      %v6715 = vld [vmem:[%s3 + $0x408] sm:$0xff]
      %v6716 = vld [vmem:[%s3 + $0x410] sm:$0xff]
      %v6717 = vld [vmem:[%s3 + $0x418] sm:$0xff]
      %v6718 = vld [vmem:[%s3 + $0x420] sm:$0xff]
      %v6719 = vld [vmem:[%s3 + $0x428] sm:$0xff]
      %v6720 = vld [vmem:[%s3 + $0x430] sm:$0xff]
      %v6721 = vld [vmem:[%s3 + $0x438] sm:$0xff]
      %v6722 = vld [vmem:[%s3 + $0x440] sm:$0xff]
      %v6723 = vld [vmem:[%s3 + $0x448] sm:$0xff]
      %v6724 = vld [vmem:[%s3 + $0x450] sm:$0xff]
      %v6725 = vld [vmem:[%s3 + $0x458] sm:$0xff]
      %v6726 = vld [vmem:[%s3 + $0x460] sm:$0xff]
      %v6727 = vld [vmem:[%s3 + $0x468] sm:$0xff]
      %v6728 = vld [vmem:[%s3 + $0x470] sm:$0xff]
      %v6729 = vld [vmem:[%s3 + $0x478] sm:$0xff]
      %v6730 = vld [vmem:[%s3 + $0x480] sm:$0xff]
      %v6731 = vld [vmem:[%s3 + $0x488] sm:$0xff]
      %v6732 = vld [vmem:[%s3 + $0x490] sm:$0xff]
      %v6733 = vld [vmem:[%s3 + $0x498] sm:$0xff]
      %v6734 = vld [vmem:[%s3 + $0x4a0] sm:$0xff]
      %v6735 = vld [vmem:[%s3 + $0x4a8] sm:$0xff]
      %v6736 = vld [vmem:[%s3 + $0x4b0] sm:$0xff]
      %v6737 = vld [vmem:[%s3 + $0x4b8] sm:$0xff]
      %v6738 = vld [vmem:[%s3 + $0x4c0] sm:$0xff]
      %v6739 = vld [vmem:[%s3 + $0x4c8] sm:$0xff]
      %v6740 = vld [vmem:[%s3 + $0x4d0] sm:$0xff]
      %v6741 = vld [vmem:[%s3 + $0x4d8] sm:$0xff]
      %v6742 = vld [vmem:[%s3 + $0x4e0] sm:$0xff]
      %v6743 = vld [vmem:[%s3 + $0x4e8] sm:$0xff]
      %v6744 = vld [vmem:[%s3 + $0x4f0] sm:$0xff]
      %v6745 = vld [vmem:[%s3 + $0x4f8] sm:$0xff]
      %v6746 = vld [vmem:[%s3 + $0x500] sm:$0xff]
      %v6747 = vld [vmem:[%s3 + $0x508] sm:$0xff]
      %v6748 = vld [vmem:[%s3 + $0x510] sm:$0xff]
      %v6749 = vld [vmem:[%s3 + $0x518] sm:$0xff]
      %v6750 = vld [vmem:[%s3 + $0x520] sm:$0xff]
      %v6751 = vld [vmem:[%s3 + $0x528] sm:$0xff]
      %v6752 = vld [vmem:[%s3 + $0x530] sm:$0xff]
      %v6753 = vld [vmem:[%s3 + $0x538] sm:$0xff]
      %v6754 = vld [vmem:[%s3 + $0x540] sm:$0xff]
      %v6755 = vld [vmem:[%s3 + $0x548] sm:$0xff]
      %v6756 = vld [vmem:[%s3 + $0x550] sm:$0xff]
      %v6757 = vld [vmem:[%s3 + $0x558] sm:$0xff]
      %v6758 = vld [vmem:[%s3 + $0x560] sm:$0xff]
      %v6759 = vld [vmem:[%s3 + $0x568] sm:$0xff]
      %v6760 = vld [vmem:[%s3 + $0x570] sm:$0xff]
      %v6761 = vld [vmem:[%s3 + $0x578] sm:$0xff]
      %v6762 = vld [vmem:[%s3 + $0x580] sm:$0xff]
      %v6763 = vld [vmem:[%s3 + $0x588] sm:$0xff]
      %v6764 = vld [vmem:[%s3 + $0x590] sm:$0xff]
      %v6765 = vld [vmem:[%s3 + $0x598] sm:$0xff]
      %v6766 = vld [vmem:[%s3 + $0x5a0] sm:$0xff]
      %v6767 = vld [vmem:[%s3 + $0x5a8] sm:$0xff]
      %v6768 = vld [vmem:[%s3 + $0x5b0] sm:$0xff]
      %v6769 = vld [vmem:[%s3 + $0x5b8] sm:$0xff]
      %v6770 = vld [vmem:[%s3 + $0x5c0] sm:$0xff]
      %v6771 = vld [vmem:[%s3 + $0x5c8] sm:$0xff]
      %v6772 = vld [vmem:[%s3 + $0x5d0] sm:$0xff]
      %v6773 = vld [vmem:[%s3 + $0x5d8] sm:$0xff]
      %v6774 = vld [vmem:[%s3 + $0x5e0] sm:$0xff]
      %v6775 = vld [vmem:[%s3 + $0x5e8] sm:$0xff]
      %v6776 = vld [vmem:[%s3 + $0x5f0] sm:$0xff]
      %v6777 = vld [vmem:[%s3 + $0x5f8] sm:$0xff]
      %v6778 = vld [vmem:[%s3 + $0x600] sm:$0xff]
      %v6779 = vld [vmem:[%s3 + $0x608] sm:$0xff]
      %v6780 = vld [vmem:[%s3 + $0x610] sm:$0xff]
      %v6781 = vld [vmem:[%s3 + $0x618] sm:$0xff]
      %v6782 = vld [vmem:[%s3 + $0x620] sm:$0xff]
      %v6783 = vld [vmem:[%s3 + $0x628] sm:$0xff]
      %v6784 = vld [vmem:[%s3 + $0x630] sm:$0xff]
      %v6785 = vld [vmem:[%s3 + $0x638] sm:$0xff]
      %v6786 = vld [vmem:[%s3 + $0x640] sm:$0xff]
      %v6787 = vld [vmem:[%s3 + $0x648] sm:$0xff]
      %v6788 = vld [vmem:[%s3 + $0x650] sm:$0xff]
      %v6789 = vld [vmem:[%s3 + $0x658] sm:$0xff]
      %v6790 = vld [vmem:[%s3 + $0x660] sm:$0xff]
      %v6791 = vld [vmem:[%s3 + $0x668] sm:$0xff]
      %v6792 = vld [vmem:[%s3 + $0x670] sm:$0xff]
      %v6793 = vld [vmem:[%s3 + $0x678] sm:$0xff]
      %v6794 = vld [vmem:[%s3 + $0x680] sm:$0xff]
      %v6795 = vld [vmem:[%s3 + $0x688] sm:$0xff]
      %v6796 = vld [vmem:[%s3 + $0x690] sm:$0xff]
      %v6797 = vld [vmem:[%s3 + $0x698] sm:$0xff]
      %v6798 = vld [vmem:[%s3 + $0x6a0] sm:$0xff]
      %v6799 = vld [vmem:[%s3 + $0x6a8] sm:$0xff]
      %v6800 = vld [vmem:[%s3 + $0x6b0] sm:$0xff]
      %v6801 = vld [vmem:[%s3 + $0x6b8] sm:$0xff]
      %v6802 = vld [vmem:[%s3 + $0x6c0] sm:$0xff]
      %v6803 = vld [vmem:[%s3 + $0x6c8] sm:$0xff]
      %v6804 = vld [vmem:[%s3 + $0x6d0] sm:$0xff]
      %v6805 = vld [vmem:[%s3 + $0x6d8] sm:$0xff]
      %v6806 = vld [vmem:[%s3 + $0x6e0] sm:$0xff]
      %v6807 = vld [vmem:[%s3 + $0x6e8] sm:$0xff]
      %v6808 = vld [vmem:[%s3 + $0x6f0] sm:$0xff]
      %v6809 = vld [vmem:[%s3 + $0x6f8] sm:$0xff]
      %v6810 = vld [vmem:[%s3 + $0x700] sm:$0xff]
      %v6811 = vld [vmem:[%s3 + $0x708] sm:$0xff]
      %v6812 = vld [vmem:[%s3 + $0x710] sm:$0xff]
      %v6813 = vld [vmem:[%s3 + $0x718] sm:$0xff]
      %v6814 = vld [vmem:[%s3 + $0x720] sm:$0xff]
      %v6815 = vld [vmem:[%s3 + $0x728] sm:$0xff]
      %v6816 = vld [vmem:[%s3 + $0x730] sm:$0xff]
      %v6817 = vld [vmem:[%s3 + $0x738] sm:$0xff]
      %v6818 = vld [vmem:[%s3 + $0x740] sm:$0xff]
      %v6819 = vld [vmem:[%s3 + $0x748] sm:$0xff]
      %v6820 = vld [vmem:[%s3 + $0x750] sm:$0xff]
      %v6821 = vld [vmem:[%s3 + $0x758] sm:$0xff]
      %v6822 = vld [vmem:[%s3 + $0x760] sm:$0xff]
      %v6823 = vld [vmem:[%s3 + $0x768] sm:$0xff]
      %vm6824 = vcmask 744448
      %v6826 = vsel %vm6824, %v6592, 0
      %v6829 = vsel %vm6824, %v6599, 0
      %v6832 = vsel %vm6824, %v6606, 0
      %v6835 = vsel %vm6824, %v6613, 0
      %v6838 = vsel %vm6824, %v6620, 0
      %v6841 = vsel %vm6824, %v6627, 0
      %v6844 = vsel %vm6824, %v6634, 0
      %v6847 = vsel %vm6824, %v6641, 0
      %v6850 = vsel %vm6824, %v6648, 0
      %v6853 = vsel %vm6824, %v6655, 0
      %v6856 = vsel %vm6824, %v6662, 0
      %v6859 = vsel %vm6824, %v6669, 0
      %v6862 = vsel %vm6824, %v6676, 0
      %v6865 = vsel %vm6824, %v6683, 0
      %v6868 = vsel %vm6824, %v6690, 0
      %v6871 = vsel %vm6824, %v6697, 0
      %v6874 = vsel %vm6824, %v6704, 0
      %v6877 = vsel %vm6824, %v6711, 0
      %v6880 = vsel %vm6824, %v6718, 0
      %v6883 = vsel %vm6824, %v6725, 0
      %v6886 = vsel %vm6824, %v6732, 0
      %v6889 = vsel %vm6824, %v6739, 0
      %v6892 = vsel %vm6824, %v6746, 0
      %v6895 = vsel %vm6824, %v6753, 0
      %v6898 = vsel %vm6824, %v6760, 0
      %v6901 = vsel %vm6824, %v6767, 0
      %v6904 = vsel %vm6824, %v6774, 0
      %v6907 = vsel %vm6824, %v6781, 0
      %v6910 = vsel %vm6824, %v6788, 0
      %v6913 = vsel %vm6824, %v6795, 0
      %v6916 = vsel %vm6824, %v6802, 0
      %v6919 = vsel %vm6824, %v6809, 0
      %v6922 = vsel %vm6824, %v6816, 0
      %v6925 = vsel %vm6824, %v6823, 0
      %vm6927 = vcmask 1042432
      %v6929 = vsel %vm6927, %v6585, 0
      %6931 = vmatprep.subr.mxu0 0.0
      %6932 = vmatpush1.msra.mxu0 %v6478
      %6933 = vmatprep.subr.mxu0 0.0
      %6934 = vmatpush1.msra.mxu0 %v6479
      %6935 = vmatprep.subr.mxu0 0.0
      %6936 = vmatpush1.msra.mxu0 %v6480
      %6937 = vmatprep.subr.mxu0 0.0
      %6938 = vmatpush1.msra.mxu0 %v6481
      %6939 = vmatprep.subr.mxu0 0.0
      %6940 = vmatpush1.msra.mxu0 %v6482
      %6941 = vmatprep.subr.mxu0 0.0
      %6942 = vmatpush1.msra.mxu0 %v6483
      %6943 = vmatprep.subr.mxu0 0.0
      %6944 = vmatpush1.msra.mxu0 %v6484
      %6945 = vmatprep.subr.mxu0 0.0
      %6946 = vmatpush1.msra.mxu0 %v6485
      %6947 = vmatprep.subr.mxu0 0.0
      %6948 = vmatpush1.msra.mxu0 %v6486
      %6949 = vmatprep.subr.mxu0 0.0
      %6950 = vmatpush1.msra.mxu0 %v6487
      %6951 = vmatprep.subr.mxu0 0.0
      %6952 = vmatpush1.msra.mxu0 %v6488
      %6953 = vmatprep.subr.mxu0 0.0
      %6954 = vmatpush1.msra.mxu0 %v6489
      %6955 = vmatprep.subr.mxu0 0.0
      %6956 = vmatpush1.msra.mxu0 %v6490
      %6957 = vmatprep.subr.mxu0 0.0
      %6958 = vmatpush1.msra.mxu0 %v6491
      %6959 = vmatprep.subr.mxu0 0.0
      %6960 = vmatpush1.msra.mxu0 %v6492
      %6961 = vmatprep.subr.mxu0 0.0
      %6962 = vmatpush1.msra.mxu0 %v6493
      %6963 = vmatprep.subr.mxu0 0.0
      %6964 = vmatpush1.msra.mxu0 %v6494
      %6965 = vmatprep.subr.mxu0 0.0
      %6966 = vmatpush1.msra.mxu0 %v6495
      %6967 = vmatprep.subr.mxu0 0.0
      %6968 = vmatpush1.msra.mxu0 %v6496
      %6969 = vmatprep.subr.mxu0 0.0
      %6970 = vmatpush1.msra.mxu0 %v6497
      %6971 = vmatprep.subr.mxu0 0.0
      %6972 = vmatpush1.msra.mxu0 %v6498
      %6973 = vmatprep.subr.mxu0 0.0
      %6974 = vmatpush1.msra.mxu0 %v6499
      %6975 = vmatprep.subr.mxu0 0.0
      %6976 = vmatpush1.msra.mxu0 %v6500
      %6977 = vmatprep.subr.mxu0 0.0
      %6978 = vmatpush1.msra.mxu0 %v6501
      %6979 = vmatprep.subr.mxu0 0.0
      %6980 = vmatpush1.msra.mxu0 %v6502
      %6981 = vmatprep.subr.mxu0 0.0
      %6982 = vmatpush1.msra.mxu0 %v6503
      %6983 = vmatprep.subr.mxu0 0.0
      %6984 = vmatpush1.msra.mxu0 %v6504
      %6985 = vmatprep.subr.mxu0 0.0
      %6986 = vmatpush1.msra.mxu0 %v6505
      %6987 = vmatprep.subr.mxu0 0.0
      %6988 = vmatpush1.msra.mxu0 %v6506
      %6989 = vmatprep.subr.mxu0 0.0
      %6990 = vmatpush1.msra.mxu0 %v6507
      %6991 = vmatprep.subr.mxu0 0.0
      %6992 = vmatpush1.msra.mxu0 %v6508
      %6993 = vmatprep.subr.mxu0 0.0
      %6994 = vmatpush1.msra.mxu0 %v6509
      %6995 = vmatprep.mubr.f32.mxu0 %v6587
      %6996 = vmatmul.mubr.f32.gmra.mrb[0].mxu0 %v6586
      %v6997 = vpop.f32.mrb[0].mxu0
      %v6998 = vadd.f32 0.0, %v6997
      %v6999 = vpop.f32.mrb[0].mxu0
      %7000 = vmatprep.mubr.f32.mxu0 %v6594
      %7001 = vmatmul.mubr.f32.gmra.mrb[0].mxu0 %v6593
      %v7002 = vpop.f32.mrb[0].mxu0
      %v7003 = vadd.f32 0.0, %v7002
      %v7004 = vpop.f32.mrb[0].mxu0
      %7005 = vmatprep.mubr.f32.mxu0 %v6601
      %7006 = vmatmul.mubr.f32.gmra.mrb[0].mxu0 %v6600
      %v7007 = vpop.f32.mrb[0].mxu0
      %v7008 = vadd.f32 0.0, %v7007
      %v7009 = vpop.f32.mrb[0].mxu0
      %7010 = vmatprep.mubr.f32.mxu0 %v6608
      %7011 = vmatmul.mubr.f32.gmra.mrb[0].mxu0 %v6607
      %v7012 = vpop.f32.mrb[0].mxu0
      %v7013 = vadd.f32 0.0, %v7012
      %v7014 = vpop.f32.mrb[0].mxu0
      %7015 = vmatprep.mubr.f32.mxu0 %v6615
      %7016 = vmatmul.mubr.f32.gmra.mrb[0].mxu0 %v6614
      %v7017 = vpop.f32.mrb[0].mxu0
      %v7018 = vadd.f32 0.0, %v7017
      %v7019 = vpop.f32.mrb[0].mxu0
      %7020 = vmatprep.mubr.f32.mxu0 %v6622
      %7021 = vmatmul.mubr.f32.gmra.mrb[0].mxu0 %v6621
      %v7022 = vpop.f32.mrb[0].mxu0
      %v7023 = vadd.f32 0.0, %v7022
      %v7024 = vpop.f32.mrb[0].mxu0
      %7025 = vmatprep.mubr.f32.mxu0 %v6629
      %7026 = vmatmul.mubr.f32.gmra.mrb[0].mxu0 %v6628
      %v7027 = vpop.f32.mrb[0].mxu0
      %v7028 = vadd.f32 0.0, %v7027
      %v7029 = vpop.f32.mrb[0].mxu0
      %7030 = vmatprep.mubr.f32.mxu0 %v6636
      %7031 = vmatmul.mubr.f32.gmra.mrb[0].mxu0 %v6635
      %v7032 = vpop.f32.mrb[0].mxu0
      %v7033 = vadd.f32 0.0, %v7032
      %v7034 = vpop.f32.mrb[0].mxu0
      %7035 = vmatprep.mubr.f32.mxu0 %v6643
      %7036 = vmatmul.mubr.f32.gmra.mrb[0].mxu0 %v6642
      %v7037 = vpop.f32.mrb[0].mxu0
      %v7038 = vadd.f32 0.0, %v7037
      %v7039 = vpop.f32.mrb[0].mxu0
      %7040 = vmatprep.mubr.f32.mxu0 %v6650
      %7041 = vmatmul.mubr.f32.gmra.mrb[0].mxu0 %v6649
      %v7042 = vpop.f32.mrb[0].mxu0
      %v7043 = vadd.f32 0.0, %v7042
      %v7044 = vpop.f32.mrb[0].mxu0
      %7045 = vmatprep.mubr.f32.mxu0 %v6657
      %7046 = vmatmul.mubr.f32.gmra.mrb[0].mxu0 %v6656
      %v7047 = vpop.f32.mrb[0].mxu0
      %v7048 = vadd.f32 0.0, %v7047
      %v7049 = vpop.f32.mrb[0].mxu0
      %7050 = vmatprep.mubr.f32.mxu0 %v6664
      %7051 = vmatmul.mubr.f32.gmra.mrb[0].mxu0 %v6663
      %v7052 = vpop.f32.mrb[0].mxu0
      %v7053 = vadd.f32 0.0, %v7052
      %v7054 = vpop.f32.mrb[0].mxu0
      %7055 = vmatprep.mubr.f32.mxu0 %v6671
      %7056 = vmatmul.mubr.f32.gmra.mrb[0].mxu0 %v6670
      %v7057 = vpop.f32.mrb[0].mxu0
      %v7058 = vadd.f32 0.0, %v7057
      %v7059 = vpop.f32.mrb[0].mxu0
      %7060 = vmatprep.mubr.f32.mxu0 %v6678
      %7061 = vmatmul.mubr.f32.gmra.mrb[0].mxu0 %v6677
      %v7062 = vpop.f32.mrb[0].mxu0
      %v7063 = vadd.f32 0.0, %v7062
      %v7064 = vpop.f32.mrb[0].mxu0
      %7065 = vmatprep.mubr.f32.mxu0 %v6685
      %7066 = vmatmul.mubr.f32.gmra.mrb[0].mxu0 %v6684
      %v7067 = vpop.f32.mrb[0].mxu0
      %v7068 = vadd.f32 0.0, %v7067
      %v7069 = vpop.f32.mrb[0].mxu0
      %7070 = vmatprep.mubr.f32.mxu0 %v6692
      %7071 = vmatmul.mubr.f32.gmra.mrb[0].mxu0 %v6691
      %v7072 = vpop.f32.mrb[0].mxu0
      %v7073 = vadd.f32 0.0, %v7072
      %v7074 = vpop.f32.mrb[0].mxu0
      %7075 = vmatprep.mubr.f32.mxu0 %v6699
      %7076 = vmatmul.mubr.f32.gmra.mrb[0].mxu0 %v6698
      %v7077 = vpop.f32.mrb[0].mxu0
      %v7078 = vadd.f32 0.0, %v7077
      %v7079 = vpop.f32.mrb[0].mxu0
      %7080 = vmatprep.mubr.f32.mxu0 %v6706
      %7081 = vmatmul.mubr.f32.gmra.mrb[0].mxu0 %v6705
      %v7082 = vpop.f32.mrb[0].mxu0
      %v7083 = vadd.f32 0.0, %v7082
      %v7084 = vpop.f32.mrb[0].mxu0
      %7085 = vmatprep.mubr.f32.mxu0 %v6713
      %7086 = vmatmul.mubr.f32.gmra.mrb[0].mxu0 %v6712
      %v7087 = vpop.f32.mrb[0].mxu0
      %v7088 = vadd.f32 0.0, %v7087
      %v7089 = vpop.f32.mrb[0].mxu0
      %7090 = vmatprep.mubr.f32.mxu0 %v6720
      %7091 = vmatmul.mubr.f32.gmra.mrb[0].mxu0 %v6719
      %v7092 = vpop.f32.mrb[0].mxu0
      %v7093 = vadd.f32 0.0, %v7092
      %v7094 = vpop.f32.mrb[0].mxu0
      %7095 = vmatprep.mubr.f32.mxu0 %v6727
      %7096 = vmatmul.mubr.f32.gmra.mrb[0].mxu0 %v6726
      %v7097 = vpop.f32.mrb[0].mxu0
      %v7098 = vadd.f32 0.0, %v7097
      %v7099 = vpop.f32.mrb[0].mxu0
      %7100 = vmatprep.mubr.f32.mxu0 %v6734
      %7101 = vmatmul.mubr.f32.gmra.mrb[0].mxu0 %v6733
      %v7102 = vpop.f32.mrb[0].mxu0
      %v7103 = vadd.f32 0.0, %v7102
      %v7104 = vpop.f32.mrb[0].mxu0
      %7105 = vmatprep.mubr.f32.mxu0 %v6741
      %7106 = vmatmul.mubr.f32.gmra.mrb[0].mxu0 %v6740
      %v7107 = vpop.f32.mrb[0].mxu0
      %v7108 = vadd.f32 0.0, %v7107
      %v7109 = vpop.f32.mrb[0].mxu0
      %7110 = vmatprep.mubr.f32.mxu0 %v6748
      %7111 = vmatmul.mubr.f32.gmra.mrb[0].mxu0 %v6747
      %v7112 = vpop.f32.mrb[0].mxu0
      %v7113 = vadd.f32 0.0, %v7112
      %v7114 = vpop.f32.mrb[0].mxu0
      %7115 = vmatprep.mubr.f32.mxu0 %v6755
      %7116 = vmatmul.mubr.f32.gmra.mrb[0].mxu0 %v6754
      %v7117 = vpop.f32.mrb[0].mxu0
      %v7118 = vadd.f32 0.0, %v7117
      %v7119 = vpop.f32.mrb[0].mxu0
      %7120 = vmatprep.mubr.f32.mxu0 %v6762
      %7121 = vmatmul.mubr.f32.gmra.mrb[0].mxu0 %v6761
      %v7122 = vpop.f32.mrb[0].mxu0
      %v7123 = vadd.f32 0.0, %v7122
      %v7124 = vpop.f32.mrb[0].mxu0
      %7125 = vmatprep.mubr.f32.mxu0 %v6769
      %7126 = vmatmul.mubr.f32.gmra.mrb[0].mxu0 %v6768
      %v7127 = vpop.f32.mrb[0].mxu0
      %v7128 = vadd.f32 0.0, %v7127
      %v7129 = vpop.f32.mrb[0].mxu0
      %7130 = vmatprep.mubr.f32.mxu0 %v6776
      %7131 = vmatmul.mubr.f32.gmra.mrb[0].mxu0 %v6775
      %v7132 = vpop.f32.mrb[0].mxu0
      %v7133 = vadd.f32 0.0, %v7132
      %v7134 = vpop.f32.mrb[0].mxu0
      %7135 = vmatprep.mubr.f32.mxu0 %v6783
      %7136 = vmatmul.mubr.f32.gmra.mrb[0].mxu0 %v6782
      %v7137 = vpop.f32.mrb[0].mxu0
      %v7138 = vadd.f32 0.0, %v7137
      %v7139 = vpop.f32.mrb[0].mxu0
      %7140 = vmatprep.mubr.f32.mxu0 %v6790
      %7141 = vmatmul.mubr.f32.gmra.mrb[0].mxu0 %v6789
      %v7142 = vpop.f32.mrb[0].mxu0
      %v7143 = vadd.f32 0.0, %v7142
      %v7144 = vpop.f32.mrb[0].mxu0
      %7145 = vmatprep.mubr.f32.mxu0 %v6797
      %7146 = vmatmul.mubr.f32.gmra.mrb[0].mxu0 %v6796
      %v7147 = vpop.f32.mrb[0].mxu0
      %v7148 = vadd.f32 0.0, %v7147
      %v7149 = vpop.f32.mrb[0].mxu0
      %7150 = vmatprep.mubr.f32.mxu0 %v6804
      %7151 = vmatmul.mubr.f32.gmra.mrb[0].mxu0 %v6803
      %v7152 = vpop.f32.mrb[0].mxu0
      %v7153 = vadd.f32 0.0, %v7152
      %v7154 = vpop.f32.mrb[0].mxu0
      %7155 = vmatprep.mubr.f32.mxu0 %v6811
      %7156 = vmatmul.mubr.f32.gmra.mrb[0].mxu0 %v6810
      %v7157 = vpop.f32.mrb[0].mxu0
      %v7158 = vadd.f32 0.0, %v7157
      %v7159 = vpop.f32.mrb[0].mxu0
      %7160 = vmatprep.mubr.f32.mxu0 %v6818
      %7161 = vmatmul.mubr.f32.gmra.mrb[0].mxu0 %v6817
      %v7162 = vpop.f32.mrb[0].mxu0
      %v7163 = vadd.f32 0.0, %v7162
      %v7164 = vpop.f32.mrb[0].mxu0
      %7165 = vdwg.mxu0
      %7166 = vmatprep.subr.mxu0 0.0
      %7167 = vmatpush1.msra.mxu0 %v6510
      %7168 = vmatprep.subr.mxu0 0.0
      %7169 = vmatpush1.msra.mxu0 %v6511
      %7170 = vmatprep.subr.mxu0 0.0
      %7171 = vmatpush1.msra.mxu0 %v6512
      %7172 = vmatprep.subr.mxu0 0.0
      %7173 = vmatpush1.msra.mxu0 %v6513
      %7174 = vmatprep.subr.mxu0 0.0
      %7175 = vmatpush1.msra.mxu0 %v6514
      %7176 = vmatprep.subr.mxu0 0.0
      %7177 = vmatpush1.msra.mxu0 %v6515
      %7178 = vmatprep.subr.mxu0 0.0
      %7179 = vmatpush1.msra.mxu0 %v6516
      %7180 = vmatprep.subr.mxu0 0.0
      %7181 = vmatpush1.msra.mxu0 %v6517
      %7182 = vmatprep.subr.mxu0 0.0
      %7183 = vmatpush1.msra.mxu0 %v6518
      %7184 = vmatprep.subr.mxu0 0.0
      %7185 = vmatpush1.msra.mxu0 %v6519
      %7186 = vmatprep.subr.mxu0 0.0
      %7187 = vmatpush1.msra.mxu0 %v6520
      %7188 = vmatprep.subr.mxu0 0.0
      %7189 = vmatpush1.msra.mxu0 %v6521
      %7190 = vmatprep.subr.mxu0 0.0
      %7191 = vmatpush1.msra.mxu0 %v6522
      %7192 = vmatprep.subr.mxu0 0.0
      %7193 = vmatpush1.msra.mxu0 %v6523
      %7194 = vmatprep.subr.mxu0 0.0
      %7195 = vmatpush1.msra.mxu0 %v6524
      %7196 = vmatprep.subr.mxu0 0.0
      %7197 = vmatpush1.msra.mxu0 %v6525
      %7198 = vmatprep.subr.mxu0 0.0
      %7199 = vmatpush1.msra.mxu0 %v6526
      %7200 = vmatprep.subr.mxu0 0.0
      %7201 = vmatpush1.msra.mxu0 %v6527
      %7202 = vmatprep.subr.mxu0 0.0
      %7203 = vmatpush1.msra.mxu0 %v6528
      %7204 = vmatprep.subr.mxu0 0.0
      %7205 = vmatpush1.msra.mxu0 %v6529
      %7206 = vmatprep.subr.mxu0 0.0
      %7207 = vmatpush1.msra.mxu0 %v6530
      %7208 = vmatprep.subr.mxu0 0.0
      %7209 = vmatpush1.msra.mxu0 %v6531
      %7210 = vmatprep.subr.mxu0 0.0
      %7211 = vmatpush1.msra.mxu0 %v6532
      %7212 = vmatprep.subr.mxu0 0.0
      %7213 = vmatpush1.msra.mxu0 %v6533
      %7214 = vmatprep.subr.mxu0 0.0
      %7215 = vmatpush1.msra.mxu0 %v6534
      %7216 = vmatprep.subr.mxu0 0.0
      %7217 = vmatpush1.msra.mxu0 %v6535
      %7218 = vmatprep.subr.mxu0 0.0
      %7219 = vmatpush1.msra.mxu0 %v6536
      %7220 = vmatprep.subr.mxu0 0.0
      %7221 = vmatpush1.msra.mxu0 %v6537
      %7222 = vmatprep.subr.mxu0 0.0
      %7223 = vmatpush1.msra.mxu0 %v6538
      %7224 = vmatprep.subr.mxu0 0.0
      %7225 = vmatpush1.msra.mxu0 %v6539
      %7226 = vmatprep.subr.mxu0 0.0
      %7227 = vmatpush1.msra.mxu0 %v6540
      %7228 = vmatprep.subr.mxu0 0.0
      %7229 = vmatpush1.msra.mxu0 %v6541
      %7230 = vmatprep.mubr.f32.mxu0 %v6589
      %7231 = vmatmul.mubr.f32.gmra.mrb[0].mxu0 %v6588
      %v7232 = vpop.f32.mrb[0].mxu0
      %v7233 = vadd.f32 %v6998, %v7232
      %v7234 = vpop.f32.mrb[0].mxu0
      %7235 = vmatprep.mubr.f32.mxu0 %v6596
      %7236 = vmatmul.mubr.f32.gmra.mrb[0].mxu0 %v6595
      %v7237 = vpop.f32.mrb[0].mxu0
      %v7238 = vadd.f32 %v7003, %v7237
      %v7239 = vpop.f32.mrb[0].mxu0
      %7240 = vmatprep.mubr.f32.mxu0 %v6603
      %7241 = vmatmul.mubr.f32.gmra.mrb[0].mxu0 %v6602
      %v7242 = vpop.f32.mrb[0].mxu0
      %v7243 = vadd.f32 %v7008, %v7242
      %v7244 = vpop.f32.mrb[0].mxu0
      %7245 = vmatprep.mubr.f32.mxu0 %v6610
      %7246 = vmatmul.mubr.f32.gmra.mrb[0].mxu0 %v6609
      %v7247 = vpop.f32.mrb[0].mxu0
      %v7248 = vadd.f32 %v7013, %v7247
      %v7249 = vpop.f32.mrb[0].mxu0
      %7250 = vmatprep.mubr.f32.mxu0 %v6617
      %7251 = vmatmul.mubr.f32.gmra.mrb[0].mxu0 %v6616
      %v7252 = vpop.f32.mrb[0].mxu0
      %v7253 = vadd.f32 %v7018, %v7252
      %v7254 = vpop.f32.mrb[0].mxu0
      %7255 = vmatprep.mubr.f32.mxu0 %v6624
      %7256 = vmatmul.mubr.f32.gmra.mrb[0].mxu0 %v6623
      %v7257 = vpop.f32.mrb[0].mxu0
      %v7258 = vadd.f32 %v7023, %v7257
      %v7259 = vpop.f32.mrb[0].mxu0
      %7260 = vmatprep.mubr.f32.mxu0 %v6631
      %7261 = vmatmul.mubr.f32.gmra.mrb[0].mxu0 %v6630
      %v7262 = vpop.f32.mrb[0].mxu0
      %v7263 = vadd.f32 %v7028, %v7262
      %v7264 = vpop.f32.mrb[0].mxu0
      %7265 = vmatprep.mubr.f32.mxu0 %v6638
      %7266 = vmatmul.mubr.f32.gmra.mrb[0].mxu0 %v6637
      %v7267 = vpop.f32.mrb[0].mxu0
      %v7268 = vadd.f32 %v7033, %v7267
      %v7269 = vpop.f32.mrb[0].mxu0
      %7270 = vmatprep.mubr.f32.mxu0 %v6645
      %7271 = vmatmul.mubr.f32.gmra.mrb[0].mxu0 %v6644
      %v7272 = vpop.f32.mrb[0].mxu0
      %v7273 = vadd.f32 %v7038, %v7272
      %v7274 = vpop.f32.mrb[0].mxu0
      %7275 = vmatprep.mubr.f32.mxu0 %v6652
      %7276 = vmatmul.mubr.f32.gmra.mrb[0].mxu0 %v6651
      %v7277 = vpop.f32.mrb[0].mxu0
      %v7278 = vadd.f32 %v7043, %v7277
      %v7279 = vpop.f32.mrb[0].mxu0
      %7280 = vmatprep.mubr.f32.mxu0 %v6659
      %7281 = vmatmul.mubr.f32.gmra.mrb[0].mxu0 %v6658
      %v7282 = vpop.f32.mrb[0].mxu0
      %v7283 = vadd.f32 %v7048, %v7282
      %v7284 = vpop.f32.mrb[0].mxu0
      %7285 = vmatprep.mubr.f32.mxu0 %v6666
      %7286 = vmatmul.mubr.f32.gmra.mrb[0].mxu0 %v6665
      %v7287 = vpop.f32.mrb[0].mxu0
      %v7288 = vadd.f32 %v7053, %v7287
      %v7289 = vpop.f32.mrb[0].mxu0
      %7290 = vmatprep.mubr.f32.mxu0 %v6673
      %7291 = vmatmul.mubr.f32.gmra.mrb[0].mxu0 %v6672
      %v7292 = vpop.f32.mrb[0].mxu0
      %v7293 = vadd.f32 %v7058, %v7292
      %v7294 = vpop.f32.mrb[0].mxu0
      %7295 = vmatprep.mubr.f32.mxu0 %v6680
      %7296 = vmatmul.mubr.f32.gmra.mrb[0].mxu0 %v6679
      %v7297 = vpop.f32.mrb[0].mxu0
      %v7298 = vadd.f32 %v7063, %v7297
      %v7299 = vpop.f32.mrb[0].mxu0
      %7300 = vmatprep.mubr.f32.mxu0 %v6687
      %7301 = vmatmul.mubr.f32.gmra.mrb[0].mxu0 %v6686
      %v7302 = vpop.f32.mrb[0].mxu0
      %v7303 = vadd.f32 %v7068, %v7302
      %v7304 = vpop.f32.mrb[0].mxu0
      %7305 = vmatprep.mubr.f32.mxu0 %v6694
      %7306 = vmatmul.mubr.f32.gmra.mrb[0].mxu0 %v6693
      %v7307 = vpop.f32.mrb[0].mxu0
      %v7308 = vadd.f32 %v7073, %v7307
      %v7309 = vpop.f32.mrb[0].mxu0
      %7310 = vmatprep.mubr.f32.mxu0 %v6701
      %7311 = vmatmul.mubr.f32.gmra.mrb[0].mxu0 %v6700
      %v7312 = vpop.f32.mrb[0].mxu0
      %v7313 = vadd.f32 %v7078, %v7312
      %v7314 = vpop.f32.mrb[0].mxu0
      %7315 = vmatprep.mubr.f32.mxu0 %v6708
      %7316 = vmatmul.mubr.f32.gmra.mrb[0].mxu0 %v6707
      %v7317 = vpop.f32.mrb[0].mxu0
      %v7318 = vadd.f32 %v7083, %v7317
      %v7319 = vpop.f32.mrb[0].mxu0
      %7320 = vmatprep.mubr.f32.mxu0 %v6715
      %7321 = vmatmul.mubr.f32.gmra.mrb[0].mxu0 %v6714
      %v7322 = vpop.f32.mrb[0].mxu0
      %v7323 = vadd.f32 %v7088, %v7322
      %v7324 = vpop.f32.mrb[0].mxu0
      %7325 = vmatprep.mubr.f32.mxu0 %v6722
      %7326 = vmatmul.mubr.f32.gmra.mrb[0].mxu0 %v6721
      %v7327 = vpop.f32.mrb[0].mxu0
      %v7328 = vadd.f32 %v7093, %v7327
      %v7329 = vpop.f32.mrb[0].mxu0
      %7330 = vmatprep.mubr.f32.mxu0 %v6729
      %7331 = vmatmul.mubr.f32.gmra.mrb[0].mxu0 %v6728
      %v7332 = vpop.f32.mrb[0].mxu0
      %v7333 = vadd.f32 %v7098, %v7332
      %v7334 = vpop.f32.mrb[0].mxu0
      %7335 = vmatprep.mubr.f32.mxu0 %v6736
      %7336 = vmatmul.mubr.f32.gmra.mrb[0].mxu0 %v6735
      %v7337 = vpop.f32.mrb[0].mxu0
      %v7338 = vadd.f32 %v7103, %v7337
      %v7339 = vpop.f32.mrb[0].mxu0
      %7340 = vmatprep.mubr.f32.mxu0 %v6743
      %7341 = vmatmul.mubr.f32.gmra.mrb[0].mxu0 %v6742
      %v7342 = vpop.f32.mrb[0].mxu0
      %v7343 = vadd.f32 %v7108, %v7342
      %v7344 = vpop.f32.mrb[0].mxu0
      %7345 = vmatprep.mubr.f32.mxu0 %v6750
      %7346 = vmatmul.mubr.f32.gmra.mrb[0].mxu0 %v6749
      %v7347 = vpop.f32.mrb[0].mxu0
      %v7348 = vadd.f32 %v7113, %v7347
      %v7349 = vpop.f32.mrb[0].mxu0
      %7350 = vmatprep.mubr.f32.mxu0 %v6757
      %7351 = vmatmul.mubr.f32.gmra.mrb[0].mxu0 %v6756
      %v7352 = vpop.f32.mrb[0].mxu0
      %v7353 = vadd.f32 %v7118, %v7352
      %v7354 = vpop.f32.mrb[0].mxu0
      %7355 = vmatprep.mubr.f32.mxu0 %v6764
      %7356 = vmatmul.mubr.f32.gmra.mrb[0].mxu0 %v6763
      %v7357 = vpop.f32.mrb[0].mxu0
      %v7358 = vadd.f32 %v7123, %v7357
      %v7359 = vpop.f32.mrb[0].mxu0
      %7360 = vmatprep.mubr.f32.mxu0 %v6771
      %7361 = vmatmul.mubr.f32.gmra.mrb[0].mxu0 %v6770
      %v7362 = vpop.f32.mrb[0].mxu0
      %v7363 = vadd.f32 %v7128, %v7362
      %v7364 = vpop.f32.mrb[0].mxu0
      %7365 = vmatprep.mubr.f32.mxu0 %v6778
      %7366 = vmatmul.mubr.f32.gmra.mrb[0].mxu0 %v6777
      %v7367 = vpop.f32.mrb[0].mxu0
      %v7368 = vadd.f32 %v7133, %v7367
      %v7369 = vpop.f32.mrb[0].mxu0
      %7370 = vmatprep.mubr.f32.mxu0 %v6785
      %7371 = vmatmul.mubr.f32.gmra.mrb[0].mxu0 %v6784
      %v7372 = vpop.f32.mrb[0].mxu0
      %v7373 = vadd.f32 %v7138, %v7372
      %v7374 = vpop.f32.mrb[0].mxu0
      %7375 = vmatprep.mubr.f32.mxu0 %v6792
      %7376 = vmatmul.mubr.f32.gmra.mrb[0].mxu0 %v6791
      %v7377 = vpop.f32.mrb[0].mxu0
      %v7378 = vadd.f32 %v7143, %v7377
      %v7379 = vpop.f32.mrb[0].mxu0
      %7380 = vmatprep.mubr.f32.mxu0 %v6799
      %7381 = vmatmul.mubr.f32.gmra.mrb[0].mxu0 %v6798
      %v7382 = vpop.f32.mrb[0].mxu0
      %v7383 = vadd.f32 %v7148, %v7382
      %v7384 = vpop.f32.mrb[0].mxu0
      %7385 = vmatprep.mubr.f32.mxu0 %v6806
      %7386 = vmatmul.mubr.f32.gmra.mrb[0].mxu0 %v6805
      %v7387 = vpop.f32.mrb[0].mxu0
      %v7388 = vadd.f32 %v7153, %v7387
      %v7389 = vpop.f32.mrb[0].mxu0
      %7390 = vmatprep.mubr.f32.mxu0 %v6813
      %7391 = vmatmul.mubr.f32.gmra.mrb[0].mxu0 %v6812
      %v7392 = vpop.f32.mrb[0].mxu0
      %v7393 = vadd.f32 %v7158, %v7392
      %v7394 = vpop.f32.mrb[0].mxu0
      %7395 = vmatprep.mubr.f32.mxu0 %v6820
      %7396 = vmatmul.mubr.f32.gmra.mrb[0].mxu0 %v6819
      %v7397 = vpop.f32.mrb[0].mxu0
      %v7398 = vadd.f32 %v7163, %v7397
      %v7399 = vpop.f32.mrb[0].mxu0
      %7400 = vdwg.mxu0
      %7401 = vmatprep.subr.mxu0 0.0
      %7402 = vmatpush1.msra.mxu0 %v6542
      %7403 = vmatprep.subr.mxu0 0.0
      %7404 = vmatpush1.msra.mxu0 %v6543
      %7405 = vmatprep.subr.mxu0 0.0
      %7406 = vmatpush1.msra.mxu0 %v6544
      %7407 = vmatprep.subr.mxu0 0.0
      %7408 = vmatpush1.msra.mxu0 %v6545
      %7409 = vmatprep.subr.mxu0 0.0
      %7410 = vmatpush1.msra.mxu0 %v6546
      %7411 = vmatprep.subr.mxu0 0.0
      %7412 = vmatpush1.msra.mxu0 %v6547
      %7413 = vmatprep.subr.mxu0 0.0
      %7414 = vmatpush1.msra.mxu0 %v6548
      %7415 = vmatprep.subr.mxu0 0.0
      %7416 = vmatpush1.msra.mxu0 %v6549
      %7417 = vmatprep.subr.mxu0 0.0
      %7418 = vmatpush1.msra.mxu0 %v6550
      %7419 = vmatprep.subr.mxu0 0.0
      %7420 = vmatpush1.msra.mxu0 %v6551
      %7421 = vmatprep.subr.mxu0 0.0
      %7422 = vmatpush1.msra.mxu0 %v6552
      %7423 = vmatprep.subr.mxu0 0.0
      %7424 = vmatpush1.msra.mxu0 %v6553
      %7425 = vmatprep.subr.mxu0 0.0
      %7426 = vmatpush1.msra.mxu0 %v6554
      %7427 = vmatprep.subr.mxu0 0.0
      %7428 = vmatpush1.msra.mxu0 %v6555
      %7429 = vmatprep.subr.mxu0 0.0
      %7430 = vmatpush1.msra.mxu0 %v6556
      %7431 = vmatprep.subr.mxu0 0.0
      %7432 = vmatpush1.msra.mxu0 %v6557
      %7433 = vmatprep.subr.mxu0 0.0
      %7434 = vmatpush1.msra.mxu0 %v6558
      %7435 = vmatprep.subr.mxu0 0.0
      %7436 = vmatpush1.msra.mxu0 %v6559
      %7437 = vmatprep.subr.mxu0 0.0
      %7438 = vmatpush1.msra.mxu0 %v6560
      %7439 = vmatprep.subr.mxu0 0.0
      %7440 = vmatpush1.msra.mxu0 %v6561
      %7441 = vmatprep.subr.mxu0 0.0
      %7442 = vmatpush1.msra.mxu0 %v6562
      %7443 = vmatprep.subr.mxu0 0.0
      %7444 = vmatpush1.msra.mxu0 %v6563
      %7445 = vmatprep.subr.mxu0 0.0
      %7446 = vmatpush1.msra.mxu0 %v6564
      %7447 = vmatprep.subr.mxu0 0.0
      %7448 = vmatpush1.msra.mxu0 %v6565
      %7449 = vmatprep.subr.mxu0 0.0
      %7450 = vmatpush1.msra.mxu0 %v6566
      %7451 = vmatprep.subr.mxu0 0.0
      %7452 = vmatpush1.msra.mxu0 %v6567
      %7453 = vmatprep.subr.mxu0 0.0
      %7454 = vmatpush1.msra.mxu0 %v6568
      %7455 = vmatprep.subr.mxu0 0.0
      %7456 = vmatpush1.msra.mxu0 %v6569
      %7457 = vmatprep.subr.mxu0 0.0
      %7458 = vmatpush1.msra.mxu0 %v6570
      %7459 = vmatprep.subr.mxu0 0.0
      %7460 = vmatpush1.msra.mxu0 %v6571
      %7461 = vmatprep.subr.mxu0 0.0
      %7462 = vmatpush1.msra.mxu0 %v6572
      %7463 = vmatprep.subr.mxu0 0.0
      %7464 = vmatpush1.msra.mxu0 %v6573
      %7465 = vmatprep.mubr.f32.mxu0 %v6591
      %7466 = vmatmul.mubr.f32.gmra.mrb[0].mxu0 %v6590
      %v7467 = vpop.f32.mrb[0].mxu0
      %v7468 = vadd.f32 %v7233, %v7467
      %v7469 = vpop.f32.mrb[0].mxu0
      %7470 = vmatprep.mubr.f32.mxu0 %v6598
      %7471 = vmatmul.mubr.f32.gmra.mrb[0].mxu0 %v6597
      %v7472 = vpop.f32.mrb[0].mxu0
      %v7473 = vadd.f32 %v7238, %v7472
      %v7474 = vpop.f32.mrb[0].mxu0
      %7475 = vmatprep.mubr.f32.mxu0 %v6605
      %7476 = vmatmul.mubr.f32.gmra.mrb[0].mxu0 %v6604
      %v7477 = vpop.f32.mrb[0].mxu0
      %v7478 = vadd.f32 %v7243, %v7477
      %v7479 = vpop.f32.mrb[0].mxu0
      %7480 = vmatprep.mubr.f32.mxu0 %v6612
      %7481 = vmatmul.mubr.f32.gmra.mrb[0].mxu0 %v6611
      %v7482 = vpop.f32.mrb[0].mxu0
      %v7483 = vadd.f32 %v7248, %v7482
      %v7484 = vpop.f32.mrb[0].mxu0
      %7485 = vmatprep.mubr.f32.mxu0 %v6619
      %7486 = vmatmul.mubr.f32.gmra.mrb[0].mxu0 %v6618
      %v7487 = vpop.f32.mrb[0].mxu0
      %v7488 = vadd.f32 %v7253, %v7487
      %v7489 = vpop.f32.mrb[0].mxu0
      %7490 = vmatprep.mubr.f32.mxu0 %v6626
      %7491 = vmatmul.mubr.f32.gmra.mrb[0].mxu0 %v6625
      %v7492 = vpop.f32.mrb[0].mxu0
      %v7493 = vadd.f32 %v7258, %v7492
      %v7494 = vpop.f32.mrb[0].mxu0
      %7495 = vmatprep.mubr.f32.mxu0 %v6633
      %7496 = vmatmul.mubr.f32.gmra.mrb[0].mxu0 %v6632
      %v7497 = vpop.f32.mrb[0].mxu0
      %v7498 = vadd.f32 %v7263, %v7497
      %v7499 = vpop.f32.mrb[0].mxu0
      %7500 = vmatprep.mubr.f32.mxu0 %v6640
      %7501 = vmatmul.mubr.f32.gmra.mrb[0].mxu0 %v6639
      %v7502 = vpop.f32.mrb[0].mxu0
      %v7503 = vadd.f32 %v7268, %v7502
      %v7504 = vpop.f32.mrb[0].mxu0
      %7505 = vmatprep.mubr.f32.mxu0 %v6647
      %7506 = vmatmul.mubr.f32.gmra.mrb[0].mxu0 %v6646
      %v7507 = vpop.f32.mrb[0].mxu0
      %v7508 = vadd.f32 %v7273, %v7507
      %v7509 = vpop.f32.mrb[0].mxu0
      %7510 = vmatprep.mubr.f32.mxu0 %v6654
      %7511 = vmatmul.mubr.f32.gmra.mrb[0].mxu0 %v6653
      %v7512 = vpop.f32.mrb[0].mxu0
      %v7513 = vadd.f32 %v7278, %v7512
      %v7514 = vpop.f32.mrb[0].mxu0
      %7515 = vmatprep.mubr.f32.mxu0 %v6661
      %7516 = vmatmul.mubr.f32.gmra.mrb[0].mxu0 %v6660
      %v7517 = vpop.f32.mrb[0].mxu0
      %v7518 = vadd.f32 %v7283, %v7517
      %v7519 = vpop.f32.mrb[0].mxu0
      %7520 = vmatprep.mubr.f32.mxu0 %v6668
      %7521 = vmatmul.mubr.f32.gmra.mrb[0].mxu0 %v6667
      %v7522 = vpop.f32.mrb[0].mxu0
      %v7523 = vadd.f32 %v7288, %v7522
      %v7524 = vpop.f32.mrb[0].mxu0
      %7525 = vmatprep.mubr.f32.mxu0 %v6675
      %7526 = vmatmul.mubr.f32.gmra.mrb[0].mxu0 %v6674
      %v7527 = vpop.f32.mrb[0].mxu0
      %v7528 = vadd.f32 %v7293, %v7527
      %v7529 = vpop.f32.mrb[0].mxu0
      %7530 = vmatprep.mubr.f32.mxu0 %v6682
      %7531 = vmatmul.mubr.f32.gmra.mrb[0].mxu0 %v6681
      %v7532 = vpop.f32.mrb[0].mxu0
      %v7533 = vadd.f32 %v7298, %v7532
      %v7534 = vpop.f32.mrb[0].mxu0
      %7535 = vmatprep.mubr.f32.mxu0 %v6689
      %7536 = vmatmul.mubr.f32.gmra.mrb[0].mxu0 %v6688
      %v7537 = vpop.f32.mrb[0].mxu0
      %v7538 = vadd.f32 %v7303, %v7537
      %v7539 = vpop.f32.mrb[0].mxu0
      %7540 = vmatprep.mubr.f32.mxu0 %v6696
      %7541 = vmatmul.mubr.f32.gmra.mrb[0].mxu0 %v6695
      %v7542 = vpop.f32.mrb[0].mxu0
      %v7543 = vadd.f32 %v7308, %v7542
      %v7544 = vpop.f32.mrb[0].mxu0
      %7545 = vmatprep.mubr.f32.mxu0 %v6703
      %7546 = vmatmul.mubr.f32.gmra.mrb[0].mxu0 %v6702
      %v7547 = vpop.f32.mrb[0].mxu0
      %v7548 = vadd.f32 %v7313, %v7547
      %v7549 = vpop.f32.mrb[0].mxu0
      %7550 = vmatprep.mubr.f32.mxu0 %v6710
      %7551 = vmatmul.mubr.f32.gmra.mrb[0].mxu0 %v6709
      %v7552 = vpop.f32.mrb[0].mxu0
      %v7553 = vadd.f32 %v7318, %v7552
      %v7554 = vpop.f32.mrb[0].mxu0
      %7555 = vmatprep.mubr.f32.mxu0 %v6717
      %7556 = vmatmul.mubr.f32.gmra.mrb[0].mxu0 %v6716
      %v7557 = vpop.f32.mrb[0].mxu0
      %v7558 = vadd.f32 %v7323, %v7557
      %v7559 = vpop.f32.mrb[0].mxu0
      %7560 = vmatprep.mubr.f32.mxu0 %v6724
      %7561 = vmatmul.mubr.f32.gmra.mrb[0].mxu0 %v6723
      %v7562 = vpop.f32.mrb[0].mxu0
      %v7563 = vadd.f32 %v7328, %v7562
      %v7564 = vpop.f32.mrb[0].mxu0
      %7565 = vmatprep.mubr.f32.mxu0 %v6731
      %7566 = vmatmul.mubr.f32.gmra.mrb[0].mxu0 %v6730
      %v7567 = vpop.f32.mrb[0].mxu0
      %v7568 = vadd.f32 %v7333, %v7567
      %v7569 = vpop.f32.mrb[0].mxu0
      %7570 = vmatprep.mubr.f32.mxu0 %v6738
      %7571 = vmatmul.mubr.f32.gmra.mrb[0].mxu0 %v6737
      %v7572 = vpop.f32.mrb[0].mxu0
      %v7573 = vadd.f32 %v7338, %v7572
      %v7574 = vpop.f32.mrb[0].mxu0
      %7575 = vmatprep.mubr.f32.mxu0 %v6745
      %7576 = vmatmul.mubr.f32.gmra.mrb[0].mxu0 %v6744
      %v7577 = vpop.f32.mrb[0].mxu0
      %v7578 = vadd.f32 %v7343, %v7577
      %v7579 = vpop.f32.mrb[0].mxu0
      %7580 = vmatprep.mubr.f32.mxu0 %v6752
      %7581 = vmatmul.mubr.f32.gmra.mrb[0].mxu0 %v6751
      %v7582 = vpop.f32.mrb[0].mxu0
      %v7583 = vadd.f32 %v7348, %v7582
      %v7584 = vpop.f32.mrb[0].mxu0
      %7585 = vmatprep.mubr.f32.mxu0 %v6759
      %7586 = vmatmul.mubr.f32.gmra.mrb[0].mxu0 %v6758
      %v7587 = vpop.f32.mrb[0].mxu0
      %v7588 = vadd.f32 %v7353, %v7587
      %v7589 = vpop.f32.mrb[0].mxu0
      %7590 = vmatprep.mubr.f32.mxu0 %v6766
      %7591 = vmatmul.mubr.f32.gmra.mrb[0].mxu0 %v6765
      %v7592 = vpop.f32.mrb[0].mxu0
      %v7593 = vadd.f32 %v7358, %v7592
      %v7594 = vpop.f32.mrb[0].mxu0
      %7595 = vmatprep.mubr.f32.mxu0 %v6773
      %7596 = vmatmul.mubr.f32.gmra.mrb[0].mxu0 %v6772
      %v7597 = vpop.f32.mrb[0].mxu0
      %v7598 = vadd.f32 %v7363, %v7597
      %v7599 = vpop.f32.mrb[0].mxu0
      %7600 = vmatprep.mubr.f32.mxu0 %v6780
      %7601 = vmatmul.mubr.f32.gmra.mrb[0].mxu0 %v6779
      %v7602 = vpop.f32.mrb[0].mxu0
      %v7603 = vadd.f32 %v7368, %v7602
      %v7604 = vpop.f32.mrb[0].mxu0
      %7605 = vmatprep.mubr.f32.mxu0 %v6787
      %7606 = vmatmul.mubr.f32.gmra.mrb[0].mxu0 %v6786
      %v7607 = vpop.f32.mrb[0].mxu0
      %v7608 = vadd.f32 %v7373, %v7607
      %v7609 = vpop.f32.mrb[0].mxu0
      %7610 = vmatprep.mubr.f32.mxu0 %v6794
      %7611 = vmatmul.mubr.f32.gmra.mrb[0].mxu0 %v6793
      %v7612 = vpop.f32.mrb[0].mxu0
      %v7613 = vadd.f32 %v7378, %v7612
      %v7614 = vpop.f32.mrb[0].mxu0
      %7615 = vmatprep.mubr.f32.mxu0 %v6801
      %7616 = vmatmul.mubr.f32.gmra.mrb[0].mxu0 %v6800
      %v7617 = vpop.f32.mrb[0].mxu0
      %v7618 = vadd.f32 %v7383, %v7617
      %v7619 = vpop.f32.mrb[0].mxu0
      %7620 = vmatprep.mubr.f32.mxu0 %v6808
      %7621 = vmatmul.mubr.f32.gmra.mrb[0].mxu0 %v6807
      %v7622 = vpop.f32.mrb[0].mxu0
      %v7623 = vadd.f32 %v7388, %v7622
      %v7624 = vpop.f32.mrb[0].mxu0
      %7625 = vmatprep.mubr.f32.mxu0 %v6815
      %7626 = vmatmul.mubr.f32.gmra.mrb[0].mxu0 %v6814
      %v7627 = vpop.f32.mrb[0].mxu0
      %v7628 = vadd.f32 %v7393, %v7627
      %v7629 = vpop.f32.mrb[0].mxu0
      %7630 = vmatprep.mubr.f32.mxu0 %v6822
      %7631 = vmatmul.mubr.f32.gmra.mrb[0].mxu0 %v6821
      %v7632 = vpop.f32.mrb[0].mxu0
      %v7633 = vadd.f32 %v7398, %v7632
      %v7634 = vpop.f32.mrb[0].mxu0
      %7635 = vdwg.mxu0
      %7636 = vmatprep.subr.mxu0 0.0
      %7637 = vmatpush1.msra.mxu0 %v6574
      %7638 = vmatprep.subr.mxu0 0.0
      %7639 = vmatpush1.msra.mxu0 %v6575
      %7640 = vmatprep.subr.mxu0 0.0
      %7641 = vmatpush1.msra.mxu0 %v6576
      %7642 = vmatprep.subr.mxu0 0.0
      %7643 = vmatpush1.msra.mxu0 %v6577
      %7644 = vmatprep.subr.mxu0 0.0
      %7645 = vmatpush1.msra.mxu0 %v6578
      %7646 = vmatprep.subr.mxu0 0.0
      %7647 = vmatpush1.msra.mxu0 %v6579
      %7648 = vmatprep.subr.mxu0 0.0
      %7649 = vmatpush1.msra.mxu0 %v6580
      %7650 = vmatprep.subr.mxu0 0.0
      %7651 = vmatpush1.msra.mxu0 %v6581
      %7652 = vmatprep.subr.mxu0 0.0
      %7653 = vmatpush1.msra.mxu0 %v6582
      %7654 = vmatprep.subr.mxu0 0.0
      %7655 = vmatpush1.msra.mxu0 %v6583
      %7656 = vmatprep.subr.mxu0 0.0
      %7657 = vmatpush1.msra.mxu0 %v6584
      %7658 = vmatprep.subr.mxu0 0.0
      %7659 = vmatpush1.msra.mxu0 %v6929
      %7660 = vmatprep.subr.mxu0 0.0
      %7661 = vmatpush1.msra.mxu0 0.0
      %7662 = vmatprep.subr.mxu0 0.0
      %7663 = vmatpush1.msra.mxu0 0.0
      %7664 = vmatprep.subr.mxu0 0.0
      %7665 = vmatpush1.msra.mxu0 0.0
      %7666 = vmatprep.subr.mxu0 0.0
      %7667 = vmatpush1.msra.mxu0 0.0
      %7668 = vmatprep.subr.mxu0 0.0
      %7669 = vmatpush1.msra.mxu0 0.0
      %7670 = vmatprep.subr.mxu0 0.0
      %7671 = vmatpush1.msra.mxu0 0.0
      %7672 = vmatprep.subr.mxu0 0.0
      %7673 = vmatpush1.msra.mxu0 0.0
      %7674 = vmatprep.subr.mxu0 0.0
      %7675 = vmatpush1.msra.mxu0 0.0
      %7676 = vmatprep.subr.mxu0 0.0
      %7677 = vmatpush1.msra.mxu0 0.0
      %7678 = vmatprep.subr.mxu0 0.0
      %7679 = vmatpush1.msra.mxu0 0.0
      %7680 = vmatprep.subr.mxu0 0.0
      %7681 = vmatpush1.msra.mxu0 0.0
      %7682 = vmatprep.subr.mxu0 0.0
      %7683 = vmatpush1.msra.mxu0 0.0
      %7684 = vmatprep.subr.mxu0 0.0
      %7685 = vmatpush1.msra.mxu0 0.0
      %7686 = vmatprep.subr.mxu0 0.0
      %7687 = vmatpush1.msra.mxu0 0.0
      %7688 = vmatprep.subr.mxu0 0.0
      %7689 = vmatpush1.msra.mxu0 0.0
      %7690 = vmatprep.subr.mxu0 0.0
      %7691 = vmatpush1.msra.mxu0 0.0
      %7692 = vmatprep.subr.mxu0 0.0
      %7693 = vmatpush1.msra.mxu0 0.0
      %7694 = vmatprep.subr.mxu0 0.0
      %7695 = vmatpush1.msra.mxu0 0.0
      %7696 = vmatprep.subr.mxu0 0.0
      %7697 = vmatpush1.msra.mxu0 0.0
      %7698 = vmatprep.subr.mxu0 0.0
      %7699 = vmatpush1.msra.mxu0 0.0
      %7700 = vmatprep.mubr.f32.mxu0 0.0
      %7701 = vmatmul.mubr.f32.gmra.mrb[0].mxu0 %v6826
      %v7702 = vpop.f32.mrb[0].mxu0
      %v7703 = vadd.f32 %v7468, %v7702
      %v7704 = vpop.f32.mrb[0].mxu0
      %7705 = vmatprep.mubr.f32.mxu0 0.0
      %7706 = vmatmul.mubr.f32.gmra.mrb[0].mxu0 %v6829
      %v7707 = vpop.f32.mrb[0].mxu0
      %v7708 = vadd.f32 %v7473, %v7707
      %v7709 = vpop.f32.mrb[0].mxu0
      %7710 = vmatprep.mubr.f32.mxu0 0.0
      %7711 = vmatmul.mubr.f32.gmra.mrb[0].mxu0 %v6832
      %v7712 = vpop.f32.mrb[0].mxu0
      %v7713 = vadd.f32 %v7478, %v7712
      %v7714 = vpop.f32.mrb[0].mxu0
      %7715 = vmatprep.mubr.f32.mxu0 0.0
      %7716 = vmatmul.mubr.f32.gmra.mrb[0].mxu0 %v6835
      %v7717 = vpop.f32.mrb[0].mxu0
      %v7718 = vadd.f32 %v7483, %v7717
      %v7719 = vpop.f32.mrb[0].mxu0
      %7720 = vmatprep.mubr.f32.mxu0 0.0
      %7721 = vmatmul.mubr.f32.gmra.mrb[0].mxu0 %v6838
      %v7722 = vpop.f32.mrb[0].mxu0
      %v7723 = vadd.f32 %v7488, %v7722
      %v7724 = vpop.f32.mrb[0].mxu0
      %7725 = vmatprep.mubr.f32.mxu0 0.0
      %7726 = vmatmul.mubr.f32.gmra.mrb[0].mxu0 %v6841
      %v7727 = vpop.f32.mrb[0].mxu0
      %v7728 = vadd.f32 %v7493, %v7727
      %v7729 = vpop.f32.mrb[0].mxu0
      %7730 = vmatprep.mubr.f32.mxu0 0.0
      %7731 = vmatmul.mubr.f32.gmra.mrb[0].mxu0 %v6844
      %v7732 = vpop.f32.mrb[0].mxu0
      %v7733 = vadd.f32 %v7498, %v7732
      %v7734 = vpop.f32.mrb[0].mxu0
      %7735 = vmatprep.mubr.f32.mxu0 0.0
      %7736 = vmatmul.mubr.f32.gmra.mrb[0].mxu0 %v6847
      %v7737 = vpop.f32.mrb[0].mxu0
      %v7738 = vadd.f32 %v7503, %v7737
      %v7739 = vpop.f32.mrb[0].mxu0
      %7740 = vmatprep.mubr.f32.mxu0 0.0
      %7741 = vmatmul.mubr.f32.gmra.mrb[0].mxu0 %v6850
      %v7742 = vpop.f32.mrb[0].mxu0
      %v7743 = vadd.f32 %v7508, %v7742
      %v7744 = vpop.f32.mrb[0].mxu0
      %7745 = vmatprep.mubr.f32.mxu0 0.0
      %7746 = vmatmul.mubr.f32.gmra.mrb[0].mxu0 %v6853
      %v7747 = vpop.f32.mrb[0].mxu0
      %v7748 = vadd.f32 %v7513, %v7747
      %v7749 = vpop.f32.mrb[0].mxu0
      %7750 = vmatprep.mubr.f32.mxu0 0.0
      %7751 = vmatmul.mubr.f32.gmra.mrb[0].mxu0 %v6856
      %v7752 = vpop.f32.mrb[0].mxu0
      %v7753 = vadd.f32 %v7518, %v7752
      %v7754 = vpop.f32.mrb[0].mxu0
      %7755 = vmatprep.mubr.f32.mxu0 0.0
      %7756 = vmatmul.mubr.f32.gmra.mrb[0].mxu0 %v6859
      %v7757 = vpop.f32.mrb[0].mxu0
      %v7758 = vadd.f32 %v7523, %v7757
      %v7759 = vpop.f32.mrb[0].mxu0
      %7760 = vmatprep.mubr.f32.mxu0 0.0
      %7761 = vmatmul.mubr.f32.gmra.mrb[0].mxu0 %v6862
      %v7762 = vpop.f32.mrb[0].mxu0
      %v7763 = vadd.f32 %v7528, %v7762
      %v7764 = vpop.f32.mrb[0].mxu0
      %7765 = vmatprep.mubr.f32.mxu0 0.0
      %7766 = vmatmul.mubr.f32.gmra.mrb[0].mxu0 %v6865
      %v7767 = vpop.f32.mrb[0].mxu0
      %v7768 = vadd.f32 %v7533, %v7767
      %v7769 = vpop.f32.mrb[0].mxu0
      %7770 = vmatprep.mubr.f32.mxu0 0.0
      %7771 = vmatmul.mubr.f32.gmra.mrb[0].mxu0 %v6868
      %v7772 = vpop.f32.mrb[0].mxu0
      %v7773 = vadd.f32 %v7538, %v7772
      %v7774 = vpop.f32.mrb[0].mxu0
      %7775 = vmatprep.mubr.f32.mxu0 0.0
      %7776 = vmatmul.mubr.f32.gmra.mrb[0].mxu0 %v6871
      %v7777 = vpop.f32.mrb[0].mxu0
      %v7778 = vadd.f32 %v7543, %v7777
      %v7779 = vpop.f32.mrb[0].mxu0
      %7780 = vmatprep.mubr.f32.mxu0 0.0
      %7781 = vmatmul.mubr.f32.gmra.mrb[0].mxu0 %v6874
      %v7782 = vpop.f32.mrb[0].mxu0
      %v7783 = vadd.f32 %v7548, %v7782
      %v7784 = vpop.f32.mrb[0].mxu0
      %7785 = vmatprep.mubr.f32.mxu0 0.0
      %7786 = vmatmul.mubr.f32.gmra.mrb[0].mxu0 %v6877
      %v7787 = vpop.f32.mrb[0].mxu0
      %v7788 = vadd.f32 %v7553, %v7787
      %v7789 = vpop.f32.mrb[0].mxu0
      %7790 = vmatprep.mubr.f32.mxu0 0.0
      %7791 = vmatmul.mubr.f32.gmra.mrb[0].mxu0 %v6880
      %v7792 = vpop.f32.mrb[0].mxu0
      %v7793 = vadd.f32 %v7558, %v7792
      %v7794 = vpop.f32.mrb[0].mxu0
      %7795 = vmatprep.mubr.f32.mxu0 0.0
      %7796 = vmatmul.mubr.f32.gmra.mrb[0].mxu0 %v6883
      %v7797 = vpop.f32.mrb[0].mxu0
      %v7798 = vadd.f32 %v7563, %v7797
      %v7799 = vpop.f32.mrb[0].mxu0
      %7800 = vmatprep.mubr.f32.mxu0 0.0
      %7801 = vmatmul.mubr.f32.gmra.mrb[0].mxu0 %v6886
      %v7802 = vpop.f32.mrb[0].mxu0
      %v7803 = vadd.f32 %v7568, %v7802
      %v7804 = vpop.f32.mrb[0].mxu0
      %7805 = vmatprep.mubr.f32.mxu0 0.0
      %7806 = vmatmul.mubr.f32.gmra.mrb[0].mxu0 %v6889
      %v7807 = vpop.f32.mrb[0].mxu0
      %v7808 = vadd.f32 %v7573, %v7807
      %v7809 = vpop.f32.mrb[0].mxu0
      %7810 = vmatprep.mubr.f32.mxu0 0.0
      %7811 = vmatmul.mubr.f32.gmra.mrb[0].mxu0 %v6892
      %v7812 = vpop.f32.mrb[0].mxu0
      %v7813 = vadd.f32 %v7578, %v7812
      %v7814 = vpop.f32.mrb[0].mxu0
      %7815 = vmatprep.mubr.f32.mxu0 0.0
      %7816 = vmatmul.mubr.f32.gmra.mrb[0].mxu0 %v6895
      %v7817 = vpop.f32.mrb[0].mxu0
      %v7818 = vadd.f32 %v7583, %v7817
      %v7819 = vpop.f32.mrb[0].mxu0
      %7820 = vmatprep.mubr.f32.mxu0 0.0
      %7821 = vmatmul.mubr.f32.gmra.mrb[0].mxu0 %v6898
      %v7822 = vpop.f32.mrb[0].mxu0
      %v7823 = vadd.f32 %v7588, %v7822
      %v7824 = vpop.f32.mrb[0].mxu0
      %7825 = vmatprep.mubr.f32.mxu0 0.0
      %7826 = vmatmul.mubr.f32.gmra.mrb[0].mxu0 %v6901
      %v7827 = vpop.f32.mrb[0].mxu0
      %v7828 = vadd.f32 %v7593, %v7827
      %v7829 = vpop.f32.mrb[0].mxu0
      %7830 = vmatprep.mubr.f32.mxu0 0.0
      %7831 = vmatmul.mubr.f32.gmra.mrb[0].mxu0 %v6904
      %v7832 = vpop.f32.mrb[0].mxu0
      %v7833 = vadd.f32 %v7598, %v7832
      %v7834 = vpop.f32.mrb[0].mxu0
      %7835 = vmatprep.mubr.f32.mxu0 0.0
      %7836 = vmatmul.mubr.f32.gmra.mrb[0].mxu0 %v6907
      %v7837 = vpop.f32.mrb[0].mxu0
      %v7838 = vadd.f32 %v7603, %v7837
      %v7839 = vpop.f32.mrb[0].mxu0
      %7840 = vmatprep.mubr.f32.mxu0 0.0
      %7841 = vmatmul.mubr.f32.gmra.mrb[0].mxu0 %v6910
      %v7842 = vpop.f32.mrb[0].mxu0
      %v7843 = vadd.f32 %v7608, %v7842
      %v7844 = vpop.f32.mrb[0].mxu0
      %7845 = vmatprep.mubr.f32.mxu0 0.0
      %7846 = vmatmul.mubr.f32.gmra.mrb[0].mxu0 %v6913
      %v7847 = vpop.f32.mrb[0].mxu0
      %v7848 = vadd.f32 %v7613, %v7847
      %v7849 = vpop.f32.mrb[0].mxu0
      %7850 = vmatprep.mubr.f32.mxu0 0.0
      %7851 = vmatmul.mubr.f32.gmra.mrb[0].mxu0 %v6916
      %v7852 = vpop.f32.mrb[0].mxu0
      %v7853 = vadd.f32 %v7618, %v7852
      %v7854 = vpop.f32.mrb[0].mxu0
      %7855 = vmatprep.mubr.f32.mxu0 0.0
      %7856 = vmatmul.mubr.f32.gmra.mrb[0].mxu0 %v6919
      %v7857 = vpop.f32.mrb[0].mxu0
      %v7858 = vadd.f32 %v7623, %v7857
      %v7859 = vpop.f32.mrb[0].mxu0
      %7860 = vmatprep.mubr.f32.mxu0 0.0
      %7861 = vmatmul.mubr.f32.gmra.mrb[0].mxu0 %v6922
      %v7862 = vpop.f32.mrb[0].mxu0
      %v7863 = vadd.f32 %v7628, %v7862
      %v7864 = vpop.f32.mrb[0].mxu0
      %7865 = vmatprep.mubr.f32.mxu0 0.0
      %7866 = vmatmul.mubr.f32.gmra.mrb[0].mxu0 %v6925
      %v7867 = vpop.f32.mrb[0].mxu0
      %v7868 = vadd.f32 %v7633, %v7867
      %v7869 = vpop.f32.mrb[0].mxu0
      %7870 = vdwg.mxu0
      %vm7871 = vcmask 261120
      %7872 = vst.msk [vmem:[%s197] sm:$0xff] %vm7871, %v7703
      %7873 = vst.msk [vmem:[%s197 + $0x8] sm:$0xff] %vm7871, %v7708
      %7874 = vst.msk [vmem:[%s197 + $0x10] sm:$0xff] %vm7871, %v7713
      %7875 = vst.msk [vmem:[%s197 + $0x18] sm:$0xff] %vm7871, %v7718
      %7876 = vst.msk [vmem:[%s197 + $0x20] sm:$0xff] %vm7871, %v7723
      %7877 = vst.msk [vmem:[%s197 + $0x28] sm:$0xff] %vm7871, %v7728
      %7878 = vst.msk [vmem:[%s197 + $0x30] sm:$0xff] %vm7871, %v7733
      %7879 = vst.msk [vmem:[%s197 + $0x38] sm:$0xff] %vm7871, %v7738
      %7880 = vst.msk [vmem:[%s197 + $0x40] sm:$0xff] %vm7871, %v7743
      %7881 = vst.msk [vmem:[%s197 + $0x48] sm:$0xff] %vm7871, %v7748
      %7882 = vst.msk [vmem:[%s197 + $0x50] sm:$0xff] %vm7871, %v7753
      %7883 = vst.msk [vmem:[%s197 + $0x58] sm:$0xff] %vm7871, %v7758
      %7884 = vst.msk [vmem:[%s197 + $0x60] sm:$0xff] %vm7871, %v7763
      %7885 = vst.msk [vmem:[%s197 + $0x68] sm:$0xff] %vm7871, %v7768
      %7886 = vst.msk [vmem:[%s197 + $0x70] sm:$0xff] %vm7871, %v7773
      %7887 = vst.msk [vmem:[%s197 + $0x78] sm:$0xff] %vm7871, %v7778
      %7888 = vst.msk [vmem:[%s197 + $0x80] sm:$0xff] %vm7871, %v7783
      %7889 = vst.msk [vmem:[%s197 + $0x88] sm:$0xff] %vm7871, %v7788
      %7890 = vst.msk [vmem:[%s197 + $0x90] sm:$0xff] %vm7871, %v7793
      %7891 = vst.msk [vmem:[%s197 + $0x98] sm:$0xff] %vm7871, %v7798
      %7892 = vst.msk [vmem:[%s197 + $0xa0] sm:$0xff] %vm7871, %v7803
      %7893 = vst.msk [vmem:[%s197 + $0xa8] sm:$0xff] %vm7871, %v7808
      %7894 = vst.msk [vmem:[%s197 + $0xb0] sm:$0xff] %vm7871, %v7813
      %7895 = vst.msk [vmem:[%s197 + $0xb8] sm:$0xff] %vm7871, %v7818
      %7896 = vst.msk [vmem:[%s197 + $0xc0] sm:$0xff] %vm7871, %v7823
      %7897 = vst.msk [vmem:[%s197 + $0xc8] sm:$0xff] %vm7871, %v7828
      %7898 = vst.msk [vmem:[%s197 + $0xd0] sm:$0xff] %vm7871, %v7833
      %7899 = vst.msk [vmem:[%s197 + $0xd8] sm:$0xff] %vm7871, %v7838
      %7900 = vst.msk [vmem:[%s197 + $0xe0] sm:$0xff] %vm7871, %v7843
      %7901 = vst.msk [vmem:[%s197 + $0xe8] sm:$0xff] %vm7871, %v7848
      %7902 = vst.msk [vmem:[%s197 + $0xf0] sm:$0xff] %vm7871, %v7853
      %7903 = vst.msk [vmem:[%s197 + $0xf8] sm:$0xff] %vm7871, %v7858
      %7904 = vst.msk [vmem:[%s197 + $0x100] sm:$0xff] %vm7871, %v7863
      %7905 = vst.msk [vmem:[%s197 + $0x108] sm:$0xff] %vm7871, %v7868
      %p7906 = scmp.lt.s32.totalorder %s15, 1
      %s7907 = scalar_select %p7906, %s15, 1
      %s7908 = smul.addr %s7907, 34
      %s7909 = smul.addr %s7908, 8
      %s7910 = scalar_lea.vmem %s4, %s7909
      // Predicated region
      $region37: #{digit_recognizer_forward.3} parent=35 // pred_check
        %p7911 = pneg %p122
      $region38: #{digit_recognizer_forward.3} parent=35 // pred_check_branch
        %7913 = sbr.rel (%p7911) target = $region40
      $region39: #{digit_recognizer_forward.3} parent=35 // pred_region
        _
      $region40: #{digit_recognizer_forward.3} parent=35 // pred_fallthru
        _
    $region36: #{digit_recognizer_forward.3} parent=5 // pred_fallthru
      _
    %p7914 = scmp.le.s32.totalorder 2, %s10
    // Predicated region
    $region41: #{digit_recognizer_forward.3} parent=5 // pred_check
      %p7915 = pneg %p7914
    $region42: #{digit_recognizer_forward.3} parent=5 // pred_check_branch
      %7917 = sbr.rel (%p7915) target = $region44
    $region43: #{digit_recognizer_forward.3} parent=5 // pred_region
      %s7918 = ssub.s32 %s10, 2
      // Predicated region
      $region45: #{digit_recognizer_forward.3} parent=43 // pred_check
        %p7919 = pneg %p128
      $region46: #{digit_recognizer_forward.3} parent=43 // pred_check_branch
        %7921 = sbr.rel (%p7919) target = $region48
      $region47: #{digit_recognizer_forward.3} parent=43 // pred_region
        %p7922 = scmp.lt.s32.totalorder %s16, 1
        %s7923 = scalar_select %p7922, %s16, 1
        %s7924 = smul.addr %s7923, 34
        %s7925 = smul.addr %s7924, 8
        %s7926 = scalar_lea.vmem %s4, %s7925
      $region48: #{digit_recognizer_forward.3} parent=43 // pred_fallthru
        _
    $region44: #{digit_recognizer_forward.3} parent=5 // pred_fallthru
      _
  $region6: #{digit_recognizer_forward.3} parent=0 // loop_footer
    %s14 = sadd.s32 1, %s10
  $region7: #{digit_recognizer_forward.3} parent=0 // loop_footer_branch
    %9 = sbr.rel target = $region3
  $region8: #{digit_recognizer_forward.3} parent=0 // loop_exit
    _

</llo_original>
